<compile_context>
chip_gen: v6e
topology: v6e:2x2x1
jax: 0.10.0
libtpu: 0.0.40
codegen_flags: <defaults>
</compile_context>

<pallas_src>
import functools

import jax
import jax.numpy as jnp
import numpy as np
from jax.experimental import pallas as pl
from jax.experimental.pallas import tpu as pltpu


# ----------------------------------------------------------------------------
# Pallas kernel: one grid step == Bblk windows.
# ----------------------------------------------------------------------------
def _window_attention_kernel(x_ref, wqkv_ref, bqkv_ref, wproj_ref, bproj_ref,
                             bias_ref, o_ref, ctx_ref, *, num_heads, approx_recip):
    Bblk, N, C = x_ref.shape
    hd = C // num_heads
    cdt = x_ref.dtype                                   # compute dtype (bf16 or f32)

    # Fused QKV projection over all Bblk windows at once: (Bblk*N, C) @ (C, 3C).
    x2 = x_ref[...].reshape(Bblk * N, C)
    qkv = jnp.dot(x2, wqkv_ref[...], preferred_element_type=jnp.float32)
    qkv = qkv + bqkv_ref[...]                           # bias add in f32
    qkv = qkv.reshape(Bblk, N, 3 * C)

    q = qkv[:, :, 0 * C:1 * C].astype(cdt)              # qk scale already folded in
    k = qkv[:, :, 1 * C:2 * C].astype(cdt)
    v = qkv[:, :, 2 * C:3 * C].astype(cdt)

    for h in range(num_heads):                          # static unroll; batched over windows
        sl = slice(h * hd, (h + 1) * hd)
        qh = q[:, :, sl]                                # (Bblk, N, hd)
        kh = k[:, :, sl]
        vh = v[:, :, sl]

        s = jnp.einsum('bnd,bmd->bnm', qh, kh,
                       preferred_element_type=jnp.float32)   # (Bblk, N, N) f32
        s = s + bias_ref[:, h]                          # rel-pos bias (+ shift mask), f32

        # numerically stable softmax in f32
        s = s - jnp.max(s, axis=-1, keepdims=True)
        p = jnp.exp(s)
        denom = jnp.sum(p, axis=-1, keepdims=True)
        if approx_recip:
            p = p * pl.reciprocal(denom, approx=True)   # EUP slot
        else:
            p = p / denom                               # exact for f32 verification path

        ctx_h = jnp.einsum('bnm,bmd->bnd', p.astype(cdt), vh,
                           preferred_element_type=jnp.float32)    # (Bblk, N, hd)
        ctx_ref[:, :, sl] = ctx_h.astype(cdt)           # no concat; scratch accumulates layout

    # Output projection over all Bblk windows at once.
    ctx2 = ctx_ref[...].reshape(Bblk * N, C)
    out = jnp.dot(ctx2, wproj_ref[...], preferred_element_type=jnp.float32)
    out = out + bproj_ref[...]
    o_ref[...] = out.reshape(Bblk, N, C).astype(o_ref.dtype)


# ----------------------------------------------------------------------------
# Relative position index (same recipe as the PyTorch __init__).
# ----------------------------------------------------------------------------
def relative_position_index(window_size):
    Wh, Ww = window_size
    coords = jnp.stack(
        jnp.meshgrid(jnp.arange(Wh), jnp.arange(Ww), indexing="ij"))   # (2, Wh, Ww)
    cf = coords.reshape(2, -1)                                         # (2, N)
    rel = cf[:, :, None] - cf[:, None, :]                              # (2, N, N)
    rel = rel.transpose(1, 2, 0)                                       # (N, N, 2)
    rel = rel.at[:, :, 0].add(Wh - 1)
    rel = rel.at[:, :, 1].add(Ww - 1)
    rel = rel.at[:, :, 0].multiply(2 * Ww - 1)
    return rel.sum(-1)                                                 # (N, N)


def _pick_block_windows(B_, N, nW, max_rows=512):
    """Largest Bblk that divides B_, is a multiple of nW (so the tiled bias pattern
    repeats identically per block), and keeps Bblk*N <= max_rows (fallback: nW)."""
    candidates = [b for b in range(nW, B_ + 1, nW) if B_ % b == 0]
    fitting = [b for b in candidates if b * N <= max_rows]
    return max(fitting) if fitting else min(candidates)


# ----------------------------------------------------------------------------
# Wrapper: builds the resident per-block bias, folds the qk scale into the QKV
# weights, casts MXU operands to bf16, and launches the kernel.
# ----------------------------------------------------------------------------
def window_attention(x, params, window_size, num_heads, mask=None,
                     compute_dtype=jnp.bfloat16, max_block_rows=512):
    B_, N, C = x.shape
    assert N == window_size[0] * window_size[1]
    assert C % num_heads == 0
    hd = C // num_heads
    scale = hd ** -0.5

    # relative position bias -> (H, N, N), f32
    rpi = relative_position_index(window_size).reshape(-1)
    rel_bias = params["rel_table"][rpi].reshape(N, N, num_heads)
    rel_bias = jnp.transpose(rel_bias, (2, 0, 1)).astype(jnp.float32)

    if mask is None:
        nW = 1
        bias_nw = rel_bias[None]                                        # (1, H, N, N)
    else:
        nW = mask.shape[0]
        assert B_ % nW == 0, "B_ must be batch * nW (window-fastest layout)"
        bias_nw = rel_bias[None] + mask[:, None].astype(jnp.float32)    # (nW, H, N, N)

    Bblk = _pick_block_windows(B_, N, nW, max_block_rows)
    # Window j inside a block is global window (block*Bblk + j); since Bblk % nW == 0,
    # its within-image window index is j % nW -> tile the bias to (Bblk, H, N, N).
    bias_tiled = jnp.tile(bias_nw, (Bblk // nW, 1, 1, 1))

    # Fold the qk scale into the Q part of the QKV projection (one-time transform).
    wqkv = params["wqkv"].astype(jnp.float32).at[:, :C].multiply(scale)
    bqkv = params["bqkv"].astype(jnp.float32).at[:C].multiply(scale)

    wqkv_c = wqkv.astype(compute_dtype)                                 # (C, 3C)
    wproj_c = params["wproj"].astype(compute_dtype)                     # (C, C)
    bqkv2 = bqkv.reshape(1, 3 * C)                                      # f32
    bproj2 = params["bproj"].astype(jnp.float32).reshape(1, C)          # f32
    x_c = x.astype(compute_dtype)

    grid = (B_ // Bblk,)

    # Rough VMEM budget: double-buffered x/out blocks + resident weights/bias
    # (also double-buffered by the pipeline) + ctx scratch + f32 intermediates.
    cbytes = jnp.dtype(compute_dtype).itemsize
    est = (2 * Bblk * N * C * (cbytes + x.dtype.itemsize)
           + 2 * (wqkv_c.size * cbytes + wproj_c.size * cbytes
                  + bqkv2.size * 4 + bproj2.size * 4 + bias_tiled.size * 4)
           + Bblk * N * C * cbytes
           + Bblk * N * (3 * C + 2 * N) * 4)
    vmem_limit = int(min(64 * 2 ** 20, max(32 * 2 ** 20, 4 * est)))

    kernel = functools.partial(
        _window_attention_kernel, num_heads=num_heads,
        approx_recip=(jnp.dtype(compute_dtype) != jnp.dtype(jnp.float32)))

    return pl.pallas_call(
        kernel,
        out_shape=jax.ShapeDtypeStruct((B_, N, C), x.dtype),
        grid_spec=pltpu.PrefetchScalarGridSpec(
            num_scalar_prefetch=0,
            grid=grid,
            in_specs=[
                pl.BlockSpec((Bblk, N, C), lambda b: (b, 0, 0)),               # x block
                pl.BlockSpec((C, 3 * C), lambda b: (0, 0)),                    # wqkv (resident)
                pl.BlockSpec((1, 3 * C), lambda b: (0, 0)),                    # bqkv (resident)
                pl.BlockSpec((C, C), lambda b: (0, 0)),                        # wproj (resident)
                pl.BlockSpec((1, C), lambda b: (0, 0)),                        # bproj (resident)
                pl.BlockSpec((Bblk, num_heads, N, N), lambda b: (0, 0, 0, 0)), # bias (resident)
            ],
            out_specs=pl.BlockSpec((Bblk, N, C), lambda b: (b, 0, 0)),
            scratch_shapes=[pltpu.VMEM((Bblk, N, C), compute_dtype)],          # ctx buffer
        ),
        compiler_params=pltpu.CompilerParams(
            dimension_semantics=("parallel",),
            vmem_limit_bytes=vmem_limit),
    )(x_c, wqkv_c, bqkv2, wproj_c, bproj2, bias_tiled)


# ----------------------------------------------------------------------------
# Pure-JAX reference mirroring the PyTorch forward (for correctness check).
# ----------------------------------------------------------------------------
def window_attention_ref(x, params, window_size, num_heads, mask=None):
    B_, N, C = x.shape
    hd = C // num_heads
    scale = hd ** -0.5

    rpi = relative_position_index(window_size).reshape(-1)
    rel_bias = params["rel_table"][rpi].reshape(N, N, num_heads)
    rel_bias = jnp.transpose(rel_bias, (2, 0, 1))          # (H, N, N)

    qkv = x @ params["wqkv"] + params["bqkv"]
    qkv = qkv.reshape(B_, N, 3, num_heads, hd).transpose(2, 0, 3, 1, 4)
    q, k, v = qkv[0], qkv[1], qkv[2]
    q = q * scale
    attn = q @ jnp.swapaxes(k, -2, -1)                     # (B_, H, N, N)
    attn = attn + rel_bias[None]
    if mask is not None:
        nW = mask.shape[0]
        attn = attn.reshape(B_ // nW, nW, num_heads, N, N) + mask[None, :, None]
        attn = attn.reshape(-1, num_heads, N, N)
    attn = jax.nn.softmax(attn, axis=-1)
    out = jnp.swapaxes(attn @ v, 1, 2).reshape(B_, N, C)
    return out @ params["wproj"] + params["bproj"]


if __name__ == "__main__":
    # Small, Swin-like configuration.
    window_size = (4, 4)          # Wh, Ww  -> N = 16
    num_heads = 4
    dim = 32                      # C (head_dim = 8)
    batch = 2
    nW = 4                        # windows per image
    B_ = batch * nW
    N = window_size[0] * window_size[1]

    key = jax.random.PRNGKey(0)
    keys = jax.random.split(key, 7)

    params = {
        "wqkv": 0.05 * jax.random.normal(keys[0], (dim, 3 * dim), jnp.float32),
        "bqkv": 0.01 * jax.random.normal(keys[1], (3 * dim,), jnp.float32),
        "wproj": 0.05 * jax.random.normal(keys[2], (dim, dim), jnp.float32),
        "bproj": 0.01 * jax.random.normal(keys[3], (dim,), jnp.float32),
        "rel_table": 0.02 * jax.random.truncated_normal(
            keys[4], -2.0, 2.0,
            ((2 * window_size[0] - 1) * (2 * window_size[1] - 1), num_heads),
            jnp.float32),
    }

    x = jax.random.normal(keys[5], (B_, N, dim), jnp.float32)

    # Shift-window style 0/-100 mask, shape (nW, N, N).
    mask_bits = jax.random.bernoulli(keys[6], 0.2, (nW, N, N))
    mask = jnp.where(mask_bits, -100.0, 0.0).astype(jnp.float32)

    # --- f32 compute path, no mask (tight tolerance) ---
    out = window_attention(x, params, window_size, num_heads, mask=None,
                           compute_dtype=jnp.float32)
    out = jax.block_until_ready(out)
    ref = window_attention_ref(x, params, window_size, num_heads, mask=None)
    np.testing.assert_allclose(np.asarray(out), np.asarray(ref),
                               rtol=1e-5, atol=1e-5)

    # --- f32 compute path, shifted-window mask (tight tolerance) ---
    out_m = window_attention(x, params, window_size, num_heads, mask=mask,
                             compute_dtype=jnp.float32)
    out_m = jax.block_until_ready(out_m)
    ref_m = window_attention_ref(x, params, window_size, num_heads, mask=mask)
    np.testing.assert_allclose(np.asarray(out_m), np.asarray(ref_m),
                               rtol=1e-5, atol=1e-5)

    # --- bf16 MXU path (production config), shifted-window mask ---
    out_bf = window_attention(x, params, window_size, num_heads, mask=mask,
                              compute_dtype=jnp.bfloat16)
    out_bf = jax.block_until_ready(out_bf)
    np.testing.assert_allclose(np.asarray(out_bf), np.asarray(ref_m),
                               rtol=2e-2, atol=2e-2)

    print("KERNEL_OK")
</pallas_src>

<mosaic_0001>
module attributes {stable_mosaic.version = 11 : i64} {
  func.func @_window_attention_kernel(%arg0: i32, %arg1: memref<8x16x32xf32, #tpu.memory_space<vmem>>, %arg2: memref<32x96xf32, #tpu.memory_space<vmem>>, %arg3: memref<1x96xf32, #tpu.memory_space<vmem>>, %arg4: memref<32x32xf32, #tpu.memory_space<vmem>>, %arg5: memref<1x32xf32, #tpu.memory_space<vmem>>, %arg6: memref<8x4x16x16xf32, #tpu.memory_space<vmem>>, %arg7: memref<8x16x32xf32, #tpu.memory_space<vmem>>, %arg8: memref<8x16x32xf32, #tpu.memory_space<vmem>>) attributes {dimension_semantics = [#tpu.dimension_semantics<parallel>], iteration_bounds = array<i64: 1>, scalar_prefetch = 0 : i64, scratch_operands = 1 : i64, tpu.core_type = #tpu.core_type<tc>, window_params = [{transform_indices = @transform_0, window_bounds = array<i64: 8, 16, 32>}, {pipeline_mode = #tpu.pipeline_mode<synchronous>, transform_indices = @transform_1, window_bounds = array<i64: 32, 96>}, {pipeline_mode = #tpu.pipeline_mode<synchronous>, transform_indices = @transform_2, window_bounds = array<i64: 1, 96>}, {pipeline_mode = #tpu.pipeline_mode<synchronous>, transform_indices = @transform_3, window_bounds = array<i64: 32, 32>}, {pipeline_mode = #tpu.pipeline_mode<synchronous>, transform_indices = @transform_4, window_bounds = array<i64: 1, 32>}, {pipeline_mode = #tpu.pipeline_mode<synchronous>, transform_indices = @transform_5, window_bounds = array<i64: 8, 4, 16, 16>}, {transform_indices = @transform_6, window_bounds = array<i64: 8, 16, 32>}]} {
    %c0 = arith.constant 0 : index
    %c0_0 = arith.constant 0 : index
    %c0_1 = arith.constant 0 : index
    %0 = vector.load %arg1[%c0, %c0_0, %c0_1] : memref<8x16x32xf32, #tpu.memory_space<vmem>>, vector<8x16x32xf32>
    %1 = vector.shape_cast %0 : vector<8x16x32xf32> to vector<128x32xf32>
    %c0_2 = arith.constant 0 : index
    %c0_3 = arith.constant 0 : index
    %2 = vector.load %arg2[%c0_2, %c0_3] : memref<32x96xf32, #tpu.memory_space<vmem>>, vector<32x96xf32>
    %cst = arith.constant dense<0.000000e+00> : vector<128x96xf32>
    %3 = tpu.matmul %1, %2, %cst {dimension_numbers = #tpu.dot_dimension_numbers<[1], [0], [0], [1], [0, 0, 1, 1], [], []>} : vector<128x32xf32>, vector<32x96xf32>, vector<128x96xf32> -> vector<128x96xf32>
    %c0_4 = arith.constant 0 : index
    %c0_5 = arith.constant 0 : index
    %4 = vector.load %arg3[%c0_4, %c0_5] : memref<1x96xf32, #tpu.memory_space<vmem>>, vector<1x96xf32>
    %5 = vector.broadcast %4 : vector<1x96xf32> to vector<128x96xf32>
    %6 = arith.addf %3, %5 : vector<128x96xf32>
    %7 = vector.shape_cast %6 : vector<128x96xf32> to vector<8x16x96xf32>
    %8 = vector.extract_strided_slice %7 {offsets = [0, 0, 0], sizes = [8, 16, 32], strides = [1, 1, 1]} : vector<8x16x96xf32> to vector<8x16x32xf32>
    %9 = vector.extract_strided_slice %7 {offsets = [0, 0, 32], sizes = [8, 16, 32], strides = [1, 1, 1]} : vector<8x16x96xf32> to vector<8x16x32xf32>
    %10 = vector.extract_strided_slice %7 {offsets = [0, 0, 64], sizes = [8, 16, 32], strides = [1, 1, 1]} : vector<8x16x96xf32> to vector<8x16x32xf32>
    %11 = vector.extract_strided_slice %8 {offsets = [0, 0, 0], sizes = [8, 16, 8], strides = [1, 1, 1]} : vector<8x16x32xf32> to vector<8x16x8xf32>
    %12 = vector.extract_strided_slice %9 {offsets = [0, 0, 0], sizes = [8, 16, 8], strides = [1, 1, 1]} : vector<8x16x32xf32> to vector<8x16x8xf32>
    %13 = vector.extract_strided_slice %10 {offsets = [0, 0, 0], sizes = [8, 16, 8], strides = [1, 1, 1]} : vector<8x16x32xf32> to vector<8x16x8xf32>
    "tpu.trace_start"() <{level = 10 : i32, message = "bnd,bmd->bnm"}> : () -> ()
    %cst_6 = arith.constant dense<0.000000e+00> : vector<8x16x16xf32>
    %14 = tpu.matmul %11, %12, %cst_6 {dimension_numbers = #tpu.dot_dimension_numbers<[2], [2], [1], [1], [0, 0, 0, 1, 1, 1], [0], [0]>} : vector<8x16x8xf32>, vector<8x16x8xf32>, vector<8x16x16xf32> -> vector<8x16x16xf32>
    "tpu.trace_stop"() : () -> ()
    %c0_7 = arith.constant 0 : index
    %c0_8 = arith.constant 0 : index
    %c0_9 = arith.constant 0 : index
    %c0_10 = arith.constant 0 : index
    %15 = vector.load %arg6[%c0_7, %c0_8, %c0_9, %c0_10] : memref<8x4x16x16xf32, #tpu.memory_space<vmem>>, vector<8x1x16x16xf32>
    %16 = vector.shape_cast %15 : vector<8x1x16x16xf32> to vector<8x16x16xf32>
    %17 = arith.addf %14, %16 : vector<8x16x16xf32>
    %cst_11 = arith.constant dense<0xFF800000> : vector<8x16xf32>
    %18 = vector.multi_reduction <maximumf>, %17, %cst_11 [2] : vector<8x16x16xf32> to vector<8x16xf32>
    %19 = vector.shape_cast %18 : vector<8x16xf32> to vector<8x16x1xf32>
    %20 = vector.broadcast %19 : vector<8x16x1xf32> to vector<8x16x16xf32>
    %21 = arith.subf %17, %20 : vector<8x16x16xf32>
    %22 = math.exp %21 : vector<8x16x16xf32>
    %cst_12 = arith.constant dense<0.000000e+00> : vector<8x16xf32>
    %23 = vector.multi_reduction <add>, %22, %cst_12 [2] : vector<8x16x16xf32> to vector<8x16xf32>
    %24 = vector.shape_cast %23 : vector<8x16xf32> to vector<8x16x1xf32>
    %25 = vector.broadcast %24 : vector<8x16x1xf32> to vector<8x16x16xf32>
    %26 = arith.divf %22, %25 : vector<8x16x16xf32>
    "tpu.trace_start"() <{level = 10 : i32, message = "bnm,bmd->bnd"}> : () -> ()
    %cst_13 = arith.constant dense<0.000000e+00> : vector<8x16x8xf32>
    %27 = tpu.matmul %26, %13, %cst_13 {dimension_numbers = #tpu.dot_dimension_numbers<[2], [1], [1], [2], [0, 0, 0, 1, 1, 2], [0], [0]>} : vector<8x16x16xf32>, vector<8x16x8xf32>, vector<8x16x8xf32> -> vector<8x16x8xf32>
    "tpu.trace_stop"() : () -> ()
    %c0_14 = arith.constant 0 : index
    %c0_15 = arith.constant 0 : index
    %c0_16 = arith.constant 0 : index
    %28 = vector.load %arg8[%c0_14, %c0_15, %c0_16] : memref<8x16x32xf32, #tpu.memory_space<vmem>>, vector<8x16x8xf32>
    tpu.vector_store %arg8[%c0_14, %c0_15, %c0_16], %27 {strides = array<i32>} : memref<8x16x32xf32, #tpu.memory_space<vmem>>, vector<8x16x8xf32>,
    %29 = vector.extract_strided_slice %8 {offsets = [0, 0, 8], sizes = [8, 16, 8], strides = [1, 1, 1]} : vector<8x16x32xf32> to vector<8x16x8xf32>
    %30 = vector.extract_strided_slice %9 {offsets = [0, 0, 8], sizes = [8, 16, 8], strides = [1, 1, 1]} : vector<8x16x32xf32> to vector<8x16x8xf32>
    %31 = vector.extract_strided_slice %10 {offsets = [0, 0, 8], sizes = [8, 16, 8], strides = [1, 1, 1]} : vector<8x16x32xf32> to vector<8x16x8xf32>
    "tpu.trace_start"() <{level = 10 : i32, message = "bnd,bmd->bnm"}> : () -> ()
    %cst_17 = arith.constant dense<0.000000e+00> : vector<8x16x16xf32>
    %32 = tpu.matmul %29, %30, %cst_17 {dimension_numbers = #tpu.dot_dimension_numbers<[2], [2], [1], [1], [0, 0, 0, 1, 1, 1], [0], [0]>} : vector<8x16x8xf32>, vector<8x16x8xf32>, vector<8x16x16xf32> -> vector<8x16x16xf32>
    "tpu.trace_stop"() : () -> ()
    %c0_18 = arith.constant 0 : index
    %c1 = arith.constant 1 : index
    %c0_19 = arith.constant 0 : index
    %c0_20 = arith.constant 0 : index
    %33 = vector.load %arg6[%c0_18, %c1, %c0_19, %c0_20] : memref<8x4x16x16xf32, #tpu.memory_space<vmem>>, vector<8x1x16x16xf32>
    %34 = vector.shape_cast %33 : vector<8x1x16x16xf32> to vector<8x16x16xf32>
    %35 = arith.addf %32, %34 : vector<8x16x16xf32>
    %cst_21 = arith.constant dense<0xFF800000> : vector<8x16xf32>
    %36 = vector.multi_reduction <maximumf>, %35, %cst_21 [2] : vector<8x16x16xf32> to vector<8x16xf32>
    %37 = vector.shape_cast %36 : vector<8x16xf32> to vector<8x16x1xf32>
    %38 = vector.broadcast %37 : vector<8x16x1xf32> to vector<8x16x16xf32>
    %39 = arith.subf %35, %38 : vector<8x16x16xf32>
    %40 = math.exp %39 : vector<8x16x16xf32>
    %cst_22 = arith.constant dense<0.000000e+00> : vector<8x16xf32>
    %41 = vector.multi_reduction <add>, %40, %cst_22 [2] : vector<8x16x16xf32> to vector<8x16xf32>
    %42 = vector.shape_cast %41 : vector<8x16xf32> to vector<8x16x1xf32>
    %43 = vector.broadcast %42 : vector<8x16x1xf32> to vector<8x16x16xf32>
    %44 = arith.divf %40, %43 : vector<8x16x16xf32>
    "tpu.trace_start"() <{level = 10 : i32, message = "bnm,bmd->bnd"}> : () -> ()
    %cst_23 = arith.constant dense<0.000000e+00> : vector<8x16x8xf32>
    %45 = tpu.matmul %44, %31, %cst_23 {dimension_numbers = #tpu.dot_dimension_numbers<[2], [1], [1], [2], [0, 0, 0, 1, 1, 2], [0], [0]>} : vector<8x16x16xf32>, vector<8x16x8xf32>, vector<8x16x8xf32> -> vector<8x16x8xf32>
    "tpu.trace_stop"() : () -> ()
    %c0_24 = arith.constant 0 : index
    %c0_25 = arith.constant 0 : index
    %c8 = arith.constant 8 : index
    %46 = vector.load %arg8[%c0_24, %c0_25, %c8] : memref<8x16x32xf32, #tpu.memory_space<vmem>>, vector<8x16x8xf32>
    tpu.vector_store %arg8[%c0_24, %c0_25, %c8], %45 {strides = array<i32>} : memref<8x16x32xf32, #tpu.memory_space<vmem>>, vector<8x16x8xf32>,
    %47 = vector.extract_strided_slice %8 {offsets = [0, 0, 16], sizes = [8, 16, 8], strides = [1, 1, 1]} : vector<8x16x32xf32> to vector<8x16x8xf32>
    %48 = vector.extract_strided_slice %9 {offsets = [0, 0, 16], sizes = [8, 16, 8], strides = [1, 1, 1]} : vector<8x16x32xf32> to vector<8x16x8xf32>
    %49 = vector.extract_strided_slice %10 {offsets = [0, 0, 16], sizes = [8, 16, 8], strides = [1, 1, 1]} : vector<8x16x32xf32> to vector<8x16x8xf32>
    "tpu.trace_start"() <{level = 10 : i32, message = "bnd,bmd->bnm"}> : () -> ()
    %cst_26 = arith.constant dense<0.000000e+00> : vector<8x16x16xf32>
    %50 = tpu.matmul %47, %48, %cst_26 {dimension_numbers = #tpu.dot_dimension_numbers<[2], [2], [1], [1], [0, 0, 0, 1, 1, 1], [0], [0]>} : vector<8x16x8xf32>, vector<8x16x8xf32>, vector<8x16x16xf32> -> vector<8x16x16xf32>
    "tpu.trace_stop"() : () -> ()
    %c0_27 = arith.constant 0 : index
    %c2 = arith.constant 2 : index
    %c0_28 = arith.constant 0 : index
    %c0_29 = arith.constant 0 : index
    %51 = vector.load %arg6[%c0_27, %c2, %c0_28, %c0_29] : memref<8x4x16x16xf32, #tpu.memory_space<vmem>>, vector<8x1x16x16xf32>
    %52 = vector.shape_cast %51 : vector<8x1x16x16xf32> to vector<8x16x16xf32>
    %53 = arith.addf %50, %52 : vector<8x16x16xf32>
    %cst_30 = arith.constant dense<0xFF800000> : vector<8x16xf32>
    %54 = vector.multi_reduction <maximumf>, %53, %cst_30 [2] : vector<8x16x16xf32> to vector<8x16xf32>
    %55 = vector.shape_cast %54 : vector<8x16xf32> to vector<8x16x1xf32>
    %56 = vector.broadcast %55 : vector<8x16x1xf32> to vector<8x16x16xf32>
    %57 = arith.subf %53, %56 : vector<8x16x16xf32>
    %58 = math.exp %57 : vector<8x16x16xf32>
    %cst_31 = arith.constant dense<0.000000e+00> : vector<8x16xf32>
    %59 = vector.multi_reduction <add>, %58, %cst_31 [2] : vector<8x16x16xf32> to vector<8x16xf32>
    %60 = vector.shape_cast %59 : vector<8x16xf32> to vector<8x16x1xf32>
    %61 = vector.broadcast %60 : vector<8x16x1xf32> to vector<8x16x16xf32>
    %62 = arith.divf %58, %61 : vector<8x16x16xf32>
    "tpu.trace_start"() <{level = 10 : i32, message = "bnm,bmd->bnd"}> : () -> ()
    %cst_32 = arith.constant dense<0.000000e+00> : vector<8x16x8xf32>
    %63 = tpu.matmul %62, %49, %cst_32 {dimension_numbers = #tpu.dot_dimension_numbers<[2], [1], [1], [2], [0, 0, 0, 1, 1, 2], [0], [0]>} : vector<8x16x16xf32>, vector<8x16x8xf32>, vector<8x16x8xf32> -> vector<8x16x8xf32>
    "tpu.trace_stop"() : () -> ()
    %c0_33 = arith.constant 0 : index
    %c0_34 = arith.constant 0 : index
    %c16 = arith.constant 16 : index
    %64 = vector.load %arg8[%c0_33, %c0_34, %c16] : memref<8x16x32xf32, #tpu.memory_space<vmem>>, vector<8x16x8xf32>
    tpu.vector_store %arg8[%c0_33, %c0_34, %c16], %63 {strides = array<i32>} : memref<8x16x32xf32, #tpu.memory_space<vmem>>, vector<8x16x8xf32>,
    %65 = vector.extract_strided_slice %8 {offsets = [0, 0, 24], sizes = [8, 16, 8], strides = [1, 1, 1]} : vector<8x16x32xf32> to vector<8x16x8xf32>
    %66 = vector.extract_strided_slice %9 {offsets = [0, 0, 24], sizes = [8, 16, 8], strides = [1, 1, 1]} : vector<8x16x32xf32> to vector<8x16x8xf32>
    %67 = vector.extract_strided_slice %10 {offsets = [0, 0, 24], sizes = [8, 16, 8], strides = [1, 1, 1]} : vector<8x16x32xf32> to vector<8x16x8xf32>
    "tpu.trace_start"() <{level = 10 : i32, message = "bnd,bmd->bnm"}> : () -> ()
    %cst_35 = arith.constant dense<0.000000e+00> : vector<8x16x16xf32>
    %68 = tpu.matmul %65, %66, %cst_35 {dimension_numbers = #tpu.dot_dimension_numbers<[2], [2], [1], [1], [0, 0, 0, 1, 1, 1], [0], [0]>} : vector<8x16x8xf32>, vector<8x16x8xf32>, vector<8x16x16xf32> -> vector<8x16x16xf32>
    "tpu.trace_stop"() : () -> ()
    %c0_36 = arith.constant 0 : index
    %c3 = arith.constant 3 : index
    %c0_37 = arith.constant 0 : index
    %c0_38 = arith.constant 0 : index
    %69 = vector.load %arg6[%c0_36, %c3, %c0_37, %c0_38] : memref<8x4x16x16xf32, #tpu.memory_space<vmem>>, vector<8x1x16x16xf32>
    %70 = vector.shape_cast %69 : vector<8x1x16x16xf32> to vector<8x16x16xf32>
    %71 = arith.addf %68, %70 : vector<8x16x16xf32>
    %cst_39 = arith.constant dense<0xFF800000> : vector<8x16xf32>
    %72 = vector.multi_reduction <maximumf>, %71, %cst_39 [2] : vector<8x16x16xf32> to vector<8x16xf32>
    %73 = vector.shape_cast %72 : vector<8x16xf32> to vector<8x16x1xf32>
    %74 = vector.broadcast %73 : vector<8x16x1xf32> to vector<8x16x16xf32>
    %75 = arith.subf %71, %74 : vector<8x16x16xf32>
    %76 = math.exp %75 : vector<8x16x16xf32>
    %cst_40 = arith.constant dense<0.000000e+00> : vector<8x16xf32>
    %77 = vector.multi_reduction <add>, %76, %cst_40 [2] : vector<8x16x16xf32> to vector<8x16xf32>
    %78 = vector.shape_cast %77 : vector<8x16xf32> to vector<8x16x1xf32>
    %79 = vector.broadcast %78 : vector<8x16x1xf32> to vector<8x16x16xf32>
    %80 = arith.divf %76, %79 : vector<8x16x16xf32>
    "tpu.trace_start"() <{level = 10 : i32, message = "bnm,bmd->bnd"}> : () -> ()
    %cst_41 = arith.constant dense<0.000000e+00> : vector<8x16x8xf32>
    %81 = tpu.matmul %80, %67, %cst_41 {dimension_numbers = #tpu.dot_dimension_numbers<[2], [1], [1], [2], [0, 0, 0, 1, 1, 2], [0], [0]>} : vector<8x16x16xf32>, vector<8x16x8xf32>, vector<8x16x8xf32> -> vector<8x16x8xf32>
    "tpu.trace_stop"() : () -> ()
    %c0_42 = arith.constant 0 : index
    %c0_43 = arith.constant 0 : index
    %c24 = arith.constant 24 : index
    %82 = vector.load %arg8[%c0_42, %c0_43, %c24] : memref<8x16x32xf32, #tpu.memory_space<vmem>>, vector<8x16x8xf32>
    tpu.vector_store %arg8[%c0_42, %c0_43, %c24], %81 {strides = array<i32>} : memref<8x16x32xf32, #tpu.memory_space<vmem>>, vector<8x16x8xf32>,
    %c0_44 = arith.constant 0 : index
    %c0_45 = arith.constant 0 : index
    %c0_46 = arith.constant 0 : index
    %83 = vector.load %arg8[%c0_44, %c0_45, %c0_46] : memref<8x16x32xf32, #tpu.memory_space<vmem>>, vector<8x16x32xf32>
    %84 = vector.shape_cast %83 : vector<8x16x32xf32> to vector<128x32xf32>
    %c0_47 = arith.constant 0 : index
    %c0_48 = arith.constant 0 : index
    %85 = vector.load %arg4[%c0_47, %c0_48] : memref<32x32xf32, #tpu.memory_space<vmem>>, vector<32x32xf32>
    %cst_49 = arith.constant dense<0.000000e+00> : vector<128x32xf32>
    %86 = tpu.matmul %84, %85, %cst_49 {dimension_numbers = #tpu.dot_dimension_numbers<[1], [0], [0], [1], [0, 0, 1, 1], [], []>} : vector<128x32xf32>, vector<32x32xf32>, vector<128x32xf32> -> vector<128x32xf32>
    %c0_50 = arith.constant 0 : index
    %c0_51 = arith.constant 0 : index
    %87 = vector.load %arg5[%c0_50, %c0_51] : memref<1x32xf32, #tpu.memory_space<vmem>>, vector<1x32xf32>
    %88 = vector.broadcast %87 : vector<1x32xf32> to vector<128x32xf32>
    %89 = arith.addf %86, %88 : vector<128x32xf32>
    %90 = vector.shape_cast %89 : vector<128x32xf32> to vector<8x16x32xf32>
    %c0_52 = arith.constant 0 : index
    %c0_53 = arith.constant 0 : index
    %c0_54 = arith.constant 0 : index
    %91 = vector.load %arg7[%c0_52, %c0_53, %c0_54] : memref<8x16x32xf32, #tpu.memory_space<vmem>>, vector<8x16x32xf32>
    tpu.vector_store %arg7[%c0_52, %c0_53, %c0_54], %90 {strides = array<i32>} : memref<8x16x32xf32, #tpu.memory_space<vmem>>, vector<8x16x32xf32>,
    return
  }
  func.func @transform_0(%arg0: i32) -> (i32, i32, i32) {
    %c0_i32 = arith.constant 0 : i32
    %c0_i32_0 = arith.constant 0 : i32
    %c0_i32_1 = arith.constant 0 : i32
    return %arg0, %c0_i32, %c0_i32_0 : i32, i32, i32
  }
  func.func @transform_1(%arg0: i32) -> (i32, i32) {
    %c0_i32 = arith.constant 0 : i32
    %c0_i32_0 = arith.constant 0 : i32
    %c0_i32_1 = arith.constant 0 : i32
    return %c0_i32, %c0_i32_0 : i32, i32
  }
  func.func @transform_2(%arg0: i32) -> (i32, i32) {
    %c0_i32 = arith.constant 0 : i32
    %c0_i32_0 = arith.constant 0 : i32
    %c0_i32_1 = arith.constant 0 : i32
    return %c0_i32, %c0_i32_0 : i32, i32
  }
  func.func @transform_3(%arg0: i32) -> (i32, i32) {
    %c0_i32 = arith.constant 0 : i32
    %c0_i32_0 = arith.constant 0 : i32
    %c0_i32_1 = arith.constant 0 : i32
    return %c0_i32, %c0_i32_0 : i32, i32
  }
  func.func @transform_4(%arg0: i32) -> (i32, i32) {
    %c0_i32 = arith.constant 0 : i32
    %c0_i32_0 = arith.constant 0 : i32
    %c0_i32_1 = arith.constant 0 : i32
    return %c0_i32, %c0_i32_0 : i32, i32
  }
  func.func @transform_5(%arg0: i32) -> (i32, i32, i32, i32) {
    %c0_i32 = arith.constant 0 : i32
    %c0_i32_0 = arith.constant 0 : i32
    %c0_i32_1 = arith.constant 0 : i32
    %c0_i32_2 = arith.constant 0 : i32
    %c0_i32_3 = arith.constant 0 : i32
    return %c0_i32, %c0_i32_0, %c0_i32_1, %c0_i32_2 : i32, i32, i32, i32
  }
  func.func @transform_6(%arg0: i32) -> (i32, i32, i32) {
    %c0_i32 = arith.constant 0 : i32
    %c0_i32_0 = arith.constant 0 : i32
    %c0_i32_1 = arith.constant 0 : i32
    return %arg0, %c0_i32, %c0_i32_0 : i32, i32, i32
  }
}

</mosaic_0001>

<llo_original>
// kernel: tpu_custom_call.1
$region0: #{tpu_custom_call.1}
  #allocation0 [shape = 'u32[]', space=smem, size = 0x4, offset = 0x4, fixed_abs, tag = 'smem constant byte address 0x4 - core index']
  #allocation1 [shape = 'u32[144,128]{1,0:T(1,128)}', space=vmem, size = 0x12000, scoped, tag = 'internal scratch']
  #allocation2 [shape = 'f32[8,16,32]{2,1,0:T(8,128)}', space=vmem, size = 0x10000, scoped, tag = 'scratch operand']
  %s0 = inlined_call_operand.hbm [shape: f32[8,16,32], index: 0, kind: input, shape index: {}]
  %s1 = inlined_call_operand.hbm [shape: f32[32,96], index: 1, kind: input, shape index: {}]
  %s2 = inlined_call_operand.vmem [shape: f32[1,96], index: 2, kind: input, shape index: {}]
  %s3 = inlined_call_operand.hbm [shape: f32[32,32], index: 3, kind: input, shape index: {}]
  %s4 = inlined_call_operand.vmem [shape: f32[1,32], index: 4, kind: input, shape index: {}]
  %s5 = inlined_call_operand.hbm [shape: f32[8,4,16,16], index: 5, kind: input, shape index: {}]
  %s6 = inlined_call_operand.hbm [shape: f32[8,16,32], index: 6, kind: output, shape index: {}]
  %s7 = sld [smem:[#allocation0]]
  $region50: #{tpu_custom_call.1} parent=0
    _
  %s9 = ssub.s32 1, %s7
  %s10 = scalar_select 0, %s9, %s7
  $region1: #{tpu_custom_call.1} parent=0
    #allocation3 [shape = 'u8[65536]{0}', space=vmem, size = 0x10000, scoped, tag = 'input window, operand 0, single buffered']
    #allocation4 [shape = 's32[1]{0}', space=sflag, size = 0x4, scoped, tag = 'scoped memory for tpu_custom_call.1']
    #allocation5 [shape = 's32[1]{0}', space=sflag, size = 0x4, scoped, tag = 'scoped memory for tpu_custom_call.1']
    #allocation6 [shape = 'u8[16384]{0}', space=vmem, size = 0x4000, scoped, tag = 'input window, operand 1, single buffered']
    #allocation7 [shape = 's32[1]{0}', space=sflag, size = 0x4, scoped, tag = 'scoped memory for tpu_custom_call.1']
    #allocation8 [shape = 'u8[16384]{0}', space=vmem, size = 0x4000, scoped, tag = 'input window, operand 3, single buffered']
    #allocation9 [shape = 'u8[262144]{0}', space=vmem, size = 0x40000, scoped, tag = 'input window, operand 5, single buffered']
    #allocation10 [shape = 's32[1]{0}', space=sflag, size = 0x4, scoped, tag = 'scoped memory for tpu_custom_call.1']
    #allocation11 [shape = 'u8[65536]{0}', space=vmem, size = 0x10000, scoped, tag = 'output window, operand 0, single buffered']
    %11 = vsyncpa [#allocation4], 0
    %12 = vsyncpa [#allocation7], 0
    %13 = vsyncpa [#allocation10], 0
    %14 = vsyncpa [#allocation5], 0
    // Predicated region
    $region2: #{tpu_custom_call.1} parent=1 // pred_check
      _
    $region3: #{tpu_custom_call.1} parent=1 // pred_check_branch
      %16 = sbr.rel (0) target = $region5
    $region4: #{tpu_custom_call.1} parent=1 // pred_region
      %s18 = ssub.s32 2048, 2048
      %19 = vsyncadd [#allocation4], %s18
      %s20 = sshll.u32 [#allocation3], 4
      %s21 = int_to_ptr.vmem [resolvable:$true] %s20
      %26 = dma.hbm_to_vmem [thread:$0]  %s0, 2048, %s21, [#allocation4], 128, 128, 8
    $region5: #{tpu_custom_call.1} parent=1 // pred_fallthru
      _
    // Predicated region
    $region6: #{tpu_custom_call.1} parent=1 // pred_check
      _
    $region7: #{tpu_custom_call.1} parent=1 // pred_check_branch
      %28 = sbr.rel (0) target = $region9
    $region8: #{tpu_custom_call.1} parent=1 // pred_region
      %s30 = ssub.s32 512, 512
      %31 = vsyncadd [#allocation7], %s30
      %s32 = sshll.u32 [#allocation6], 4
      %s33 = int_to_ptr.vmem [resolvable:$true] %s32
      %38 = dma.hbm_to_vmem [thread:$0]  %s1, 512, %s33, [#allocation7], 128, 128, 8
    $region9: #{tpu_custom_call.1} parent=1 // pred_fallthru
      _
    // Predicated region
    $region10: #{tpu_custom_call.1} parent=1 // pred_check
      _
    $region11: #{tpu_custom_call.1} parent=1 // pred_check_branch
      %40 = sbr.rel (0) target = $region13
    $region12: #{tpu_custom_call.1} parent=1 // pred_region
      _
    $region13: #{tpu_custom_call.1} parent=1 // pred_fallthru
      _
    // Predicated region
    $region14: #{tpu_custom_call.1} parent=1 // pred_check
      _
    $region15: #{tpu_custom_call.1} parent=1 // pred_check_branch
      %42 = sbr.rel (0) target = $region17
    $region16: #{tpu_custom_call.1} parent=1 // pred_region
      %s44 = ssub.s32 512, 512
      %45 = vsyncadd [#allocation7], %s44
      %s46 = sshll.u32 [#allocation8], 4
      %s47 = int_to_ptr.vmem [resolvable:$true] %s46
      %52 = dma.hbm_to_vmem [thread:$0]  %s3, 512, %s47, [#allocation7], 128, 128, 8
    $region17: #{tpu_custom_call.1} parent=1 // pred_fallthru
      _
    // Predicated region
    $region18: #{tpu_custom_call.1} parent=1 // pred_check
      _
    $region19: #{tpu_custom_call.1} parent=1 // pred_check_branch
      %54 = sbr.rel (0) target = $region21
    $region20: #{tpu_custom_call.1} parent=1 // pred_region
      _
    $region21: #{tpu_custom_call.1} parent=1 // pred_fallthru
      _
    // Predicated region
    $region22: #{tpu_custom_call.1} parent=1 // pred_check
      _
    $region23: #{tpu_custom_call.1} parent=1 // pred_check_branch
      %56 = sbr.rel (0) target = $region25
    $region24: #{tpu_custom_call.1} parent=1 // pred_region
      %s58 = ssub.s32 8192, 8192
      %59 = vsyncadd [#allocation10], %s58
      %s60 = sshll.u32 [#allocation9], 4
      %s61 = int_to_ptr.vmem [resolvable:$true] %s60
      %66 = dma.hbm_to_vmem [thread:$0]  %s5, 8192, %s61, [#allocation10], 128, 128, 8
    $region25: #{tpu_custom_call.1} parent=1 // pred_fallthru
      _
    // Predicated region
    $region26: #{tpu_custom_call.1} parent=1 // pred_check
      _
    $region27: #{tpu_custom_call.1} parent=1 // pred_check_branch
      %68 = sbr.rel (0) target = $region29
    $region28: #{tpu_custom_call.1} parent=1 // pred_region
      %69 = dma.done [#allocation4], 2048
    $region29: #{tpu_custom_call.1} parent=1 // pred_fallthru
      _
    // Predicated region
    $region30: #{tpu_custom_call.1} parent=1 // pred_check
      _
    $region31: #{tpu_custom_call.1} parent=1 // pred_check_branch
      %71 = sbr.rel (0) target = $region33
    $region32: #{tpu_custom_call.1} parent=1 // pred_region
      %72 = dma.done [#allocation7], 512
    $region33: #{tpu_custom_call.1} parent=1 // pred_fallthru
      _
    // Predicated region
    $region34: #{tpu_custom_call.1} parent=1 // pred_check
      _
    $region35: #{tpu_custom_call.1} parent=1 // pred_check_branch
      %74 = sbr.rel (0) target = $region37
    $region36: #{tpu_custom_call.1} parent=1 // pred_region
      %75 = dma.done [#allocation7], 512
    $region37: #{tpu_custom_call.1} parent=1 // pred_fallthru
      _
    // Predicated region
    $region38: #{tpu_custom_call.1} parent=1 // pred_check
      _
    $region39: #{tpu_custom_call.1} parent=1 // pred_check_branch
      %77 = sbr.rel (0) target = $region41
    $region40: #{tpu_custom_call.1} parent=1 // pred_region
      %78 = dma.done [#allocation10], 8192
    $region41: #{tpu_custom_call.1} parent=1 // pred_fallthru
      _
    %v79 = vld [vmem:[#allocation3] sm:$0xff]
    %v80 = vld [vmem:[#allocation3 + $0x8] sm:$0xff]
    %v81 = vld [vmem:[#allocation3 + $0x10] sm:$0xff]
    %v82 = vld [vmem:[#allocation3 + $0x18] sm:$0xff]
    %v83 = vld [vmem:[#allocation3 + $0x20] sm:$0xff]
    %v84 = vld [vmem:[#allocation3 + $0x28] sm:$0xff]
    %v85 = vld [vmem:[#allocation3 + $0x30] sm:$0xff]
    %v86 = vld [vmem:[#allocation3 + $0x38] sm:$0xff]
    %v87 = vld [vmem:[#allocation3 + $0x40] sm:$0xff]
    %v88 = vld [vmem:[#allocation3 + $0x48] sm:$0xff]
    %v89 = vld [vmem:[#allocation3 + $0x50] sm:$0xff]
    %v90 = vld [vmem:[#allocation3 + $0x58] sm:$0xff]
    %v91 = vld [vmem:[#allocation3 + $0x60] sm:$0xff]
    %v92 = vld [vmem:[#allocation3 + $0x68] sm:$0xff]
    %v93 = vld [vmem:[#allocation3 + $0x70] sm:$0xff]
    %v94 = vld [vmem:[#allocation3 + $0x78] sm:$0xff]
    %v95 = vld [vmem:[#allocation6] sm:$0xff]
    %v96 = vld [vmem:[#allocation6 + $0x8] sm:$0xff]
    %v97 = vld [vmem:[#allocation6 + $0x10] sm:$0xff]
    %v98 = vld [vmem:[#allocation6 + $0x18] sm:$0xff]
    %v99 = vld [vmem:[%s2] sm:$0x1]
    %v101 = vlaneseq
    %v102 = vshrl.u32 %v101, 7
    %v103 = vsub.s32 0, %v102
    %v104 = vrot.slane %v99, %v103
    %vm106 = vcmask 261120
    %v108 = vsel %vm106, %v79, 0
    %v111 = vsel %vm106, %v80, 0
    %v114 = vsel %vm106, %v81, 0
    %v117 = vsel %vm106, %v82, 0
    %v120 = vsel %vm106, %v83, 0
    %v123 = vsel %vm106, %v84, 0
    %v126 = vsel %vm106, %v85, 0
    %v129 = vsel %vm106, %v86, 0
    %v132 = vsel %vm106, %v87, 0
    %v135 = vsel %vm106, %v88, 0
    %v138 = vsel %vm106, %v89, 0
    %v141 = vsel %vm106, %v90, 0
    %v144 = vsel %vm106, %v91, 0
    %v147 = vsel %vm106, %v92, 0
    %v150 = vsel %vm106, %v93, 0
    %v153 = vsel %vm106, %v94, 0
    %155 = vmatprep.subr.mxu0 0.0
    %156 = vmatpush1.msra.mxu0 0.0
    %157 = vmatprep.subr.mxu0 0.0
    %158 = vmatpush1.msra.mxu0 0.0
    %159 = vmatprep.subr.mxu0 0.0
    %160 = vmatpush1.msra.mxu0 0.0
    %161 = vmatprep.subr.mxu0 0.0
    %162 = vmatpush1.msra.mxu0 0.0
    %163 = vmatprep.subr.mxu0 0.0
    %164 = vmatpush1.msra.mxu0 0.0
    %165 = vmatprep.subr.mxu0 0.0
    %166 = vmatpush1.msra.mxu0 0.0
    %167 = vmatprep.subr.mxu0 0.0
    %168 = vmatpush1.msra.mxu0 0.0
    %169 = vmatprep.subr.mxu0 0.0
    %170 = vmatpush1.msra.mxu0 0.0
    %171 = vmatprep.subr.mxu0 0.0
    %172 = vmatpush1.msra.mxu0 0.0
    %173 = vmatprep.subr.mxu0 0.0
    %174 = vmatpush1.msra.mxu0 0.0
    %175 = vmatprep.subr.mxu0 0.0
    %176 = vmatpush1.msra.mxu0 0.0
    %177 = vmatprep.subr.mxu0 0.0
    %178 = vmatpush1.msra.mxu0 0.0
    %179 = vmatprep.subr.mxu0 0.0
    %180 = vmatpush1.msra.mxu0 %v98
    %181 = vmatprep.subr.mxu0 0.0
    %182 = vmatpush1.msra.mxu0 %v97
    %183 = vmatprep.subr.mxu0 0.0
    %184 = vmatpush1.msra.mxu0 %v96
    %185 = vmatprep.subr.mxu0 0.0
    %186 = vmatpush1.msra.mxu0 %v95
    %187 = vmatprep.subr.mxu0 0.0
    %188 = vmatpush2.msra.mxu0 0.0
    %189 = vmatprep.subr.mxu0 0.0
    %190 = vmatpush2.msra.mxu0 0.0
    %191 = vmatprep.subr.mxu0 0.0
    %192 = vmatpush2.msra.mxu0 0.0
    %193 = vmatprep.subr.mxu0 0.0
    %194 = vmatpush2.msra.mxu0 0.0
    %195 = vmatprep.subr.mxu0 0.0
    %196 = vmatpush2.msra.mxu0 0.0
    %197 = vmatprep.subr.mxu0 0.0
    %198 = vmatpush2.msra.mxu0 0.0
    %199 = vmatprep.subr.mxu0 0.0
    %200 = vmatpush2.msra.mxu0 0.0
    %201 = vmatprep.subr.mxu0 0.0
    %202 = vmatpush2.msra.mxu0 0.0
    %203 = vmatprep.subr.mxu0 0.0
    %204 = vmatpush2.msra.mxu0 0.0
    %205 = vmatprep.subr.mxu0 0.0
    %206 = vmatpush2.msra.mxu0 0.0
    %207 = vmatprep.subr.mxu0 0.0
    %208 = vmatpush2.msra.mxu0 0.0
    %209 = vmatprep.subr.mxu0 0.0
    %210 = vmatpush2.msra.mxu0 0.0
    %211 = vmatprep.subr.mxu0 0.0
    %212 = vmatpush2.msra.mxu0 0.0
    %213 = vmatprep.subr.mxu0 0.0
    %214 = vmatpush2.msra.mxu0 0.0
    %215 = vmatprep.subr.mxu0 0.0
    %216 = vmatpush2.msra.mxu0 0.0
    %217 = vmatprep.subr.mxu0 0.0
    %218 = vmatpush2.msra.mxu0 0.0
    %219 = vmatprep.mubr.f32.mxu0 0.0
    %220 = vmatmul.mubr.f32.gmra.mxu0 %v108
    %v221 = vpop.f32.mrf.mxu0
    %v222 = vadd.f32 %v104, %v221
    %v223 = vpop.f32.mrf.mxu0
    %224 = vmatprep.mubr.f32.mxu0 0.0
    %225 = vmatmul.mubr.f32.gmra.mxu0 %v111
    %v226 = vpop.f32.mrf.mxu0
    %v227 = vadd.f32 %v104, %v226
    %v228 = vpop.f32.mrf.mxu0
    %229 = vmatprep.mubr.f32.mxu0 0.0
    %230 = vmatmul.mubr.f32.gmra.mxu0 %v114
    %v231 = vpop.f32.mrf.mxu0
    %v232 = vadd.f32 %v104, %v231
    %v233 = vpop.f32.mrf.mxu0
    %234 = vmatprep.mubr.f32.mxu0 0.0
    %235 = vmatmul.mubr.f32.gmra.mxu0 %v117
    %v236 = vpop.f32.mrf.mxu0
    %v237 = vadd.f32 %v104, %v236
    %v238 = vpop.f32.mrf.mxu0
    %239 = vmatprep.mubr.f32.mxu0 0.0
    %240 = vmatmul.mubr.f32.gmra.mxu0 %v120
    %v241 = vpop.f32.mrf.mxu0
    %v242 = vadd.f32 %v104, %v241
    %v243 = vpop.f32.mrf.mxu0
    %244 = vmatprep.mubr.f32.mxu0 0.0
    %245 = vmatmul.mubr.f32.gmra.mxu0 %v123
    %v246 = vpop.f32.mrf.mxu0
    %v247 = vadd.f32 %v104, %v246
    %v248 = vpop.f32.mrf.mxu0
    %249 = vmatprep.mubr.f32.mxu0 0.0
    %250 = vmatmul.mubr.f32.gmra.mxu0 %v126
    %v251 = vpop.f32.mrf.mxu0
    %v252 = vadd.f32 %v104, %v251
    %v253 = vpop.f32.mrf.mxu0
    %254 = vmatprep.mubr.f32.mxu0 0.0
    %255 = vmatmul.mubr.f32.gmra.mxu0 %v129
    %v256 = vpop.f32.mrf.mxu0
    %v257 = vadd.f32 %v104, %v256
    %v258 = vpop.f32.mrf.mxu0
    %259 = vmatprep.mubr.f32.mxu0 0.0
    %260 = vmatmul.mubr.f32.gmra.mxu0 %v132
    %v261 = vpop.f32.mrf.mxu0
    %v262 = vadd.f32 %v104, %v261
    %v263 = vpop.f32.mrf.mxu0
    %264 = vmatprep.mubr.f32.mxu0 0.0
    %265 = vmatmul.mubr.f32.gmra.mxu0 %v135
    %v266 = vpop.f32.mrf.mxu0
    %v267 = vadd.f32 %v104, %v266
    %v268 = vpop.f32.mrf.mxu0
    %269 = vmatprep.mubr.f32.mxu0 0.0
    %270 = vmatmul.mubr.f32.gmra.mxu0 %v138
    %v271 = vpop.f32.mrf.mxu0
    %v272 = vadd.f32 %v104, %v271
    %v273 = vpop.f32.mrf.mxu0
    %274 = vmatprep.mubr.f32.mxu0 0.0
    %275 = vmatmul.mubr.f32.gmra.mxu0 %v141
    %v276 = vpop.f32.mrf.mxu0
    %v277 = vadd.f32 %v104, %v276
    %v278 = vpop.f32.mrf.mxu0
    %279 = vmatprep.mubr.f32.mxu0 0.0
    %280 = vmatmul.mubr.f32.gmra.mxu0 %v144
    %v281 = vpop.f32.mrf.mxu0
    %v282 = vadd.f32 %v104, %v281
    %v283 = vpop.f32.mrf.mxu0
    %284 = vmatprep.mubr.f32.mxu0 0.0
    %285 = vmatmul.mubr.f32.gmra.mxu0 %v147
    %v286 = vpop.f32.mrf.mxu0
    %v287 = vadd.f32 %v104, %v286
    %v288 = vpop.f32.mrf.mxu0
    %289 = vmatprep.mubr.f32.mxu0 0.0
    %290 = vmatmul.mubr.f32.gmra.mxu0 %v150
    %v291 = vpop.f32.mrf.mxu0
    %v292 = vadd.f32 %v104, %v291
    %v293 = vpop.f32.mrf.mxu0
    %294 = vmatprep.mubr.f32.mxu0 0.0
    %295 = vmatmul.mubr.f32.gmra.mxu0 %v153
    %v296 = vpop.f32.mrf.mxu0
    %v297 = vadd.f32 %v104, %v296
    %v298 = vpop.f32.mrf.mxu0
    %299 = vdwg.mxu0
    %v300 = vld [vmem:[#allocation9] sm:$0xff]
    %v301 = vld [vmem:[#allocation9 + $0x8] sm:$0xff]
    %v302 = vld [vmem:[#allocation9 + $0x40] sm:$0xff]
    %v303 = vld [vmem:[#allocation9 + $0x48] sm:$0xff]
    %v304 = vld [vmem:[#allocation9 + $0x80] sm:$0xff]
    %v305 = vld [vmem:[#allocation9 + $0x88] sm:$0xff]
    %v306 = vld [vmem:[#allocation9 + $0xc0] sm:$0xff]
    %v307 = vld [vmem:[#allocation9 + $0xc8] sm:$0xff]
    %v308 = vld [vmem:[#allocation9 + $0x100] sm:$0xff]
    %v309 = vld [vmem:[#allocation9 + $0x108] sm:$0xff]
    %v310 = vld [vmem:[#allocation9 + $0x140] sm:$0xff]
    %v311 = vld [vmem:[#allocation9 + $0x148] sm:$0xff]
    %v312 = vld [vmem:[#allocation9 + $0x180] sm:$0xff]
    %v313 = vld [vmem:[#allocation9 + $0x188] sm:$0xff]
    %v314 = vld [vmem:[#allocation9 + $0x1c0] sm:$0xff]
    %v315 = vld [vmem:[#allocation9 + $0x1c8] sm:$0xff]
    %318 = vrot.lane.b32.xlu0 %v222, 96
    %v319 = vpop.permute.xlu0 %318
    %320 = vrot.lane.b32.xlu0 %v227, 96
    %v321 = vpop.permute.xlu0 %320
    %vm322 = vcmask 64512
    %v323 = vsel %vm322, %v222, 0
    %v325 = vsel %vm322, %v227, 0
    %v327 = vsel %vm322, %v319, 0
    %v329 = vsel %vm322, %v321, 0
    %331 = vmatprep.subr.mxu0 0.0
    %332 = vmatpush1.xpose.msra.mxu0 0.0
    %333 = vmatprep.subr.mxu0 0.0
    %334 = vmatpush1.xpose.msra.mxu0 0.0
    %335 = vmatprep.subr.mxu0 0.0
    %336 = vmatpush1.xpose.msra.mxu0 0.0
    %337 = vmatprep.subr.mxu0 0.0
    %338 = vmatpush1.xpose.msra.mxu0 0.0
    %339 = vmatprep.subr.mxu0 0.0
    %340 = vmatpush1.xpose.msra.mxu0 0.0
    %341 = vmatprep.subr.mxu0 0.0
    %342 = vmatpush1.xpose.msra.mxu0 0.0
    %343 = vmatprep.subr.mxu0 0.0
    %344 = vmatpush1.xpose.msra.mxu0 0.0
    %345 = vmatprep.subr.mxu0 0.0
    %346 = vmatpush1.xpose.msra.mxu0 0.0
    %347 = vmatprep.subr.mxu0 0.0
    %348 = vmatpush1.xpose.msra.mxu0 0.0
    %349 = vmatprep.subr.mxu0 0.0
    %350 = vmatpush1.xpose.msra.mxu0 0.0
    %351 = vmatprep.subr.mxu0 0.0
    %352 = vmatpush1.xpose.msra.mxu0 0.0
    %353 = vmatprep.subr.mxu0 0.0
    %354 = vmatpush1.xpose.msra.mxu0 0.0
    %355 = vmatprep.subr.mxu0 0.0
    %356 = vmatpush1.xpose.msra.mxu0 0.0
    %357 = vmatprep.subr.mxu0 0.0
    %358 = vmatpush1.xpose.msra.mxu0 0.0
    %359 = vmatprep.subr.mxu0 0.0
    %360 = vmatpush1.xpose.msra.mxu0 %v329
    %361 = vmatprep.subr.mxu0 0.0
    %362 = vmatpush1.xpose.msra.mxu0 %v327
    %363 = vmatprep.subr.mxu0 0.0
    %364 = vmatpush2.xpose.msra.mxu0 0.0
    %365 = vmatprep.subr.mxu0 0.0
    %366 = vmatpush2.xpose.msra.mxu0 0.0
    %367 = vmatprep.subr.mxu0 0.0
    %368 = vmatpush2.xpose.msra.mxu0 0.0
    %369 = vmatprep.subr.mxu0 0.0
    %370 = vmatpush2.xpose.msra.mxu0 0.0
    %371 = vmatprep.subr.mxu0 0.0
    %372 = vmatpush2.xpose.msra.mxu0 0.0
    %373 = vmatprep.subr.mxu0 0.0
    %374 = vmatpush2.xpose.msra.mxu0 0.0
    %375 = vmatprep.subr.mxu0 0.0
    %376 = vmatpush2.xpose.msra.mxu0 0.0
    %377 = vmatprep.subr.mxu0 0.0
    %378 = vmatpush2.xpose.msra.mxu0 0.0
    %379 = vmatprep.subr.mxu0 0.0
    %380 = vmatpush2.xpose.msra.mxu0 0.0
    %381 = vmatprep.subr.mxu0 0.0
    %382 = vmatpush2.xpose.msra.mxu0 0.0
    %383 = vmatprep.subr.mxu0 0.0
    %384 = vmatpush2.xpose.msra.mxu0 0.0
    %385 = vmatprep.subr.mxu0 0.0
    %386 = vmatpush2.xpose.msra.mxu0 0.0
    %387 = vmatprep.subr.mxu0 0.0
    %388 = vmatpush2.xpose.msra.mxu0 0.0
    %389 = vmatprep.subr.mxu0 0.0
    %390 = vmatpush2.xpose.msra.mxu0 0.0
    %391 = vmatprep.subr.mxu0 0.0
    %392 = vmatpush2.xpose.msra.mxu0 0.0
    %393 = vmatprep.subr.mxu0 0.0
    %394 = vmatpush2.xpose.msra.mxu0 0.0
    %395 = vmatprep.mubr.f32.mxu0 0.0
    %396 = vmatmul.mubr.f32.gmra.mxu0 %v323
    %v397 = vpop.f32.mrf.mxu0
    %v398 = vadd.f32 %v300, %v397
    %v399 = vpop.f32.mrf.mxu0
    %400 = vmatprep.mubr.f32.mxu0 0.0
    %401 = vmatmul.mubr.f32.gmra.mxu0 %v325
    %v402 = vpop.f32.mrf.mxu0
    %v403 = vadd.f32 %v301, %v402
    %v404 = vpop.f32.mrf.mxu0
    %405 = vdwg.mxu0
    %408 = vrot.lane.b32.xlu0 %v232, 96
    %v409 = vpop.permute.xlu0 %408
    %410 = vrot.lane.b32.xlu0 %v237, 96
    %v411 = vpop.permute.xlu0 %410
    %v412 = vsel %vm322, %v232, 0
    %v414 = vsel %vm322, %v237, 0
    %v416 = vsel %vm322, %v409, 0
    %v418 = vsel %vm322, %v411, 0
    %420 = vmatprep.subr.mxu0 0.0
    %421 = vmatpush1.xpose.msra.mxu0 0.0
    %422 = vmatprep.subr.mxu0 0.0
    %423 = vmatpush1.xpose.msra.mxu0 0.0
    %424 = vmatprep.subr.mxu0 0.0
    %425 = vmatpush1.xpose.msra.mxu0 0.0
    %426 = vmatprep.subr.mxu0 0.0
    %427 = vmatpush1.xpose.msra.mxu0 0.0
    %428 = vmatprep.subr.mxu0 0.0
    %429 = vmatpush1.xpose.msra.mxu0 0.0
    %430 = vmatprep.subr.mxu0 0.0
    %431 = vmatpush1.xpose.msra.mxu0 0.0
    %432 = vmatprep.subr.mxu0 0.0
    %433 = vmatpush1.xpose.msra.mxu0 0.0
    %434 = vmatprep.subr.mxu0 0.0
    %435 = vmatpush1.xpose.msra.mxu0 0.0
    %436 = vmatprep.subr.mxu0 0.0
    %437 = vmatpush1.xpose.msra.mxu0 0.0
    %438 = vmatprep.subr.mxu0 0.0
    %439 = vmatpush1.xpose.msra.mxu0 0.0
    %440 = vmatprep.subr.mxu0 0.0
    %441 = vmatpush1.xpose.msra.mxu0 0.0
    %442 = vmatprep.subr.mxu0 0.0
    %443 = vmatpush1.xpose.msra.mxu0 0.0
    %444 = vmatprep.subr.mxu0 0.0
    %445 = vmatpush1.xpose.msra.mxu0 0.0
    %446 = vmatprep.subr.mxu0 0.0
    %447 = vmatpush1.xpose.msra.mxu0 0.0
    %448 = vmatprep.subr.mxu0 0.0
    %449 = vmatpush1.xpose.msra.mxu0 %v418
    %450 = vmatprep.subr.mxu0 0.0
    %451 = vmatpush1.xpose.msra.mxu0 %v416
    %452 = vmatprep.subr.mxu0 0.0
    %453 = vmatpush2.xpose.msra.mxu0 0.0
    %454 = vmatprep.subr.mxu0 0.0
    %455 = vmatpush2.xpose.msra.mxu0 0.0
    %456 = vmatprep.subr.mxu0 0.0
    %457 = vmatpush2.xpose.msra.mxu0 0.0
    %458 = vmatprep.subr.mxu0 0.0
    %459 = vmatpush2.xpose.msra.mxu0 0.0
    %460 = vmatprep.subr.mxu0 0.0
    %461 = vmatpush2.xpose.msra.mxu0 0.0
    %462 = vmatprep.subr.mxu0 0.0
    %463 = vmatpush2.xpose.msra.mxu0 0.0
    %464 = vmatprep.subr.mxu0 0.0
    %465 = vmatpush2.xpose.msra.mxu0 0.0
    %466 = vmatprep.subr.mxu0 0.0
    %467 = vmatpush2.xpose.msra.mxu0 0.0
    %468 = vmatprep.subr.mxu0 0.0
    %469 = vmatpush2.xpose.msra.mxu0 0.0
    %470 = vmatprep.subr.mxu0 0.0
    %471 = vmatpush2.xpose.msra.mxu0 0.0
    %472 = vmatprep.subr.mxu0 0.0
    %473 = vmatpush2.xpose.msra.mxu0 0.0
    %474 = vmatprep.subr.mxu0 0.0
    %475 = vmatpush2.xpose.msra.mxu0 0.0
    %476 = vmatprep.subr.mxu0 0.0
    %477 = vmatpush2.xpose.msra.mxu0 0.0
    %478 = vmatprep.subr.mxu0 0.0
    %479 = vmatpush2.xpose.msra.mxu0 0.0
    %480 = vmatprep.subr.mxu0 0.0
    %481 = vmatpush2.xpose.msra.mxu0 0.0
    %482 = vmatprep.subr.mxu0 0.0
    %483 = vmatpush2.xpose.msra.mxu0 0.0
    %484 = vmatprep.mubr.f32.mxu0 0.0
    %485 = vmatmul.mubr.f32.gmra.mxu0 %v412
    %v486 = vpop.f32.mrf.mxu0
    %v487 = vadd.f32 %v302, %v486
    %v488 = vpop.f32.mrf.mxu0
    %489 = vmatprep.mubr.f32.mxu0 0.0
    %490 = vmatmul.mubr.f32.gmra.mxu0 %v414
    %v491 = vpop.f32.mrf.mxu0
    %v492 = vadd.f32 %v303, %v491
    %v493 = vpop.f32.mrf.mxu0
    %494 = vdwg.mxu0
    %497 = vrot.lane.b32.xlu0 %v242, 96
    %v498 = vpop.permute.xlu0 %497
    %499 = vrot.lane.b32.xlu0 %v247, 96
    %v500 = vpop.permute.xlu0 %499
    %v501 = vsel %vm322, %v242, 0
    %v503 = vsel %vm322, %v247, 0
    %v505 = vsel %vm322, %v498, 0
    %v507 = vsel %vm322, %v500, 0
    %509 = vmatprep.subr.mxu0 0.0
    %510 = vmatpush1.xpose.msra.mxu0 0.0
    %511 = vmatprep.subr.mxu0 0.0
    %512 = vmatpush1.xpose.msra.mxu0 0.0
    %513 = vmatprep.subr.mxu0 0.0
    %514 = vmatpush1.xpose.msra.mxu0 0.0
    %515 = vmatprep.subr.mxu0 0.0
    %516 = vmatpush1.xpose.msra.mxu0 0.0
    %517 = vmatprep.subr.mxu0 0.0
    %518 = vmatpush1.xpose.msra.mxu0 0.0
    %519 = vmatprep.subr.mxu0 0.0
    %520 = vmatpush1.xpose.msra.mxu0 0.0
    %521 = vmatprep.subr.mxu0 0.0
    %522 = vmatpush1.xpose.msra.mxu0 0.0
    %523 = vmatprep.subr.mxu0 0.0
    %524 = vmatpush1.xpose.msra.mxu0 0.0
    %525 = vmatprep.subr.mxu0 0.0
    %526 = vmatpush1.xpose.msra.mxu0 0.0
    %527 = vmatprep.subr.mxu0 0.0
    %528 = vmatpush1.xpose.msra.mxu0 0.0
    %529 = vmatprep.subr.mxu0 0.0
    %530 = vmatpush1.xpose.msra.mxu0 0.0
    %531 = vmatprep.subr.mxu0 0.0
    %532 = vmatpush1.xpose.msra.mxu0 0.0
    %533 = vmatprep.subr.mxu0 0.0
    %534 = vmatpush1.xpose.msra.mxu0 0.0
    %535 = vmatprep.subr.mxu0 0.0
    %536 = vmatpush1.xpose.msra.mxu0 0.0
    %537 = vmatprep.subr.mxu0 0.0
    %538 = vmatpush1.xpose.msra.mxu0 %v507
    %539 = vmatprep.subr.mxu0 0.0
    %540 = vmatpush1.xpose.msra.mxu0 %v505
    %541 = vmatprep.subr.mxu0 0.0
    %542 = vmatpush2.xpose.msra.mxu0 0.0
    %543 = vmatprep.subr.mxu0 0.0
    %544 = vmatpush2.xpose.msra.mxu0 0.0
    %545 = vmatprep.subr.mxu0 0.0
    %546 = vmatpush2.xpose.msra.mxu0 0.0
    %547 = vmatprep.subr.mxu0 0.0
    %548 = vmatpush2.xpose.msra.mxu0 0.0
    %549 = vmatprep.subr.mxu0 0.0
    %550 = vmatpush2.xpose.msra.mxu0 0.0
    %551 = vmatprep.subr.mxu0 0.0
    %552 = vmatpush2.xpose.msra.mxu0 0.0
    %553 = vmatprep.subr.mxu0 0.0
    %554 = vmatpush2.xpose.msra.mxu0 0.0
    %555 = vmatprep.subr.mxu0 0.0
    %556 = vmatpush2.xpose.msra.mxu0 0.0
    %557 = vmatprep.subr.mxu0 0.0
    %558 = vmatpush2.xpose.msra.mxu0 0.0
    %559 = vmatprep.subr.mxu0 0.0
    %560 = vmatpush2.xpose.msra.mxu0 0.0
    %561 = vmatprep.subr.mxu0 0.0
    %562 = vmatpush2.xpose.msra.mxu0 0.0
    %563 = vmatprep.subr.mxu0 0.0
    %564 = vmatpush2.xpose.msra.mxu0 0.0
    %565 = vmatprep.subr.mxu0 0.0
    %566 = vmatpush2.xpose.msra.mxu0 0.0
    %567 = vmatprep.subr.mxu0 0.0
    %568 = vmatpush2.xpose.msra.mxu0 0.0
    %569 = vmatprep.subr.mxu0 0.0
    %570 = vmatpush2.xpose.msra.mxu0 0.0
    %571 = vmatprep.subr.mxu0 0.0
    %572 = vmatpush2.xpose.msra.mxu0 0.0
    %573 = vmatprep.mubr.f32.mxu0 0.0
    %574 = vmatmul.mubr.f32.gmra.mxu0 %v501
    %v575 = vpop.f32.mrf.mxu0
    %v576 = vadd.f32 %v304, %v575
    %v577 = vpop.f32.mrf.mxu0
    %578 = vmatprep.mubr.f32.mxu0 0.0
    %579 = vmatmul.mubr.f32.gmra.mxu0 %v503
    %v580 = vpop.f32.mrf.mxu0
    %v581 = vadd.f32 %v305, %v580
    %v582 = vpop.f32.mrf.mxu0
    %583 = vdwg.mxu0
    %586 = vrot.lane.b32.xlu0 %v252, 96
    %v587 = vpop.permute.xlu0 %586
    %588 = vrot.lane.b32.xlu0 %v257, 96
    %v589 = vpop.permute.xlu0 %588
    %v590 = vsel %vm322, %v252, 0
    %v592 = vsel %vm322, %v257, 0
    %v594 = vsel %vm322, %v587, 0
    %v596 = vsel %vm322, %v589, 0
    %598 = vmatprep.subr.mxu0 0.0
    %599 = vmatpush1.xpose.msra.mxu0 0.0
    %600 = vmatprep.subr.mxu0 0.0
    %601 = vmatpush1.xpose.msra.mxu0 0.0
    %602 = vmatprep.subr.mxu0 0.0
    %603 = vmatpush1.xpose.msra.mxu0 0.0
    %604 = vmatprep.subr.mxu0 0.0
    %605 = vmatpush1.xpose.msra.mxu0 0.0
    %606 = vmatprep.subr.mxu0 0.0
    %607 = vmatpush1.xpose.msra.mxu0 0.0
    %608 = vmatprep.subr.mxu0 0.0
    %609 = vmatpush1.xpose.msra.mxu0 0.0
    %610 = vmatprep.subr.mxu0 0.0
    %611 = vmatpush1.xpose.msra.mxu0 0.0
    %612 = vmatprep.subr.mxu0 0.0
    %613 = vmatpush1.xpose.msra.mxu0 0.0
    %614 = vmatprep.subr.mxu0 0.0
    %615 = vmatpush1.xpose.msra.mxu0 0.0
    %616 = vmatprep.subr.mxu0 0.0
    %617 = vmatpush1.xpose.msra.mxu0 0.0
    %618 = vmatprep.subr.mxu0 0.0
    %619 = vmatpush1.xpose.msra.mxu0 0.0
    %620 = vmatprep.subr.mxu0 0.0
    %621 = vmatpush1.xpose.msra.mxu0 0.0
    %622 = vmatprep.subr.mxu0 0.0
    %623 = vmatpush1.xpose.msra.mxu0 0.0
    %624 = vmatprep.subr.mxu0 0.0
    %625 = vmatpush1.xpose.msra.mxu0 0.0
    %626 = vmatprep.subr.mxu0 0.0
    %627 = vmatpush1.xpose.msra.mxu0 %v596
    %628 = vmatprep.subr.mxu0 0.0
    %629 = vmatpush1.xpose.msra.mxu0 %v594
    %630 = vmatprep.subr.mxu0 0.0
    %631 = vmatpush2.xpose.msra.mxu0 0.0
    %632 = vmatprep.subr.mxu0 0.0
    %633 = vmatpush2.xpose.msra.mxu0 0.0
    %634 = vmatprep.subr.mxu0 0.0
    %635 = vmatpush2.xpose.msra.mxu0 0.0
    %636 = vmatprep.subr.mxu0 0.0
    %637 = vmatpush2.xpose.msra.mxu0 0.0
    %638 = vmatprep.subr.mxu0 0.0
    %639 = vmatpush2.xpose.msra.mxu0 0.0
    %640 = vmatprep.subr.mxu0 0.0
    %641 = vmatpush2.xpose.msra.mxu0 0.0
    %642 = vmatprep.subr.mxu0 0.0
    %643 = vmatpush2.xpose.msra.mxu0 0.0
    %644 = vmatprep.subr.mxu0 0.0
    %645 = vmatpush2.xpose.msra.mxu0 0.0
    %646 = vmatprep.subr.mxu0 0.0
    %647 = vmatpush2.xpose.msra.mxu0 0.0
    %648 = vmatprep.subr.mxu0 0.0
    %649 = vmatpush2.xpose.msra.mxu0 0.0
    %650 = vmatprep.subr.mxu0 0.0
    %651 = vmatpush2.xpose.msra.mxu0 0.0
    %652 = vmatprep.subr.mxu0 0.0
    %653 = vmatpush2.xpose.msra.mxu0 0.0
    %654 = vmatprep.subr.mxu0 0.0
    %655 = vmatpush2.xpose.msra.mxu0 0.0
    %656 = vmatprep.subr.mxu0 0.0
    %657 = vmatpush2.xpose.msra.mxu0 0.0
    %658 = vmatprep.subr.mxu0 0.0
    %659 = vmatpush2.xpose.msra.mxu0 0.0
    %660 = vmatprep.subr.mxu0 0.0
    %661 = vmatpush2.xpose.msra.mxu0 0.0
    %662 = vmatprep.mubr.f32.mxu0 0.0
    %663 = vmatmul.mubr.f32.gmra.mxu0 %v590
    %v664 = vpop.f32.mrf.mxu0
    %v665 = vadd.f32 %v306, %v664
    %v666 = vpop.f32.mrf.mxu0
    %667 = vmatprep.mubr.f32.mxu0 0.0
    %668 = vmatmul.mubr.f32.gmra.mxu0 %v592
    %v669 = vpop.f32.mrf.mxu0
    %v670 = vadd.f32 %v307, %v669
    %v671 = vpop.f32.mrf.mxu0
    %672 = vdwg.mxu0
    %675 = vrot.lane.b32.xlu0 %v262, 96
    %v676 = vpop.permute.xlu0 %675
    %677 = vrot.lane.b32.xlu0 %v267, 96
    %v678 = vpop.permute.xlu0 %677
    %v679 = vsel %vm322, %v262, 0
    %v681 = vsel %vm322, %v267, 0
    %v683 = vsel %vm322, %v676, 0
    %v685 = vsel %vm322, %v678, 0
    %687 = vmatprep.subr.mxu0 0.0
    %688 = vmatpush1.xpose.msra.mxu0 0.0
    %689 = vmatprep.subr.mxu0 0.0
    %690 = vmatpush1.xpose.msra.mxu0 0.0
    %691 = vmatprep.subr.mxu0 0.0
    %692 = vmatpush1.xpose.msra.mxu0 0.0
    %693 = vmatprep.subr.mxu0 0.0
    %694 = vmatpush1.xpose.msra.mxu0 0.0
    %695 = vmatprep.subr.mxu0 0.0
    %696 = vmatpush1.xpose.msra.mxu0 0.0
    %697 = vmatprep.subr.mxu0 0.0
    %698 = vmatpush1.xpose.msra.mxu0 0.0
    %699 = vmatprep.subr.mxu0 0.0
    %700 = vmatpush1.xpose.msra.mxu0 0.0
    %701 = vmatprep.subr.mxu0 0.0
    %702 = vmatpush1.xpose.msra.mxu0 0.0
    %703 = vmatprep.subr.mxu0 0.0
    %704 = vmatpush1.xpose.msra.mxu0 0.0
    %705 = vmatprep.subr.mxu0 0.0
    %706 = vmatpush1.xpose.msra.mxu0 0.0
    %707 = vmatprep.subr.mxu0 0.0
    %708 = vmatpush1.xpose.msra.mxu0 0.0
    %709 = vmatprep.subr.mxu0 0.0
    %710 = vmatpush1.xpose.msra.mxu0 0.0
    %711 = vmatprep.subr.mxu0 0.0
    %712 = vmatpush1.xpose.msra.mxu0 0.0
    %713 = vmatprep.subr.mxu0 0.0
    %714 = vmatpush1.xpose.msra.mxu0 0.0
    %715 = vmatprep.subr.mxu0 0.0
    %716 = vmatpush1.xpose.msra.mxu0 %v685
    %717 = vmatprep.subr.mxu0 0.0
    %718 = vmatpush1.xpose.msra.mxu0 %v683
    %719 = vmatprep.subr.mxu0 0.0
    %720 = vmatpush2.xpose.msra.mxu0 0.0
    %721 = vmatprep.subr.mxu0 0.0
    %722 = vmatpush2.xpose.msra.mxu0 0.0
    %723 = vmatprep.subr.mxu0 0.0
    %724 = vmatpush2.xpose.msra.mxu0 0.0
    %725 = vmatprep.subr.mxu0 0.0
    %726 = vmatpush2.xpose.msra.mxu0 0.0
    %727 = vmatprep.subr.mxu0 0.0
    %728 = vmatpush2.xpose.msra.mxu0 0.0
    %729 = vmatprep.subr.mxu0 0.0
    %730 = vmatpush2.xpose.msra.mxu0 0.0
    %731 = vmatprep.subr.mxu0 0.0
    %732 = vmatpush2.xpose.msra.mxu0 0.0
    %733 = vmatprep.subr.mxu0 0.0
    %734 = vmatpush2.xpose.msra.mxu0 0.0
    %735 = vmatprep.subr.mxu0 0.0
    %736 = vmatpush2.xpose.msra.mxu0 0.0
    %737 = vmatprep.subr.mxu0 0.0
    %738 = vmatpush2.xpose.msra.mxu0 0.0
    %739 = vmatprep.subr.mxu0 0.0
    %740 = vmatpush2.xpose.msra.mxu0 0.0
    %741 = vmatprep.subr.mxu0 0.0
    %742 = vmatpush2.xpose.msra.mxu0 0.0
    %743 = vmatprep.subr.mxu0 0.0
    %744 = vmatpush2.xpose.msra.mxu0 0.0
    %745 = vmatprep.subr.mxu0 0.0
    %746 = vmatpush2.xpose.msra.mxu0 0.0
    %747 = vmatprep.subr.mxu0 0.0
    %748 = vmatpush2.xpose.msra.mxu0 0.0
    %749 = vmatprep.subr.mxu0 0.0
    %750 = vmatpush2.xpose.msra.mxu0 0.0
    %751 = vmatprep.mubr.f32.mxu0 0.0
    %752 = vmatmul.mubr.f32.gmra.mxu0 %v679
    %v753 = vpop.f32.mrf.mxu0
    %v754 = vadd.f32 %v308, %v753
    %v755 = vpop.f32.mrf.mxu0
    %756 = vmatprep.mubr.f32.mxu0 0.0
    %757 = vmatmul.mubr.f32.gmra.mxu0 %v681
    %v758 = vpop.f32.mrf.mxu0
    %v759 = vadd.f32 %v309, %v758
    %v760 = vpop.f32.mrf.mxu0
    %761 = vdwg.mxu0
    %764 = vrot.lane.b32.xlu0 %v272, 96
    %v765 = vpop.permute.xlu0 %764
    %766 = vrot.lane.b32.xlu0 %v277, 96
    %v767 = vpop.permute.xlu0 %766
    %v768 = vsel %vm322, %v272, 0
    %v770 = vsel %vm322, %v277, 0
    %v772 = vsel %vm322, %v765, 0
    %v774 = vsel %vm322, %v767, 0
    %776 = vmatprep.subr.mxu0 0.0
    %777 = vmatpush1.xpose.msra.mxu0 0.0
    %778 = vmatprep.subr.mxu0 0.0
    %779 = vmatpush1.xpose.msra.mxu0 0.0
    %780 = vmatprep.subr.mxu0 0.0
    %781 = vmatpush1.xpose.msra.mxu0 0.0
    %782 = vmatprep.subr.mxu0 0.0
    %783 = vmatpush1.xpose.msra.mxu0 0.0
    %784 = vmatprep.subr.mxu0 0.0
    %785 = vmatpush1.xpose.msra.mxu0 0.0
    %786 = vmatprep.subr.mxu0 0.0
    %787 = vmatpush1.xpose.msra.mxu0 0.0
    %788 = vmatprep.subr.mxu0 0.0
    %789 = vmatpush1.xpose.msra.mxu0 0.0
    %790 = vmatprep.subr.mxu0 0.0
    %791 = vmatpush1.xpose.msra.mxu0 0.0
    %792 = vmatprep.subr.mxu0 0.0
    %793 = vmatpush1.xpose.msra.mxu0 0.0
    %794 = vmatprep.subr.mxu0 0.0
    %795 = vmatpush1.xpose.msra.mxu0 0.0
    %796 = vmatprep.subr.mxu0 0.0
    %797 = vmatpush1.xpose.msra.mxu0 0.0
    %798 = vmatprep.subr.mxu0 0.0
    %799 = vmatpush1.xpose.msra.mxu0 0.0
    %800 = vmatprep.subr.mxu0 0.0
    %801 = vmatpush1.xpose.msra.mxu0 0.0
    %802 = vmatprep.subr.mxu0 0.0
    %803 = vmatpush1.xpose.msra.mxu0 0.0
    %804 = vmatprep.subr.mxu0 0.0
    %805 = vmatpush1.xpose.msra.mxu0 %v774
    %806 = vmatprep.subr.mxu0 0.0
    %807 = vmatpush1.xpose.msra.mxu0 %v772
    %808 = vmatprep.subr.mxu0 0.0
    %809 = vmatpush2.xpose.msra.mxu0 0.0
    %810 = vmatprep.subr.mxu0 0.0
    %811 = vmatpush2.xpose.msra.mxu0 0.0
    %812 = vmatprep.subr.mxu0 0.0
    %813 = vmatpush2.xpose.msra.mxu0 0.0
    %814 = vmatprep.subr.mxu0 0.0
    %815 = vmatpush2.xpose.msra.mxu0 0.0
    %816 = vmatprep.subr.mxu0 0.0
    %817 = vmatpush2.xpose.msra.mxu0 0.0
    %818 = vmatprep.subr.mxu0 0.0
    %819 = vmatpush2.xpose.msra.mxu0 0.0
    %820 = vmatprep.subr.mxu0 0.0
    %821 = vmatpush2.xpose.msra.mxu0 0.0
    %822 = vmatprep.subr.mxu0 0.0
    %823 = vmatpush2.xpose.msra.mxu0 0.0
    %824 = vmatprep.subr.mxu0 0.0
    %825 = vmatpush2.xpose.msra.mxu0 0.0
    %826 = vmatprep.subr.mxu0 0.0
    %827 = vmatpush2.xpose.msra.mxu0 0.0
    %828 = vmatprep.subr.mxu0 0.0
    %829 = vmatpush2.xpose.msra.mxu0 0.0
    %830 = vmatprep.subr.mxu0 0.0
    %831 = vmatpush2.xpose.msra.mxu0 0.0
    %832 = vmatprep.subr.mxu0 0.0
    %833 = vmatpush2.xpose.msra.mxu0 0.0
    %834 = vmatprep.subr.mxu0 0.0
    %835 = vmatpush2.xpose.msra.mxu0 0.0
    %836 = vmatprep.subr.mxu0 0.0
    %837 = vmatpush2.xpose.msra.mxu0 0.0
    %838 = vmatprep.subr.mxu0 0.0
    %839 = vmatpush2.xpose.msra.mxu0 0.0
    %840 = vmatprep.mubr.f32.mxu0 0.0
    %841 = vmatmul.mubr.f32.gmra.mxu0 %v768
    %v842 = vpop.f32.mrf.mxu0
    %v843 = vadd.f32 %v310, %v842
    %v844 = vpop.f32.mrf.mxu0
    %845 = vmatprep.mubr.f32.mxu0 0.0
    %846 = vmatmul.mubr.f32.gmra.mxu0 %v770
    %v847 = vpop.f32.mrf.mxu0
    %v848 = vadd.f32 %v311, %v847
    %v849 = vpop.f32.mrf.mxu0
    %850 = vdwg.mxu0
    %853 = vrot.lane.b32.xlu0 %v282, 96
    %v854 = vpop.permute.xlu0 %853
    %855 = vrot.lane.b32.xlu0 %v287, 96
    %v856 = vpop.permute.xlu0 %855
    %v857 = vsel %vm322, %v282, 0
    %v859 = vsel %vm322, %v287, 0
    %v861 = vsel %vm322, %v854, 0
    %v863 = vsel %vm322, %v856, 0
    %865 = vmatprep.subr.mxu0 0.0
    %866 = vmatpush1.xpose.msra.mxu0 0.0
    %867 = vmatprep.subr.mxu0 0.0
    %868 = vmatpush1.xpose.msra.mxu0 0.0
    %869 = vmatprep.subr.mxu0 0.0
    %870 = vmatpush1.xpose.msra.mxu0 0.0
    %871 = vmatprep.subr.mxu0 0.0
    %872 = vmatpush1.xpose.msra.mxu0 0.0
    %873 = vmatprep.subr.mxu0 0.0
    %874 = vmatpush1.xpose.msra.mxu0 0.0
    %875 = vmatprep.subr.mxu0 0.0
    %876 = vmatpush1.xpose.msra.mxu0 0.0
    %877 = vmatprep.subr.mxu0 0.0
    %878 = vmatpush1.xpose.msra.mxu0 0.0
    %879 = vmatprep.subr.mxu0 0.0
    %880 = vmatpush1.xpose.msra.mxu0 0.0
    %881 = vmatprep.subr.mxu0 0.0
    %882 = vmatpush1.xpose.msra.mxu0 0.0
    %883 = vmatprep.subr.mxu0 0.0
    %884 = vmatpush1.xpose.msra.mxu0 0.0
    %885 = vmatprep.subr.mxu0 0.0
    %886 = vmatpush1.xpose.msra.mxu0 0.0
    %887 = vmatprep.subr.mxu0 0.0
    %888 = vmatpush1.xpose.msra.mxu0 0.0
    %889 = vmatprep.subr.mxu0 0.0
    %890 = vmatpush1.xpose.msra.mxu0 0.0
    %891 = vmatprep.subr.mxu0 0.0
    %892 = vmatpush1.xpose.msra.mxu0 0.0
    %893 = vmatprep.subr.mxu0 0.0
    %894 = vmatpush1.xpose.msra.mxu0 %v863
    %895 = vmatprep.subr.mxu0 0.0
    %896 = vmatpush1.xpose.msra.mxu0 %v861
    %897 = vmatprep.subr.mxu0 0.0
    %898 = vmatpush2.xpose.msra.mxu0 0.0
    %899 = vmatprep.subr.mxu0 0.0
    %900 = vmatpush2.xpose.msra.mxu0 0.0
    %901 = vmatprep.subr.mxu0 0.0
    %902 = vmatpush2.xpose.msra.mxu0 0.0
    %903 = vmatprep.subr.mxu0 0.0
    %904 = vmatpush2.xpose.msra.mxu0 0.0
    %905 = vmatprep.subr.mxu0 0.0
    %906 = vmatpush2.xpose.msra.mxu0 0.0
    %907 = vmatprep.subr.mxu0 0.0
    %908 = vmatpush2.xpose.msra.mxu0 0.0
    %909 = vmatprep.subr.mxu0 0.0
    %910 = vmatpush2.xpose.msra.mxu0 0.0
    %911 = vmatprep.subr.mxu0 0.0
    %912 = vmatpush2.xpose.msra.mxu0 0.0
    %913 = vmatprep.subr.mxu0 0.0
    %914 = vmatpush2.xpose.msra.mxu0 0.0
    %915 = vmatprep.subr.mxu0 0.0
    %916 = vmatpush2.xpose.msra.mxu0 0.0
    %917 = vmatprep.subr.mxu0 0.0
    %918 = vmatpush2.xpose.msra.mxu0 0.0
    %919 = vmatprep.subr.mxu0 0.0
    %920 = vmatpush2.xpose.msra.mxu0 0.0
    %921 = vmatprep.subr.mxu0 0.0
    %922 = vmatpush2.xpose.msra.mxu0 0.0
    %923 = vmatprep.subr.mxu0 0.0
    %924 = vmatpush2.xpose.msra.mxu0 0.0
    %925 = vmatprep.subr.mxu0 0.0
    %926 = vmatpush2.xpose.msra.mxu0 0.0
    %927 = vmatprep.subr.mxu0 0.0
    %928 = vmatpush2.xpose.msra.mxu0 0.0
    %929 = vmatprep.mubr.f32.mxu0 0.0
    %930 = vmatmul.mubr.f32.gmra.mxu0 %v857
    %v931 = vpop.f32.mrf.mxu0
    %v932 = vadd.f32 %v312, %v931
    %v933 = vpop.f32.mrf.mxu0
    %934 = vmatprep.mubr.f32.mxu0 0.0
    %935 = vmatmul.mubr.f32.gmra.mxu0 %v859
    %v936 = vpop.f32.mrf.mxu0
    %v937 = vadd.f32 %v313, %v936
    %v938 = vpop.f32.mrf.mxu0
    %939 = vdwg.mxu0
    %942 = vrot.lane.b32.xlu0 %v292, 96
    %v943 = vpop.permute.xlu0 %942
    %944 = vrot.lane.b32.xlu0 %v297, 96
    %v945 = vpop.permute.xlu0 %944
    %v946 = vsel %vm322, %v292, 0
    %v948 = vsel %vm322, %v297, 0
    %v950 = vsel %vm322, %v943, 0
    %v952 = vsel %vm322, %v945, 0
    %954 = vmatprep.subr.mxu0 0.0
    %955 = vmatpush1.xpose.msra.mxu0 0.0
    %956 = vmatprep.subr.mxu0 0.0
    %957 = vmatpush1.xpose.msra.mxu0 0.0
    %958 = vmatprep.subr.mxu0 0.0
    %959 = vmatpush1.xpose.msra.mxu0 0.0
    %960 = vmatprep.subr.mxu0 0.0
    %961 = vmatpush1.xpose.msra.mxu0 0.0
    %962 = vmatprep.subr.mxu0 0.0
    %963 = vmatpush1.xpose.msra.mxu0 0.0
    %964 = vmatprep.subr.mxu0 0.0
    %965 = vmatpush1.xpose.msra.mxu0 0.0
    %966 = vmatprep.subr.mxu0 0.0
    %967 = vmatpush1.xpose.msra.mxu0 0.0
    %968 = vmatprep.subr.mxu0 0.0
    %969 = vmatpush1.xpose.msra.mxu0 0.0
    %970 = vmatprep.subr.mxu0 0.0
    %971 = vmatpush1.xpose.msra.mxu0 0.0
    %972 = vmatprep.subr.mxu0 0.0
    %973 = vmatpush1.xpose.msra.mxu0 0.0
    %974 = vmatprep.subr.mxu0 0.0
    %975 = vmatpush1.xpose.msra.mxu0 0.0
    %976 = vmatprep.subr.mxu0 0.0
    %977 = vmatpush1.xpose.msra.mxu0 0.0
    %978 = vmatprep.subr.mxu0 0.0
    %979 = vmatpush1.xpose.msra.mxu0 0.0
    %980 = vmatprep.subr.mxu0 0.0
    %981 = vmatpush1.xpose.msra.mxu0 0.0
    %982 = vmatprep.subr.mxu0 0.0
    %983 = vmatpush1.xpose.msra.mxu0 %v952
    %984 = vmatprep.subr.mxu0 0.0
    %985 = vmatpush1.xpose.msra.mxu0 %v950
    %986 = vmatprep.subr.mxu0 0.0
    %987 = vmatpush2.xpose.msra.mxu0 0.0
    %988 = vmatprep.subr.mxu0 0.0
    %989 = vmatpush2.xpose.msra.mxu0 0.0
    %990 = vmatprep.subr.mxu0 0.0
    %991 = vmatpush2.xpose.msra.mxu0 0.0
    %992 = vmatprep.subr.mxu0 0.0
    %993 = vmatpush2.xpose.msra.mxu0 0.0
    %994 = vmatprep.subr.mxu0 0.0
    %995 = vmatpush2.xpose.msra.mxu0 0.0
    %996 = vmatprep.subr.mxu0 0.0
    %997 = vmatpush2.xpose.msra.mxu0 0.0
    %998 = vmatprep.subr.mxu0 0.0
    %999 = vmatpush2.xpose.msra.mxu0 0.0
    %1000 = vmatprep.subr.mxu0 0.0
    %1001 = vmatpush2.xpose.msra.mxu0 0.0
    %1002 = vmatprep.subr.mxu0 0.0
    %1003 = vmatpush2.xpose.msra.mxu0 0.0
    %1004 = vmatprep.subr.mxu0 0.0
    %1005 = vmatpush2.xpose.msra.mxu0 0.0
    %1006 = vmatprep.subr.mxu0 0.0
    %1007 = vmatpush2.xpose.msra.mxu0 0.0
    %1008 = vmatprep.subr.mxu0 0.0
    %1009 = vmatpush2.xpose.msra.mxu0 0.0
    %1010 = vmatprep.subr.mxu0 0.0
    %1011 = vmatpush2.xpose.msra.mxu0 0.0
    %1012 = vmatprep.subr.mxu0 0.0
    %1013 = vmatpush2.xpose.msra.mxu0 0.0
    %1014 = vmatprep.subr.mxu0 0.0
    %1015 = vmatpush2.xpose.msra.mxu0 0.0
    %1016 = vmatprep.subr.mxu0 0.0
    %1017 = vmatpush2.xpose.msra.mxu0 0.0
    %1018 = vmatprep.mubr.f32.mxu0 0.0
    %1019 = vmatmul.mubr.f32.gmra.mxu0 %v946
    %v1020 = vpop.f32.mrf.mxu0
    %v1021 = vadd.f32 %v314, %v1020
    %v1022 = vpop.f32.mrf.mxu0
    %1023 = vmatprep.mubr.f32.mxu0 0.0
    %1024 = vmatmul.mubr.f32.gmra.mxu0 %v948
    %v1025 = vpop.f32.mrf.mxu0
    %v1026 = vadd.f32 %v315, %v1025
    %v1027 = vpop.f32.mrf.mxu0
    %1028 = vdwg.mxu0
    %vm1029 = vcmask 130048
    %v1030 = vsel %vm1029, %v398, -inf
    %1031 = vmax.xlane.f32.xlu0 %v1030
    %v1032 = vpop.xlane.xlu0 %1031
    %v1033 = vsel %vm1029, %v403, -inf
    %1034 = vmax.xlane.f32.xlu0 %v1033
    %v1035 = vpop.xlane.xlu0 %1034
    %v1036 = vsel %vm1029, %v487, -inf
    %1037 = vmax.xlane.f32.xlu0 %v1036
    %v1038 = vpop.xlane.xlu0 %1037
    %v1039 = vsel %vm1029, %v492, -inf
    %1040 = vmax.xlane.f32.xlu0 %v1039
    %v1041 = vpop.xlane.xlu0 %1040
    %v1042 = vsel %vm1029, %v576, -inf
    %1043 = vmax.xlane.f32.xlu0 %v1042
    %v1044 = vpop.xlane.xlu0 %1043
    %v1045 = vsel %vm1029, %v581, -inf
    %1046 = vmax.xlane.f32.xlu0 %v1045
    %v1047 = vpop.xlane.xlu0 %1046
    %v1048 = vsel %vm1029, %v665, -inf
    %1049 = vmax.xlane.f32.xlu0 %v1048
    %v1050 = vpop.xlane.xlu0 %1049
    %v1051 = vsel %vm1029, %v670, -inf
    %1052 = vmax.xlane.f32.xlu0 %v1051
    %v1053 = vpop.xlane.xlu0 %1052
    %v1054 = vsel %vm1029, %v754, -inf
    %1055 = vmax.xlane.f32.xlu0 %v1054
    %v1056 = vpop.xlane.xlu0 %1055
    %v1057 = vsel %vm1029, %v759, -inf
    %1058 = vmax.xlane.f32.xlu0 %v1057
    %v1059 = vpop.xlane.xlu0 %1058
    %v1060 = vsel %vm1029, %v843, -inf
    %1061 = vmax.xlane.f32.xlu0 %v1060
    %v1062 = vpop.xlane.xlu0 %1061
    %v1063 = vsel %vm1029, %v848, -inf
    %1064 = vmax.xlane.f32.xlu0 %v1063
    %v1065 = vpop.xlane.xlu0 %1064
    %v1066 = vsel %vm1029, %v932, -inf
    %1067 = vmax.xlane.f32.xlu0 %v1066
    %v1068 = vpop.xlane.xlu0 %1067
    %v1069 = vsel %vm1029, %v937, -inf
    %1070 = vmax.xlane.f32.xlu0 %v1069
    %v1071 = vpop.xlane.xlu0 %1070
    %v1072 = vsel %vm1029, %v1021, -inf
    %1073 = vmax.xlane.f32.xlu0 %v1072
    %v1074 = vpop.xlane.xlu0 %1073
    %v1075 = vsel %vm1029, %v1026, -inf
    %1076 = vmax.xlane.f32.xlu0 %v1075
    %v1077 = vpop.xlane.xlu0 %1076
    %v1078 = vsub.f32 %v398, %v1032
    %v1079 = vsub.f32 %v403, %v1035
    %v1080 = vsub.f32 %v487, %v1038
    %v1081 = vsub.f32 %v492, %v1041
    %v1082 = vsub.f32 %v576, %v1044
    %v1083 = vsub.f32 %v581, %v1047
    %v1084 = vsub.f32 %v665, %v1050
    %v1085 = vsub.f32 %v670, %v1053
    %v1086 = vsub.f32 %v754, %v1056
    %v1087 = vsub.f32 %v759, %v1059
    %v1088 = vsub.f32 %v843, %v1062
    %v1089 = vsub.f32 %v848, %v1065
    %v1090 = vsub.f32 %v932, %v1068
    %v1091 = vsub.f32 %v937, %v1071
    %v1092 = vsub.f32 %v1021, %v1074
    %v1093 = vsub.f32 %v1026, %v1077
    %v1094 = vmul.f32 %v1078, 1.442695
    %v1095 = vpow.pop %v1094
    %v1096 = vmul.f32 %v1079, 1.442695
    %v1097 = vpow.pop %v1096
    %v1098 = vmul.f32 %v1080, 1.442695
    %v1099 = vpow.pop %v1098
    %v1100 = vmul.f32 %v1081, 1.442695
    %v1101 = vpow.pop %v1100
    %v1102 = vmul.f32 %v1082, 1.442695
    %v1103 = vpow.pop %v1102
    %v1104 = vmul.f32 %v1083, 1.442695
    %v1105 = vpow.pop %v1104
    %v1106 = vmul.f32 %v1084, 1.442695
    %v1107 = vpow.pop %v1106
    %v1108 = vmul.f32 %v1085, 1.442695
    %v1109 = vpow.pop %v1108
    %v1110 = vmul.f32 %v1086, 1.442695
    %v1111 = vpow.pop %v1110
    %v1112 = vmul.f32 %v1087, 1.442695
    %v1113 = vpow.pop %v1112
    %v1114 = vmul.f32 %v1088, 1.442695
    %v1115 = vpow.pop %v1114
    %v1116 = vmul.f32 %v1089, 1.442695
    %v1117 = vpow.pop %v1116
    %v1118 = vmul.f32 %v1090, 1.442695
    %v1119 = vpow.pop %v1118
    %v1120 = vmul.f32 %v1091, 1.442695
    %v1121 = vpow.pop %v1120
    %v1122 = vmul.f32 %v1092, 1.442695
    %v1123 = vpow.pop %v1122
    %v1124 = vmul.f32 %v1093, 1.442695
    %v1125 = vpow.pop %v1124
    %v1126 = vsel %vm1029, %v1095, 0.0
    %1127 = vadd.xlane.f32.xlu0 %v1126
    %v1128 = vpop.xlane.xlu0 %1127
    %v1129 = vsel %vm1029, %v1097, 0.0
    %1130 = vadd.xlane.f32.xlu0 %v1129
    %v1131 = vpop.xlane.xlu0 %1130
    %v1132 = vsel %vm1029, %v1099, 0.0
    %1133 = vadd.xlane.f32.xlu0 %v1132
    %v1134 = vpop.xlane.xlu0 %1133
    %v1135 = vsel %vm1029, %v1101, 0.0
    %1136 = vadd.xlane.f32.xlu0 %v1135
    %v1137 = vpop.xlane.xlu0 %1136
    %v1138 = vsel %vm1029, %v1103, 0.0
    %1139 = vadd.xlane.f32.xlu0 %v1138
    %v1140 = vpop.xlane.xlu0 %1139
    %v1141 = vsel %vm1029, %v1105, 0.0
    %1142 = vadd.xlane.f32.xlu0 %v1141
    %v1143 = vpop.xlane.xlu0 %1142
    %v1144 = vsel %vm1029, %v1107, 0.0
    %1145 = vadd.xlane.f32.xlu0 %v1144
    %v1146 = vpop.xlane.xlu0 %1145
    %v1147 = vsel %vm1029, %v1109, 0.0
    %1148 = vadd.xlane.f32.xlu0 %v1147
    %v1149 = vpop.xlane.xlu0 %1148
    %v1150 = vsel %vm1029, %v1111, 0.0
    %1151 = vadd.xlane.f32.xlu0 %v1150
    %v1152 = vpop.xlane.xlu0 %1151
    %v1153 = vsel %vm1029, %v1113, 0.0
    %1154 = vadd.xlane.f32.xlu0 %v1153
    %v1155 = vpop.xlane.xlu0 %1154
    %v1156 = vsel %vm1029, %v1115, 0.0
    %1157 = vadd.xlane.f32.xlu0 %v1156
    %v1158 = vpop.xlane.xlu0 %1157
    %v1159 = vsel %vm1029, %v1117, 0.0
    %1160 = vadd.xlane.f32.xlu0 %v1159
    %v1161 = vpop.xlane.xlu0 %1160
    %v1162 = vsel %vm1029, %v1119, 0.0
    %1163 = vadd.xlane.f32.xlu0 %v1162
    %v1164 = vpop.xlane.xlu0 %1163
    %v1165 = vsel %vm1029, %v1121, 0.0
    %1166 = vadd.xlane.f32.xlu0 %v1165
    %v1167 = vpop.xlane.xlu0 %1166
    %v1168 = vsel %vm1029, %v1123, 0.0
    %1169 = vadd.xlane.f32.xlu0 %v1168
    %v1170 = vpop.xlane.xlu0 %1169
    %v1171 = vsel %vm1029, %v1125, 0.0
    %1172 = vadd.xlane.f32.xlu0 %v1171
    %v1173 = vpop.xlane.xlu0 %1172
    %v1174 = vrcp.pop %v1128
    %v1175 = vmul.f32 %v1095, %v1174
    %v1176 = vrcp.pop %v1131
    %v1177 = vmul.f32 %v1097, %v1176
    %v1178 = vrcp.pop %v1134
    %v1179 = vmul.f32 %v1099, %v1178
    %v1180 = vrcp.pop %v1137
    %v1181 = vmul.f32 %v1101, %v1180
    %v1182 = vrcp.pop %v1140
    %v1183 = vmul.f32 %v1103, %v1182
    %v1184 = vrcp.pop %v1143
    %v1185 = vmul.f32 %v1105, %v1184
    %v1186 = vrcp.pop %v1146
    %v1187 = vmul.f32 %v1107, %v1186
    %v1188 = vrcp.pop %v1149
    %v1189 = vmul.f32 %v1109, %v1188
    %v1190 = vrcp.pop %v1152
    %v1191 = vmul.f32 %v1111, %v1190
    %v1192 = vrcp.pop %v1155
    %v1193 = vmul.f32 %v1113, %v1192
    %v1194 = vrcp.pop %v1158
    %v1195 = vmul.f32 %v1115, %v1194
    %v1196 = vrcp.pop %v1161
    %v1197 = vmul.f32 %v1117, %v1196
    %v1198 = vrcp.pop %v1164
    %v1199 = vmul.f32 %v1119, %v1198
    %v1200 = vrcp.pop %v1167
    %v1201 = vmul.f32 %v1121, %v1200
    %v1202 = vrcp.pop %v1170
    %v1203 = vmul.f32 %v1123, %v1202
    %v1204 = vrcp.pop %v1173
    %v1205 = vmul.f32 %v1125, %v1204
    %1206 = vrot.lane.b32.xlu0 %v222, 64
    %v1207 = vpop.permute.xlu0 %1206
    %1208 = vrot.lane.b32.xlu0 %v227, 64
    %v1209 = vpop.permute.xlu0 %1208
    %v1213 = vsel %vm1029, %v1175, 0
    %v1216 = vsel %vm1029, %v1177, 0
    %1218 = vmatprep.subr.mxu0 0.0
    %1219 = vmatpush1.msra.mxu0 0.0
    %1220 = vmatprep.subr.mxu0 0.0
    %1221 = vmatpush1.msra.mxu0 0.0
    %1222 = vmatprep.subr.mxu0 0.0
    %1223 = vmatpush1.msra.mxu0 0.0
    %1224 = vmatprep.subr.mxu0 0.0
    %1225 = vmatpush1.msra.mxu0 0.0
    %1226 = vmatprep.subr.mxu0 0.0
    %1227 = vmatpush1.msra.mxu0 0.0
    %1228 = vmatprep.subr.mxu0 0.0
    %1229 = vmatpush1.msra.mxu0 0.0
    %1230 = vmatprep.subr.mxu0 0.0
    %1231 = vmatpush1.msra.mxu0 0.0
    %1232 = vmatprep.subr.mxu0 0.0
    %1233 = vmatpush1.msra.mxu0 0.0
    %1234 = vmatprep.subr.mxu0 0.0
    %1235 = vmatpush1.msra.mxu0 0.0
    %1236 = vmatprep.subr.mxu0 0.0
    %1237 = vmatpush1.msra.mxu0 0.0
    %1238 = vmatprep.subr.mxu0 0.0
    %1239 = vmatpush1.msra.mxu0 0.0
    %1240 = vmatprep.subr.mxu0 0.0
    %1241 = vmatpush1.msra.mxu0 0.0
    %1242 = vmatprep.subr.mxu0 0.0
    %1243 = vmatpush1.msra.mxu0 0.0
    %1244 = vmatprep.subr.mxu0 0.0
    %1245 = vmatpush1.msra.mxu0 0.0
    %1246 = vmatprep.subr.mxu0 0.0
    %1247 = vmatpush1.msra.mxu0 %v1209
    %1248 = vmatprep.subr.mxu0 0.0
    %1249 = vmatpush1.msra.mxu0 %v1207
    %1250 = vmatprep.subr.mxu0 0.0
    %1251 = vmatpush2.msra.mxu0 0.0
    %1252 = vmatprep.subr.mxu0 0.0
    %1253 = vmatpush2.msra.mxu0 0.0
    %1254 = vmatprep.subr.mxu0 0.0
    %1255 = vmatpush2.msra.mxu0 0.0
    %1256 = vmatprep.subr.mxu0 0.0
    %1257 = vmatpush2.msra.mxu0 0.0
    %1258 = vmatprep.subr.mxu0 0.0
    %1259 = vmatpush2.msra.mxu0 0.0
    %1260 = vmatprep.subr.mxu0 0.0
    %1261 = vmatpush2.msra.mxu0 0.0
    %1262 = vmatprep.subr.mxu0 0.0
    %1263 = vmatpush2.msra.mxu0 0.0
    %1264 = vmatprep.subr.mxu0 0.0
    %1265 = vmatpush2.msra.mxu0 0.0
    %1266 = vmatprep.subr.mxu0 0.0
    %1267 = vmatpush2.msra.mxu0 0.0
    %1268 = vmatprep.subr.mxu0 0.0
    %1269 = vmatpush2.msra.mxu0 0.0
    %1270 = vmatprep.subr.mxu0 0.0
    %1271 = vmatpush2.msra.mxu0 0.0
    %1272 = vmatprep.subr.mxu0 0.0
    %1273 = vmatpush2.msra.mxu0 0.0
    %1274 = vmatprep.subr.mxu0 0.0
    %1275 = vmatpush2.msra.mxu0 0.0
    %1276 = vmatprep.subr.mxu0 0.0
    %1277 = vmatpush2.msra.mxu0 0.0
    %1278 = vmatprep.subr.mxu0 0.0
    %1279 = vmatpush2.msra.mxu0 0.0
    %1280 = vmatprep.subr.mxu0 0.0
    %1281 = vmatpush2.msra.mxu0 0.0
    %1282 = vmatprep.mubr.f32.mxu0 0.0
    %1283 = vmatmul.mubr.f32.gmra.mxu0 %v1213
    %v1284 = vpop.f32.mrf.mxu0
    %v1285 = vadd.f32 0.0, %v1284
    %v1286 = vpop.f32.mrf.mxu0
    %1287 = vmatprep.mubr.f32.mxu0 0.0
    %1288 = vmatmul.mubr.f32.gmra.mxu0 %v1216
    %v1289 = vpop.f32.mrf.mxu0
    %v1290 = vadd.f32 0.0, %v1289
    %v1291 = vpop.f32.mrf.mxu0
    %1292 = vdwg.mxu0
    %1293 = vrot.lane.b32.xlu0 %v232, 64
    %v1294 = vpop.permute.xlu0 %1293
    %1295 = vrot.lane.b32.xlu0 %v237, 64
    %v1296 = vpop.permute.xlu0 %1295
    %v1300 = vsel %vm1029, %v1179, 0
    %v1303 = vsel %vm1029, %v1181, 0
    %1305 = vmatprep.subr.mxu0 0.0
    %1306 = vmatpush1.msra.mxu0 0.0
    %1307 = vmatprep.subr.mxu0 0.0
    %1308 = vmatpush1.msra.mxu0 0.0
    %1309 = vmatprep.subr.mxu0 0.0
    %1310 = vmatpush1.msra.mxu0 0.0
    %1311 = vmatprep.subr.mxu0 0.0
    %1312 = vmatpush1.msra.mxu0 0.0
    %1313 = vmatprep.subr.mxu0 0.0
    %1314 = vmatpush1.msra.mxu0 0.0
    %1315 = vmatprep.subr.mxu0 0.0
    %1316 = vmatpush1.msra.mxu0 0.0
    %1317 = vmatprep.subr.mxu0 0.0
    %1318 = vmatpush1.msra.mxu0 0.0
    %1319 = vmatprep.subr.mxu0 0.0
    %1320 = vmatpush1.msra.mxu0 0.0
    %1321 = vmatprep.subr.mxu0 0.0
    %1322 = vmatpush1.msra.mxu0 0.0
    %1323 = vmatprep.subr.mxu0 0.0
    %1324 = vmatpush1.msra.mxu0 0.0
    %1325 = vmatprep.subr.mxu0 0.0
    %1326 = vmatpush1.msra.mxu0 0.0
    %1327 = vmatprep.subr.mxu0 0.0
    %1328 = vmatpush1.msra.mxu0 0.0
    %1329 = vmatprep.subr.mxu0 0.0
    %1330 = vmatpush1.msra.mxu0 0.0
    %1331 = vmatprep.subr.mxu0 0.0
    %1332 = vmatpush1.msra.mxu0 0.0
    %1333 = vmatprep.subr.mxu0 0.0
    %1334 = vmatpush1.msra.mxu0 %v1296
    %1335 = vmatprep.subr.mxu0 0.0
    %1336 = vmatpush1.msra.mxu0 %v1294
    %1337 = vmatprep.subr.mxu0 0.0
    %1338 = vmatpush2.msra.mxu0 0.0
    %1339 = vmatprep.subr.mxu0 0.0
    %1340 = vmatpush2.msra.mxu0 0.0
    %1341 = vmatprep.subr.mxu0 0.0
    %1342 = vmatpush2.msra.mxu0 0.0
    %1343 = vmatprep.subr.mxu0 0.0
    %1344 = vmatpush2.msra.mxu0 0.0
    %1345 = vmatprep.subr.mxu0 0.0
    %1346 = vmatpush2.msra.mxu0 0.0
    %1347 = vmatprep.subr.mxu0 0.0
    %1348 = vmatpush2.msra.mxu0 0.0
    %1349 = vmatprep.subr.mxu0 0.0
    %1350 = vmatpush2.msra.mxu0 0.0
    %1351 = vmatprep.subr.mxu0 0.0
    %1352 = vmatpush2.msra.mxu0 0.0
    %1353 = vmatprep.subr.mxu0 0.0
    %1354 = vmatpush2.msra.mxu0 0.0
    %1355 = vmatprep.subr.mxu0 0.0
    %1356 = vmatpush2.msra.mxu0 0.0
    %1357 = vmatprep.subr.mxu0 0.0
    %1358 = vmatpush2.msra.mxu0 0.0
    %1359 = vmatprep.subr.mxu0 0.0
    %1360 = vmatpush2.msra.mxu0 0.0
    %1361 = vmatprep.subr.mxu0 0.0
    %1362 = vmatpush2.msra.mxu0 0.0
    %1363 = vmatprep.subr.mxu0 0.0
    %1364 = vmatpush2.msra.mxu0 0.0
    %1365 = vmatprep.subr.mxu0 0.0
    %1366 = vmatpush2.msra.mxu0 0.0
    %1367 = vmatprep.subr.mxu0 0.0
    %1368 = vmatpush2.msra.mxu0 0.0
    %1369 = vmatprep.mubr.f32.mxu0 0.0
    %1370 = vmatmul.mubr.f32.gmra.mxu0 %v1300
    %v1371 = vpop.f32.mrf.mxu0
    %v1372 = vadd.f32 0.0, %v1371
    %v1373 = vpop.f32.mrf.mxu0
    %1374 = vmatprep.mubr.f32.mxu0 0.0
    %1375 = vmatmul.mubr.f32.gmra.mxu0 %v1303
    %v1376 = vpop.f32.mrf.mxu0
    %v1377 = vadd.f32 0.0, %v1376
    %v1378 = vpop.f32.mrf.mxu0
    %1379 = vdwg.mxu0
    %1380 = vrot.lane.b32.xlu0 %v242, 64
    %v1381 = vpop.permute.xlu0 %1380
    %1382 = vrot.lane.b32.xlu0 %v247, 64
    %v1383 = vpop.permute.xlu0 %1382
    %v1387 = vsel %vm1029, %v1183, 0
    %v1390 = vsel %vm1029, %v1185, 0
    %1392 = vmatprep.subr.mxu0 0.0
    %1393 = vmatpush1.msra.mxu0 0.0
    %1394 = vmatprep.subr.mxu0 0.0
    %1395 = vmatpush1.msra.mxu0 0.0
    %1396 = vmatprep.subr.mxu0 0.0
    %1397 = vmatpush1.msra.mxu0 0.0
    %1398 = vmatprep.subr.mxu0 0.0
    %1399 = vmatpush1.msra.mxu0 0.0
    %1400 = vmatprep.subr.mxu0 0.0
    %1401 = vmatpush1.msra.mxu0 0.0
    %1402 = vmatprep.subr.mxu0 0.0
    %1403 = vmatpush1.msra.mxu0 0.0
    %1404 = vmatprep.subr.mxu0 0.0
    %1405 = vmatpush1.msra.mxu0 0.0
    %1406 = vmatprep.subr.mxu0 0.0
    %1407 = vmatpush1.msra.mxu0 0.0
    %1408 = vmatprep.subr.mxu0 0.0
    %1409 = vmatpush1.msra.mxu0 0.0
    %1410 = vmatprep.subr.mxu0 0.0
    %1411 = vmatpush1.msra.mxu0 0.0
    %1412 = vmatprep.subr.mxu0 0.0
    %1413 = vmatpush1.msra.mxu0 0.0
    %1414 = vmatprep.subr.mxu0 0.0
    %1415 = vmatpush1.msra.mxu0 0.0
    %1416 = vmatprep.subr.mxu0 0.0
    %1417 = vmatpush1.msra.mxu0 0.0
    %1418 = vmatprep.subr.mxu0 0.0
    %1419 = vmatpush1.msra.mxu0 0.0
    %1420 = vmatprep.subr.mxu0 0.0
    %1421 = vmatpush1.msra.mxu0 %v1383
    %1422 = vmatprep.subr.mxu0 0.0
    %1423 = vmatpush1.msra.mxu0 %v1381
    %1424 = vmatprep.subr.mxu0 0.0
    %1425 = vmatpush2.msra.mxu0 0.0
    %1426 = vmatprep.subr.mxu0 0.0
    %1427 = vmatpush2.msra.mxu0 0.0
    %1428 = vmatprep.subr.mxu0 0.0
    %1429 = vmatpush2.msra.mxu0 0.0
    %1430 = vmatprep.subr.mxu0 0.0
    %1431 = vmatpush2.msra.mxu0 0.0
    %1432 = vmatprep.subr.mxu0 0.0
    %1433 = vmatpush2.msra.mxu0 0.0
    %1434 = vmatprep.subr.mxu0 0.0
    %1435 = vmatpush2.msra.mxu0 0.0
    %1436 = vmatprep.subr.mxu0 0.0
    %1437 = vmatpush2.msra.mxu0 0.0
    %1438 = vmatprep.subr.mxu0 0.0
    %1439 = vmatpush2.msra.mxu0 0.0
    %1440 = vmatprep.subr.mxu0 0.0
    %1441 = vmatpush2.msra.mxu0 0.0
    %1442 = vmatprep.subr.mxu0 0.0
    %1443 = vmatpush2.msra.mxu0 0.0
    %1444 = vmatprep.subr.mxu0 0.0
    %1445 = vmatpush2.msra.mxu0 0.0
    %1446 = vmatprep.subr.mxu0 0.0
    %1447 = vmatpush2.msra.mxu0 0.0
    %1448 = vmatprep.subr.mxu0 0.0
    %1449 = vmatpush2.msra.mxu0 0.0
    %1450 = vmatprep.subr.mxu0 0.0
    %1451 = vmatpush2.msra.mxu0 0.0
    %1452 = vmatprep.subr.mxu0 0.0
    %1453 = vmatpush2.msra.mxu0 0.0
    %1454 = vmatprep.subr.mxu0 0.0
    %1455 = vmatpush2.msra.mxu0 0.0
    %1456 = vmatprep.mubr.f32.mxu0 0.0
    %1457 = vmatmul.mubr.f32.gmra.mxu0 %v1387
    %v1458 = vpop.f32.mrf.mxu0
    %v1459 = vadd.f32 0.0, %v1458
    %v1460 = vpop.f32.mrf.mxu0
    %1461 = vmatprep.mubr.f32.mxu0 0.0
    %1462 = vmatmul.mubr.f32.gmra.mxu0 %v1390
    %v1463 = vpop.f32.mrf.mxu0
    %v1464 = vadd.f32 0.0, %v1463
    %v1465 = vpop.f32.mrf.mxu0
    %1466 = vdwg.mxu0
    %1467 = vrot.lane.b32.xlu0 %v252, 64
    %v1468 = vpop.permute.xlu0 %1467
    %1469 = vrot.lane.b32.xlu0 %v257, 64
    %v1470 = vpop.permute.xlu0 %1469
    %v1474 = vsel %vm1029, %v1187, 0
    %v1477 = vsel %vm1029, %v1189, 0
    %1479 = vmatprep.subr.mxu0 0.0
    %1480 = vmatpush1.msra.mxu0 0.0
    %1481 = vmatprep.subr.mxu0 0.0
    %1482 = vmatpush1.msra.mxu0 0.0
    %1483 = vmatprep.subr.mxu0 0.0
    %1484 = vmatpush1.msra.mxu0 0.0
    %1485 = vmatprep.subr.mxu0 0.0
    %1486 = vmatpush1.msra.mxu0 0.0
    %1487 = vmatprep.subr.mxu0 0.0
    %1488 = vmatpush1.msra.mxu0 0.0
    %1489 = vmatprep.subr.mxu0 0.0
    %1490 = vmatpush1.msra.mxu0 0.0
    %1491 = vmatprep.subr.mxu0 0.0
    %1492 = vmatpush1.msra.mxu0 0.0
    %1493 = vmatprep.subr.mxu0 0.0
    %1494 = vmatpush1.msra.mxu0 0.0
    %1495 = vmatprep.subr.mxu0 0.0
    %1496 = vmatpush1.msra.mxu0 0.0
    %1497 = vmatprep.subr.mxu0 0.0
    %1498 = vmatpush1.msra.mxu0 0.0
    %1499 = vmatprep.subr.mxu0 0.0
    %1500 = vmatpush1.msra.mxu0 0.0
    %1501 = vmatprep.subr.mxu0 0.0
    %1502 = vmatpush1.msra.mxu0 0.0
    %1503 = vmatprep.subr.mxu0 0.0
    %1504 = vmatpush1.msra.mxu0 0.0
    %1505 = vmatprep.subr.mxu0 0.0
    %1506 = vmatpush1.msra.mxu0 0.0
    %1507 = vmatprep.subr.mxu0 0.0
    %1508 = vmatpush1.msra.mxu0 %v1470
    %1509 = vmatprep.subr.mxu0 0.0
    %1510 = vmatpush1.msra.mxu0 %v1468
    %1511 = vmatprep.subr.mxu0 0.0
    %1512 = vmatpush2.msra.mxu0 0.0
    %1513 = vmatprep.subr.mxu0 0.0
    %1514 = vmatpush2.msra.mxu0 0.0
    %1515 = vmatprep.subr.mxu0 0.0
    %1516 = vmatpush2.msra.mxu0 0.0
    %1517 = vmatprep.subr.mxu0 0.0
    %1518 = vmatpush2.msra.mxu0 0.0
    %1519 = vmatprep.subr.mxu0 0.0
    %1520 = vmatpush2.msra.mxu0 0.0
    %1521 = vmatprep.subr.mxu0 0.0
    %1522 = vmatpush2.msra.mxu0 0.0
    %1523 = vmatprep.subr.mxu0 0.0
    %1524 = vmatpush2.msra.mxu0 0.0
    %1525 = vmatprep.subr.mxu0 0.0
    %1526 = vmatpush2.msra.mxu0 0.0
    %1527 = vmatprep.subr.mxu0 0.0
    %1528 = vmatpush2.msra.mxu0 0.0
    %1529 = vmatprep.subr.mxu0 0.0
    %1530 = vmatpush2.msra.mxu0 0.0
    %1531 = vmatprep.subr.mxu0 0.0
    %1532 = vmatpush2.msra.mxu0 0.0
    %1533 = vmatprep.subr.mxu0 0.0
    %1534 = vmatpush2.msra.mxu0 0.0
    %1535 = vmatprep.subr.mxu0 0.0
    %1536 = vmatpush2.msra.mxu0 0.0
    %1537 = vmatprep.subr.mxu0 0.0
    %1538 = vmatpush2.msra.mxu0 0.0
    %1539 = vmatprep.subr.mxu0 0.0
    %1540 = vmatpush2.msra.mxu0 0.0
    %1541 = vmatprep.subr.mxu0 0.0
    %1542 = vmatpush2.msra.mxu0 0.0
    %1543 = vmatprep.mubr.f32.mxu0 0.0
    %1544 = vmatmul.mubr.f32.gmra.mxu0 %v1474
    %v1545 = vpop.f32.mrf.mxu0
    %v1546 = vadd.f32 0.0, %v1545
    %v1547 = vpop.f32.mrf.mxu0
    %1548 = vmatprep.mubr.f32.mxu0 0.0
    %1549 = vmatmul.mubr.f32.gmra.mxu0 %v1477
    %v1550 = vpop.f32.mrf.mxu0
    %v1551 = vadd.f32 0.0, %v1550
    %v1552 = vpop.f32.mrf.mxu0
    %1553 = vdwg.mxu0
    %1554 = vrot.lane.b32.xlu0 %v262, 64
    %v1555 = vpop.permute.xlu0 %1554
    %1556 = vrot.lane.b32.xlu0 %v267, 64
    %v1557 = vpop.permute.xlu0 %1556
    %v1561 = vsel %vm1029, %v1191, 0
    %v1564 = vsel %vm1029, %v1193, 0
    %1566 = vmatprep.subr.mxu0 0.0
    %1567 = vmatpush1.msra.mxu0 0.0
    %1568 = vmatprep.subr.mxu0 0.0
    %1569 = vmatpush1.msra.mxu0 0.0
    %1570 = vmatprep.subr.mxu0 0.0
    %1571 = vmatpush1.msra.mxu0 0.0
    %1572 = vmatprep.subr.mxu0 0.0
    %1573 = vmatpush1.msra.mxu0 0.0
    %1574 = vmatprep.subr.mxu0 0.0
    %1575 = vmatpush1.msra.mxu0 0.0
    %1576 = vmatprep.subr.mxu0 0.0
    %1577 = vmatpush1.msra.mxu0 0.0
    %1578 = vmatprep.subr.mxu0 0.0
    %1579 = vmatpush1.msra.mxu0 0.0
    %1580 = vmatprep.subr.mxu0 0.0
    %1581 = vmatpush1.msra.mxu0 0.0
    %1582 = vmatprep.subr.mxu0 0.0
    %1583 = vmatpush1.msra.mxu0 0.0
    %1584 = vmatprep.subr.mxu0 0.0
    %1585 = vmatpush1.msra.mxu0 0.0
    %1586 = vmatprep.subr.mxu0 0.0
    %1587 = vmatpush1.msra.mxu0 0.0
    %1588 = vmatprep.subr.mxu0 0.0
    %1589 = vmatpush1.msra.mxu0 0.0
    %1590 = vmatprep.subr.mxu0 0.0
    %1591 = vmatpush1.msra.mxu0 0.0
    %1592 = vmatprep.subr.mxu0 0.0
    %1593 = vmatpush1.msra.mxu0 0.0
    %1594 = vmatprep.subr.mxu0 0.0
    %1595 = vmatpush1.msra.mxu0 %v1557
    %1596 = vmatprep.subr.mxu0 0.0
    %1597 = vmatpush1.msra.mxu0 %v1555
    %1598 = vmatprep.subr.mxu0 0.0
    %1599 = vmatpush2.msra.mxu0 0.0
    %1600 = vmatprep.subr.mxu0 0.0
    %1601 = vmatpush2.msra.mxu0 0.0
    %1602 = vmatprep.subr.mxu0 0.0
    %1603 = vmatpush2.msra.mxu0 0.0
    %1604 = vmatprep.subr.mxu0 0.0
    %1605 = vmatpush2.msra.mxu0 0.0
    %1606 = vmatprep.subr.mxu0 0.0
    %1607 = vmatpush2.msra.mxu0 0.0
    %1608 = vmatprep.subr.mxu0 0.0
    %1609 = vmatpush2.msra.mxu0 0.0
    %1610 = vmatprep.subr.mxu0 0.0
    %1611 = vmatpush2.msra.mxu0 0.0
    %1612 = vmatprep.subr.mxu0 0.0
    %1613 = vmatpush2.msra.mxu0 0.0
    %1614 = vmatprep.subr.mxu0 0.0
    %1615 = vmatpush2.msra.mxu0 0.0
    %1616 = vmatprep.subr.mxu0 0.0
    %1617 = vmatpush2.msra.mxu0 0.0
    %1618 = vmatprep.subr.mxu0 0.0
    %1619 = vmatpush2.msra.mxu0 0.0
    %1620 = vmatprep.subr.mxu0 0.0
    %1621 = vmatpush2.msra.mxu0 0.0
    %1622 = vmatprep.subr.mxu0 0.0
    %1623 = vmatpush2.msra.mxu0 0.0
    %1624 = vmatprep.subr.mxu0 0.0
    %1625 = vmatpush2.msra.mxu0 0.0
    %1626 = vmatprep.subr.mxu0 0.0
    %1627 = vmatpush2.msra.mxu0 0.0
    %1628 = vmatprep.subr.mxu0 0.0
    %1629 = vmatpush2.msra.mxu0 0.0
    %1630 = vmatprep.mubr.f32.mxu0 0.0
    %1631 = vmatmul.mubr.f32.gmra.mxu0 %v1561
    %v1632 = vpop.f32.mrf.mxu0
    %v1633 = vadd.f32 0.0, %v1632
    %v1634 = vpop.f32.mrf.mxu0
    %1635 = vmatprep.mubr.f32.mxu0 0.0
    %1636 = vmatmul.mubr.f32.gmra.mxu0 %v1564
    %v1637 = vpop.f32.mrf.mxu0
    %v1638 = vadd.f32 0.0, %v1637
    %v1639 = vpop.f32.mrf.mxu0
    %1640 = vdwg.mxu0
    %1641 = vrot.lane.b32.xlu0 %v272, 64
    %v1642 = vpop.permute.xlu0 %1641
    %1643 = vrot.lane.b32.xlu0 %v277, 64
    %v1644 = vpop.permute.xlu0 %1643
    %v1648 = vsel %vm1029, %v1195, 0
    %v1651 = vsel %vm1029, %v1197, 0
    %1653 = vmatprep.subr.mxu0 0.0
    %1654 = vmatpush1.msra.mxu0 0.0
    %1655 = vmatprep.subr.mxu0 0.0
    %1656 = vmatpush1.msra.mxu0 0.0
    %1657 = vmatprep.subr.mxu0 0.0
    %1658 = vmatpush1.msra.mxu0 0.0
    %1659 = vmatprep.subr.mxu0 0.0
    %1660 = vmatpush1.msra.mxu0 0.0
    %1661 = vmatprep.subr.mxu0 0.0
    %1662 = vmatpush1.msra.mxu0 0.0
    %1663 = vmatprep.subr.mxu0 0.0
    %1664 = vmatpush1.msra.mxu0 0.0
    %1665 = vmatprep.subr.mxu0 0.0
    %1666 = vmatpush1.msra.mxu0 0.0
    %1667 = vmatprep.subr.mxu0 0.0
    %1668 = vmatpush1.msra.mxu0 0.0
    %1669 = vmatprep.subr.mxu0 0.0
    %1670 = vmatpush1.msra.mxu0 0.0
    %1671 = vmatprep.subr.mxu0 0.0
    %1672 = vmatpush1.msra.mxu0 0.0
    %1673 = vmatprep.subr.mxu0 0.0
    %1674 = vmatpush1.msra.mxu0 0.0
    %1675 = vmatprep.subr.mxu0 0.0
    %1676 = vmatpush1.msra.mxu0 0.0
    %1677 = vmatprep.subr.mxu0 0.0
    %1678 = vmatpush1.msra.mxu0 0.0
    %1679 = vmatprep.subr.mxu0 0.0
    %1680 = vmatpush1.msra.mxu0 0.0
    %1681 = vmatprep.subr.mxu0 0.0
    %1682 = vmatpush1.msra.mxu0 %v1644
    %1683 = vmatprep.subr.mxu0 0.0
    %1684 = vmatpush1.msra.mxu0 %v1642
    %1685 = vmatprep.subr.mxu0 0.0
    %1686 = vmatpush2.msra.mxu0 0.0
    %1687 = vmatprep.subr.mxu0 0.0
    %1688 = vmatpush2.msra.mxu0 0.0
    %1689 = vmatprep.subr.mxu0 0.0
    %1690 = vmatpush2.msra.mxu0 0.0
    %1691 = vmatprep.subr.mxu0 0.0
    %1692 = vmatpush2.msra.mxu0 0.0
    %1693 = vmatprep.subr.mxu0 0.0
    %1694 = vmatpush2.msra.mxu0 0.0
    %1695 = vmatprep.subr.mxu0 0.0
    %1696 = vmatpush2.msra.mxu0 0.0
    %1697 = vmatprep.subr.mxu0 0.0
    %1698 = vmatpush2.msra.mxu0 0.0
    %1699 = vmatprep.subr.mxu0 0.0
    %1700 = vmatpush2.msra.mxu0 0.0
    %1701 = vmatprep.subr.mxu0 0.0
    %1702 = vmatpush2.msra.mxu0 0.0
    %1703 = vmatprep.subr.mxu0 0.0
    %1704 = vmatpush2.msra.mxu0 0.0
    %1705 = vmatprep.subr.mxu0 0.0
    %1706 = vmatpush2.msra.mxu0 0.0
    %1707 = vmatprep.subr.mxu0 0.0
    %1708 = vmatpush2.msra.mxu0 0.0
    %1709 = vmatprep.subr.mxu0 0.0
    %1710 = vmatpush2.msra.mxu0 0.0
    %1711 = vmatprep.subr.mxu0 0.0
    %1712 = vmatpush2.msra.mxu0 0.0
    %1713 = vmatprep.subr.mxu0 0.0
    %1714 = vmatpush2.msra.mxu0 0.0
    %1715 = vmatprep.subr.mxu0 0.0
    %1716 = vmatpush2.msra.mxu0 0.0
    %1717 = vmatprep.mubr.f32.mxu0 0.0
    %1718 = vmatmul.mubr.f32.gmra.mxu0 %v1648
    %v1719 = vpop.f32.mrf.mxu0
    %v1720 = vadd.f32 0.0, %v1719
    %v1721 = vpop.f32.mrf.mxu0
    %1722 = vmatprep.mubr.f32.mxu0 0.0
    %1723 = vmatmul.mubr.f32.gmra.mxu0 %v1651
    %v1724 = vpop.f32.mrf.mxu0
    %v1725 = vadd.f32 0.0, %v1724
    %v1726 = vpop.f32.mrf.mxu0
    %1727 = vdwg.mxu0
    %1728 = vrot.lane.b32.xlu0 %v282, 64
    %v1729 = vpop.permute.xlu0 %1728
    %1730 = vrot.lane.b32.xlu0 %v287, 64
    %v1731 = vpop.permute.xlu0 %1730
    %v1735 = vsel %vm1029, %v1199, 0
    %v1738 = vsel %vm1029, %v1201, 0
    %1740 = vmatprep.subr.mxu0 0.0
    %1741 = vmatpush1.msra.mxu0 0.0
    %1742 = vmatprep.subr.mxu0 0.0
    %1743 = vmatpush1.msra.mxu0 0.0
    %1744 = vmatprep.subr.mxu0 0.0
    %1745 = vmatpush1.msra.mxu0 0.0
    %1746 = vmatprep.subr.mxu0 0.0
    %1747 = vmatpush1.msra.mxu0 0.0
    %1748 = vmatprep.subr.mxu0 0.0
    %1749 = vmatpush1.msra.mxu0 0.0
    %1750 = vmatprep.subr.mxu0 0.0
    %1751 = vmatpush1.msra.mxu0 0.0
    %1752 = vmatprep.subr.mxu0 0.0
    %1753 = vmatpush1.msra.mxu0 0.0
    %1754 = vmatprep.subr.mxu0 0.0
    %1755 = vmatpush1.msra.mxu0 0.0
    %1756 = vmatprep.subr.mxu0 0.0
    %1757 = vmatpush1.msra.mxu0 0.0
    %1758 = vmatprep.subr.mxu0 0.0
    %1759 = vmatpush1.msra.mxu0 0.0
    %1760 = vmatprep.subr.mxu0 0.0
    %1761 = vmatpush1.msra.mxu0 0.0
    %1762 = vmatprep.subr.mxu0 0.0
    %1763 = vmatpush1.msra.mxu0 0.0
    %1764 = vmatprep.subr.mxu0 0.0
    %1765 = vmatpush1.msra.mxu0 0.0
    %1766 = vmatprep.subr.mxu0 0.0
    %1767 = vmatpush1.msra.mxu0 0.0
    %1768 = vmatprep.subr.mxu0 0.0
    %1769 = vmatpush1.msra.mxu0 %v1731
    %1770 = vmatprep.subr.mxu0 0.0
    %1771 = vmatpush1.msra.mxu0 %v1729
    %1772 = vmatprep.subr.mxu0 0.0
    %1773 = vmatpush2.msra.mxu0 0.0
    %1774 = vmatprep.subr.mxu0 0.0
    %1775 = vmatpush2.msra.mxu0 0.0
    %1776 = vmatprep.subr.mxu0 0.0
    %1777 = vmatpush2.msra.mxu0 0.0
    %1778 = vmatprep.subr.mxu0 0.0
    %1779 = vmatpush2.msra.mxu0 0.0
    %1780 = vmatprep.subr.mxu0 0.0
    %1781 = vmatpush2.msra.mxu0 0.0
    %1782 = vmatprep.subr.mxu0 0.0
    %1783 = vmatpush2.msra.mxu0 0.0
    %1784 = vmatprep.subr.mxu0 0.0
    %1785 = vmatpush2.msra.mxu0 0.0
    %1786 = vmatprep.subr.mxu0 0.0
    %1787 = vmatpush2.msra.mxu0 0.0
    %1788 = vmatprep.subr.mxu0 0.0
    %1789 = vmatpush2.msra.mxu0 0.0
    %1790 = vmatprep.subr.mxu0 0.0
    %1791 = vmatpush2.msra.mxu0 0.0
    %1792 = vmatprep.subr.mxu0 0.0
    %1793 = vmatpush2.msra.mxu0 0.0
    %1794 = vmatprep.subr.mxu0 0.0
    %1795 = vmatpush2.msra.mxu0 0.0
    %1796 = vmatprep.subr.mxu0 0.0
    %1797 = vmatpush2.msra.mxu0 0.0
    %1798 = vmatprep.subr.mxu0 0.0
    %1799 = vmatpush2.msra.mxu0 0.0
    %1800 = vmatprep.subr.mxu0 0.0
    %1801 = vmatpush2.msra.mxu0 0.0
    %1802 = vmatprep.subr.mxu0 0.0
    %1803 = vmatpush2.msra.mxu0 0.0
    %1804 = vmatprep.mubr.f32.mxu0 0.0
    %1805 = vmatmul.mubr.f32.gmra.mxu0 %v1735
    %v1806 = vpop.f32.mrf.mxu0
    %v1807 = vadd.f32 0.0, %v1806
    %v1808 = vpop.f32.mrf.mxu0
    %1809 = vmatprep.mubr.f32.mxu0 0.0
    %1810 = vmatmul.mubr.f32.gmra.mxu0 %v1738
    %v1811 = vpop.f32.mrf.mxu0
    %v1812 = vadd.f32 0.0, %v1811
    %v1813 = vpop.f32.mrf.mxu0
    %1814 = vdwg.mxu0
    %1815 = vrot.lane.b32.xlu0 %v292, 64
    %v1816 = vpop.permute.xlu0 %1815
    %1817 = vrot.lane.b32.xlu0 %v297, 64
    %v1818 = vpop.permute.xlu0 %1817
    %v1822 = vsel %vm1029, %v1203, 0
    %v1825 = vsel %vm1029, %v1205, 0
    %1827 = vmatprep.subr.mxu0 0.0
    %1828 = vmatpush1.msra.mxu0 0.0
    %1829 = vmatprep.subr.mxu0 0.0
    %1830 = vmatpush1.msra.mxu0 0.0
    %1831 = vmatprep.subr.mxu0 0.0
    %1832 = vmatpush1.msra.mxu0 0.0
    %1833 = vmatprep.subr.mxu0 0.0
    %1834 = vmatpush1.msra.mxu0 0.0
    %1835 = vmatprep.subr.mxu0 0.0
    %1836 = vmatpush1.msra.mxu0 0.0
    %1837 = vmatprep.subr.mxu0 0.0
    %1838 = vmatpush1.msra.mxu0 0.0
    %1839 = vmatprep.subr.mxu0 0.0
    %1840 = vmatpush1.msra.mxu0 0.0
    %1841 = vmatprep.subr.mxu0 0.0
    %1842 = vmatpush1.msra.mxu0 0.0
    %1843 = vmatprep.subr.mxu0 0.0
    %1844 = vmatpush1.msra.mxu0 0.0
    %1845 = vmatprep.subr.mxu0 0.0
    %1846 = vmatpush1.msra.mxu0 0.0
    %1847 = vmatprep.subr.mxu0 0.0
    %1848 = vmatpush1.msra.mxu0 0.0
    %1849 = vmatprep.subr.mxu0 0.0
    %1850 = vmatpush1.msra.mxu0 0.0
    %1851 = vmatprep.subr.mxu0 0.0
    %1852 = vmatpush1.msra.mxu0 0.0
    %1853 = vmatprep.subr.mxu0 0.0
    %1854 = vmatpush1.msra.mxu0 0.0
    %1855 = vmatprep.subr.mxu0 0.0
    %1856 = vmatpush1.msra.mxu0 %v1818
    %1857 = vmatprep.subr.mxu0 0.0
    %1858 = vmatpush1.msra.mxu0 %v1816
    %1859 = vmatprep.subr.mxu0 0.0
    %1860 = vmatpush2.msra.mxu0 0.0
    %1861 = vmatprep.subr.mxu0 0.0
    %1862 = vmatpush2.msra.mxu0 0.0
    %1863 = vmatprep.subr.mxu0 0.0
    %1864 = vmatpush2.msra.mxu0 0.0
    %1865 = vmatprep.subr.mxu0 0.0
    %1866 = vmatpush2.msra.mxu0 0.0
    %1867 = vmatprep.subr.mxu0 0.0
    %1868 = vmatpush2.msra.mxu0 0.0
    %1869 = vmatprep.subr.mxu0 0.0
    %1870 = vmatpush2.msra.mxu0 0.0
    %1871 = vmatprep.subr.mxu0 0.0
    %1872 = vmatpush2.msra.mxu0 0.0
    %1873 = vmatprep.subr.mxu0 0.0
    %1874 = vmatpush2.msra.mxu0 0.0
    %1875 = vmatprep.subr.mxu0 0.0
    %1876 = vmatpush2.msra.mxu0 0.0
    %1877 = vmatprep.subr.mxu0 0.0
    %1878 = vmatpush2.msra.mxu0 0.0
    %1879 = vmatprep.subr.mxu0 0.0
    %1880 = vmatpush2.msra.mxu0 0.0
    %1881 = vmatprep.subr.mxu0 0.0
    %1882 = vmatpush2.msra.mxu0 0.0
    %1883 = vmatprep.subr.mxu0 0.0
    %1884 = vmatpush2.msra.mxu0 0.0
    %1885 = vmatprep.subr.mxu0 0.0
    %1886 = vmatpush2.msra.mxu0 0.0
    %1887 = vmatprep.subr.mxu0 0.0
    %1888 = vmatpush2.msra.mxu0 0.0
    %1889 = vmatprep.subr.mxu0 0.0
    %1890 = vmatpush2.msra.mxu0 0.0
    %1891 = vmatprep.mubr.f32.mxu0 0.0
    %1892 = vmatmul.mubr.f32.gmra.mxu0 %v1822
    %v1893 = vpop.f32.mrf.mxu0
    %v1894 = vadd.f32 0.0, %v1893
    %v1895 = vpop.f32.mrf.mxu0
    %1896 = vmatprep.mubr.f32.mxu0 0.0
    %1897 = vmatmul.mubr.f32.gmra.mxu0 %v1825
    %v1898 = vpop.f32.mrf.mxu0
    %v1899 = vadd.f32 0.0, %v1898
    %v1900 = vpop.f32.mrf.mxu0
    %1901 = vdwg.mxu0
    %1902 = vst.msk [vmem:[#allocation2] sm:$0xff] %vm322, %v1285
    %1903 = vst.msk [vmem:[#allocation2 + $0x8] sm:$0xff] %vm322, %v1290
    %1904 = vst.msk [vmem:[#allocation2 + $0x10] sm:$0xff] %vm322, %v1372
    %1905 = vst.msk [vmem:[#allocation2 + $0x18] sm:$0xff] %vm322, %v1377
    %1906 = vst.msk [vmem:[#allocation2 + $0x20] sm:$0xff] %vm322, %v1459
    %1907 = vst.msk [vmem:[#allocation2 + $0x28] sm:$0xff] %vm322, %v1464
    %1908 = vst.msk [vmem:[#allocation2 + $0x30] sm:$0xff] %vm322, %v1546
    %1909 = vst.msk [vmem:[#allocation2 + $0x38] sm:$0xff] %vm322, %v1551
    %1910 = vst.msk [vmem:[#allocation2 + $0x40] sm:$0xff] %vm322, %v1633
    %1911 = vst.msk [vmem:[#allocation2 + $0x48] sm:$0xff] %vm322, %v1638
    %1912 = vst.msk [vmem:[#allocation2 + $0x50] sm:$0xff] %vm322, %v1720
    %1913 = vst.msk [vmem:[#allocation2 + $0x58] sm:$0xff] %vm322, %v1725
    %1914 = vst.msk [vmem:[#allocation2 + $0x60] sm:$0xff] %vm322, %v1807
    %1915 = vst.msk [vmem:[#allocation2 + $0x68] sm:$0xff] %vm322, %v1812
    %1916 = vst.msk [vmem:[#allocation2 + $0x70] sm:$0xff] %vm322, %v1894
    %1917 = vst.msk [vmem:[#allocation2 + $0x78] sm:$0xff] %vm322, %v1899
    %s1918 = scalar_lea.vmem [#allocation9], 16
    %v1919 = vld [vmem:[%s1918] sm:$0xff]
    %v1920 = vld [vmem:[%s1918 + $0x8] sm:$0xff]
    %v1921 = vld [vmem:[%s1918 + $0x40] sm:$0xff]
    %v1922 = vld [vmem:[%s1918 + $0x48] sm:$0xff]
    %v1923 = vld [vmem:[%s1918 + $0x80] sm:$0xff]
    %v1924 = vld [vmem:[%s1918 + $0x88] sm:$0xff]
    %v1925 = vld [vmem:[%s1918 + $0xc0] sm:$0xff]
    %v1926 = vld [vmem:[%s1918 + $0xc8] sm:$0xff]
    %v1927 = vld [vmem:[%s1918 + $0x100] sm:$0xff]
    %v1928 = vld [vmem:[%s1918 + $0x108] sm:$0xff]
    %v1929 = vld [vmem:[%s1918 + $0x140] sm:$0xff]
    %v1930 = vld [vmem:[%s1918 + $0x148] sm:$0xff]
    %v1931 = vld [vmem:[%s1918 + $0x180] sm:$0xff]
    %v1932 = vld [vmem:[%s1918 + $0x188] sm:$0xff]
    %v1933 = vld [vmem:[%s1918 + $0x1c0] sm:$0xff]
    %v1934 = vld [vmem:[%s1918 + $0x1c8] sm:$0xff]
    %1935 = vrot.lane.b32.xlu0 %v222, 120
    %v1936 = vpop.permute.xlu0 %1935
    %1937 = vrot.lane.b32.xlu0 %v227, 120
    %v1938 = vpop.permute.xlu0 %1937
    %1939 = vrot.lane.b32.xlu0 %v222, 88
    %v1940 = vpop.permute.xlu0 %1939
    %1941 = vrot.lane.b32.xlu0 %v227, 88
    %v1942 = vpop.permute.xlu0 %1941
    %v1943 = vsel %vm322, %v1936, 0
    %v1945 = vsel %vm322, %v1938, 0
    %v1947 = vsel %vm322, %v1940, 0
    %v1949 = vsel %vm322, %v1942, 0
    %1951 = vmatprep.subr.mxu0 0.0
    %1952 = vmatpush1.xpose.msra.mxu0 0.0
    %1953 = vmatprep.subr.mxu0 0.0
    %1954 = vmatpush1.xpose.msra.mxu0 0.0
    %1955 = vmatprep.subr.mxu0 0.0
    %1956 = vmatpush1.xpose.msra.mxu0 0.0
    %1957 = vmatprep.subr.mxu0 0.0
    %1958 = vmatpush1.xpose.msra.mxu0 0.0
    %1959 = vmatprep.subr.mxu0 0.0
    %1960 = vmatpush1.xpose.msra.mxu0 0.0
    %1961 = vmatprep.subr.mxu0 0.0
    %1962 = vmatpush1.xpose.msra.mxu0 0.0
    %1963 = vmatprep.subr.mxu0 0.0
    %1964 = vmatpush1.xpose.msra.mxu0 0.0
    %1965 = vmatprep.subr.mxu0 0.0
    %1966 = vmatpush1.xpose.msra.mxu0 0.0
    %1967 = vmatprep.subr.mxu0 0.0
    %1968 = vmatpush1.xpose.msra.mxu0 0.0
    %1969 = vmatprep.subr.mxu0 0.0
    %1970 = vmatpush1.xpose.msra.mxu0 0.0
    %1971 = vmatprep.subr.mxu0 0.0
    %1972 = vmatpush1.xpose.msra.mxu0 0.0
    %1973 = vmatprep.subr.mxu0 0.0
    %1974 = vmatpush1.xpose.msra.mxu0 0.0
    %1975 = vmatprep.subr.mxu0 0.0
    %1976 = vmatpush1.xpose.msra.mxu0 0.0
    %1977 = vmatprep.subr.mxu0 0.0
    %1978 = vmatpush1.xpose.msra.mxu0 0.0
    %1979 = vmatprep.subr.mxu0 0.0
    %1980 = vmatpush1.xpose.msra.mxu0 %v1949
    %1981 = vmatprep.subr.mxu0 0.0
    %1982 = vmatpush1.xpose.msra.mxu0 %v1947
    %1983 = vmatprep.subr.mxu0 0.0
    %1984 = vmatpush2.xpose.msra.mxu0 0.0
    %1985 = vmatprep.subr.mxu0 0.0
    %1986 = vmatpush2.xpose.msra.mxu0 0.0
    %1987 = vmatprep.subr.mxu0 0.0
    %1988 = vmatpush2.xpose.msra.mxu0 0.0
    %1989 = vmatprep.subr.mxu0 0.0
    %1990 = vmatpush2.xpose.msra.mxu0 0.0
    %1991 = vmatprep.subr.mxu0 0.0
    %1992 = vmatpush2.xpose.msra.mxu0 0.0
    %1993 = vmatprep.subr.mxu0 0.0
    %1994 = vmatpush2.xpose.msra.mxu0 0.0
    %1995 = vmatprep.subr.mxu0 0.0
    %1996 = vmatpush2.xpose.msra.mxu0 0.0
    %1997 = vmatprep.subr.mxu0 0.0
    %1998 = vmatpush2.xpose.msra.mxu0 0.0
    %1999 = vmatprep.subr.mxu0 0.0
    %2000 = vmatpush2.xpose.msra.mxu0 0.0
    %2001 = vmatprep.subr.mxu0 0.0
    %2002 = vmatpush2.xpose.msra.mxu0 0.0
    %2003 = vmatprep.subr.mxu0 0.0
    %2004 = vmatpush2.xpose.msra.mxu0 0.0
    %2005 = vmatprep.subr.mxu0 0.0
    %2006 = vmatpush2.xpose.msra.mxu0 0.0
    %2007 = vmatprep.subr.mxu0 0.0
    %2008 = vmatpush2.xpose.msra.mxu0 0.0
    %2009 = vmatprep.subr.mxu0 0.0
    %2010 = vmatpush2.xpose.msra.mxu0 0.0
    %2011 = vmatprep.subr.mxu0 0.0
    %2012 = vmatpush2.xpose.msra.mxu0 0.0
    %2013 = vmatprep.subr.mxu0 0.0
    %2014 = vmatpush2.xpose.msra.mxu0 0.0
    %2015 = vmatprep.mubr.f32.mxu0 0.0
    %2016 = vmatmul.mubr.f32.gmra.mxu0 %v1943
    %v2017 = vpop.f32.mrf.mxu0
    %v2018 = vadd.f32 %v1919, %v2017
    %v2019 = vpop.f32.mrf.mxu0
    %2020 = vmatprep.mubr.f32.mxu0 0.0
    %2021 = vmatmul.mubr.f32.gmra.mxu0 %v1945
    %v2022 = vpop.f32.mrf.mxu0
    %v2023 = vadd.f32 %v1920, %v2022
    %v2024 = vpop.f32.mrf.mxu0
    %2025 = vdwg.mxu0
    %2026 = vrot.lane.b32.xlu0 %v232, 120
    %v2027 = vpop.permute.xlu0 %2026
    %2028 = vrot.lane.b32.xlu0 %v237, 120
    %v2029 = vpop.permute.xlu0 %2028
    %2030 = vrot.lane.b32.xlu0 %v232, 88
    %v2031 = vpop.permute.xlu0 %2030
    %2032 = vrot.lane.b32.xlu0 %v237, 88
    %v2033 = vpop.permute.xlu0 %2032
    %v2034 = vsel %vm322, %v2027, 0
    %v2036 = vsel %vm322, %v2029, 0
    %v2038 = vsel %vm322, %v2031, 0
    %v2040 = vsel %vm322, %v2033, 0
    %2042 = vmatprep.subr.mxu0 0.0
    %2043 = vmatpush1.xpose.msra.mxu0 0.0
    %2044 = vmatprep.subr.mxu0 0.0
    %2045 = vmatpush1.xpose.msra.mxu0 0.0
    %2046 = vmatprep.subr.mxu0 0.0
    %2047 = vmatpush1.xpose.msra.mxu0 0.0
    %2048 = vmatprep.subr.mxu0 0.0
    %2049 = vmatpush1.xpose.msra.mxu0 0.0
    %2050 = vmatprep.subr.mxu0 0.0
    %2051 = vmatpush1.xpose.msra.mxu0 0.0
    %2052 = vmatprep.subr.mxu0 0.0
    %2053 = vmatpush1.xpose.msra.mxu0 0.0
    %2054 = vmatprep.subr.mxu0 0.0
    %2055 = vmatpush1.xpose.msra.mxu0 0.0
    %2056 = vmatprep.subr.mxu0 0.0
    %2057 = vmatpush1.xpose.msra.mxu0 0.0
    %2058 = vmatprep.subr.mxu0 0.0
    %2059 = vmatpush1.xpose.msra.mxu0 0.0
    %2060 = vmatprep.subr.mxu0 0.0
    %2061 = vmatpush1.xpose.msra.mxu0 0.0
    %2062 = vmatprep.subr.mxu0 0.0
    %2063 = vmatpush1.xpose.msra.mxu0 0.0
    %2064 = vmatprep.subr.mxu0 0.0
    %2065 = vmatpush1.xpose.msra.mxu0 0.0
    %2066 = vmatprep.subr.mxu0 0.0
    %2067 = vmatpush1.xpose.msra.mxu0 0.0
    %2068 = vmatprep.subr.mxu0 0.0
    %2069 = vmatpush1.xpose.msra.mxu0 0.0
    %2070 = vmatprep.subr.mxu0 0.0
    %2071 = vmatpush1.xpose.msra.mxu0 %v2040
    %2072 = vmatprep.subr.mxu0 0.0
    %2073 = vmatpush1.xpose.msra.mxu0 %v2038
    %2074 = vmatprep.subr.mxu0 0.0
    %2075 = vmatpush2.xpose.msra.mxu0 0.0
    %2076 = vmatprep.subr.mxu0 0.0
    %2077 = vmatpush2.xpose.msra.mxu0 0.0
    %2078 = vmatprep.subr.mxu0 0.0
    %2079 = vmatpush2.xpose.msra.mxu0 0.0
    %2080 = vmatprep.subr.mxu0 0.0
    %2081 = vmatpush2.xpose.msra.mxu0 0.0
    %2082 = vmatprep.subr.mxu0 0.0
    %2083 = vmatpush2.xpose.msra.mxu0 0.0
    %2084 = vmatprep.subr.mxu0 0.0
    %2085 = vmatpush2.xpose.msra.mxu0 0.0
    %2086 = vmatprep.subr.mxu0 0.0
    %2087 = vmatpush2.xpose.msra.mxu0 0.0
    %2088 = vmatprep.subr.mxu0 0.0
    %2089 = vmatpush2.xpose.msra.mxu0 0.0
    %2090 = vmatprep.subr.mxu0 0.0
    %2091 = vmatpush2.xpose.msra.mxu0 0.0
    %2092 = vmatprep.subr.mxu0 0.0
    %2093 = vmatpush2.xpose.msra.mxu0 0.0
    %2094 = vmatprep.subr.mxu0 0.0
    %2095 = vmatpush2.xpose.msra.mxu0 0.0
    %2096 = vmatprep.subr.mxu0 0.0
    %2097 = vmatpush2.xpose.msra.mxu0 0.0
    %2098 = vmatprep.subr.mxu0 0.0
    %2099 = vmatpush2.xpose.msra.mxu0 0.0
    %2100 = vmatprep.subr.mxu0 0.0
    %2101 = vmatpush2.xpose.msra.mxu0 0.0
    %2102 = vmatprep.subr.mxu0 0.0
    %2103 = vmatpush2.xpose.msra.mxu0 0.0
    %2104 = vmatprep.subr.mxu0 0.0
    %2105 = vmatpush2.xpose.msra.mxu0 0.0
    %2106 = vmatprep.mubr.f32.mxu0 0.0
    %2107 = vmatmul.mubr.f32.gmra.mxu0 %v2034
    %v2108 = vpop.f32.mrf.mxu0
    %v2109 = vadd.f32 %v1921, %v2108
    %v2110 = vpop.f32.mrf.mxu0
    %2111 = vmatprep.mubr.f32.mxu0 0.0
    %2112 = vmatmul.mubr.f32.gmra.mxu0 %v2036
    %v2113 = vpop.f32.mrf.mxu0
    %v2114 = vadd.f32 %v1922, %v2113
    %v2115 = vpop.f32.mrf.mxu0
    %2116 = vdwg.mxu0
    %2117 = vrot.lane.b32.xlu0 %v242, 120
    %v2118 = vpop.permute.xlu0 %2117
    %2119 = vrot.lane.b32.xlu0 %v247, 120
    %v2120 = vpop.permute.xlu0 %2119
    %2121 = vrot.lane.b32.xlu0 %v242, 88
    %v2122 = vpop.permute.xlu0 %2121
    %2123 = vrot.lane.b32.xlu0 %v247, 88
    %v2124 = vpop.permute.xlu0 %2123
    %v2125 = vsel %vm322, %v2118, 0
    %v2127 = vsel %vm322, %v2120, 0
    %v2129 = vsel %vm322, %v2122, 0
    %v2131 = vsel %vm322, %v2124, 0
    %2133 = vmatprep.subr.mxu0 0.0
    %2134 = vmatpush1.xpose.msra.mxu0 0.0
    %2135 = vmatprep.subr.mxu0 0.0
    %2136 = vmatpush1.xpose.msra.mxu0 0.0
    %2137 = vmatprep.subr.mxu0 0.0
    %2138 = vmatpush1.xpose.msra.mxu0 0.0
    %2139 = vmatprep.subr.mxu0 0.0
    %2140 = vmatpush1.xpose.msra.mxu0 0.0
    %2141 = vmatprep.subr.mxu0 0.0
    %2142 = vmatpush1.xpose.msra.mxu0 0.0
    %2143 = vmatprep.subr.mxu0 0.0
    %2144 = vmatpush1.xpose.msra.mxu0 0.0
    %2145 = vmatprep.subr.mxu0 0.0
    %2146 = vmatpush1.xpose.msra.mxu0 0.0
    %2147 = vmatprep.subr.mxu0 0.0
    %2148 = vmatpush1.xpose.msra.mxu0 0.0
    %2149 = vmatprep.subr.mxu0 0.0
    %2150 = vmatpush1.xpose.msra.mxu0 0.0
    %2151 = vmatprep.subr.mxu0 0.0
    %2152 = vmatpush1.xpose.msra.mxu0 0.0
    %2153 = vmatprep.subr.mxu0 0.0
    %2154 = vmatpush1.xpose.msra.mxu0 0.0
    %2155 = vmatprep.subr.mxu0 0.0
    %2156 = vmatpush1.xpose.msra.mxu0 0.0
    %2157 = vmatprep.subr.mxu0 0.0
    %2158 = vmatpush1.xpose.msra.mxu0 0.0
    %2159 = vmatprep.subr.mxu0 0.0
    %2160 = vmatpush1.xpose.msra.mxu0 0.0
    %2161 = vmatprep.subr.mxu0 0.0
    %2162 = vmatpush1.xpose.msra.mxu0 %v2131
    %2163 = vmatprep.subr.mxu0 0.0
    %2164 = vmatpush1.xpose.msra.mxu0 %v2129
    %2165 = vmatprep.subr.mxu0 0.0
    %2166 = vmatpush2.xpose.msra.mxu0 0.0
    %2167 = vmatprep.subr.mxu0 0.0
    %2168 = vmatpush2.xpose.msra.mxu0 0.0
    %2169 = vmatprep.subr.mxu0 0.0
    %2170 = vmatpush2.xpose.msra.mxu0 0.0
    %2171 = vmatprep.subr.mxu0 0.0
    %2172 = vmatpush2.xpose.msra.mxu0 0.0
    %2173 = vmatprep.subr.mxu0 0.0
    %2174 = vmatpush2.xpose.msra.mxu0 0.0
    %2175 = vmatprep.subr.mxu0 0.0
    %2176 = vmatpush2.xpose.msra.mxu0 0.0
    %2177 = vmatprep.subr.mxu0 0.0
    %2178 = vmatpush2.xpose.msra.mxu0 0.0
    %2179 = vmatprep.subr.mxu0 0.0
    %2180 = vmatpush2.xpose.msra.mxu0 0.0
    %2181 = vmatprep.subr.mxu0 0.0
    %2182 = vmatpush2.xpose.msra.mxu0 0.0
    %2183 = vmatprep.subr.mxu0 0.0
    %2184 = vmatpush2.xpose.msra.mxu0 0.0
    %2185 = vmatprep.subr.mxu0 0.0
    %2186 = vmatpush2.xpose.msra.mxu0 0.0
    %2187 = vmatprep.subr.mxu0 0.0
    %2188 = vmatpush2.xpose.msra.mxu0 0.0
    %2189 = vmatprep.subr.mxu0 0.0
    %2190 = vmatpush2.xpose.msra.mxu0 0.0
    %2191 = vmatprep.subr.mxu0 0.0
    %2192 = vmatpush2.xpose.msra.mxu0 0.0
    %2193 = vmatprep.subr.mxu0 0.0
    %2194 = vmatpush2.xpose.msra.mxu0 0.0
    %2195 = vmatprep.subr.mxu0 0.0
    %2196 = vmatpush2.xpose.msra.mxu0 0.0
    %2197 = vmatprep.mubr.f32.mxu0 0.0
    %2198 = vmatmul.mubr.f32.gmra.mxu0 %v2125
    %v2199 = vpop.f32.mrf.mxu0
    %v2200 = vadd.f32 %v1923, %v2199
    %v2201 = vpop.f32.mrf.mxu0
    %2202 = vmatprep.mubr.f32.mxu0 0.0
    %2203 = vmatmul.mubr.f32.gmra.mxu0 %v2127
    %v2204 = vpop.f32.mrf.mxu0
    %v2205 = vadd.f32 %v1924, %v2204
    %v2206 = vpop.f32.mrf.mxu0
    %2207 = vdwg.mxu0
    %2208 = vrot.lane.b32.xlu0 %v252, 120
    %v2209 = vpop.permute.xlu0 %2208
    %2210 = vrot.lane.b32.xlu0 %v257, 120
    %v2211 = vpop.permute.xlu0 %2210
    %2212 = vrot.lane.b32.xlu0 %v252, 88
    %v2213 = vpop.permute.xlu0 %2212
    %2214 = vrot.lane.b32.xlu0 %v257, 88
    %v2215 = vpop.permute.xlu0 %2214
    %v2216 = vsel %vm322, %v2209, 0
    %v2218 = vsel %vm322, %v2211, 0
    %v2220 = vsel %vm322, %v2213, 0
    %v2222 = vsel %vm322, %v2215, 0
    %2224 = vmatprep.subr.mxu0 0.0
    %2225 = vmatpush1.xpose.msra.mxu0 0.0
    %2226 = vmatprep.subr.mxu0 0.0
    %2227 = vmatpush1.xpose.msra.mxu0 0.0
    %2228 = vmatprep.subr.mxu0 0.0
    %2229 = vmatpush1.xpose.msra.mxu0 0.0
    %2230 = vmatprep.subr.mxu0 0.0
    %2231 = vmatpush1.xpose.msra.mxu0 0.0
    %2232 = vmatprep.subr.mxu0 0.0
    %2233 = vmatpush1.xpose.msra.mxu0 0.0
    %2234 = vmatprep.subr.mxu0 0.0
    %2235 = vmatpush1.xpose.msra.mxu0 0.0
    %2236 = vmatprep.subr.mxu0 0.0
    %2237 = vmatpush1.xpose.msra.mxu0 0.0
    %2238 = vmatprep.subr.mxu0 0.0
    %2239 = vmatpush1.xpose.msra.mxu0 0.0
    %2240 = vmatprep.subr.mxu0 0.0
    %2241 = vmatpush1.xpose.msra.mxu0 0.0
    %2242 = vmatprep.subr.mxu0 0.0
    %2243 = vmatpush1.xpose.msra.mxu0 0.0
    %2244 = vmatprep.subr.mxu0 0.0
    %2245 = vmatpush1.xpose.msra.mxu0 0.0
    %2246 = vmatprep.subr.mxu0 0.0
    %2247 = vmatpush1.xpose.msra.mxu0 0.0
    %2248 = vmatprep.subr.mxu0 0.0
    %2249 = vmatpush1.xpose.msra.mxu0 0.0
    %2250 = vmatprep.subr.mxu0 0.0
    %2251 = vmatpush1.xpose.msra.mxu0 0.0
    %2252 = vmatprep.subr.mxu0 0.0
    %2253 = vmatpush1.xpose.msra.mxu0 %v2222
    %2254 = vmatprep.subr.mxu0 0.0
    %2255 = vmatpush1.xpose.msra.mxu0 %v2220
    %2256 = vmatprep.subr.mxu0 0.0
    %2257 = vmatpush2.xpose.msra.mxu0 0.0
    %2258 = vmatprep.subr.mxu0 0.0
    %2259 = vmatpush2.xpose.msra.mxu0 0.0
    %2260 = vmatprep.subr.mxu0 0.0
    %2261 = vmatpush2.xpose.msra.mxu0 0.0
    %2262 = vmatprep.subr.mxu0 0.0
    %2263 = vmatpush2.xpose.msra.mxu0 0.0
    %2264 = vmatprep.subr.mxu0 0.0
    %2265 = vmatpush2.xpose.msra.mxu0 0.0
    %2266 = vmatprep.subr.mxu0 0.0
    %2267 = vmatpush2.xpose.msra.mxu0 0.0
    %2268 = vmatprep.subr.mxu0 0.0
    %2269 = vmatpush2.xpose.msra.mxu0 0.0
    %2270 = vmatprep.subr.mxu0 0.0
    %2271 = vmatpush2.xpose.msra.mxu0 0.0
    %2272 = vmatprep.subr.mxu0 0.0
    %2273 = vmatpush2.xpose.msra.mxu0 0.0
    %2274 = vmatprep.subr.mxu0 0.0
    %2275 = vmatpush2.xpose.msra.mxu0 0.0
    %2276 = vmatprep.subr.mxu0 0.0
    %2277 = vmatpush2.xpose.msra.mxu0 0.0
    %2278 = vmatprep.subr.mxu0 0.0
    %2279 = vmatpush2.xpose.msra.mxu0 0.0
    %2280 = vmatprep.subr.mxu0 0.0
    %2281 = vmatpush2.xpose.msra.mxu0 0.0
    %2282 = vmatprep.subr.mxu0 0.0
    %2283 = vmatpush2.xpose.msra.mxu0 0.0
    %2284 = vmatprep.subr.mxu0 0.0
    %2285 = vmatpush2.xpose.msra.mxu0 0.0
    %2286 = vmatprep.subr.mxu0 0.0
    %2287 = vmatpush2.xpose.msra.mxu0 0.0
    %2288 = vmatprep.mubr.f32.mxu0 0.0
    %2289 = vmatmul.mubr.f32.gmra.mxu0 %v2216
    %v2290 = vpop.f32.mrf.mxu0
    %v2291 = vadd.f32 %v1925, %v2290
    %v2292 = vpop.f32.mrf.mxu0
    %2293 = vmatprep.mubr.f32.mxu0 0.0
    %2294 = vmatmul.mubr.f32.gmra.mxu0 %v2218
    %v2295 = vpop.f32.mrf.mxu0
    %v2296 = vadd.f32 %v1926, %v2295
    %v2297 = vpop.f32.mrf.mxu0
    %2298 = vdwg.mxu0
    %2299 = vrot.lane.b32.xlu0 %v262, 120
    %v2300 = vpop.permute.xlu0 %2299
    %2301 = vrot.lane.b32.xlu0 %v267, 120
    %v2302 = vpop.permute.xlu0 %2301
    %2303 = vrot.lane.b32.xlu0 %v262, 88
    %v2304 = vpop.permute.xlu0 %2303
    %2305 = vrot.lane.b32.xlu0 %v267, 88
    %v2306 = vpop.permute.xlu0 %2305
    %v2307 = vsel %vm322, %v2300, 0
    %v2309 = vsel %vm322, %v2302, 0
    %v2311 = vsel %vm322, %v2304, 0
    %v2313 = vsel %vm322, %v2306, 0
    %2315 = vmatprep.subr.mxu0 0.0
    %2316 = vmatpush1.xpose.msra.mxu0 0.0
    %2317 = vmatprep.subr.mxu0 0.0
    %2318 = vmatpush1.xpose.msra.mxu0 0.0
    %2319 = vmatprep.subr.mxu0 0.0
    %2320 = vmatpush1.xpose.msra.mxu0 0.0
    %2321 = vmatprep.subr.mxu0 0.0
    %2322 = vmatpush1.xpose.msra.mxu0 0.0
    %2323 = vmatprep.subr.mxu0 0.0
    %2324 = vmatpush1.xpose.msra.mxu0 0.0
    %2325 = vmatprep.subr.mxu0 0.0
    %2326 = vmatpush1.xpose.msra.mxu0 0.0
    %2327 = vmatprep.subr.mxu0 0.0
    %2328 = vmatpush1.xpose.msra.mxu0 0.0
    %2329 = vmatprep.subr.mxu0 0.0
    %2330 = vmatpush1.xpose.msra.mxu0 0.0
    %2331 = vmatprep.subr.mxu0 0.0
    %2332 = vmatpush1.xpose.msra.mxu0 0.0
    %2333 = vmatprep.subr.mxu0 0.0
    %2334 = vmatpush1.xpose.msra.mxu0 0.0
    %2335 = vmatprep.subr.mxu0 0.0
    %2336 = vmatpush1.xpose.msra.mxu0 0.0
    %2337 = vmatprep.subr.mxu0 0.0
    %2338 = vmatpush1.xpose.msra.mxu0 0.0
    %2339 = vmatprep.subr.mxu0 0.0
    %2340 = vmatpush1.xpose.msra.mxu0 0.0
    %2341 = vmatprep.subr.mxu0 0.0
    %2342 = vmatpush1.xpose.msra.mxu0 0.0
    %2343 = vmatprep.subr.mxu0 0.0
    %2344 = vmatpush1.xpose.msra.mxu0 %v2313
    %2345 = vmatprep.subr.mxu0 0.0
    %2346 = vmatpush1.xpose.msra.mxu0 %v2311
    %2347 = vmatprep.subr.mxu0 0.0
    %2348 = vmatpush2.xpose.msra.mxu0 0.0
    %2349 = vmatprep.subr.mxu0 0.0
    %2350 = vmatpush2.xpose.msra.mxu0 0.0
    %2351 = vmatprep.subr.mxu0 0.0
    %2352 = vmatpush2.xpose.msra.mxu0 0.0
    %2353 = vmatprep.subr.mxu0 0.0
    %2354 = vmatpush2.xpose.msra.mxu0 0.0
    %2355 = vmatprep.subr.mxu0 0.0
    %2356 = vmatpush2.xpose.msra.mxu0 0.0
    %2357 = vmatprep.subr.mxu0 0.0
    %2358 = vmatpush2.xpose.msra.mxu0 0.0
    %2359 = vmatprep.subr.mxu0 0.0
    %2360 = vmatpush2.xpose.msra.mxu0 0.0
    %2361 = vmatprep.subr.mxu0 0.0
    %2362 = vmatpush2.xpose.msra.mxu0 0.0
    %2363 = vmatprep.subr.mxu0 0.0
    %2364 = vmatpush2.xpose.msra.mxu0 0.0
    %2365 = vmatprep.subr.mxu0 0.0
    %2366 = vmatpush2.xpose.msra.mxu0 0.0
    %2367 = vmatprep.subr.mxu0 0.0
    %2368 = vmatpush2.xpose.msra.mxu0 0.0
    %2369 = vmatprep.subr.mxu0 0.0
    %2370 = vmatpush2.xpose.msra.mxu0 0.0
    %2371 = vmatprep.subr.mxu0 0.0
    %2372 = vmatpush2.xpose.msra.mxu0 0.0
    %2373 = vmatprep.subr.mxu0 0.0
    %2374 = vmatpush2.xpose.msra.mxu0 0.0
    %2375 = vmatprep.subr.mxu0 0.0
    %2376 = vmatpush2.xpose.msra.mxu0 0.0
    %2377 = vmatprep.subr.mxu0 0.0
    %2378 = vmatpush2.xpose.msra.mxu0 0.0
    %2379 = vmatprep.mubr.f32.mxu0 0.0
    %2380 = vmatmul.mubr.f32.gmra.mxu0 %v2307
    %v2381 = vpop.f32.mrf.mxu0
    %v2382 = vadd.f32 %v1927, %v2381
    %v2383 = vpop.f32.mrf.mxu0
    %2384 = vmatprep.mubr.f32.mxu0 0.0
    %2385 = vmatmul.mubr.f32.gmra.mxu0 %v2309
    %v2386 = vpop.f32.mrf.mxu0
    %v2387 = vadd.f32 %v1928, %v2386
    %v2388 = vpop.f32.mrf.mxu0
    %2389 = vdwg.mxu0
    %2390 = vrot.lane.b32.xlu0 %v272, 120
    %v2391 = vpop.permute.xlu0 %2390
    %2392 = vrot.lane.b32.xlu0 %v277, 120
    %v2393 = vpop.permute.xlu0 %2392
    %2394 = vrot.lane.b32.xlu0 %v272, 88
    %v2395 = vpop.permute.xlu0 %2394
    %2396 = vrot.lane.b32.xlu0 %v277, 88
    %v2397 = vpop.permute.xlu0 %2396
    %v2398 = vsel %vm322, %v2391, 0
    %v2400 = vsel %vm322, %v2393, 0
    %v2402 = vsel %vm322, %v2395, 0
    %v2404 = vsel %vm322, %v2397, 0
    %2406 = vmatprep.subr.mxu0 0.0
    %2407 = vmatpush1.xpose.msra.mxu0 0.0
    %2408 = vmatprep.subr.mxu0 0.0
    %2409 = vmatpush1.xpose.msra.mxu0 0.0
    %2410 = vmatprep.subr.mxu0 0.0
    %2411 = vmatpush1.xpose.msra.mxu0 0.0
    %2412 = vmatprep.subr.mxu0 0.0
    %2413 = vmatpush1.xpose.msra.mxu0 0.0
    %2414 = vmatprep.subr.mxu0 0.0
    %2415 = vmatpush1.xpose.msra.mxu0 0.0
    %2416 = vmatprep.subr.mxu0 0.0
    %2417 = vmatpush1.xpose.msra.mxu0 0.0
    %2418 = vmatprep.subr.mxu0 0.0
    %2419 = vmatpush1.xpose.msra.mxu0 0.0
    %2420 = vmatprep.subr.mxu0 0.0
    %2421 = vmatpush1.xpose.msra.mxu0 0.0
    %2422 = vmatprep.subr.mxu0 0.0
    %2423 = vmatpush1.xpose.msra.mxu0 0.0
    %2424 = vmatprep.subr.mxu0 0.0
    %2425 = vmatpush1.xpose.msra.mxu0 0.0
    %2426 = vmatprep.subr.mxu0 0.0
    %2427 = vmatpush1.xpose.msra.mxu0 0.0
    %2428 = vmatprep.subr.mxu0 0.0
    %2429 = vmatpush1.xpose.msra.mxu0 0.0
    %2430 = vmatprep.subr.mxu0 0.0
    %2431 = vmatpush1.xpose.msra.mxu0 0.0
    %2432 = vmatprep.subr.mxu0 0.0
    %2433 = vmatpush1.xpose.msra.mxu0 0.0
    %2434 = vmatprep.subr.mxu0 0.0
    %2435 = vmatpush1.xpose.msra.mxu0 %v2404
    %2436 = vmatprep.subr.mxu0 0.0
    %2437 = vmatpush1.xpose.msra.mxu0 %v2402
    %2438 = vmatprep.subr.mxu0 0.0
    %2439 = vmatpush2.xpose.msra.mxu0 0.0
    %2440 = vmatprep.subr.mxu0 0.0
    %2441 = vmatpush2.xpose.msra.mxu0 0.0
    %2442 = vmatprep.subr.mxu0 0.0
    %2443 = vmatpush2.xpose.msra.mxu0 0.0
    %2444 = vmatprep.subr.mxu0 0.0
    %2445 = vmatpush2.xpose.msra.mxu0 0.0
    %2446 = vmatprep.subr.mxu0 0.0
    %2447 = vmatpush2.xpose.msra.mxu0 0.0
    %2448 = vmatprep.subr.mxu0 0.0
    %2449 = vmatpush2.xpose.msra.mxu0 0.0
    %2450 = vmatprep.subr.mxu0 0.0
    %2451 = vmatpush2.xpose.msra.mxu0 0.0
    %2452 = vmatprep.subr.mxu0 0.0
    %2453 = vmatpush2.xpose.msra.mxu0 0.0
    %2454 = vmatprep.subr.mxu0 0.0
    %2455 = vmatpush2.xpose.msra.mxu0 0.0
    %2456 = vmatprep.subr.mxu0 0.0
    %2457 = vmatpush2.xpose.msra.mxu0 0.0
    %2458 = vmatprep.subr.mxu0 0.0
    %2459 = vmatpush2.xpose.msra.mxu0 0.0
    %2460 = vmatprep.subr.mxu0 0.0
    %2461 = vmatpush2.xpose.msra.mxu0 0.0
    %2462 = vmatprep.subr.mxu0 0.0
    %2463 = vmatpush2.xpose.msra.mxu0 0.0
    %2464 = vmatprep.subr.mxu0 0.0
    %2465 = vmatpush2.xpose.msra.mxu0 0.0
    %2466 = vmatprep.subr.mxu0 0.0
    %2467 = vmatpush2.xpose.msra.mxu0 0.0
    %2468 = vmatprep.subr.mxu0 0.0
    %2469 = vmatpush2.xpose.msra.mxu0 0.0
    %2470 = vmatprep.mubr.f32.mxu0 0.0
    %2471 = vmatmul.mubr.f32.gmra.mxu0 %v2398
    %v2472 = vpop.f32.mrf.mxu0
    %v2473 = vadd.f32 %v1929, %v2472
    %v2474 = vpop.f32.mrf.mxu0
    %2475 = vmatprep.mubr.f32.mxu0 0.0
    %2476 = vmatmul.mubr.f32.gmra.mxu0 %v2400
    %v2477 = vpop.f32.mrf.mxu0
    %v2478 = vadd.f32 %v1930, %v2477
    %v2479 = vpop.f32.mrf.mxu0
    %2480 = vdwg.mxu0
    %2481 = vrot.lane.b32.xlu0 %v282, 120
    %v2482 = vpop.permute.xlu0 %2481
    %2483 = vrot.lane.b32.xlu0 %v287, 120
    %v2484 = vpop.permute.xlu0 %2483
    %2485 = vrot.lane.b32.xlu0 %v282, 88
    %v2486 = vpop.permute.xlu0 %2485
    %2487 = vrot.lane.b32.xlu0 %v287, 88
    %v2488 = vpop.permute.xlu0 %2487
    %v2489 = vsel %vm322, %v2482, 0
    %v2491 = vsel %vm322, %v2484, 0
    %v2493 = vsel %vm322, %v2486, 0
    %v2495 = vsel %vm322, %v2488, 0
    %2497 = vmatprep.subr.mxu0 0.0
    %2498 = vmatpush1.xpose.msra.mxu0 0.0
    %2499 = vmatprep.subr.mxu0 0.0
    %2500 = vmatpush1.xpose.msra.mxu0 0.0
    %2501 = vmatprep.subr.mxu0 0.0
    %2502 = vmatpush1.xpose.msra.mxu0 0.0
    %2503 = vmatprep.subr.mxu0 0.0
    %2504 = vmatpush1.xpose.msra.mxu0 0.0
    %2505 = vmatprep.subr.mxu0 0.0
    %2506 = vmatpush1.xpose.msra.mxu0 0.0
    %2507 = vmatprep.subr.mxu0 0.0
    %2508 = vmatpush1.xpose.msra.mxu0 0.0
    %2509 = vmatprep.subr.mxu0 0.0
    %2510 = vmatpush1.xpose.msra.mxu0 0.0
    %2511 = vmatprep.subr.mxu0 0.0
    %2512 = vmatpush1.xpose.msra.mxu0 0.0
    %2513 = vmatprep.subr.mxu0 0.0
    %2514 = vmatpush1.xpose.msra.mxu0 0.0
    %2515 = vmatprep.subr.mxu0 0.0
    %2516 = vmatpush1.xpose.msra.mxu0 0.0
    %2517 = vmatprep.subr.mxu0 0.0
    %2518 = vmatpush1.xpose.msra.mxu0 0.0
    %2519 = vmatprep.subr.mxu0 0.0
    %2520 = vmatpush1.xpose.msra.mxu0 0.0
    %2521 = vmatprep.subr.mxu0 0.0
    %2522 = vmatpush1.xpose.msra.mxu0 0.0
    %2523 = vmatprep.subr.mxu0 0.0
    %2524 = vmatpush1.xpose.msra.mxu0 0.0
    %2525 = vmatprep.subr.mxu0 0.0
    %2526 = vmatpush1.xpose.msra.mxu0 %v2495
    %2527 = vmatprep.subr.mxu0 0.0
    %2528 = vmatpush1.xpose.msra.mxu0 %v2493
    %2529 = vmatprep.subr.mxu0 0.0
    %2530 = vmatpush2.xpose.msra.mxu0 0.0
    %2531 = vmatprep.subr.mxu0 0.0
    %2532 = vmatpush2.xpose.msra.mxu0 0.0
    %2533 = vmatprep.subr.mxu0 0.0
    %2534 = vmatpush2.xpose.msra.mxu0 0.0
    %2535 = vmatprep.subr.mxu0 0.0
    %2536 = vmatpush2.xpose.msra.mxu0 0.0
    %2537 = vmatprep.subr.mxu0 0.0
    %2538 = vmatpush2.xpose.msra.mxu0 0.0
    %2539 = vmatprep.subr.mxu0 0.0
    %2540 = vmatpush2.xpose.msra.mxu0 0.0
    %2541 = vmatprep.subr.mxu0 0.0
    %2542 = vmatpush2.xpose.msra.mxu0 0.0
    %2543 = vmatprep.subr.mxu0 0.0
    %2544 = vmatpush2.xpose.msra.mxu0 0.0
    %2545 = vmatprep.subr.mxu0 0.0
    %2546 = vmatpush2.xpose.msra.mxu0 0.0
    %2547 = vmatprep.subr.mxu0 0.0
    %2548 = vmatpush2.xpose.msra.mxu0 0.0
    %2549 = vmatprep.subr.mxu0 0.0
    %2550 = vmatpush2.xpose.msra.mxu0 0.0
    %2551 = vmatprep.subr.mxu0 0.0
    %2552 = vmatpush2.xpose.msra.mxu0 0.0
    %2553 = vmatprep.subr.mxu0 0.0
    %2554 = vmatpush2.xpose.msra.mxu0 0.0
    %2555 = vmatprep.subr.mxu0 0.0
    %2556 = vmatpush2.xpose.msra.mxu0 0.0
    %2557 = vmatprep.subr.mxu0 0.0
    %2558 = vmatpush2.xpose.msra.mxu0 0.0
    %2559 = vmatprep.subr.mxu0 0.0
    %2560 = vmatpush2.xpose.msra.mxu0 0.0
    %2561 = vmatprep.mubr.f32.mxu0 0.0
    %2562 = vmatmul.mubr.f32.gmra.mxu0 %v2489
    %v2563 = vpop.f32.mrf.mxu0
    %v2564 = vadd.f32 %v1931, %v2563
    %v2565 = vpop.f32.mrf.mxu0
    %2566 = vmatprep.mubr.f32.mxu0 0.0
    %2567 = vmatmul.mubr.f32.gmra.mxu0 %v2491
    %v2568 = vpop.f32.mrf.mxu0
    %v2569 = vadd.f32 %v1932, %v2568
    %v2570 = vpop.f32.mrf.mxu0
    %2571 = vdwg.mxu0
    %2572 = vrot.lane.b32.xlu0 %v292, 120
    %v2573 = vpop.permute.xlu0 %2572
    %2574 = vrot.lane.b32.xlu0 %v297, 120
    %v2575 = vpop.permute.xlu0 %2574
    %2576 = vrot.lane.b32.xlu0 %v292, 88
    %v2577 = vpop.permute.xlu0 %2576
    %2578 = vrot.lane.b32.xlu0 %v297, 88
    %v2579 = vpop.permute.xlu0 %2578
    %v2580 = vsel %vm322, %v2573, 0
    %v2582 = vsel %vm322, %v2575, 0
    %v2584 = vsel %vm322, %v2577, 0
    %v2586 = vsel %vm322, %v2579, 0
    %2588 = vmatprep.subr.mxu0 0.0
    %2589 = vmatpush1.xpose.msra.mxu0 0.0
    %2590 = vmatprep.subr.mxu0 0.0
    %2591 = vmatpush1.xpose.msra.mxu0 0.0
    %2592 = vmatprep.subr.mxu0 0.0
    %2593 = vmatpush1.xpose.msra.mxu0 0.0
    %2594 = vmatprep.subr.mxu0 0.0
    %2595 = vmatpush1.xpose.msra.mxu0 0.0
    %2596 = vmatprep.subr.mxu0 0.0
    %2597 = vmatpush1.xpose.msra.mxu0 0.0
    %2598 = vmatprep.subr.mxu0 0.0
    %2599 = vmatpush1.xpose.msra.mxu0 0.0
    %2600 = vmatprep.subr.mxu0 0.0
    %2601 = vmatpush1.xpose.msra.mxu0 0.0
    %2602 = vmatprep.subr.mxu0 0.0
    %2603 = vmatpush1.xpose.msra.mxu0 0.0
    %2604 = vmatprep.subr.mxu0 0.0
    %2605 = vmatpush1.xpose.msra.mxu0 0.0
    %2606 = vmatprep.subr.mxu0 0.0
    %2607 = vmatpush1.xpose.msra.mxu0 0.0
    %2608 = vmatprep.subr.mxu0 0.0
    %2609 = vmatpush1.xpose.msra.mxu0 0.0
    %2610 = vmatprep.subr.mxu0 0.0
    %2611 = vmatpush1.xpose.msra.mxu0 0.0
    %2612 = vmatprep.subr.mxu0 0.0
    %2613 = vmatpush1.xpose.msra.mxu0 0.0
    %2614 = vmatprep.subr.mxu0 0.0
    %2615 = vmatpush1.xpose.msra.mxu0 0.0
    %2616 = vmatprep.subr.mxu0 0.0
    %2617 = vmatpush1.xpose.msra.mxu0 %v2586
    %2618 = vmatprep.subr.mxu0 0.0
    %2619 = vmatpush1.xpose.msra.mxu0 %v2584
    %2620 = vmatprep.subr.mxu0 0.0
    %2621 = vmatpush2.xpose.msra.mxu0 0.0
    %2622 = vmatprep.subr.mxu0 0.0
    %2623 = vmatpush2.xpose.msra.mxu0 0.0
    %2624 = vmatprep.subr.mxu0 0.0
    %2625 = vmatpush2.xpose.msra.mxu0 0.0
    %2626 = vmatprep.subr.mxu0 0.0
    %2627 = vmatpush2.xpose.msra.mxu0 0.0
    %2628 = vmatprep.subr.mxu0 0.0
    %2629 = vmatpush2.xpose.msra.mxu0 0.0
    %2630 = vmatprep.subr.mxu0 0.0
    %2631 = vmatpush2.xpose.msra.mxu0 0.0
    %2632 = vmatprep.subr.mxu0 0.0
    %2633 = vmatpush2.xpose.msra.mxu0 0.0
    %2634 = vmatprep.subr.mxu0 0.0
    %2635 = vmatpush2.xpose.msra.mxu0 0.0
    %2636 = vmatprep.subr.mxu0 0.0
    %2637 = vmatpush2.xpose.msra.mxu0 0.0
    %2638 = vmatprep.subr.mxu0 0.0
    %2639 = vmatpush2.xpose.msra.mxu0 0.0
    %2640 = vmatprep.subr.mxu0 0.0
    %2641 = vmatpush2.xpose.msra.mxu0 0.0
    %2642 = vmatprep.subr.mxu0 0.0
    %2643 = vmatpush2.xpose.msra.mxu0 0.0
    %2644 = vmatprep.subr.mxu0 0.0
    %2645 = vmatpush2.xpose.msra.mxu0 0.0
    %2646 = vmatprep.subr.mxu0 0.0
    %2647 = vmatpush2.xpose.msra.mxu0 0.0
    %2648 = vmatprep.subr.mxu0 0.0
    %2649 = vmatpush2.xpose.msra.mxu0 0.0
    %2650 = vmatprep.subr.mxu0 0.0
    %2651 = vmatpush2.xpose.msra.mxu0 0.0
    %2652 = vmatprep.mubr.f32.mxu0 0.0
    %2653 = vmatmul.mubr.f32.gmra.mxu0 %v2580
    %v2654 = vpop.f32.mrf.mxu0
    %v2655 = vadd.f32 %v1933, %v2654
    %v2656 = vpop.f32.mrf.mxu0
    %2657 = vmatprep.mubr.f32.mxu0 0.0
    %2658 = vmatmul.mubr.f32.gmra.mxu0 %v2582
    %v2659 = vpop.f32.mrf.mxu0
    %v2660 = vadd.f32 %v1934, %v2659
    %v2661 = vpop.f32.mrf.mxu0
    %2662 = vdwg.mxu0
    %v2663 = vsel %vm1029, %v2018, -inf
    %2664 = vmax.xlane.f32.xlu0 %v2663
    %v2665 = vpop.xlane.xlu0 %2664
    %v2666 = vsel %vm1029, %v2023, -inf
    %2667 = vmax.xlane.f32.xlu0 %v2666
    %v2668 = vpop.xlane.xlu0 %2667
    %v2669 = vsel %vm1029, %v2109, -inf
    %2670 = vmax.xlane.f32.xlu0 %v2669
    %v2671 = vpop.xlane.xlu0 %2670
    %v2672 = vsel %vm1029, %v2114, -inf
    %2673 = vmax.xlane.f32.xlu0 %v2672
    %v2674 = vpop.xlane.xlu0 %2673
    %v2675 = vsel %vm1029, %v2200, -inf
    %2676 = vmax.xlane.f32.xlu0 %v2675
    %v2677 = vpop.xlane.xlu0 %2676
    %v2678 = vsel %vm1029, %v2205, -inf
    %2679 = vmax.xlane.f32.xlu0 %v2678
    %v2680 = vpop.xlane.xlu0 %2679
    %v2681 = vsel %vm1029, %v2291, -inf
    %2682 = vmax.xlane.f32.xlu0 %v2681
    %v2683 = vpop.xlane.xlu0 %2682
    %v2684 = vsel %vm1029, %v2296, -inf
    %2685 = vmax.xlane.f32.xlu0 %v2684
    %v2686 = vpop.xlane.xlu0 %2685
    %v2687 = vsel %vm1029, %v2382, -inf
    %2688 = vmax.xlane.f32.xlu0 %v2687
    %v2689 = vpop.xlane.xlu0 %2688
    %v2690 = vsel %vm1029, %v2387, -inf
    %2691 = vmax.xlane.f32.xlu0 %v2690
    %v2692 = vpop.xlane.xlu0 %2691
    %v2693 = vsel %vm1029, %v2473, -inf
    %2694 = vmax.xlane.f32.xlu0 %v2693
    %v2695 = vpop.xlane.xlu0 %2694
    %v2696 = vsel %vm1029, %v2478, -inf
    %2697 = vmax.xlane.f32.xlu0 %v2696
    %v2698 = vpop.xlane.xlu0 %2697
    %v2699 = vsel %vm1029, %v2564, -inf
    %2700 = vmax.xlane.f32.xlu0 %v2699
    %v2701 = vpop.xlane.xlu0 %2700
    %v2702 = vsel %vm1029, %v2569, -inf
    %2703 = vmax.xlane.f32.xlu0 %v2702
    %v2704 = vpop.xlane.xlu0 %2703
    %v2705 = vsel %vm1029, %v2655, -inf
    %2706 = vmax.xlane.f32.xlu0 %v2705
    %v2707 = vpop.xlane.xlu0 %2706
    %v2708 = vsel %vm1029, %v2660, -inf
    %2709 = vmax.xlane.f32.xlu0 %v2708
    %v2710 = vpop.xlane.xlu0 %2709
    %v2711 = vsub.f32 %v2018, %v2665
    %v2712 = vsub.f32 %v2023, %v2668
    %v2713 = vsub.f32 %v2109, %v2671
    %v2714 = vsub.f32 %v2114, %v2674
    %v2715 = vsub.f32 %v2200, %v2677
    %v2716 = vsub.f32 %v2205, %v2680
    %v2717 = vsub.f32 %v2291, %v2683
    %v2718 = vsub.f32 %v2296, %v2686
    %v2719 = vsub.f32 %v2382, %v2689
    %v2720 = vsub.f32 %v2387, %v2692
    %v2721 = vsub.f32 %v2473, %v2695
    %v2722 = vsub.f32 %v2478, %v2698
    %v2723 = vsub.f32 %v2564, %v2701
    %v2724 = vsub.f32 %v2569, %v2704
    %v2725 = vsub.f32 %v2655, %v2707
    %v2726 = vsub.f32 %v2660, %v2710
    %v2727 = vmul.f32 %v2711, 1.442695
    %v2728 = vpow.pop %v2727
    %v2729 = vmul.f32 %v2712, 1.442695
    %v2730 = vpow.pop %v2729
    %v2731 = vmul.f32 %v2713, 1.442695
    %v2732 = vpow.pop %v2731
    %v2733 = vmul.f32 %v2714, 1.442695
    %v2734 = vpow.pop %v2733
    %v2735 = vmul.f32 %v2715, 1.442695
    %v2736 = vpow.pop %v2735
    %v2737 = vmul.f32 %v2716, 1.442695
    %v2738 = vpow.pop %v2737
    %v2739 = vmul.f32 %v2717, 1.442695
    %v2740 = vpow.pop %v2739
    %v2741 = vmul.f32 %v2718, 1.442695
    %v2742 = vpow.pop %v2741
    %v2743 = vmul.f32 %v2719, 1.442695
    %v2744 = vpow.pop %v2743
    %v2745 = vmul.f32 %v2720, 1.442695
    %v2746 = vpow.pop %v2745
    %v2747 = vmul.f32 %v2721, 1.442695
    %v2748 = vpow.pop %v2747
    %v2749 = vmul.f32 %v2722, 1.442695
    %v2750 = vpow.pop %v2749
    %v2751 = vmul.f32 %v2723, 1.442695
    %v2752 = vpow.pop %v2751
    %v2753 = vmul.f32 %v2724, 1.442695
    %v2754 = vpow.pop %v2753
    %v2755 = vmul.f32 %v2725, 1.442695
    %v2756 = vpow.pop %v2755
    %v2757 = vmul.f32 %v2726, 1.442695
    %v2758 = vpow.pop %v2757
    %v2759 = vsel %vm1029, %v2728, 0.0
    %2760 = vadd.xlane.f32.xlu0 %v2759
    %v2761 = vpop.xlane.xlu0 %2760
    %v2762 = vsel %vm1029, %v2730, 0.0
    %2763 = vadd.xlane.f32.xlu0 %v2762
    %v2764 = vpop.xlane.xlu0 %2763
    %v2765 = vsel %vm1029, %v2732, 0.0
    %2766 = vadd.xlane.f32.xlu0 %v2765
    %v2767 = vpop.xlane.xlu0 %2766
    %v2768 = vsel %vm1029, %v2734, 0.0
    %2769 = vadd.xlane.f32.xlu0 %v2768
    %v2770 = vpop.xlane.xlu0 %2769
    %v2771 = vsel %vm1029, %v2736, 0.0
    %2772 = vadd.xlane.f32.xlu0 %v2771
    %v2773 = vpop.xlane.xlu0 %2772
    %v2774 = vsel %vm1029, %v2738, 0.0
    %2775 = vadd.xlane.f32.xlu0 %v2774
    %v2776 = vpop.xlane.xlu0 %2775
    %v2777 = vsel %vm1029, %v2740, 0.0
    %2778 = vadd.xlane.f32.xlu0 %v2777
    %v2779 = vpop.xlane.xlu0 %2778
    %v2780 = vsel %vm1029, %v2742, 0.0
    %2781 = vadd.xlane.f32.xlu0 %v2780
    %v2782 = vpop.xlane.xlu0 %2781
    %v2783 = vsel %vm1029, %v2744, 0.0
    %2784 = vadd.xlane.f32.xlu0 %v2783
    %v2785 = vpop.xlane.xlu0 %2784
    %v2786 = vsel %vm1029, %v2746, 0.0
    %2787 = vadd.xlane.f32.xlu0 %v2786
    %v2788 = vpop.xlane.xlu0 %2787
    %v2789 = vsel %vm1029, %v2748, 0.0
    %2790 = vadd.xlane.f32.xlu0 %v2789
    %v2791 = vpop.xlane.xlu0 %2790
    %v2792 = vsel %vm1029, %v2750, 0.0
    %2793 = vadd.xlane.f32.xlu0 %v2792
    %v2794 = vpop.xlane.xlu0 %2793
    %v2795 = vsel %vm1029, %v2752, 0.0
    %2796 = vadd.xlane.f32.xlu0 %v2795
    %v2797 = vpop.xlane.xlu0 %2796
    %v2798 = vsel %vm1029, %v2754, 0.0
    %2799 = vadd.xlane.f32.xlu0 %v2798
    %v2800 = vpop.xlane.xlu0 %2799
    %v2801 = vsel %vm1029, %v2756, 0.0
    %2802 = vadd.xlane.f32.xlu0 %v2801
    %v2803 = vpop.xlane.xlu0 %2802
    %v2804 = vsel %vm1029, %v2758, 0.0
    %2805 = vadd.xlane.f32.xlu0 %v2804
    %v2806 = vpop.xlane.xlu0 %2805
    %v2807 = vrcp.pop %v2761
    %v2808 = vmul.f32 %v2728, %v2807
    %v2809 = vrcp.pop %v2764
    %v2810 = vmul.f32 %v2730, %v2809
    %v2811 = vrcp.pop %v2767
    %v2812 = vmul.f32 %v2732, %v2811
    %v2813 = vrcp.pop %v2770
    %v2814 = vmul.f32 %v2734, %v2813
    %v2815 = vrcp.pop %v2773
    %v2816 = vmul.f32 %v2736, %v2815
    %v2817 = vrcp.pop %v2776
    %v2818 = vmul.f32 %v2738, %v2817
    %v2819 = vrcp.pop %v2779
    %v2820 = vmul.f32 %v2740, %v2819
    %v2821 = vrcp.pop %v2782
    %v2822 = vmul.f32 %v2742, %v2821
    %v2823 = vrcp.pop %v2785
    %v2824 = vmul.f32 %v2744, %v2823
    %v2825 = vrcp.pop %v2788
    %v2826 = vmul.f32 %v2746, %v2825
    %v2827 = vrcp.pop %v2791
    %v2828 = vmul.f32 %v2748, %v2827
    %v2829 = vrcp.pop %v2794
    %v2830 = vmul.f32 %v2750, %v2829
    %v2831 = vrcp.pop %v2797
    %v2832 = vmul.f32 %v2752, %v2831
    %v2833 = vrcp.pop %v2800
    %v2834 = vmul.f32 %v2754, %v2833
    %v2835 = vrcp.pop %v2803
    %v2836 = vmul.f32 %v2756, %v2835
    %v2837 = vrcp.pop %v2806
    %v2838 = vmul.f32 %v2758, %v2837
    %2839 = vrot.lane.b32.xlu0 %v222, 56
    %v2840 = vpop.permute.xlu0 %2839
    %2841 = vrot.lane.b32.xlu0 %v227, 56
    %v2842 = vpop.permute.xlu0 %2841
    %v2846 = vsel %vm1029, %v2808, 0
    %v2849 = vsel %vm1029, %v2810, 0
    %2851 = vmatprep.subr.mxu0 0.0
    %2852 = vmatpush1.msra.mxu0 0.0
    %2853 = vmatprep.subr.mxu0 0.0
    %2854 = vmatpush1.msra.mxu0 0.0
    %2855 = vmatprep.subr.mxu0 0.0
    %2856 = vmatpush1.msra.mxu0 0.0
    %2857 = vmatprep.subr.mxu0 0.0
    %2858 = vmatpush1.msra.mxu0 0.0
    %2859 = vmatprep.subr.mxu0 0.0
    %2860 = vmatpush1.msra.mxu0 0.0
    %2861 = vmatprep.subr.mxu0 0.0
    %2862 = vmatpush1.msra.mxu0 0.0
    %2863 = vmatprep.subr.mxu0 0.0
    %2864 = vmatpush1.msra.mxu0 0.0
    %2865 = vmatprep.subr.mxu0 0.0
    %2866 = vmatpush1.msra.mxu0 0.0
    %2867 = vmatprep.subr.mxu0 0.0
    %2868 = vmatpush1.msra.mxu0 0.0
    %2869 = vmatprep.subr.mxu0 0.0
    %2870 = vmatpush1.msra.mxu0 0.0
    %2871 = vmatprep.subr.mxu0 0.0
    %2872 = vmatpush1.msra.mxu0 0.0
    %2873 = vmatprep.subr.mxu0 0.0
    %2874 = vmatpush1.msra.mxu0 0.0
    %2875 = vmatprep.subr.mxu0 0.0
    %2876 = vmatpush1.msra.mxu0 0.0
    %2877 = vmatprep.subr.mxu0 0.0
    %2878 = vmatpush1.msra.mxu0 0.0
    %2879 = vmatprep.subr.mxu0 0.0
    %2880 = vmatpush1.msra.mxu0 %v2842
    %2881 = vmatprep.subr.mxu0 0.0
    %2882 = vmatpush1.msra.mxu0 %v2840
    %2883 = vmatprep.subr.mxu0 0.0
    %2884 = vmatpush2.msra.mxu0 0.0
    %2885 = vmatprep.subr.mxu0 0.0
    %2886 = vmatpush2.msra.mxu0 0.0
    %2887 = vmatprep.subr.mxu0 0.0
    %2888 = vmatpush2.msra.mxu0 0.0
    %2889 = vmatprep.subr.mxu0 0.0
    %2890 = vmatpush2.msra.mxu0 0.0
    %2891 = vmatprep.subr.mxu0 0.0
    %2892 = vmatpush2.msra.mxu0 0.0
    %2893 = vmatprep.subr.mxu0 0.0
    %2894 = vmatpush2.msra.mxu0 0.0
    %2895 = vmatprep.subr.mxu0 0.0
    %2896 = vmatpush2.msra.mxu0 0.0
    %2897 = vmatprep.subr.mxu0 0.0
    %2898 = vmatpush2.msra.mxu0 0.0
    %2899 = vmatprep.subr.mxu0 0.0
    %2900 = vmatpush2.msra.mxu0 0.0
    %2901 = vmatprep.subr.mxu0 0.0
    %2902 = vmatpush2.msra.mxu0 0.0
    %2903 = vmatprep.subr.mxu0 0.0
    %2904 = vmatpush2.msra.mxu0 0.0
    %2905 = vmatprep.subr.mxu0 0.0
    %2906 = vmatpush2.msra.mxu0 0.0
    %2907 = vmatprep.subr.mxu0 0.0
    %2908 = vmatpush2.msra.mxu0 0.0
    %2909 = vmatprep.subr.mxu0 0.0
    %2910 = vmatpush2.msra.mxu0 0.0
    %2911 = vmatprep.subr.mxu0 0.0
    %2912 = vmatpush2.msra.mxu0 0.0
    %2913 = vmatprep.subr.mxu0 0.0
    %2914 = vmatpush2.msra.mxu0 0.0
    %2915 = vmatprep.mubr.f32.mxu0 0.0
    %2916 = vmatmul.mubr.f32.gmra.mxu0 %v2846
    %v2917 = vpop.f32.mrf.mxu0
    %v2918 = vadd.f32 0.0, %v2917
    %v2919 = vpop.f32.mrf.mxu0
    %2920 = vmatprep.mubr.f32.mxu0 0.0
    %2921 = vmatmul.mubr.f32.gmra.mxu0 %v2849
    %v2922 = vpop.f32.mrf.mxu0
    %v2923 = vadd.f32 0.0, %v2922
    %v2924 = vpop.f32.mrf.mxu0
    %2925 = vdwg.mxu0
    %2926 = vrot.lane.b32.xlu0 %v232, 56
    %v2927 = vpop.permute.xlu0 %2926
    %2928 = vrot.lane.b32.xlu0 %v237, 56
    %v2929 = vpop.permute.xlu0 %2928
    %v2933 = vsel %vm1029, %v2812, 0
    %v2936 = vsel %vm1029, %v2814, 0
    %2938 = vmatprep.subr.mxu0 0.0
    %2939 = vmatpush1.msra.mxu0 0.0
    %2940 = vmatprep.subr.mxu0 0.0
    %2941 = vmatpush1.msra.mxu0 0.0
    %2942 = vmatprep.subr.mxu0 0.0
    %2943 = vmatpush1.msra.mxu0 0.0
    %2944 = vmatprep.subr.mxu0 0.0
    %2945 = vmatpush1.msra.mxu0 0.0
    %2946 = vmatprep.subr.mxu0 0.0
    %2947 = vmatpush1.msra.mxu0 0.0
    %2948 = vmatprep.subr.mxu0 0.0
    %2949 = vmatpush1.msra.mxu0 0.0
    %2950 = vmatprep.subr.mxu0 0.0
    %2951 = vmatpush1.msra.mxu0 0.0
    %2952 = vmatprep.subr.mxu0 0.0
    %2953 = vmatpush1.msra.mxu0 0.0
    %2954 = vmatprep.subr.mxu0 0.0
    %2955 = vmatpush1.msra.mxu0 0.0
    %2956 = vmatprep.subr.mxu0 0.0
    %2957 = vmatpush1.msra.mxu0 0.0
    %2958 = vmatprep.subr.mxu0 0.0
    %2959 = vmatpush1.msra.mxu0 0.0
    %2960 = vmatprep.subr.mxu0 0.0
    %2961 = vmatpush1.msra.mxu0 0.0
    %2962 = vmatprep.subr.mxu0 0.0
    %2963 = vmatpush1.msra.mxu0 0.0
    %2964 = vmatprep.subr.mxu0 0.0
    %2965 = vmatpush1.msra.mxu0 0.0
    %2966 = vmatprep.subr.mxu0 0.0
    %2967 = vmatpush1.msra.mxu0 %v2929
    %2968 = vmatprep.subr.mxu0 0.0
    %2969 = vmatpush1.msra.mxu0 %v2927
    %2970 = vmatprep.subr.mxu0 0.0
    %2971 = vmatpush2.msra.mxu0 0.0
    %2972 = vmatprep.subr.mxu0 0.0
    %2973 = vmatpush2.msra.mxu0 0.0
    %2974 = vmatprep.subr.mxu0 0.0
    %2975 = vmatpush2.msra.mxu0 0.0
    %2976 = vmatprep.subr.mxu0 0.0
    %2977 = vmatpush2.msra.mxu0 0.0
    %2978 = vmatprep.subr.mxu0 0.0
    %2979 = vmatpush2.msra.mxu0 0.0
    %2980 = vmatprep.subr.mxu0 0.0
    %2981 = vmatpush2.msra.mxu0 0.0
    %2982 = vmatprep.subr.mxu0 0.0
    %2983 = vmatpush2.msra.mxu0 0.0
    %2984 = vmatprep.subr.mxu0 0.0
    %2985 = vmatpush2.msra.mxu0 0.0
    %2986 = vmatprep.subr.mxu0 0.0
    %2987 = vmatpush2.msra.mxu0 0.0
    %2988 = vmatprep.subr.mxu0 0.0
    %2989 = vmatpush2.msra.mxu0 0.0
    %2990 = vmatprep.subr.mxu0 0.0
    %2991 = vmatpush2.msra.mxu0 0.0
    %2992 = vmatprep.subr.mxu0 0.0
    %2993 = vmatpush2.msra.mxu0 0.0
    %2994 = vmatprep.subr.mxu0 0.0
    %2995 = vmatpush2.msra.mxu0 0.0
    %2996 = vmatprep.subr.mxu0 0.0
    %2997 = vmatpush2.msra.mxu0 0.0
    %2998 = vmatprep.subr.mxu0 0.0
    %2999 = vmatpush2.msra.mxu0 0.0
    %3000 = vmatprep.subr.mxu0 0.0
    %3001 = vmatpush2.msra.mxu0 0.0
    %3002 = vmatprep.mubr.f32.mxu0 0.0
    %3003 = vmatmul.mubr.f32.gmra.mxu0 %v2933
    %v3004 = vpop.f32.mrf.mxu0
    %v3005 = vadd.f32 0.0, %v3004
    %v3006 = vpop.f32.mrf.mxu0
    %3007 = vmatprep.mubr.f32.mxu0 0.0
    %3008 = vmatmul.mubr.f32.gmra.mxu0 %v2936
    %v3009 = vpop.f32.mrf.mxu0
    %v3010 = vadd.f32 0.0, %v3009
    %v3011 = vpop.f32.mrf.mxu0
    %3012 = vdwg.mxu0
    %3013 = vrot.lane.b32.xlu0 %v242, 56
    %v3014 = vpop.permute.xlu0 %3013
    %3015 = vrot.lane.b32.xlu0 %v247, 56
    %v3016 = vpop.permute.xlu0 %3015
    %v3020 = vsel %vm1029, %v2816, 0
    %v3023 = vsel %vm1029, %v2818, 0
    %3025 = vmatprep.subr.mxu0 0.0
    %3026 = vmatpush1.msra.mxu0 0.0
    %3027 = vmatprep.subr.mxu0 0.0
    %3028 = vmatpush1.msra.mxu0 0.0
    %3029 = vmatprep.subr.mxu0 0.0
    %3030 = vmatpush1.msra.mxu0 0.0
    %3031 = vmatprep.subr.mxu0 0.0
    %3032 = vmatpush1.msra.mxu0 0.0
    %3033 = vmatprep.subr.mxu0 0.0
    %3034 = vmatpush1.msra.mxu0 0.0
    %3035 = vmatprep.subr.mxu0 0.0
    %3036 = vmatpush1.msra.mxu0 0.0
    %3037 = vmatprep.subr.mxu0 0.0
    %3038 = vmatpush1.msra.mxu0 0.0
    %3039 = vmatprep.subr.mxu0 0.0
    %3040 = vmatpush1.msra.mxu0 0.0
    %3041 = vmatprep.subr.mxu0 0.0
    %3042 = vmatpush1.msra.mxu0 0.0
    %3043 = vmatprep.subr.mxu0 0.0
    %3044 = vmatpush1.msra.mxu0 0.0
    %3045 = vmatprep.subr.mxu0 0.0
    %3046 = vmatpush1.msra.mxu0 0.0
    %3047 = vmatprep.subr.mxu0 0.0
    %3048 = vmatpush1.msra.mxu0 0.0
    %3049 = vmatprep.subr.mxu0 0.0
    %3050 = vmatpush1.msra.mxu0 0.0
    %3051 = vmatprep.subr.mxu0 0.0
    %3052 = vmatpush1.msra.mxu0 0.0
    %3053 = vmatprep.subr.mxu0 0.0
    %3054 = vmatpush1.msra.mxu0 %v3016
    %3055 = vmatprep.subr.mxu0 0.0
    %3056 = vmatpush1.msra.mxu0 %v3014
    %3057 = vmatprep.subr.mxu0 0.0
    %3058 = vmatpush2.msra.mxu0 0.0
    %3059 = vmatprep.subr.mxu0 0.0
    %3060 = vmatpush2.msra.mxu0 0.0
    %3061 = vmatprep.subr.mxu0 0.0
    %3062 = vmatpush2.msra.mxu0 0.0
    %3063 = vmatprep.subr.mxu0 0.0
    %3064 = vmatpush2.msra.mxu0 0.0
    %3065 = vmatprep.subr.mxu0 0.0
    %3066 = vmatpush2.msra.mxu0 0.0
    %3067 = vmatprep.subr.mxu0 0.0
    %3068 = vmatpush2.msra.mxu0 0.0
    %3069 = vmatprep.subr.mxu0 0.0
    %3070 = vmatpush2.msra.mxu0 0.0
    %3071 = vmatprep.subr.mxu0 0.0
    %3072 = vmatpush2.msra.mxu0 0.0
    %3073 = vmatprep.subr.mxu0 0.0
    %3074 = vmatpush2.msra.mxu0 0.0
    %3075 = vmatprep.subr.mxu0 0.0
    %3076 = vmatpush2.msra.mxu0 0.0
    %3077 = vmatprep.subr.mxu0 0.0
    %3078 = vmatpush2.msra.mxu0 0.0
    %3079 = vmatprep.subr.mxu0 0.0
    %3080 = vmatpush2.msra.mxu0 0.0
    %3081 = vmatprep.subr.mxu0 0.0
    %3082 = vmatpush2.msra.mxu0 0.0
    %3083 = vmatprep.subr.mxu0 0.0
    %3084 = vmatpush2.msra.mxu0 0.0
    %3085 = vmatprep.subr.mxu0 0.0
    %3086 = vmatpush2.msra.mxu0 0.0
    %3087 = vmatprep.subr.mxu0 0.0
    %3088 = vmatpush2.msra.mxu0 0.0
    %3089 = vmatprep.mubr.f32.mxu0 0.0
    %3090 = vmatmul.mubr.f32.gmra.mxu0 %v3020
    %v3091 = vpop.f32.mrf.mxu0
    %v3092 = vadd.f32 0.0, %v3091
    %v3093 = vpop.f32.mrf.mxu0
    %3094 = vmatprep.mubr.f32.mxu0 0.0
    %3095 = vmatmul.mubr.f32.gmra.mxu0 %v3023
    %v3096 = vpop.f32.mrf.mxu0
    %v3097 = vadd.f32 0.0, %v3096
    %v3098 = vpop.f32.mrf.mxu0
    %3099 = vdwg.mxu0
    %3100 = vrot.lane.b32.xlu0 %v252, 56
    %v3101 = vpop.permute.xlu0 %3100
    %3102 = vrot.lane.b32.xlu0 %v257, 56
    %v3103 = vpop.permute.xlu0 %3102
    %v3107 = vsel %vm1029, %v2820, 0
    %v3110 = vsel %vm1029, %v2822, 0
    %3112 = vmatprep.subr.mxu0 0.0
    %3113 = vmatpush1.msra.mxu0 0.0
    %3114 = vmatprep.subr.mxu0 0.0
    %3115 = vmatpush1.msra.mxu0 0.0
    %3116 = vmatprep.subr.mxu0 0.0
    %3117 = vmatpush1.msra.mxu0 0.0
    %3118 = vmatprep.subr.mxu0 0.0
    %3119 = vmatpush1.msra.mxu0 0.0
    %3120 = vmatprep.subr.mxu0 0.0
    %3121 = vmatpush1.msra.mxu0 0.0
    %3122 = vmatprep.subr.mxu0 0.0
    %3123 = vmatpush1.msra.mxu0 0.0
    %3124 = vmatprep.subr.mxu0 0.0
    %3125 = vmatpush1.msra.mxu0 0.0
    %3126 = vmatprep.subr.mxu0 0.0
    %3127 = vmatpush1.msra.mxu0 0.0
    %3128 = vmatprep.subr.mxu0 0.0
    %3129 = vmatpush1.msra.mxu0 0.0
    %3130 = vmatprep.subr.mxu0 0.0
    %3131 = vmatpush1.msra.mxu0 0.0
    %3132 = vmatprep.subr.mxu0 0.0
    %3133 = vmatpush1.msra.mxu0 0.0
    %3134 = vmatprep.subr.mxu0 0.0
    %3135 = vmatpush1.msra.mxu0 0.0
    %3136 = vmatprep.subr.mxu0 0.0
    %3137 = vmatpush1.msra.mxu0 0.0
    %3138 = vmatprep.subr.mxu0 0.0
    %3139 = vmatpush1.msra.mxu0 0.0
    %3140 = vmatprep.subr.mxu0 0.0
    %3141 = vmatpush1.msra.mxu0 %v3103
    %3142 = vmatprep.subr.mxu0 0.0
    %3143 = vmatpush1.msra.mxu0 %v3101
    %3144 = vmatprep.subr.mxu0 0.0
    %3145 = vmatpush2.msra.mxu0 0.0
    %3146 = vmatprep.subr.mxu0 0.0
    %3147 = vmatpush2.msra.mxu0 0.0
    %3148 = vmatprep.subr.mxu0 0.0
    %3149 = vmatpush2.msra.mxu0 0.0
    %3150 = vmatprep.subr.mxu0 0.0
    %3151 = vmatpush2.msra.mxu0 0.0
    %3152 = vmatprep.subr.mxu0 0.0
    %3153 = vmatpush2.msra.mxu0 0.0
    %3154 = vmatprep.subr.mxu0 0.0
    %3155 = vmatpush2.msra.mxu0 0.0
    %3156 = vmatprep.subr.mxu0 0.0
    %3157 = vmatpush2.msra.mxu0 0.0
    %3158 = vmatprep.subr.mxu0 0.0
    %3159 = vmatpush2.msra.mxu0 0.0
    %3160 = vmatprep.subr.mxu0 0.0
    %3161 = vmatpush2.msra.mxu0 0.0
    %3162 = vmatprep.subr.mxu0 0.0
    %3163 = vmatpush2.msra.mxu0 0.0
    %3164 = vmatprep.subr.mxu0 0.0
    %3165 = vmatpush2.msra.mxu0 0.0
    %3166 = vmatprep.subr.mxu0 0.0
    %3167 = vmatpush2.msra.mxu0 0.0
    %3168 = vmatprep.subr.mxu0 0.0
    %3169 = vmatpush2.msra.mxu0 0.0
    %3170 = vmatprep.subr.mxu0 0.0
    %3171 = vmatpush2.msra.mxu0 0.0
    %3172 = vmatprep.subr.mxu0 0.0
    %3173 = vmatpush2.msra.mxu0 0.0
    %3174 = vmatprep.subr.mxu0 0.0
    %3175 = vmatpush2.msra.mxu0 0.0
    %3176 = vmatprep.mubr.f32.mxu0 0.0
    %3177 = vmatmul.mubr.f32.gmra.mxu0 %v3107
    %v3178 = vpop.f32.mrf.mxu0
    %v3179 = vadd.f32 0.0, %v3178
    %v3180 = vpop.f32.mrf.mxu0
    %3181 = vmatprep.mubr.f32.mxu0 0.0
    %3182 = vmatmul.mubr.f32.gmra.mxu0 %v3110
    %v3183 = vpop.f32.mrf.mxu0
    %v3184 = vadd.f32 0.0, %v3183
    %v3185 = vpop.f32.mrf.mxu0
    %3186 = vdwg.mxu0
    %3187 = vrot.lane.b32.xlu0 %v262, 56
    %v3188 = vpop.permute.xlu0 %3187
    %3189 = vrot.lane.b32.xlu0 %v267, 56
    %v3190 = vpop.permute.xlu0 %3189
    %v3194 = vsel %vm1029, %v2824, 0
    %v3197 = vsel %vm1029, %v2826, 0
    %3199 = vmatprep.subr.mxu0 0.0
    %3200 = vmatpush1.msra.mxu0 0.0
    %3201 = vmatprep.subr.mxu0 0.0
    %3202 = vmatpush1.msra.mxu0 0.0
    %3203 = vmatprep.subr.mxu0 0.0
    %3204 = vmatpush1.msra.mxu0 0.0
    %3205 = vmatprep.subr.mxu0 0.0
    %3206 = vmatpush1.msra.mxu0 0.0
    %3207 = vmatprep.subr.mxu0 0.0
    %3208 = vmatpush1.msra.mxu0 0.0
    %3209 = vmatprep.subr.mxu0 0.0
    %3210 = vmatpush1.msra.mxu0 0.0
    %3211 = vmatprep.subr.mxu0 0.0
    %3212 = vmatpush1.msra.mxu0 0.0
    %3213 = vmatprep.subr.mxu0 0.0
    %3214 = vmatpush1.msra.mxu0 0.0
    %3215 = vmatprep.subr.mxu0 0.0
    %3216 = vmatpush1.msra.mxu0 0.0
    %3217 = vmatprep.subr.mxu0 0.0
    %3218 = vmatpush1.msra.mxu0 0.0
    %3219 = vmatprep.subr.mxu0 0.0
    %3220 = vmatpush1.msra.mxu0 0.0
    %3221 = vmatprep.subr.mxu0 0.0
    %3222 = vmatpush1.msra.mxu0 0.0
    %3223 = vmatprep.subr.mxu0 0.0
    %3224 = vmatpush1.msra.mxu0 0.0
    %3225 = vmatprep.subr.mxu0 0.0
    %3226 = vmatpush1.msra.mxu0 0.0
    %3227 = vmatprep.subr.mxu0 0.0
    %3228 = vmatpush1.msra.mxu0 %v3190
    %3229 = vmatprep.subr.mxu0 0.0
    %3230 = vmatpush1.msra.mxu0 %v3188
    %3231 = vmatprep.subr.mxu0 0.0
    %3232 = vmatpush2.msra.mxu0 0.0
    %3233 = vmatprep.subr.mxu0 0.0
    %3234 = vmatpush2.msra.mxu0 0.0
    %3235 = vmatprep.subr.mxu0 0.0
    %3236 = vmatpush2.msra.mxu0 0.0
    %3237 = vmatprep.subr.mxu0 0.0
    %3238 = vmatpush2.msra.mxu0 0.0
    %3239 = vmatprep.subr.mxu0 0.0
    %3240 = vmatpush2.msra.mxu0 0.0
    %3241 = vmatprep.subr.mxu0 0.0
    %3242 = vmatpush2.msra.mxu0 0.0
    %3243 = vmatprep.subr.mxu0 0.0
    %3244 = vmatpush2.msra.mxu0 0.0
    %3245 = vmatprep.subr.mxu0 0.0
    %3246 = vmatpush2.msra.mxu0 0.0
    %3247 = vmatprep.subr.mxu0 0.0
    %3248 = vmatpush2.msra.mxu0 0.0
    %3249 = vmatprep.subr.mxu0 0.0
    %3250 = vmatpush2.msra.mxu0 0.0
    %3251 = vmatprep.subr.mxu0 0.0
    %3252 = vmatpush2.msra.mxu0 0.0
    %3253 = vmatprep.subr.mxu0 0.0
    %3254 = vmatpush2.msra.mxu0 0.0
    %3255 = vmatprep.subr.mxu0 0.0
    %3256 = vmatpush2.msra.mxu0 0.0
    %3257 = vmatprep.subr.mxu0 0.0
    %3258 = vmatpush2.msra.mxu0 0.0
    %3259 = vmatprep.subr.mxu0 0.0
    %3260 = vmatpush2.msra.mxu0 0.0
    %3261 = vmatprep.subr.mxu0 0.0
    %3262 = vmatpush2.msra.mxu0 0.0
    %3263 = vmatprep.mubr.f32.mxu0 0.0
    %3264 = vmatmul.mubr.f32.gmra.mxu0 %v3194
    %v3265 = vpop.f32.mrf.mxu0
    %v3266 = vadd.f32 0.0, %v3265
    %v3267 = vpop.f32.mrf.mxu0
    %3268 = vmatprep.mubr.f32.mxu0 0.0
    %3269 = vmatmul.mubr.f32.gmra.mxu0 %v3197
    %v3270 = vpop.f32.mrf.mxu0
    %v3271 = vadd.f32 0.0, %v3270
    %v3272 = vpop.f32.mrf.mxu0
    %3273 = vdwg.mxu0
    %3274 = vrot.lane.b32.xlu0 %v272, 56
    %v3275 = vpop.permute.xlu0 %3274
    %3276 = vrot.lane.b32.xlu0 %v277, 56
    %v3277 = vpop.permute.xlu0 %3276
    %v3281 = vsel %vm1029, %v2828, 0
    %v3284 = vsel %vm1029, %v2830, 0
    %3286 = vmatprep.subr.mxu0 0.0
    %3287 = vmatpush1.msra.mxu0 0.0
    %3288 = vmatprep.subr.mxu0 0.0
    %3289 = vmatpush1.msra.mxu0 0.0
    %3290 = vmatprep.subr.mxu0 0.0
    %3291 = vmatpush1.msra.mxu0 0.0
    %3292 = vmatprep.subr.mxu0 0.0
    %3293 = vmatpush1.msra.mxu0 0.0
    %3294 = vmatprep.subr.mxu0 0.0
    %3295 = vmatpush1.msra.mxu0 0.0
    %3296 = vmatprep.subr.mxu0 0.0
    %3297 = vmatpush1.msra.mxu0 0.0
    %3298 = vmatprep.subr.mxu0 0.0
    %3299 = vmatpush1.msra.mxu0 0.0
    %3300 = vmatprep.subr.mxu0 0.0
    %3301 = vmatpush1.msra.mxu0 0.0
    %3302 = vmatprep.subr.mxu0 0.0
    %3303 = vmatpush1.msra.mxu0 0.0
    %3304 = vmatprep.subr.mxu0 0.0
    %3305 = vmatpush1.msra.mxu0 0.0
    %3306 = vmatprep.subr.mxu0 0.0
    %3307 = vmatpush1.msra.mxu0 0.0
    %3308 = vmatprep.subr.mxu0 0.0
    %3309 = vmatpush1.msra.mxu0 0.0
    %3310 = vmatprep.subr.mxu0 0.0
    %3311 = vmatpush1.msra.mxu0 0.0
    %3312 = vmatprep.subr.mxu0 0.0
    %3313 = vmatpush1.msra.mxu0 0.0
    %3314 = vmatprep.subr.mxu0 0.0
    %3315 = vmatpush1.msra.mxu0 %v3277
    %3316 = vmatprep.subr.mxu0 0.0
    %3317 = vmatpush1.msra.mxu0 %v3275
    %3318 = vmatprep.subr.mxu0 0.0
    %3319 = vmatpush2.msra.mxu0 0.0
    %3320 = vmatprep.subr.mxu0 0.0
    %3321 = vmatpush2.msra.mxu0 0.0
    %3322 = vmatprep.subr.mxu0 0.0
    %3323 = vmatpush2.msra.mxu0 0.0
    %3324 = vmatprep.subr.mxu0 0.0
    %3325 = vmatpush2.msra.mxu0 0.0
    %3326 = vmatprep.subr.mxu0 0.0
    %3327 = vmatpush2.msra.mxu0 0.0
    %3328 = vmatprep.subr.mxu0 0.0
    %3329 = vmatpush2.msra.mxu0 0.0
    %3330 = vmatprep.subr.mxu0 0.0
    %3331 = vmatpush2.msra.mxu0 0.0
    %3332 = vmatprep.subr.mxu0 0.0
    %3333 = vmatpush2.msra.mxu0 0.0
    %3334 = vmatprep.subr.mxu0 0.0
    %3335 = vmatpush2.msra.mxu0 0.0
    %3336 = vmatprep.subr.mxu0 0.0
    %3337 = vmatpush2.msra.mxu0 0.0
    %3338 = vmatprep.subr.mxu0 0.0
    %3339 = vmatpush2.msra.mxu0 0.0
    %3340 = vmatprep.subr.mxu0 0.0
    %3341 = vmatpush2.msra.mxu0 0.0
    %3342 = vmatprep.subr.mxu0 0.0
    %3343 = vmatpush2.msra.mxu0 0.0
    %3344 = vmatprep.subr.mxu0 0.0
    %3345 = vmatpush2.msra.mxu0 0.0
    %3346 = vmatprep.subr.mxu0 0.0
    %3347 = vmatpush2.msra.mxu0 0.0
    %3348 = vmatprep.subr.mxu0 0.0
    %3349 = vmatpush2.msra.mxu0 0.0
    %3350 = vmatprep.mubr.f32.mxu0 0.0
    %3351 = vmatmul.mubr.f32.gmra.mxu0 %v3281
    %v3352 = vpop.f32.mrf.mxu0
    %v3353 = vadd.f32 0.0, %v3352
    %v3354 = vpop.f32.mrf.mxu0
    %3355 = vmatprep.mubr.f32.mxu0 0.0
    %3356 = vmatmul.mubr.f32.gmra.mxu0 %v3284
    %v3357 = vpop.f32.mrf.mxu0
    %v3358 = vadd.f32 0.0, %v3357
    %v3359 = vpop.f32.mrf.mxu0
    %3360 = vdwg.mxu0
    %3361 = vrot.lane.b32.xlu0 %v282, 56
    %v3362 = vpop.permute.xlu0 %3361
    %3363 = vrot.lane.b32.xlu0 %v287, 56
    %v3364 = vpop.permute.xlu0 %3363
    %v3368 = vsel %vm1029, %v2832, 0
    %v3371 = vsel %vm1029, %v2834, 0
    %3373 = vmatprep.subr.mxu0 0.0
    %3374 = vmatpush1.msra.mxu0 0.0
    %3375 = vmatprep.subr.mxu0 0.0
    %3376 = vmatpush1.msra.mxu0 0.0
    %3377 = vmatprep.subr.mxu0 0.0
    %3378 = vmatpush1.msra.mxu0 0.0
    %3379 = vmatprep.subr.mxu0 0.0
    %3380 = vmatpush1.msra.mxu0 0.0
    %3381 = vmatprep.subr.mxu0 0.0
    %3382 = vmatpush1.msra.mxu0 0.0
    %3383 = vmatprep.subr.mxu0 0.0
    %3384 = vmatpush1.msra.mxu0 0.0
    %3385 = vmatprep.subr.mxu0 0.0
    %3386 = vmatpush1.msra.mxu0 0.0
    %3387 = vmatprep.subr.mxu0 0.0
    %3388 = vmatpush1.msra.mxu0 0.0
    %3389 = vmatprep.subr.mxu0 0.0
    %3390 = vmatpush1.msra.mxu0 0.0
    %3391 = vmatprep.subr.mxu0 0.0
    %3392 = vmatpush1.msra.mxu0 0.0
    %3393 = vmatprep.subr.mxu0 0.0
    %3394 = vmatpush1.msra.mxu0 0.0
    %3395 = vmatprep.subr.mxu0 0.0
    %3396 = vmatpush1.msra.mxu0 0.0
    %3397 = vmatprep.subr.mxu0 0.0
    %3398 = vmatpush1.msra.mxu0 0.0
    %3399 = vmatprep.subr.mxu0 0.0
    %3400 = vmatpush1.msra.mxu0 0.0
    %3401 = vmatprep.subr.mxu0 0.0
    %3402 = vmatpush1.msra.mxu0 %v3364
    %3403 = vmatprep.subr.mxu0 0.0
    %3404 = vmatpush1.msra.mxu0 %v3362
    %3405 = vmatprep.subr.mxu0 0.0
    %3406 = vmatpush2.msra.mxu0 0.0
    %3407 = vmatprep.subr.mxu0 0.0
    %3408 = vmatpush2.msra.mxu0 0.0
    %3409 = vmatprep.subr.mxu0 0.0
    %3410 = vmatpush2.msra.mxu0 0.0
    %3411 = vmatprep.subr.mxu0 0.0
    %3412 = vmatpush2.msra.mxu0 0.0
    %3413 = vmatprep.subr.mxu0 0.0
    %3414 = vmatpush2.msra.mxu0 0.0
    %3415 = vmatprep.subr.mxu0 0.0
    %3416 = vmatpush2.msra.mxu0 0.0
    %3417 = vmatprep.subr.mxu0 0.0
    %3418 = vmatpush2.msra.mxu0 0.0
    %3419 = vmatprep.subr.mxu0 0.0
    %3420 = vmatpush2.msra.mxu0 0.0
    %3421 = vmatprep.subr.mxu0 0.0
    %3422 = vmatpush2.msra.mxu0 0.0
    %3423 = vmatprep.subr.mxu0 0.0
    %3424 = vmatpush2.msra.mxu0 0.0
    %3425 = vmatprep.subr.mxu0 0.0
    %3426 = vmatpush2.msra.mxu0 0.0
    %3427 = vmatprep.subr.mxu0 0.0
    %3428 = vmatpush2.msra.mxu0 0.0
    %3429 = vmatprep.subr.mxu0 0.0
    %3430 = vmatpush2.msra.mxu0 0.0
    %3431 = vmatprep.subr.mxu0 0.0
    %3432 = vmatpush2.msra.mxu0 0.0
    %3433 = vmatprep.subr.mxu0 0.0
    %3434 = vmatpush2.msra.mxu0 0.0
    %3435 = vmatprep.subr.mxu0 0.0
    %3436 = vmatpush2.msra.mxu0 0.0
    %3437 = vmatprep.mubr.f32.mxu0 0.0
    %3438 = vmatmul.mubr.f32.gmra.mxu0 %v3368
    %v3439 = vpop.f32.mrf.mxu0
    %v3440 = vadd.f32 0.0, %v3439
    %v3441 = vpop.f32.mrf.mxu0
    %3442 = vmatprep.mubr.f32.mxu0 0.0
    %3443 = vmatmul.mubr.f32.gmra.mxu0 %v3371
    %v3444 = vpop.f32.mrf.mxu0
    %v3445 = vadd.f32 0.0, %v3444
    %v3446 = vpop.f32.mrf.mxu0
    %3447 = vdwg.mxu0
    %3448 = vrot.lane.b32.xlu0 %v292, 56
    %v3449 = vpop.permute.xlu0 %3448
    %3450 = vrot.lane.b32.xlu0 %v297, 56
    %v3451 = vpop.permute.xlu0 %3450
    %v3455 = vsel %vm1029, %v2836, 0
    %v3458 = vsel %vm1029, %v2838, 0
    %3460 = vmatprep.subr.mxu0 0.0
    %3461 = vmatpush1.msra.mxu0 0.0
    %3462 = vmatprep.subr.mxu0 0.0
    %3463 = vmatpush1.msra.mxu0 0.0
    %3464 = vmatprep.subr.mxu0 0.0
    %3465 = vmatpush1.msra.mxu0 0.0
    %3466 = vmatprep.subr.mxu0 0.0
    %3467 = vmatpush1.msra.mxu0 0.0
    %3468 = vmatprep.subr.mxu0 0.0
    %3469 = vmatpush1.msra.mxu0 0.0
    %3470 = vmatprep.subr.mxu0 0.0
    %3471 = vmatpush1.msra.mxu0 0.0
    %3472 = vmatprep.subr.mxu0 0.0
    %3473 = vmatpush1.msra.mxu0 0.0
    %3474 = vmatprep.subr.mxu0 0.0
    %3475 = vmatpush1.msra.mxu0 0.0
    %3476 = vmatprep.subr.mxu0 0.0
    %3477 = vmatpush1.msra.mxu0 0.0
    %3478 = vmatprep.subr.mxu0 0.0
    %3479 = vmatpush1.msra.mxu0 0.0
    %3480 = vmatprep.subr.mxu0 0.0
    %3481 = vmatpush1.msra.mxu0 0.0
    %3482 = vmatprep.subr.mxu0 0.0
    %3483 = vmatpush1.msra.mxu0 0.0
    %3484 = vmatprep.subr.mxu0 0.0
    %3485 = vmatpush1.msra.mxu0 0.0
    %3486 = vmatprep.subr.mxu0 0.0
    %3487 = vmatpush1.msra.mxu0 0.0
    %3488 = vmatprep.subr.mxu0 0.0
    %3489 = vmatpush1.msra.mxu0 %v3451
    %3490 = vmatprep.subr.mxu0 0.0
    %3491 = vmatpush1.msra.mxu0 %v3449
    %3492 = vmatprep.subr.mxu0 0.0
    %3493 = vmatpush2.msra.mxu0 0.0
    %3494 = vmatprep.subr.mxu0 0.0
    %3495 = vmatpush2.msra.mxu0 0.0
    %3496 = vmatprep.subr.mxu0 0.0
    %3497 = vmatpush2.msra.mxu0 0.0
    %3498 = vmatprep.subr.mxu0 0.0
    %3499 = vmatpush2.msra.mxu0 0.0
    %3500 = vmatprep.subr.mxu0 0.0
    %3501 = vmatpush2.msra.mxu0 0.0
    %3502 = vmatprep.subr.mxu0 0.0
    %3503 = vmatpush2.msra.mxu0 0.0
    %3504 = vmatprep.subr.mxu0 0.0
    %3505 = vmatpush2.msra.mxu0 0.0
    %3506 = vmatprep.subr.mxu0 0.0
    %3507 = vmatpush2.msra.mxu0 0.0
    %3508 = vmatprep.subr.mxu0 0.0
    %3509 = vmatpush2.msra.mxu0 0.0
    %3510 = vmatprep.subr.mxu0 0.0
    %3511 = vmatpush2.msra.mxu0 0.0
    %3512 = vmatprep.subr.mxu0 0.0
    %3513 = vmatpush2.msra.mxu0 0.0
    %3514 = vmatprep.subr.mxu0 0.0
    %3515 = vmatpush2.msra.mxu0 0.0
    %3516 = vmatprep.subr.mxu0 0.0
    %3517 = vmatpush2.msra.mxu0 0.0
    %3518 = vmatprep.subr.mxu0 0.0
    %3519 = vmatpush2.msra.mxu0 0.0
    %3520 = vmatprep.subr.mxu0 0.0
    %3521 = vmatpush2.msra.mxu0 0.0
    %3522 = vmatprep.subr.mxu0 0.0
    %3523 = vmatpush2.msra.mxu0 0.0
    %3524 = vmatprep.mubr.f32.mxu0 0.0
    %3525 = vmatmul.mubr.f32.gmra.mxu0 %v3455
    %v3526 = vpop.f32.mrf.mxu0
    %v3527 = vadd.f32 0.0, %v3526
    %v3528 = vpop.f32.mrf.mxu0
    %3529 = vmatprep.mubr.f32.mxu0 0.0
    %3530 = vmatmul.mubr.f32.gmra.mxu0 %v3458
    %v3531 = vpop.f32.mrf.mxu0
    %v3532 = vadd.f32 0.0, %v3531
    %v3533 = vpop.f32.mrf.mxu0
    %3534 = vdwg.mxu0
    %3551 = vrot.lane.b32.xlu0 %v2918, 8
    %v3552 = vpop.permute.xlu0 %3551
    %3553 = vrot.lane.b32.xlu0 %v2923, 8
    %v3554 = vpop.permute.xlu0 %3553
    %3555 = vrot.lane.b32.xlu0 %v3005, 8
    %v3556 = vpop.permute.xlu0 %3555
    %3557 = vrot.lane.b32.xlu0 %v3010, 8
    %v3558 = vpop.permute.xlu0 %3557
    %3559 = vrot.lane.b32.xlu0 %v3092, 8
    %v3560 = vpop.permute.xlu0 %3559
    %3561 = vrot.lane.b32.xlu0 %v3097, 8
    %v3562 = vpop.permute.xlu0 %3561
    %3563 = vrot.lane.b32.xlu0 %v3179, 8
    %v3564 = vpop.permute.xlu0 %3563
    %3565 = vrot.lane.b32.xlu0 %v3184, 8
    %v3566 = vpop.permute.xlu0 %3565
    %3567 = vrot.lane.b32.xlu0 %v3266, 8
    %v3568 = vpop.permute.xlu0 %3567
    %3569 = vrot.lane.b32.xlu0 %v3271, 8
    %v3570 = vpop.permute.xlu0 %3569
    %3571 = vrot.lane.b32.xlu0 %v3353, 8
    %v3572 = vpop.permute.xlu0 %3571
    %3573 = vrot.lane.b32.xlu0 %v3358, 8
    %v3574 = vpop.permute.xlu0 %3573
    %3575 = vrot.lane.b32.xlu0 %v3440, 8
    %v3576 = vpop.permute.xlu0 %3575
    %3577 = vrot.lane.b32.xlu0 %v3445, 8
    %v3578 = vpop.permute.xlu0 %3577
    %3579 = vrot.lane.b32.xlu0 %v3527, 8
    %v3580 = vpop.permute.xlu0 %3579
    %3581 = vrot.lane.b32.xlu0 %v3532, 8
    %v3582 = vpop.permute.xlu0 %3581
    %vm3599 = vcmask 130112
    %3600 = vst.msk [vmem:[#allocation2] sm:$0xff] %vm3599, %v3552
    %3601 = vst.msk [vmem:[#allocation2 + $0x8] sm:$0xff] %vm3599, %v3554
    %3602 = vst.msk [vmem:[#allocation2 + $0x10] sm:$0xff] %vm3599, %v3556
    %3603 = vst.msk [vmem:[#allocation2 + $0x18] sm:$0xff] %vm3599, %v3558
    %3604 = vst.msk [vmem:[#allocation2 + $0x20] sm:$0xff] %vm3599, %v3560
    %3605 = vst.msk [vmem:[#allocation2 + $0x28] sm:$0xff] %vm3599, %v3562
    %3606 = vst.msk [vmem:[#allocation2 + $0x30] sm:$0xff] %vm3599, %v3564
    %3607 = vst.msk [vmem:[#allocation2 + $0x38] sm:$0xff] %vm3599, %v3566
    %3608 = vst.msk [vmem:[#allocation2 + $0x40] sm:$0xff] %vm3599, %v3568
    %3609 = vst.msk [vmem:[#allocation2 + $0x48] sm:$0xff] %vm3599, %v3570
    %3610 = vst.msk [vmem:[#allocation2 + $0x50] sm:$0xff] %vm3599, %v3572
    %3611 = vst.msk [vmem:[#allocation2 + $0x58] sm:$0xff] %vm3599, %v3574
    %3612 = vst.msk [vmem:[#allocation2 + $0x60] sm:$0xff] %vm3599, %v3576
    %3613 = vst.msk [vmem:[#allocation2 + $0x68] sm:$0xff] %vm3599, %v3578
    %3614 = vst.msk [vmem:[#allocation2 + $0x70] sm:$0xff] %vm3599, %v3580
    %3615 = vst.msk [vmem:[#allocation2 + $0x78] sm:$0xff] %vm3599, %v3582
    %s3616 = scalar_lea.vmem [#allocation9], 32
    %v3617 = vld [vmem:[%s3616] sm:$0xff]
    %v3618 = vld [vmem:[%s3616 + $0x8] sm:$0xff]
    %v3619 = vld [vmem:[%s3616 + $0x40] sm:$0xff]
    %v3620 = vld [vmem:[%s3616 + $0x48] sm:$0xff]
    %v3621 = vld [vmem:[%s3616 + $0x80] sm:$0xff]
    %v3622 = vld [vmem:[%s3616 + $0x88] sm:$0xff]
    %v3623 = vld [vmem:[%s3616 + $0xc0] sm:$0xff]
    %v3624 = vld [vmem:[%s3616 + $0xc8] sm:$0xff]
    %v3625 = vld [vmem:[%s3616 + $0x100] sm:$0xff]
    %v3626 = vld [vmem:[%s3616 + $0x108] sm:$0xff]
    %v3627 = vld [vmem:[%s3616 + $0x140] sm:$0xff]
    %v3628 = vld [vmem:[%s3616 + $0x148] sm:$0xff]
    %v3629 = vld [vmem:[%s3616 + $0x180] sm:$0xff]
    %v3630 = vld [vmem:[%s3616 + $0x188] sm:$0xff]
    %v3631 = vld [vmem:[%s3616 + $0x1c0] sm:$0xff]
    %v3632 = vld [vmem:[%s3616 + $0x1c8] sm:$0xff]
    %3633 = vrot.lane.b32.xlu0 %v222, 112
    %v3634 = vpop.permute.xlu0 %3633
    %3635 = vrot.lane.b32.xlu0 %v227, 112
    %v3636 = vpop.permute.xlu0 %3635
    %3637 = vrot.lane.b32.xlu0 %v222, 80
    %v3638 = vpop.permute.xlu0 %3637
    %3639 = vrot.lane.b32.xlu0 %v227, 80
    %v3640 = vpop.permute.xlu0 %3639
    %v3641 = vsel %vm322, %v3634, 0
    %v3643 = vsel %vm322, %v3636, 0
    %v3645 = vsel %vm322, %v3638, 0
    %v3647 = vsel %vm322, %v3640, 0
    %3649 = vmatprep.subr.mxu0 0.0
    %3650 = vmatpush1.xpose.msra.mxu0 0.0
    %3651 = vmatprep.subr.mxu0 0.0
    %3652 = vmatpush1.xpose.msra.mxu0 0.0
    %3653 = vmatprep.subr.mxu0 0.0
    %3654 = vmatpush1.xpose.msra.mxu0 0.0
    %3655 = vmatprep.subr.mxu0 0.0
    %3656 = vmatpush1.xpose.msra.mxu0 0.0
    %3657 = vmatprep.subr.mxu0 0.0
    %3658 = vmatpush1.xpose.msra.mxu0 0.0
    %3659 = vmatprep.subr.mxu0 0.0
    %3660 = vmatpush1.xpose.msra.mxu0 0.0
    %3661 = vmatprep.subr.mxu0 0.0
    %3662 = vmatpush1.xpose.msra.mxu0 0.0
    %3663 = vmatprep.subr.mxu0 0.0
    %3664 = vmatpush1.xpose.msra.mxu0 0.0
    %3665 = vmatprep.subr.mxu0 0.0
    %3666 = vmatpush1.xpose.msra.mxu0 0.0
    %3667 = vmatprep.subr.mxu0 0.0
    %3668 = vmatpush1.xpose.msra.mxu0 0.0
    %3669 = vmatprep.subr.mxu0 0.0
    %3670 = vmatpush1.xpose.msra.mxu0 0.0
    %3671 = vmatprep.subr.mxu0 0.0
    %3672 = vmatpush1.xpose.msra.mxu0 0.0
    %3673 = vmatprep.subr.mxu0 0.0
    %3674 = vmatpush1.xpose.msra.mxu0 0.0
    %3675 = vmatprep.subr.mxu0 0.0
    %3676 = vmatpush1.xpose.msra.mxu0 0.0
    %3677 = vmatprep.subr.mxu0 0.0
    %3678 = vmatpush1.xpose.msra.mxu0 %v3647
    %3679 = vmatprep.subr.mxu0 0.0
    %3680 = vmatpush1.xpose.msra.mxu0 %v3645
    %3681 = vmatprep.subr.mxu0 0.0
    %3682 = vmatpush2.xpose.msra.mxu0 0.0
    %3683 = vmatprep.subr.mxu0 0.0
    %3684 = vmatpush2.xpose.msra.mxu0 0.0
    %3685 = vmatprep.subr.mxu0 0.0
    %3686 = vmatpush2.xpose.msra.mxu0 0.0
    %3687 = vmatprep.subr.mxu0 0.0
    %3688 = vmatpush2.xpose.msra.mxu0 0.0
    %3689 = vmatprep.subr.mxu0 0.0
    %3690 = vmatpush2.xpose.msra.mxu0 0.0
    %3691 = vmatprep.subr.mxu0 0.0
    %3692 = vmatpush2.xpose.msra.mxu0 0.0
    %3693 = vmatprep.subr.mxu0 0.0
    %3694 = vmatpush2.xpose.msra.mxu0 0.0
    %3695 = vmatprep.subr.mxu0 0.0
    %3696 = vmatpush2.xpose.msra.mxu0 0.0
    %3697 = vmatprep.subr.mxu0 0.0
    %3698 = vmatpush2.xpose.msra.mxu0 0.0
    %3699 = vmatprep.subr.mxu0 0.0
    %3700 = vmatpush2.xpose.msra.mxu0 0.0
    %3701 = vmatprep.subr.mxu0 0.0
    %3702 = vmatpush2.xpose.msra.mxu0 0.0
    %3703 = vmatprep.subr.mxu0 0.0
    %3704 = vmatpush2.xpose.msra.mxu0 0.0
    %3705 = vmatprep.subr.mxu0 0.0
    %3706 = vmatpush2.xpose.msra.mxu0 0.0
    %3707 = vmatprep.subr.mxu0 0.0
    %3708 = vmatpush2.xpose.msra.mxu0 0.0
    %3709 = vmatprep.subr.mxu0 0.0
    %3710 = vmatpush2.xpose.msra.mxu0 0.0
    %3711 = vmatprep.subr.mxu0 0.0
    %3712 = vmatpush2.xpose.msra.mxu0 0.0
    %3713 = vmatprep.mubr.f32.mxu0 0.0
    %3714 = vmatmul.mubr.f32.gmra.mxu0 %v3641
    %v3715 = vpop.f32.mrf.mxu0
    %v3716 = vadd.f32 %v3617, %v3715
    %v3717 = vpop.f32.mrf.mxu0
    %3718 = vmatprep.mubr.f32.mxu0 0.0
    %3719 = vmatmul.mubr.f32.gmra.mxu0 %v3643
    %v3720 = vpop.f32.mrf.mxu0
    %v3721 = vadd.f32 %v3618, %v3720
    %v3722 = vpop.f32.mrf.mxu0
    %3723 = vdwg.mxu0
    %3724 = vrot.lane.b32.xlu0 %v232, 112
    %v3725 = vpop.permute.xlu0 %3724
    %3726 = vrot.lane.b32.xlu0 %v237, 112
    %v3727 = vpop.permute.xlu0 %3726
    %3728 = vrot.lane.b32.xlu0 %v232, 80
    %v3729 = vpop.permute.xlu0 %3728
    %3730 = vrot.lane.b32.xlu0 %v237, 80
    %v3731 = vpop.permute.xlu0 %3730
    %v3732 = vsel %vm322, %v3725, 0
    %v3734 = vsel %vm322, %v3727, 0
    %v3736 = vsel %vm322, %v3729, 0
    %v3738 = vsel %vm322, %v3731, 0
    %3740 = vmatprep.subr.mxu0 0.0
    %3741 = vmatpush1.xpose.msra.mxu0 0.0
    %3742 = vmatprep.subr.mxu0 0.0
    %3743 = vmatpush1.xpose.msra.mxu0 0.0
    %3744 = vmatprep.subr.mxu0 0.0
    %3745 = vmatpush1.xpose.msra.mxu0 0.0
    %3746 = vmatprep.subr.mxu0 0.0
    %3747 = vmatpush1.xpose.msra.mxu0 0.0
    %3748 = vmatprep.subr.mxu0 0.0
    %3749 = vmatpush1.xpose.msra.mxu0 0.0
    %3750 = vmatprep.subr.mxu0 0.0
    %3751 = vmatpush1.xpose.msra.mxu0 0.0
    %3752 = vmatprep.subr.mxu0 0.0
    %3753 = vmatpush1.xpose.msra.mxu0 0.0
    %3754 = vmatprep.subr.mxu0 0.0
    %3755 = vmatpush1.xpose.msra.mxu0 0.0
    %3756 = vmatprep.subr.mxu0 0.0
    %3757 = vmatpush1.xpose.msra.mxu0 0.0
    %3758 = vmatprep.subr.mxu0 0.0
    %3759 = vmatpush1.xpose.msra.mxu0 0.0
    %3760 = vmatprep.subr.mxu0 0.0
    %3761 = vmatpush1.xpose.msra.mxu0 0.0
    %3762 = vmatprep.subr.mxu0 0.0
    %3763 = vmatpush1.xpose.msra.mxu0 0.0
    %3764 = vmatprep.subr.mxu0 0.0
    %3765 = vmatpush1.xpose.msra.mxu0 0.0
    %3766 = vmatprep.subr.mxu0 0.0
    %3767 = vmatpush1.xpose.msra.mxu0 0.0
    %3768 = vmatprep.subr.mxu0 0.0
    %3769 = vmatpush1.xpose.msra.mxu0 %v3738
    %3770 = vmatprep.subr.mxu0 0.0
    %3771 = vmatpush1.xpose.msra.mxu0 %v3736
    %3772 = vmatprep.subr.mxu0 0.0
    %3773 = vmatpush2.xpose.msra.mxu0 0.0
    %3774 = vmatprep.subr.mxu0 0.0
    %3775 = vmatpush2.xpose.msra.mxu0 0.0
    %3776 = vmatprep.subr.mxu0 0.0
    %3777 = vmatpush2.xpose.msra.mxu0 0.0
    %3778 = vmatprep.subr.mxu0 0.0
    %3779 = vmatpush2.xpose.msra.mxu0 0.0
    %3780 = vmatprep.subr.mxu0 0.0
    %3781 = vmatpush2.xpose.msra.mxu0 0.0
    %3782 = vmatprep.subr.mxu0 0.0
    %3783 = vmatpush2.xpose.msra.mxu0 0.0
    %3784 = vmatprep.subr.mxu0 0.0
    %3785 = vmatpush2.xpose.msra.mxu0 0.0
    %3786 = vmatprep.subr.mxu0 0.0
    %3787 = vmatpush2.xpose.msra.mxu0 0.0
    %3788 = vmatprep.subr.mxu0 0.0
    %3789 = vmatpush2.xpose.msra.mxu0 0.0
    %3790 = vmatprep.subr.mxu0 0.0
    %3791 = vmatpush2.xpose.msra.mxu0 0.0
    %3792 = vmatprep.subr.mxu0 0.0
    %3793 = vmatpush2.xpose.msra.mxu0 0.0
    %3794 = vmatprep.subr.mxu0 0.0
    %3795 = vmatpush2.xpose.msra.mxu0 0.0
    %3796 = vmatprep.subr.mxu0 0.0
    %3797 = vmatpush2.xpose.msra.mxu0 0.0
    %3798 = vmatprep.subr.mxu0 0.0
    %3799 = vmatpush2.xpose.msra.mxu0 0.0
    %3800 = vmatprep.subr.mxu0 0.0
    %3801 = vmatpush2.xpose.msra.mxu0 0.0
    %3802 = vmatprep.subr.mxu0 0.0
    %3803 = vmatpush2.xpose.msra.mxu0 0.0
    %3804 = vmatprep.mubr.f32.mxu0 0.0
    %3805 = vmatmul.mubr.f32.gmra.mxu0 %v3732
    %v3806 = vpop.f32.mrf.mxu0
    %v3807 = vadd.f32 %v3619, %v3806
    %v3808 = vpop.f32.mrf.mxu0
    %3809 = vmatprep.mubr.f32.mxu0 0.0
    %3810 = vmatmul.mubr.f32.gmra.mxu0 %v3734
    %v3811 = vpop.f32.mrf.mxu0
    %v3812 = vadd.f32 %v3620, %v3811
    %v3813 = vpop.f32.mrf.mxu0
    %3814 = vdwg.mxu0
    %3815 = vrot.lane.b32.xlu0 %v242, 112
    %v3816 = vpop.permute.xlu0 %3815
    %3817 = vrot.lane.b32.xlu0 %v247, 112
    %v3818 = vpop.permute.xlu0 %3817
    %3819 = vrot.lane.b32.xlu0 %v242, 80
    %v3820 = vpop.permute.xlu0 %3819
    %3821 = vrot.lane.b32.xlu0 %v247, 80
    %v3822 = vpop.permute.xlu0 %3821
    %v3823 = vsel %vm322, %v3816, 0
    %v3825 = vsel %vm322, %v3818, 0
    %v3827 = vsel %vm322, %v3820, 0
    %v3829 = vsel %vm322, %v3822, 0
    %3831 = vmatprep.subr.mxu0 0.0
    %3832 = vmatpush1.xpose.msra.mxu0 0.0
    %3833 = vmatprep.subr.mxu0 0.0
    %3834 = vmatpush1.xpose.msra.mxu0 0.0
    %3835 = vmatprep.subr.mxu0 0.0
    %3836 = vmatpush1.xpose.msra.mxu0 0.0
    %3837 = vmatprep.subr.mxu0 0.0
    %3838 = vmatpush1.xpose.msra.mxu0 0.0
    %3839 = vmatprep.subr.mxu0 0.0
    %3840 = vmatpush1.xpose.msra.mxu0 0.0
    %3841 = vmatprep.subr.mxu0 0.0
    %3842 = vmatpush1.xpose.msra.mxu0 0.0
    %3843 = vmatprep.subr.mxu0 0.0
    %3844 = vmatpush1.xpose.msra.mxu0 0.0
    %3845 = vmatprep.subr.mxu0 0.0
    %3846 = vmatpush1.xpose.msra.mxu0 0.0
    %3847 = vmatprep.subr.mxu0 0.0
    %3848 = vmatpush1.xpose.msra.mxu0 0.0
    %3849 = vmatprep.subr.mxu0 0.0
    %3850 = vmatpush1.xpose.msra.mxu0 0.0
    %3851 = vmatprep.subr.mxu0 0.0
    %3852 = vmatpush1.xpose.msra.mxu0 0.0
    %3853 = vmatprep.subr.mxu0 0.0
    %3854 = vmatpush1.xpose.msra.mxu0 0.0
    %3855 = vmatprep.subr.mxu0 0.0
    %3856 = vmatpush1.xpose.msra.mxu0 0.0
    %3857 = vmatprep.subr.mxu0 0.0
    %3858 = vmatpush1.xpose.msra.mxu0 0.0
    %3859 = vmatprep.subr.mxu0 0.0
    %3860 = vmatpush1.xpose.msra.mxu0 %v3829
    %3861 = vmatprep.subr.mxu0 0.0
    %3862 = vmatpush1.xpose.msra.mxu0 %v3827
    %3863 = vmatprep.subr.mxu0 0.0
    %3864 = vmatpush2.xpose.msra.mxu0 0.0
    %3865 = vmatprep.subr.mxu0 0.0
    %3866 = vmatpush2.xpose.msra.mxu0 0.0
    %3867 = vmatprep.subr.mxu0 0.0
    %3868 = vmatpush2.xpose.msra.mxu0 0.0
    %3869 = vmatprep.subr.mxu0 0.0
    %3870 = vmatpush2.xpose.msra.mxu0 0.0
    %3871 = vmatprep.subr.mxu0 0.0
    %3872 = vmatpush2.xpose.msra.mxu0 0.0
    %3873 = vmatprep.subr.mxu0 0.0
    %3874 = vmatpush2.xpose.msra.mxu0 0.0
    %3875 = vmatprep.subr.mxu0 0.0
    %3876 = vmatpush2.xpose.msra.mxu0 0.0
    %3877 = vmatprep.subr.mxu0 0.0
    %3878 = vmatpush2.xpose.msra.mxu0 0.0
    %3879 = vmatprep.subr.mxu0 0.0
    %3880 = vmatpush2.xpose.msra.mxu0 0.0
    %3881 = vmatprep.subr.mxu0 0.0
    %3882 = vmatpush2.xpose.msra.mxu0 0.0
    %3883 = vmatprep.subr.mxu0 0.0
    %3884 = vmatpush2.xpose.msra.mxu0 0.0
    %3885 = vmatprep.subr.mxu0 0.0
    %3886 = vmatpush2.xpose.msra.mxu0 0.0
    %3887 = vmatprep.subr.mxu0 0.0
    %3888 = vmatpush2.xpose.msra.mxu0 0.0
    %3889 = vmatprep.subr.mxu0 0.0
    %3890 = vmatpush2.xpose.msra.mxu0 0.0
    %3891 = vmatprep.subr.mxu0 0.0
    %3892 = vmatpush2.xpose.msra.mxu0 0.0
    %3893 = vmatprep.subr.mxu0 0.0
    %3894 = vmatpush2.xpose.msra.mxu0 0.0
    %3895 = vmatprep.mubr.f32.mxu0 0.0
    %3896 = vmatmul.mubr.f32.gmra.mxu0 %v3823
    %v3897 = vpop.f32.mrf.mxu0
    %v3898 = vadd.f32 %v3621, %v3897
    %v3899 = vpop.f32.mrf.mxu0
    %3900 = vmatprep.mubr.f32.mxu0 0.0
    %3901 = vmatmul.mubr.f32.gmra.mxu0 %v3825
    %v3902 = vpop.f32.mrf.mxu0
    %v3903 = vadd.f32 %v3622, %v3902
    %v3904 = vpop.f32.mrf.mxu0
    %3905 = vdwg.mxu0
    %3906 = vrot.lane.b32.xlu0 %v252, 112
    %v3907 = vpop.permute.xlu0 %3906
    %3908 = vrot.lane.b32.xlu0 %v257, 112
    %v3909 = vpop.permute.xlu0 %3908
    %3910 = vrot.lane.b32.xlu0 %v252, 80
    %v3911 = vpop.permute.xlu0 %3910
    %3912 = vrot.lane.b32.xlu0 %v257, 80
    %v3913 = vpop.permute.xlu0 %3912
    %v3914 = vsel %vm322, %v3907, 0
    %v3916 = vsel %vm322, %v3909, 0
    %v3918 = vsel %vm322, %v3911, 0
    %v3920 = vsel %vm322, %v3913, 0
    %3922 = vmatprep.subr.mxu0 0.0
    %3923 = vmatpush1.xpose.msra.mxu0 0.0
    %3924 = vmatprep.subr.mxu0 0.0
    %3925 = vmatpush1.xpose.msra.mxu0 0.0
    %3926 = vmatprep.subr.mxu0 0.0
    %3927 = vmatpush1.xpose.msra.mxu0 0.0
    %3928 = vmatprep.subr.mxu0 0.0
    %3929 = vmatpush1.xpose.msra.mxu0 0.0
    %3930 = vmatprep.subr.mxu0 0.0
    %3931 = vmatpush1.xpose.msra.mxu0 0.0
    %3932 = vmatprep.subr.mxu0 0.0
    %3933 = vmatpush1.xpose.msra.mxu0 0.0
    %3934 = vmatprep.subr.mxu0 0.0
    %3935 = vmatpush1.xpose.msra.mxu0 0.0
    %3936 = vmatprep.subr.mxu0 0.0
    %3937 = vmatpush1.xpose.msra.mxu0 0.0
    %3938 = vmatprep.subr.mxu0 0.0
    %3939 = vmatpush1.xpose.msra.mxu0 0.0
    %3940 = vmatprep.subr.mxu0 0.0
    %3941 = vmatpush1.xpose.msra.mxu0 0.0
    %3942 = vmatprep.subr.mxu0 0.0
    %3943 = vmatpush1.xpose.msra.mxu0 0.0
    %3944 = vmatprep.subr.mxu0 0.0
    %3945 = vmatpush1.xpose.msra.mxu0 0.0
    %3946 = vmatprep.subr.mxu0 0.0
    %3947 = vmatpush1.xpose.msra.mxu0 0.0
    %3948 = vmatprep.subr.mxu0 0.0
    %3949 = vmatpush1.xpose.msra.mxu0 0.0
    %3950 = vmatprep.subr.mxu0 0.0
    %3951 = vmatpush1.xpose.msra.mxu0 %v3920
    %3952 = vmatprep.subr.mxu0 0.0
    %3953 = vmatpush1.xpose.msra.mxu0 %v3918
    %3954 = vmatprep.subr.mxu0 0.0
    %3955 = vmatpush2.xpose.msra.mxu0 0.0
    %3956 = vmatprep.subr.mxu0 0.0
    %3957 = vmatpush2.xpose.msra.mxu0 0.0
    %3958 = vmatprep.subr.mxu0 0.0
    %3959 = vmatpush2.xpose.msra.mxu0 0.0
    %3960 = vmatprep.subr.mxu0 0.0
    %3961 = vmatpush2.xpose.msra.mxu0 0.0
    %3962 = vmatprep.subr.mxu0 0.0
    %3963 = vmatpush2.xpose.msra.mxu0 0.0
    %3964 = vmatprep.subr.mxu0 0.0
    %3965 = vmatpush2.xpose.msra.mxu0 0.0
    %3966 = vmatprep.subr.mxu0 0.0
    %3967 = vmatpush2.xpose.msra.mxu0 0.0
    %3968 = vmatprep.subr.mxu0 0.0
    %3969 = vmatpush2.xpose.msra.mxu0 0.0
    %3970 = vmatprep.subr.mxu0 0.0
    %3971 = vmatpush2.xpose.msra.mxu0 0.0
    %3972 = vmatprep.subr.mxu0 0.0
    %3973 = vmatpush2.xpose.msra.mxu0 0.0
    %3974 = vmatprep.subr.mxu0 0.0
    %3975 = vmatpush2.xpose.msra.mxu0 0.0
    %3976 = vmatprep.subr.mxu0 0.0
    %3977 = vmatpush2.xpose.msra.mxu0 0.0
    %3978 = vmatprep.subr.mxu0 0.0
    %3979 = vmatpush2.xpose.msra.mxu0 0.0
    %3980 = vmatprep.subr.mxu0 0.0
    %3981 = vmatpush2.xpose.msra.mxu0 0.0
    %3982 = vmatprep.subr.mxu0 0.0
    %3983 = vmatpush2.xpose.msra.mxu0 0.0
    %3984 = vmatprep.subr.mxu0 0.0
    %3985 = vmatpush2.xpose.msra.mxu0 0.0
    %3986 = vmatprep.mubr.f32.mxu0 0.0
    %3987 = vmatmul.mubr.f32.gmra.mxu0 %v3914
    %v3988 = vpop.f32.mrf.mxu0
    %v3989 = vadd.f32 %v3623, %v3988
    %v3990 = vpop.f32.mrf.mxu0
    %3991 = vmatprep.mubr.f32.mxu0 0.0
    %3992 = vmatmul.mubr.f32.gmra.mxu0 %v3916
    %v3993 = vpop.f32.mrf.mxu0
    %v3994 = vadd.f32 %v3624, %v3993
    %v3995 = vpop.f32.mrf.mxu0
    %3996 = vdwg.mxu0
    %3997 = vrot.lane.b32.xlu0 %v262, 112
    %v3998 = vpop.permute.xlu0 %3997
    %3999 = vrot.lane.b32.xlu0 %v267, 112
    %v4000 = vpop.permute.xlu0 %3999
    %4001 = vrot.lane.b32.xlu0 %v262, 80
    %v4002 = vpop.permute.xlu0 %4001
    %4003 = vrot.lane.b32.xlu0 %v267, 80
    %v4004 = vpop.permute.xlu0 %4003
    %v4005 = vsel %vm322, %v3998, 0
    %v4007 = vsel %vm322, %v4000, 0
    %v4009 = vsel %vm322, %v4002, 0
    %v4011 = vsel %vm322, %v4004, 0
    %4013 = vmatprep.subr.mxu0 0.0
    %4014 = vmatpush1.xpose.msra.mxu0 0.0
    %4015 = vmatprep.subr.mxu0 0.0
    %4016 = vmatpush1.xpose.msra.mxu0 0.0
    %4017 = vmatprep.subr.mxu0 0.0
    %4018 = vmatpush1.xpose.msra.mxu0 0.0
    %4019 = vmatprep.subr.mxu0 0.0
    %4020 = vmatpush1.xpose.msra.mxu0 0.0
    %4021 = vmatprep.subr.mxu0 0.0
    %4022 = vmatpush1.xpose.msra.mxu0 0.0
    %4023 = vmatprep.subr.mxu0 0.0
    %4024 = vmatpush1.xpose.msra.mxu0 0.0
    %4025 = vmatprep.subr.mxu0 0.0
    %4026 = vmatpush1.xpose.msra.mxu0 0.0
    %4027 = vmatprep.subr.mxu0 0.0
    %4028 = vmatpush1.xpose.msra.mxu0 0.0
    %4029 = vmatprep.subr.mxu0 0.0
    %4030 = vmatpush1.xpose.msra.mxu0 0.0
    %4031 = vmatprep.subr.mxu0 0.0
    %4032 = vmatpush1.xpose.msra.mxu0 0.0
    %4033 = vmatprep.subr.mxu0 0.0
    %4034 = vmatpush1.xpose.msra.mxu0 0.0
    %4035 = vmatprep.subr.mxu0 0.0
    %4036 = vmatpush1.xpose.msra.mxu0 0.0
    %4037 = vmatprep.subr.mxu0 0.0
    %4038 = vmatpush1.xpose.msra.mxu0 0.0
    %4039 = vmatprep.subr.mxu0 0.0
    %4040 = vmatpush1.xpose.msra.mxu0 0.0
    %4041 = vmatprep.subr.mxu0 0.0
    %4042 = vmatpush1.xpose.msra.mxu0 %v4011
    %4043 = vmatprep.subr.mxu0 0.0
    %4044 = vmatpush1.xpose.msra.mxu0 %v4009
    %4045 = vmatprep.subr.mxu0 0.0
    %4046 = vmatpush2.xpose.msra.mxu0 0.0
    %4047 = vmatprep.subr.mxu0 0.0
    %4048 = vmatpush2.xpose.msra.mxu0 0.0
    %4049 = vmatprep.subr.mxu0 0.0
    %4050 = vmatpush2.xpose.msra.mxu0 0.0
    %4051 = vmatprep.subr.mxu0 0.0
    %4052 = vmatpush2.xpose.msra.mxu0 0.0
    %4053 = vmatprep.subr.mxu0 0.0
    %4054 = vmatpush2.xpose.msra.mxu0 0.0
    %4055 = vmatprep.subr.mxu0 0.0
    %4056 = vmatpush2.xpose.msra.mxu0 0.0
    %4057 = vmatprep.subr.mxu0 0.0
    %4058 = vmatpush2.xpose.msra.mxu0 0.0
    %4059 = vmatprep.subr.mxu0 0.0
    %4060 = vmatpush2.xpose.msra.mxu0 0.0
    %4061 = vmatprep.subr.mxu0 0.0
    %4062 = vmatpush2.xpose.msra.mxu0 0.0
    %4063 = vmatprep.subr.mxu0 0.0
    %4064 = vmatpush2.xpose.msra.mxu0 0.0
    %4065 = vmatprep.subr.mxu0 0.0
    %4066 = vmatpush2.xpose.msra.mxu0 0.0
    %4067 = vmatprep.subr.mxu0 0.0
    %4068 = vmatpush2.xpose.msra.mxu0 0.0
    %4069 = vmatprep.subr.mxu0 0.0
    %4070 = vmatpush2.xpose.msra.mxu0 0.0
    %4071 = vmatprep.subr.mxu0 0.0
    %4072 = vmatpush2.xpose.msra.mxu0 0.0
    %4073 = vmatprep.subr.mxu0 0.0
    %4074 = vmatpush2.xpose.msra.mxu0 0.0
    %4075 = vmatprep.subr.mxu0 0.0
    %4076 = vmatpush2.xpose.msra.mxu0 0.0
    %4077 = vmatprep.mubr.f32.mxu0 0.0
    %4078 = vmatmul.mubr.f32.gmra.mxu0 %v4005
    %v4079 = vpop.f32.mrf.mxu0
    %v4080 = vadd.f32 %v3625, %v4079
    %v4081 = vpop.f32.mrf.mxu0
    %4082 = vmatprep.mubr.f32.mxu0 0.0
    %4083 = vmatmul.mubr.f32.gmra.mxu0 %v4007
    %v4084 = vpop.f32.mrf.mxu0
    %v4085 = vadd.f32 %v3626, %v4084
    %v4086 = vpop.f32.mrf.mxu0
    %4087 = vdwg.mxu0
    %4088 = vrot.lane.b32.xlu0 %v272, 112
    %v4089 = vpop.permute.xlu0 %4088
    %4090 = vrot.lane.b32.xlu0 %v277, 112
    %v4091 = vpop.permute.xlu0 %4090
    %4092 = vrot.lane.b32.xlu0 %v272, 80
    %v4093 = vpop.permute.xlu0 %4092
    %4094 = vrot.lane.b32.xlu0 %v277, 80
    %v4095 = vpop.permute.xlu0 %4094
    %v4096 = vsel %vm322, %v4089, 0
    %v4098 = vsel %vm322, %v4091, 0
    %v4100 = vsel %vm322, %v4093, 0
    %v4102 = vsel %vm322, %v4095, 0
    %4104 = vmatprep.subr.mxu0 0.0
    %4105 = vmatpush1.xpose.msra.mxu0 0.0
    %4106 = vmatprep.subr.mxu0 0.0
    %4107 = vmatpush1.xpose.msra.mxu0 0.0
    %4108 = vmatprep.subr.mxu0 0.0
    %4109 = vmatpush1.xpose.msra.mxu0 0.0
    %4110 = vmatprep.subr.mxu0 0.0
    %4111 = vmatpush1.xpose.msra.mxu0 0.0
    %4112 = vmatprep.subr.mxu0 0.0
    %4113 = vmatpush1.xpose.msra.mxu0 0.0
    %4114 = vmatprep.subr.mxu0 0.0
    %4115 = vmatpush1.xpose.msra.mxu0 0.0
    %4116 = vmatprep.subr.mxu0 0.0
    %4117 = vmatpush1.xpose.msra.mxu0 0.0
    %4118 = vmatprep.subr.mxu0 0.0
    %4119 = vmatpush1.xpose.msra.mxu0 0.0
    %4120 = vmatprep.subr.mxu0 0.0
    %4121 = vmatpush1.xpose.msra.mxu0 0.0
    %4122 = vmatprep.subr.mxu0 0.0
    %4123 = vmatpush1.xpose.msra.mxu0 0.0
    %4124 = vmatprep.subr.mxu0 0.0
    %4125 = vmatpush1.xpose.msra.mxu0 0.0
    %4126 = vmatprep.subr.mxu0 0.0
    %4127 = vmatpush1.xpose.msra.mxu0 0.0
    %4128 = vmatprep.subr.mxu0 0.0
    %4129 = vmatpush1.xpose.msra.mxu0 0.0
    %4130 = vmatprep.subr.mxu0 0.0
    %4131 = vmatpush1.xpose.msra.mxu0 0.0
    %4132 = vmatprep.subr.mxu0 0.0
    %4133 = vmatpush1.xpose.msra.mxu0 %v4102
    %4134 = vmatprep.subr.mxu0 0.0
    %4135 = vmatpush1.xpose.msra.mxu0 %v4100
    %4136 = vmatprep.subr.mxu0 0.0
    %4137 = vmatpush2.xpose.msra.mxu0 0.0
    %4138 = vmatprep.subr.mxu0 0.0
    %4139 = vmatpush2.xpose.msra.mxu0 0.0
    %4140 = vmatprep.subr.mxu0 0.0
    %4141 = vmatpush2.xpose.msra.mxu0 0.0
    %4142 = vmatprep.subr.mxu0 0.0
    %4143 = vmatpush2.xpose.msra.mxu0 0.0
    %4144 = vmatprep.subr.mxu0 0.0
    %4145 = vmatpush2.xpose.msra.mxu0 0.0
    %4146 = vmatprep.subr.mxu0 0.0
    %4147 = vmatpush2.xpose.msra.mxu0 0.0
    %4148 = vmatprep.subr.mxu0 0.0
    %4149 = vmatpush2.xpose.msra.mxu0 0.0
    %4150 = vmatprep.subr.mxu0 0.0
    %4151 = vmatpush2.xpose.msra.mxu0 0.0
    %4152 = vmatprep.subr.mxu0 0.0
    %4153 = vmatpush2.xpose.msra.mxu0 0.0
    %4154 = vmatprep.subr.mxu0 0.0
    %4155 = vmatpush2.xpose.msra.mxu0 0.0
    %4156 = vmatprep.subr.mxu0 0.0
    %4157 = vmatpush2.xpose.msra.mxu0 0.0
    %4158 = vmatprep.subr.mxu0 0.0
    %4159 = vmatpush2.xpose.msra.mxu0 0.0
    %4160 = vmatprep.subr.mxu0 0.0
    %4161 = vmatpush2.xpose.msra.mxu0 0.0
    %4162 = vmatprep.subr.mxu0 0.0
    %4163 = vmatpush2.xpose.msra.mxu0 0.0
    %4164 = vmatprep.subr.mxu0 0.0
    %4165 = vmatpush2.xpose.msra.mxu0 0.0
    %4166 = vmatprep.subr.mxu0 0.0
    %4167 = vmatpush2.xpose.msra.mxu0 0.0
    %4168 = vmatprep.mubr.f32.mxu0 0.0
    %4169 = vmatmul.mubr.f32.gmra.mxu0 %v4096
    %v4170 = vpop.f32.mrf.mxu0
    %v4171 = vadd.f32 %v3627, %v4170
    %v4172 = vpop.f32.mrf.mxu0
    %4173 = vmatprep.mubr.f32.mxu0 0.0
    %4174 = vmatmul.mubr.f32.gmra.mxu0 %v4098
    %v4175 = vpop.f32.mrf.mxu0
    %v4176 = vadd.f32 %v3628, %v4175
    %v4177 = vpop.f32.mrf.mxu0
    %4178 = vdwg.mxu0
    %4179 = vrot.lane.b32.xlu0 %v282, 112
    %v4180 = vpop.permute.xlu0 %4179
    %4181 = vrot.lane.b32.xlu0 %v287, 112
    %v4182 = vpop.permute.xlu0 %4181
    %4183 = vrot.lane.b32.xlu0 %v282, 80
    %v4184 = vpop.permute.xlu0 %4183
    %4185 = vrot.lane.b32.xlu0 %v287, 80
    %v4186 = vpop.permute.xlu0 %4185
    %v4187 = vsel %vm322, %v4180, 0
    %v4189 = vsel %vm322, %v4182, 0
    %v4191 = vsel %vm322, %v4184, 0
    %v4193 = vsel %vm322, %v4186, 0
    %4195 = vmatprep.subr.mxu0 0.0
    %4196 = vmatpush1.xpose.msra.mxu0 0.0
    %4197 = vmatprep.subr.mxu0 0.0
    %4198 = vmatpush1.xpose.msra.mxu0 0.0
    %4199 = vmatprep.subr.mxu0 0.0
    %4200 = vmatpush1.xpose.msra.mxu0 0.0
    %4201 = vmatprep.subr.mxu0 0.0
    %4202 = vmatpush1.xpose.msra.mxu0 0.0
    %4203 = vmatprep.subr.mxu0 0.0
    %4204 = vmatpush1.xpose.msra.mxu0 0.0
    %4205 = vmatprep.subr.mxu0 0.0
    %4206 = vmatpush1.xpose.msra.mxu0 0.0
    %4207 = vmatprep.subr.mxu0 0.0
    %4208 = vmatpush1.xpose.msra.mxu0 0.0
    %4209 = vmatprep.subr.mxu0 0.0
    %4210 = vmatpush1.xpose.msra.mxu0 0.0
    %4211 = vmatprep.subr.mxu0 0.0
    %4212 = vmatpush1.xpose.msra.mxu0 0.0
    %4213 = vmatprep.subr.mxu0 0.0
    %4214 = vmatpush1.xpose.msra.mxu0 0.0
    %4215 = vmatprep.subr.mxu0 0.0
    %4216 = vmatpush1.xpose.msra.mxu0 0.0
    %4217 = vmatprep.subr.mxu0 0.0
    %4218 = vmatpush1.xpose.msra.mxu0 0.0
    %4219 = vmatprep.subr.mxu0 0.0
    %4220 = vmatpush1.xpose.msra.mxu0 0.0
    %4221 = vmatprep.subr.mxu0 0.0
    %4222 = vmatpush1.xpose.msra.mxu0 0.0
    %4223 = vmatprep.subr.mxu0 0.0
    %4224 = vmatpush1.xpose.msra.mxu0 %v4193
    %4225 = vmatprep.subr.mxu0 0.0
    %4226 = vmatpush1.xpose.msra.mxu0 %v4191
    %4227 = vmatprep.subr.mxu0 0.0
    %4228 = vmatpush2.xpose.msra.mxu0 0.0
    %4229 = vmatprep.subr.mxu0 0.0
    %4230 = vmatpush2.xpose.msra.mxu0 0.0
    %4231 = vmatprep.subr.mxu0 0.0
    %4232 = vmatpush2.xpose.msra.mxu0 0.0
    %4233 = vmatprep.subr.mxu0 0.0
    %4234 = vmatpush2.xpose.msra.mxu0 0.0
    %4235 = vmatprep.subr.mxu0 0.0
    %4236 = vmatpush2.xpose.msra.mxu0 0.0
    %4237 = vmatprep.subr.mxu0 0.0
    %4238 = vmatpush2.xpose.msra.mxu0 0.0
    %4239 = vmatprep.subr.mxu0 0.0
    %4240 = vmatpush2.xpose.msra.mxu0 0.0
    %4241 = vmatprep.subr.mxu0 0.0
    %4242 = vmatpush2.xpose.msra.mxu0 0.0
    %4243 = vmatprep.subr.mxu0 0.0
    %4244 = vmatpush2.xpose.msra.mxu0 0.0
    %4245 = vmatprep.subr.mxu0 0.0
    %4246 = vmatpush2.xpose.msra.mxu0 0.0
    %4247 = vmatprep.subr.mxu0 0.0
    %4248 = vmatpush2.xpose.msra.mxu0 0.0
    %4249 = vmatprep.subr.mxu0 0.0
    %4250 = vmatpush2.xpose.msra.mxu0 0.0
    %4251 = vmatprep.subr.mxu0 0.0
    %4252 = vmatpush2.xpose.msra.mxu0 0.0
    %4253 = vmatprep.subr.mxu0 0.0
    %4254 = vmatpush2.xpose.msra.mxu0 0.0
    %4255 = vmatprep.subr.mxu0 0.0
    %4256 = vmatpush2.xpose.msra.mxu0 0.0
    %4257 = vmatprep.subr.mxu0 0.0
    %4258 = vmatpush2.xpose.msra.mxu0 0.0
    %4259 = vmatprep.mubr.f32.mxu0 0.0
    %4260 = vmatmul.mubr.f32.gmra.mxu0 %v4187
    %v4261 = vpop.f32.mrf.mxu0
    %v4262 = vadd.f32 %v3629, %v4261
    %v4263 = vpop.f32.mrf.mxu0
    %4264 = vmatprep.mubr.f32.mxu0 0.0
    %4265 = vmatmul.mubr.f32.gmra.mxu0 %v4189
    %v4266 = vpop.f32.mrf.mxu0
    %v4267 = vadd.f32 %v3630, %v4266
    %v4268 = vpop.f32.mrf.mxu0
    %4269 = vdwg.mxu0
    %4270 = vrot.lane.b32.xlu0 %v292, 112
    %v4271 = vpop.permute.xlu0 %4270
    %4272 = vrot.lane.b32.xlu0 %v297, 112
    %v4273 = vpop.permute.xlu0 %4272
    %4274 = vrot.lane.b32.xlu0 %v292, 80
    %v4275 = vpop.permute.xlu0 %4274
    %4276 = vrot.lane.b32.xlu0 %v297, 80
    %v4277 = vpop.permute.xlu0 %4276
    %v4278 = vsel %vm322, %v4271, 0
    %v4280 = vsel %vm322, %v4273, 0
    %v4282 = vsel %vm322, %v4275, 0
    %v4284 = vsel %vm322, %v4277, 0
    %4286 = vmatprep.subr.mxu0 0.0
    %4287 = vmatpush1.xpose.msra.mxu0 0.0
    %4288 = vmatprep.subr.mxu0 0.0
    %4289 = vmatpush1.xpose.msra.mxu0 0.0
    %4290 = vmatprep.subr.mxu0 0.0
    %4291 = vmatpush1.xpose.msra.mxu0 0.0
    %4292 = vmatprep.subr.mxu0 0.0
    %4293 = vmatpush1.xpose.msra.mxu0 0.0
    %4294 = vmatprep.subr.mxu0 0.0
    %4295 = vmatpush1.xpose.msra.mxu0 0.0
    %4296 = vmatprep.subr.mxu0 0.0
    %4297 = vmatpush1.xpose.msra.mxu0 0.0
    %4298 = vmatprep.subr.mxu0 0.0
    %4299 = vmatpush1.xpose.msra.mxu0 0.0
    %4300 = vmatprep.subr.mxu0 0.0
    %4301 = vmatpush1.xpose.msra.mxu0 0.0
    %4302 = vmatprep.subr.mxu0 0.0
    %4303 = vmatpush1.xpose.msra.mxu0 0.0
    %4304 = vmatprep.subr.mxu0 0.0
    %4305 = vmatpush1.xpose.msra.mxu0 0.0
    %4306 = vmatprep.subr.mxu0 0.0
    %4307 = vmatpush1.xpose.msra.mxu0 0.0
    %4308 = vmatprep.subr.mxu0 0.0
    %4309 = vmatpush1.xpose.msra.mxu0 0.0
    %4310 = vmatprep.subr.mxu0 0.0
    %4311 = vmatpush1.xpose.msra.mxu0 0.0
    %4312 = vmatprep.subr.mxu0 0.0
    %4313 = vmatpush1.xpose.msra.mxu0 0.0
    %4314 = vmatprep.subr.mxu0 0.0
    %4315 = vmatpush1.xpose.msra.mxu0 %v4284
    %4316 = vmatprep.subr.mxu0 0.0
    %4317 = vmatpush1.xpose.msra.mxu0 %v4282
    %4318 = vmatprep.subr.mxu0 0.0
    %4319 = vmatpush2.xpose.msra.mxu0 0.0
    %4320 = vmatprep.subr.mxu0 0.0
    %4321 = vmatpush2.xpose.msra.mxu0 0.0
    %4322 = vmatprep.subr.mxu0 0.0
    %4323 = vmatpush2.xpose.msra.mxu0 0.0
    %4324 = vmatprep.subr.mxu0 0.0
    %4325 = vmatpush2.xpose.msra.mxu0 0.0
    %4326 = vmatprep.subr.mxu0 0.0
    %4327 = vmatpush2.xpose.msra.mxu0 0.0
    %4328 = vmatprep.subr.mxu0 0.0
    %4329 = vmatpush2.xpose.msra.mxu0 0.0
    %4330 = vmatprep.subr.mxu0 0.0
    %4331 = vmatpush2.xpose.msra.mxu0 0.0
    %4332 = vmatprep.subr.mxu0 0.0
    %4333 = vmatpush2.xpose.msra.mxu0 0.0
    %4334 = vmatprep.subr.mxu0 0.0
    %4335 = vmatpush2.xpose.msra.mxu0 0.0
    %4336 = vmatprep.subr.mxu0 0.0
    %4337 = vmatpush2.xpose.msra.mxu0 0.0
    %4338 = vmatprep.subr.mxu0 0.0
    %4339 = vmatpush2.xpose.msra.mxu0 0.0
    %4340 = vmatprep.subr.mxu0 0.0
    %4341 = vmatpush2.xpose.msra.mxu0 0.0
    %4342 = vmatprep.subr.mxu0 0.0
    %4343 = vmatpush2.xpose.msra.mxu0 0.0
    %4344 = vmatprep.subr.mxu0 0.0
    %4345 = vmatpush2.xpose.msra.mxu0 0.0
    %4346 = vmatprep.subr.mxu0 0.0
    %4347 = vmatpush2.xpose.msra.mxu0 0.0
    %4348 = vmatprep.subr.mxu0 0.0
    %4349 = vmatpush2.xpose.msra.mxu0 0.0
    %4350 = vmatprep.mubr.f32.mxu0 0.0
    %4351 = vmatmul.mubr.f32.gmra.mxu0 %v4278
    %v4352 = vpop.f32.mrf.mxu0
    %v4353 = vadd.f32 %v3631, %v4352
    %v4354 = vpop.f32.mrf.mxu0
    %4355 = vmatprep.mubr.f32.mxu0 0.0
    %4356 = vmatmul.mubr.f32.gmra.mxu0 %v4280
    %v4357 = vpop.f32.mrf.mxu0
    %v4358 = vadd.f32 %v3632, %v4357
    %v4359 = vpop.f32.mrf.mxu0
    %4360 = vdwg.mxu0
    %v4361 = vsel %vm1029, %v3716, -inf
    %4362 = vmax.xlane.f32.xlu0 %v4361
    %v4363 = vpop.xlane.xlu0 %4362
    %v4364 = vsel %vm1029, %v3721, -inf
    %4365 = vmax.xlane.f32.xlu0 %v4364
    %v4366 = vpop.xlane.xlu0 %4365
    %v4367 = vsel %vm1029, %v3807, -inf
    %4368 = vmax.xlane.f32.xlu0 %v4367
    %v4369 = vpop.xlane.xlu0 %4368
    %v4370 = vsel %vm1029, %v3812, -inf
    %4371 = vmax.xlane.f32.xlu0 %v4370
    %v4372 = vpop.xlane.xlu0 %4371
    %v4373 = vsel %vm1029, %v3898, -inf
    %4374 = vmax.xlane.f32.xlu0 %v4373
    %v4375 = vpop.xlane.xlu0 %4374
    %v4376 = vsel %vm1029, %v3903, -inf
    %4377 = vmax.xlane.f32.xlu0 %v4376
    %v4378 = vpop.xlane.xlu0 %4377
    %v4379 = vsel %vm1029, %v3989, -inf
    %4380 = vmax.xlane.f32.xlu0 %v4379
    %v4381 = vpop.xlane.xlu0 %4380
    %v4382 = vsel %vm1029, %v3994, -inf
    %4383 = vmax.xlane.f32.xlu0 %v4382
    %v4384 = vpop.xlane.xlu0 %4383
    %v4385 = vsel %vm1029, %v4080, -inf
    %4386 = vmax.xlane.f32.xlu0 %v4385
    %v4387 = vpop.xlane.xlu0 %4386
    %v4388 = vsel %vm1029, %v4085, -inf
    %4389 = vmax.xlane.f32.xlu0 %v4388
    %v4390 = vpop.xlane.xlu0 %4389
    %v4391 = vsel %vm1029, %v4171, -inf
    %4392 = vmax.xlane.f32.xlu0 %v4391
    %v4393 = vpop.xlane.xlu0 %4392
    %v4394 = vsel %vm1029, %v4176, -inf
    %4395 = vmax.xlane.f32.xlu0 %v4394
    %v4396 = vpop.xlane.xlu0 %4395
    %v4397 = vsel %vm1029, %v4262, -inf
    %4398 = vmax.xlane.f32.xlu0 %v4397
    %v4399 = vpop.xlane.xlu0 %4398
    %v4400 = vsel %vm1029, %v4267, -inf
    %4401 = vmax.xlane.f32.xlu0 %v4400
    %v4402 = vpop.xlane.xlu0 %4401
    %v4403 = vsel %vm1029, %v4353, -inf
    %4404 = vmax.xlane.f32.xlu0 %v4403
    %v4405 = vpop.xlane.xlu0 %4404
    %v4406 = vsel %vm1029, %v4358, -inf
    %4407 = vmax.xlane.f32.xlu0 %v4406
    %v4408 = vpop.xlane.xlu0 %4407
    %v4409 = vsub.f32 %v3716, %v4363
    %v4410 = vsub.f32 %v3721, %v4366
    %v4411 = vsub.f32 %v3807, %v4369
    %v4412 = vsub.f32 %v3812, %v4372
    %v4413 = vsub.f32 %v3898, %v4375
    %v4414 = vsub.f32 %v3903, %v4378
    %v4415 = vsub.f32 %v3989, %v4381
    %v4416 = vsub.f32 %v3994, %v4384
    %v4417 = vsub.f32 %v4080, %v4387
    %v4418 = vsub.f32 %v4085, %v4390
    %v4419 = vsub.f32 %v4171, %v4393
    %v4420 = vsub.f32 %v4176, %v4396
    %v4421 = vsub.f32 %v4262, %v4399
    %v4422 = vsub.f32 %v4267, %v4402
    %v4423 = vsub.f32 %v4353, %v4405
    %v4424 = vsub.f32 %v4358, %v4408
    %v4425 = vmul.f32 %v4409, 1.442695
    %v4426 = vpow.pop %v4425
    %v4427 = vmul.f32 %v4410, 1.442695
    %v4428 = vpow.pop %v4427
    %v4429 = vmul.f32 %v4411, 1.442695
    %v4430 = vpow.pop %v4429
    %v4431 = vmul.f32 %v4412, 1.442695
    %v4432 = vpow.pop %v4431
    %v4433 = vmul.f32 %v4413, 1.442695
    %v4434 = vpow.pop %v4433
    %v4435 = vmul.f32 %v4414, 1.442695
    %v4436 = vpow.pop %v4435
    %v4437 = vmul.f32 %v4415, 1.442695
    %v4438 = vpow.pop %v4437
    %v4439 = vmul.f32 %v4416, 1.442695
    %v4440 = vpow.pop %v4439
    %v4441 = vmul.f32 %v4417, 1.442695
    %v4442 = vpow.pop %v4441
    %v4443 = vmul.f32 %v4418, 1.442695
    %v4444 = vpow.pop %v4443
    %v4445 = vmul.f32 %v4419, 1.442695
    %v4446 = vpow.pop %v4445
    %v4447 = vmul.f32 %v4420, 1.442695
    %v4448 = vpow.pop %v4447
    %v4449 = vmul.f32 %v4421, 1.442695
    %v4450 = vpow.pop %v4449
    %v4451 = vmul.f32 %v4422, 1.442695
    %v4452 = vpow.pop %v4451
    %v4453 = vmul.f32 %v4423, 1.442695
    %v4454 = vpow.pop %v4453
    %v4455 = vmul.f32 %v4424, 1.442695
    %v4456 = vpow.pop %v4455
    %v4457 = vsel %vm1029, %v4426, 0.0
    %4458 = vadd.xlane.f32.xlu0 %v4457
    %v4459 = vpop.xlane.xlu0 %4458
    %v4460 = vsel %vm1029, %v4428, 0.0
    %4461 = vadd.xlane.f32.xlu0 %v4460
    %v4462 = vpop.xlane.xlu0 %4461
    %v4463 = vsel %vm1029, %v4430, 0.0
    %4464 = vadd.xlane.f32.xlu0 %v4463
    %v4465 = vpop.xlane.xlu0 %4464
    %v4466 = vsel %vm1029, %v4432, 0.0
    %4467 = vadd.xlane.f32.xlu0 %v4466
    %v4468 = vpop.xlane.xlu0 %4467
    %v4469 = vsel %vm1029, %v4434, 0.0
    %4470 = vadd.xlane.f32.xlu0 %v4469
    %v4471 = vpop.xlane.xlu0 %4470
    %v4472 = vsel %vm1029, %v4436, 0.0
    %4473 = vadd.xlane.f32.xlu0 %v4472
    %v4474 = vpop.xlane.xlu0 %4473
    %v4475 = vsel %vm1029, %v4438, 0.0
    %4476 = vadd.xlane.f32.xlu0 %v4475
    %v4477 = vpop.xlane.xlu0 %4476
    %v4478 = vsel %vm1029, %v4440, 0.0
    %4479 = vadd.xlane.f32.xlu0 %v4478
    %v4480 = vpop.xlane.xlu0 %4479
    %v4481 = vsel %vm1029, %v4442, 0.0
    %4482 = vadd.xlane.f32.xlu0 %v4481
    %v4483 = vpop.xlane.xlu0 %4482
    %v4484 = vsel %vm1029, %v4444, 0.0
    %4485 = vadd.xlane.f32.xlu0 %v4484
    %v4486 = vpop.xlane.xlu0 %4485
    %v4487 = vsel %vm1029, %v4446, 0.0
    %4488 = vadd.xlane.f32.xlu0 %v4487
    %v4489 = vpop.xlane.xlu0 %4488
    %v4490 = vsel %vm1029, %v4448, 0.0
    %4491 = vadd.xlane.f32.xlu0 %v4490
    %v4492 = vpop.xlane.xlu0 %4491
    %v4493 = vsel %vm1029, %v4450, 0.0
    %4494 = vadd.xlane.f32.xlu0 %v4493
    %v4495 = vpop.xlane.xlu0 %4494
    %v4496 = vsel %vm1029, %v4452, 0.0
    %4497 = vadd.xlane.f32.xlu0 %v4496
    %v4498 = vpop.xlane.xlu0 %4497
    %v4499 = vsel %vm1029, %v4454, 0.0
    %4500 = vadd.xlane.f32.xlu0 %v4499
    %v4501 = vpop.xlane.xlu0 %4500
    %v4502 = vsel %vm1029, %v4456, 0.0
    %4503 = vadd.xlane.f32.xlu0 %v4502
    %v4504 = vpop.xlane.xlu0 %4503
    %v4505 = vrcp.pop %v4459
    %v4506 = vmul.f32 %v4426, %v4505
    %v4507 = vrcp.pop %v4462
    %v4508 = vmul.f32 %v4428, %v4507
    %v4509 = vrcp.pop %v4465
    %v4510 = vmul.f32 %v4430, %v4509
    %v4511 = vrcp.pop %v4468
    %v4512 = vmul.f32 %v4432, %v4511
    %v4513 = vrcp.pop %v4471
    %v4514 = vmul.f32 %v4434, %v4513
    %v4515 = vrcp.pop %v4474
    %v4516 = vmul.f32 %v4436, %v4515
    %v4517 = vrcp.pop %v4477
    %v4518 = vmul.f32 %v4438, %v4517
    %v4519 = vrcp.pop %v4480
    %v4520 = vmul.f32 %v4440, %v4519
    %v4521 = vrcp.pop %v4483
    %v4522 = vmul.f32 %v4442, %v4521
    %v4523 = vrcp.pop %v4486
    %v4524 = vmul.f32 %v4444, %v4523
    %v4525 = vrcp.pop %v4489
    %v4526 = vmul.f32 %v4446, %v4525
    %v4527 = vrcp.pop %v4492
    %v4528 = vmul.f32 %v4448, %v4527
    %v4529 = vrcp.pop %v4495
    %v4530 = vmul.f32 %v4450, %v4529
    %v4531 = vrcp.pop %v4498
    %v4532 = vmul.f32 %v4452, %v4531
    %v4533 = vrcp.pop %v4501
    %v4534 = vmul.f32 %v4454, %v4533
    %v4535 = vrcp.pop %v4504
    %v4536 = vmul.f32 %v4456, %v4535
    %4537 = vrot.lane.b32.xlu0 %v222, 48
    %v4538 = vpop.permute.xlu0 %4537
    %4539 = vrot.lane.b32.xlu0 %v227, 48
    %v4540 = vpop.permute.xlu0 %4539
    %v4544 = vsel %vm1029, %v4506, 0
    %v4547 = vsel %vm1029, %v4508, 0
    %4549 = vmatprep.subr.mxu0 0.0
    %4550 = vmatpush1.msra.mxu0 0.0
    %4551 = vmatprep.subr.mxu0 0.0
    %4552 = vmatpush1.msra.mxu0 0.0
    %4553 = vmatprep.subr.mxu0 0.0
    %4554 = vmatpush1.msra.mxu0 0.0
    %4555 = vmatprep.subr.mxu0 0.0
    %4556 = vmatpush1.msra.mxu0 0.0
    %4557 = vmatprep.subr.mxu0 0.0
    %4558 = vmatpush1.msra.mxu0 0.0
    %4559 = vmatprep.subr.mxu0 0.0
    %4560 = vmatpush1.msra.mxu0 0.0
    %4561 = vmatprep.subr.mxu0 0.0
    %4562 = vmatpush1.msra.mxu0 0.0
    %4563 = vmatprep.subr.mxu0 0.0
    %4564 = vmatpush1.msra.mxu0 0.0
    %4565 = vmatprep.subr.mxu0 0.0
    %4566 = vmatpush1.msra.mxu0 0.0
    %4567 = vmatprep.subr.mxu0 0.0
    %4568 = vmatpush1.msra.mxu0 0.0
    %4569 = vmatprep.subr.mxu0 0.0
    %4570 = vmatpush1.msra.mxu0 0.0
    %4571 = vmatprep.subr.mxu0 0.0
    %4572 = vmatpush1.msra.mxu0 0.0
    %4573 = vmatprep.subr.mxu0 0.0
    %4574 = vmatpush1.msra.mxu0 0.0
    %4575 = vmatprep.subr.mxu0 0.0
    %4576 = vmatpush1.msra.mxu0 0.0
    %4577 = vmatprep.subr.mxu0 0.0
    %4578 = vmatpush1.msra.mxu0 %v4540
    %4579 = vmatprep.subr.mxu0 0.0
    %4580 = vmatpush1.msra.mxu0 %v4538
    %4581 = vmatprep.subr.mxu0 0.0
    %4582 = vmatpush2.msra.mxu0 0.0
    %4583 = vmatprep.subr.mxu0 0.0
    %4584 = vmatpush2.msra.mxu0 0.0
    %4585 = vmatprep.subr.mxu0 0.0
    %4586 = vmatpush2.msra.mxu0 0.0
    %4587 = vmatprep.subr.mxu0 0.0
    %4588 = vmatpush2.msra.mxu0 0.0
    %4589 = vmatprep.subr.mxu0 0.0
    %4590 = vmatpush2.msra.mxu0 0.0
    %4591 = vmatprep.subr.mxu0 0.0
    %4592 = vmatpush2.msra.mxu0 0.0
    %4593 = vmatprep.subr.mxu0 0.0
    %4594 = vmatpush2.msra.mxu0 0.0
    %4595 = vmatprep.subr.mxu0 0.0
    %4596 = vmatpush2.msra.mxu0 0.0
    %4597 = vmatprep.subr.mxu0 0.0
    %4598 = vmatpush2.msra.mxu0 0.0
    %4599 = vmatprep.subr.mxu0 0.0
    %4600 = vmatpush2.msra.mxu0 0.0
    %4601 = vmatprep.subr.mxu0 0.0
    %4602 = vmatpush2.msra.mxu0 0.0
    %4603 = vmatprep.subr.mxu0 0.0
    %4604 = vmatpush2.msra.mxu0 0.0
    %4605 = vmatprep.subr.mxu0 0.0
    %4606 = vmatpush2.msra.mxu0 0.0
    %4607 = vmatprep.subr.mxu0 0.0
    %4608 = vmatpush2.msra.mxu0 0.0
    %4609 = vmatprep.subr.mxu0 0.0
    %4610 = vmatpush2.msra.mxu0 0.0
    %4611 = vmatprep.subr.mxu0 0.0
    %4612 = vmatpush2.msra.mxu0 0.0
    %4613 = vmatprep.mubr.f32.mxu0 0.0
    %4614 = vmatmul.mubr.f32.gmra.mxu0 %v4544
    %v4615 = vpop.f32.mrf.mxu0
    %v4616 = vadd.f32 0.0, %v4615
    %v4617 = vpop.f32.mrf.mxu0
    %4618 = vmatprep.mubr.f32.mxu0 0.0
    %4619 = vmatmul.mubr.f32.gmra.mxu0 %v4547
    %v4620 = vpop.f32.mrf.mxu0
    %v4621 = vadd.f32 0.0, %v4620
    %v4622 = vpop.f32.mrf.mxu0
    %4623 = vdwg.mxu0
    %4624 = vrot.lane.b32.xlu0 %v232, 48
    %v4625 = vpop.permute.xlu0 %4624
    %4626 = vrot.lane.b32.xlu0 %v237, 48
    %v4627 = vpop.permute.xlu0 %4626
    %v4631 = vsel %vm1029, %v4510, 0
    %v4634 = vsel %vm1029, %v4512, 0
    %4636 = vmatprep.subr.mxu0 0.0
    %4637 = vmatpush1.msra.mxu0 0.0
    %4638 = vmatprep.subr.mxu0 0.0
    %4639 = vmatpush1.msra.mxu0 0.0
    %4640 = vmatprep.subr.mxu0 0.0
    %4641 = vmatpush1.msra.mxu0 0.0
    %4642 = vmatprep.subr.mxu0 0.0
    %4643 = vmatpush1.msra.mxu0 0.0
    %4644 = vmatprep.subr.mxu0 0.0
    %4645 = vmatpush1.msra.mxu0 0.0
    %4646 = vmatprep.subr.mxu0 0.0
    %4647 = vmatpush1.msra.mxu0 0.0
    %4648 = vmatprep.subr.mxu0 0.0
    %4649 = vmatpush1.msra.mxu0 0.0
    %4650 = vmatprep.subr.mxu0 0.0
    %4651 = vmatpush1.msra.mxu0 0.0
    %4652 = vmatprep.subr.mxu0 0.0
    %4653 = vmatpush1.msra.mxu0 0.0
    %4654 = vmatprep.subr.mxu0 0.0
    %4655 = vmatpush1.msra.mxu0 0.0
    %4656 = vmatprep.subr.mxu0 0.0
    %4657 = vmatpush1.msra.mxu0 0.0
    %4658 = vmatprep.subr.mxu0 0.0
    %4659 = vmatpush1.msra.mxu0 0.0
    %4660 = vmatprep.subr.mxu0 0.0
    %4661 = vmatpush1.msra.mxu0 0.0
    %4662 = vmatprep.subr.mxu0 0.0
    %4663 = vmatpush1.msra.mxu0 0.0
    %4664 = vmatprep.subr.mxu0 0.0
    %4665 = vmatpush1.msra.mxu0 %v4627
    %4666 = vmatprep.subr.mxu0 0.0
    %4667 = vmatpush1.msra.mxu0 %v4625
    %4668 = vmatprep.subr.mxu0 0.0
    %4669 = vmatpush2.msra.mxu0 0.0
    %4670 = vmatprep.subr.mxu0 0.0
    %4671 = vmatpush2.msra.mxu0 0.0
    %4672 = vmatprep.subr.mxu0 0.0
    %4673 = vmatpush2.msra.mxu0 0.0
    %4674 = vmatprep.subr.mxu0 0.0
    %4675 = vmatpush2.msra.mxu0 0.0
    %4676 = vmatprep.subr.mxu0 0.0
    %4677 = vmatpush2.msra.mxu0 0.0
    %4678 = vmatprep.subr.mxu0 0.0
    %4679 = vmatpush2.msra.mxu0 0.0
    %4680 = vmatprep.subr.mxu0 0.0
    %4681 = vmatpush2.msra.mxu0 0.0
    %4682 = vmatprep.subr.mxu0 0.0
    %4683 = vmatpush2.msra.mxu0 0.0
    %4684 = vmatprep.subr.mxu0 0.0
    %4685 = vmatpush2.msra.mxu0 0.0
    %4686 = vmatprep.subr.mxu0 0.0
    %4687 = vmatpush2.msra.mxu0 0.0
    %4688 = vmatprep.subr.mxu0 0.0
    %4689 = vmatpush2.msra.mxu0 0.0
    %4690 = vmatprep.subr.mxu0 0.0
    %4691 = vmatpush2.msra.mxu0 0.0
    %4692 = vmatprep.subr.mxu0 0.0
    %4693 = vmatpush2.msra.mxu0 0.0
    %4694 = vmatprep.subr.mxu0 0.0
    %4695 = vmatpush2.msra.mxu0 0.0
    %4696 = vmatprep.subr.mxu0 0.0
    %4697 = vmatpush2.msra.mxu0 0.0
    %4698 = vmatprep.subr.mxu0 0.0
    %4699 = vmatpush2.msra.mxu0 0.0
    %4700 = vmatprep.mubr.f32.mxu0 0.0
    %4701 = vmatmul.mubr.f32.gmra.mxu0 %v4631
    %v4702 = vpop.f32.mrf.mxu0
    %v4703 = vadd.f32 0.0, %v4702
    %v4704 = vpop.f32.mrf.mxu0
    %4705 = vmatprep.mubr.f32.mxu0 0.0
    %4706 = vmatmul.mubr.f32.gmra.mxu0 %v4634
    %v4707 = vpop.f32.mrf.mxu0
    %v4708 = vadd.f32 0.0, %v4707
    %v4709 = vpop.f32.mrf.mxu0
    %4710 = vdwg.mxu0
    %4711 = vrot.lane.b32.xlu0 %v242, 48
    %v4712 = vpop.permute.xlu0 %4711
    %4713 = vrot.lane.b32.xlu0 %v247, 48
    %v4714 = vpop.permute.xlu0 %4713
    %v4718 = vsel %vm1029, %v4514, 0
    %v4721 = vsel %vm1029, %v4516, 0
    %4723 = vmatprep.subr.mxu0 0.0
    %4724 = vmatpush1.msra.mxu0 0.0
    %4725 = vmatprep.subr.mxu0 0.0
    %4726 = vmatpush1.msra.mxu0 0.0
    %4727 = vmatprep.subr.mxu0 0.0
    %4728 = vmatpush1.msra.mxu0 0.0
    %4729 = vmatprep.subr.mxu0 0.0
    %4730 = vmatpush1.msra.mxu0 0.0
    %4731 = vmatprep.subr.mxu0 0.0
    %4732 = vmatpush1.msra.mxu0 0.0
    %4733 = vmatprep.subr.mxu0 0.0
    %4734 = vmatpush1.msra.mxu0 0.0
    %4735 = vmatprep.subr.mxu0 0.0
    %4736 = vmatpush1.msra.mxu0 0.0
    %4737 = vmatprep.subr.mxu0 0.0
    %4738 = vmatpush1.msra.mxu0 0.0
    %4739 = vmatprep.subr.mxu0 0.0
    %4740 = vmatpush1.msra.mxu0 0.0
    %4741 = vmatprep.subr.mxu0 0.0
    %4742 = vmatpush1.msra.mxu0 0.0
    %4743 = vmatprep.subr.mxu0 0.0
    %4744 = vmatpush1.msra.mxu0 0.0
    %4745 = vmatprep.subr.mxu0 0.0
    %4746 = vmatpush1.msra.mxu0 0.0
    %4747 = vmatprep.subr.mxu0 0.0
    %4748 = vmatpush1.msra.mxu0 0.0
    %4749 = vmatprep.subr.mxu0 0.0
    %4750 = vmatpush1.msra.mxu0 0.0
    %4751 = vmatprep.subr.mxu0 0.0
    %4752 = vmatpush1.msra.mxu0 %v4714
    %4753 = vmatprep.subr.mxu0 0.0
    %4754 = vmatpush1.msra.mxu0 %v4712
    %4755 = vmatprep.subr.mxu0 0.0
    %4756 = vmatpush2.msra.mxu0 0.0
    %4757 = vmatprep.subr.mxu0 0.0
    %4758 = vmatpush2.msra.mxu0 0.0
    %4759 = vmatprep.subr.mxu0 0.0
    %4760 = vmatpush2.msra.mxu0 0.0
    %4761 = vmatprep.subr.mxu0 0.0
    %4762 = vmatpush2.msra.mxu0 0.0
    %4763 = vmatprep.subr.mxu0 0.0
    %4764 = vmatpush2.msra.mxu0 0.0
    %4765 = vmatprep.subr.mxu0 0.0
    %4766 = vmatpush2.msra.mxu0 0.0
    %4767 = vmatprep.subr.mxu0 0.0
    %4768 = vmatpush2.msra.mxu0 0.0
    %4769 = vmatprep.subr.mxu0 0.0
    %4770 = vmatpush2.msra.mxu0 0.0
    %4771 = vmatprep.subr.mxu0 0.0
    %4772 = vmatpush2.msra.mxu0 0.0
    %4773 = vmatprep.subr.mxu0 0.0
    %4774 = vmatpush2.msra.mxu0 0.0
    %4775 = vmatprep.subr.mxu0 0.0
    %4776 = vmatpush2.msra.mxu0 0.0
    %4777 = vmatprep.subr.mxu0 0.0
    %4778 = vmatpush2.msra.mxu0 0.0
    %4779 = vmatprep.subr.mxu0 0.0
    %4780 = vmatpush2.msra.mxu0 0.0
    %4781 = vmatprep.subr.mxu0 0.0
    %4782 = vmatpush2.msra.mxu0 0.0
    %4783 = vmatprep.subr.mxu0 0.0
    %4784 = vmatpush2.msra.mxu0 0.0
    %4785 = vmatprep.subr.mxu0 0.0
    %4786 = vmatpush2.msra.mxu0 0.0
    %4787 = vmatprep.mubr.f32.mxu0 0.0
    %4788 = vmatmul.mubr.f32.gmra.mxu0 %v4718
    %v4789 = vpop.f32.mrf.mxu0
    %v4790 = vadd.f32 0.0, %v4789
    %v4791 = vpop.f32.mrf.mxu0
    %4792 = vmatprep.mubr.f32.mxu0 0.0
    %4793 = vmatmul.mubr.f32.gmra.mxu0 %v4721
    %v4794 = vpop.f32.mrf.mxu0
    %v4795 = vadd.f32 0.0, %v4794
    %v4796 = vpop.f32.mrf.mxu0
    %4797 = vdwg.mxu0
    %4798 = vrot.lane.b32.xlu0 %v252, 48
    %v4799 = vpop.permute.xlu0 %4798
    %4800 = vrot.lane.b32.xlu0 %v257, 48
    %v4801 = vpop.permute.xlu0 %4800
    %v4805 = vsel %vm1029, %v4518, 0
    %v4808 = vsel %vm1029, %v4520, 0
    %4810 = vmatprep.subr.mxu0 0.0
    %4811 = vmatpush1.msra.mxu0 0.0
    %4812 = vmatprep.subr.mxu0 0.0
    %4813 = vmatpush1.msra.mxu0 0.0
    %4814 = vmatprep.subr.mxu0 0.0
    %4815 = vmatpush1.msra.mxu0 0.0
    %4816 = vmatprep.subr.mxu0 0.0
    %4817 = vmatpush1.msra.mxu0 0.0
    %4818 = vmatprep.subr.mxu0 0.0
    %4819 = vmatpush1.msra.mxu0 0.0
    %4820 = vmatprep.subr.mxu0 0.0
    %4821 = vmatpush1.msra.mxu0 0.0
    %4822 = vmatprep.subr.mxu0 0.0
    %4823 = vmatpush1.msra.mxu0 0.0
    %4824 = vmatprep.subr.mxu0 0.0
    %4825 = vmatpush1.msra.mxu0 0.0
    %4826 = vmatprep.subr.mxu0 0.0
    %4827 = vmatpush1.msra.mxu0 0.0
    %4828 = vmatprep.subr.mxu0 0.0
    %4829 = vmatpush1.msra.mxu0 0.0
    %4830 = vmatprep.subr.mxu0 0.0
    %4831 = vmatpush1.msra.mxu0 0.0
    %4832 = vmatprep.subr.mxu0 0.0
    %4833 = vmatpush1.msra.mxu0 0.0
    %4834 = vmatprep.subr.mxu0 0.0
    %4835 = vmatpush1.msra.mxu0 0.0
    %4836 = vmatprep.subr.mxu0 0.0
    %4837 = vmatpush1.msra.mxu0 0.0
    %4838 = vmatprep.subr.mxu0 0.0
    %4839 = vmatpush1.msra.mxu0 %v4801
    %4840 = vmatprep.subr.mxu0 0.0
    %4841 = vmatpush1.msra.mxu0 %v4799
    %4842 = vmatprep.subr.mxu0 0.0
    %4843 = vmatpush2.msra.mxu0 0.0
    %4844 = vmatprep.subr.mxu0 0.0
    %4845 = vmatpush2.msra.mxu0 0.0
    %4846 = vmatprep.subr.mxu0 0.0
    %4847 = vmatpush2.msra.mxu0 0.0
    %4848 = vmatprep.subr.mxu0 0.0
    %4849 = vmatpush2.msra.mxu0 0.0
    %4850 = vmatprep.subr.mxu0 0.0
    %4851 = vmatpush2.msra.mxu0 0.0
    %4852 = vmatprep.subr.mxu0 0.0
    %4853 = vmatpush2.msra.mxu0 0.0
    %4854 = vmatprep.subr.mxu0 0.0
    %4855 = vmatpush2.msra.mxu0 0.0
    %4856 = vmatprep.subr.mxu0 0.0
    %4857 = vmatpush2.msra.mxu0 0.0
    %4858 = vmatprep.subr.mxu0 0.0
    %4859 = vmatpush2.msra.mxu0 0.0
    %4860 = vmatprep.subr.mxu0 0.0
    %4861 = vmatpush2.msra.mxu0 0.0
    %4862 = vmatprep.subr.mxu0 0.0
    %4863 = vmatpush2.msra.mxu0 0.0
    %4864 = vmatprep.subr.mxu0 0.0
    %4865 = vmatpush2.msra.mxu0 0.0
    %4866 = vmatprep.subr.mxu0 0.0
    %4867 = vmatpush2.msra.mxu0 0.0
    %4868 = vmatprep.subr.mxu0 0.0
    %4869 = vmatpush2.msra.mxu0 0.0
    %4870 = vmatprep.subr.mxu0 0.0
    %4871 = vmatpush2.msra.mxu0 0.0
    %4872 = vmatprep.subr.mxu0 0.0
    %4873 = vmatpush2.msra.mxu0 0.0
    %4874 = vmatprep.mubr.f32.mxu0 0.0
    %4875 = vmatmul.mubr.f32.gmra.mxu0 %v4805
    %v4876 = vpop.f32.mrf.mxu0
    %v4877 = vadd.f32 0.0, %v4876
    %v4878 = vpop.f32.mrf.mxu0
    %4879 = vmatprep.mubr.f32.mxu0 0.0
    %4880 = vmatmul.mubr.f32.gmra.mxu0 %v4808
    %v4881 = vpop.f32.mrf.mxu0
    %v4882 = vadd.f32 0.0, %v4881
    %v4883 = vpop.f32.mrf.mxu0
    %4884 = vdwg.mxu0
    %4885 = vrot.lane.b32.xlu0 %v262, 48
    %v4886 = vpop.permute.xlu0 %4885
    %4887 = vrot.lane.b32.xlu0 %v267, 48
    %v4888 = vpop.permute.xlu0 %4887
    %v4892 = vsel %vm1029, %v4522, 0
    %v4895 = vsel %vm1029, %v4524, 0
    %4897 = vmatprep.subr.mxu0 0.0
    %4898 = vmatpush1.msra.mxu0 0.0
    %4899 = vmatprep.subr.mxu0 0.0
    %4900 = vmatpush1.msra.mxu0 0.0
    %4901 = vmatprep.subr.mxu0 0.0
    %4902 = vmatpush1.msra.mxu0 0.0
    %4903 = vmatprep.subr.mxu0 0.0
    %4904 = vmatpush1.msra.mxu0 0.0
    %4905 = vmatprep.subr.mxu0 0.0
    %4906 = vmatpush1.msra.mxu0 0.0
    %4907 = vmatprep.subr.mxu0 0.0
    %4908 = vmatpush1.msra.mxu0 0.0
    %4909 = vmatprep.subr.mxu0 0.0
    %4910 = vmatpush1.msra.mxu0 0.0
    %4911 = vmatprep.subr.mxu0 0.0
    %4912 = vmatpush1.msra.mxu0 0.0
    %4913 = vmatprep.subr.mxu0 0.0
    %4914 = vmatpush1.msra.mxu0 0.0
    %4915 = vmatprep.subr.mxu0 0.0
    %4916 = vmatpush1.msra.mxu0 0.0
    %4917 = vmatprep.subr.mxu0 0.0
    %4918 = vmatpush1.msra.mxu0 0.0
    %4919 = vmatprep.subr.mxu0 0.0
    %4920 = vmatpush1.msra.mxu0 0.0
    %4921 = vmatprep.subr.mxu0 0.0
    %4922 = vmatpush1.msra.mxu0 0.0
    %4923 = vmatprep.subr.mxu0 0.0
    %4924 = vmatpush1.msra.mxu0 0.0
    %4925 = vmatprep.subr.mxu0 0.0
    %4926 = vmatpush1.msra.mxu0 %v4888
    %4927 = vmatprep.subr.mxu0 0.0
    %4928 = vmatpush1.msra.mxu0 %v4886
    %4929 = vmatprep.subr.mxu0 0.0
    %4930 = vmatpush2.msra.mxu0 0.0
    %4931 = vmatprep.subr.mxu0 0.0
    %4932 = vmatpush2.msra.mxu0 0.0
    %4933 = vmatprep.subr.mxu0 0.0
    %4934 = vmatpush2.msra.mxu0 0.0
    %4935 = vmatprep.subr.mxu0 0.0
    %4936 = vmatpush2.msra.mxu0 0.0
    %4937 = vmatprep.subr.mxu0 0.0
    %4938 = vmatpush2.msra.mxu0 0.0
    %4939 = vmatprep.subr.mxu0 0.0
    %4940 = vmatpush2.msra.mxu0 0.0
    %4941 = vmatprep.subr.mxu0 0.0
    %4942 = vmatpush2.msra.mxu0 0.0
    %4943 = vmatprep.subr.mxu0 0.0
    %4944 = vmatpush2.msra.mxu0 0.0
    %4945 = vmatprep.subr.mxu0 0.0
    %4946 = vmatpush2.msra.mxu0 0.0
    %4947 = vmatprep.subr.mxu0 0.0
    %4948 = vmatpush2.msra.mxu0 0.0
    %4949 = vmatprep.subr.mxu0 0.0
    %4950 = vmatpush2.msra.mxu0 0.0
    %4951 = vmatprep.subr.mxu0 0.0
    %4952 = vmatpush2.msra.mxu0 0.0
    %4953 = vmatprep.subr.mxu0 0.0
    %4954 = vmatpush2.msra.mxu0 0.0
    %4955 = vmatprep.subr.mxu0 0.0
    %4956 = vmatpush2.msra.mxu0 0.0
    %4957 = vmatprep.subr.mxu0 0.0
    %4958 = vmatpush2.msra.mxu0 0.0
    %4959 = vmatprep.subr.mxu0 0.0
    %4960 = vmatpush2.msra.mxu0 0.0
    %4961 = vmatprep.mubr.f32.mxu0 0.0
    %4962 = vmatmul.mubr.f32.gmra.mxu0 %v4892
    %v4963 = vpop.f32.mrf.mxu0
    %v4964 = vadd.f32 0.0, %v4963
    %v4965 = vpop.f32.mrf.mxu0
    %4966 = vmatprep.mubr.f32.mxu0 0.0
    %4967 = vmatmul.mubr.f32.gmra.mxu0 %v4895
    %v4968 = vpop.f32.mrf.mxu0
    %v4969 = vadd.f32 0.0, %v4968
    %v4970 = vpop.f32.mrf.mxu0
    %4971 = vdwg.mxu0
    %4972 = vrot.lane.b32.xlu0 %v272, 48
    %v4973 = vpop.permute.xlu0 %4972
    %4974 = vrot.lane.b32.xlu0 %v277, 48
    %v4975 = vpop.permute.xlu0 %4974
    %v4979 = vsel %vm1029, %v4526, 0
    %v4982 = vsel %vm1029, %v4528, 0
    %4984 = vmatprep.subr.mxu0 0.0
    %4985 = vmatpush1.msra.mxu0 0.0
    %4986 = vmatprep.subr.mxu0 0.0
    %4987 = vmatpush1.msra.mxu0 0.0
    %4988 = vmatprep.subr.mxu0 0.0
    %4989 = vmatpush1.msra.mxu0 0.0
    %4990 = vmatprep.subr.mxu0 0.0
    %4991 = vmatpush1.msra.mxu0 0.0
    %4992 = vmatprep.subr.mxu0 0.0
    %4993 = vmatpush1.msra.mxu0 0.0
    %4994 = vmatprep.subr.mxu0 0.0
    %4995 = vmatpush1.msra.mxu0 0.0
    %4996 = vmatprep.subr.mxu0 0.0
    %4997 = vmatpush1.msra.mxu0 0.0
    %4998 = vmatprep.subr.mxu0 0.0
    %4999 = vmatpush1.msra.mxu0 0.0
    %5000 = vmatprep.subr.mxu0 0.0
    %5001 = vmatpush1.msra.mxu0 0.0
    %5002 = vmatprep.subr.mxu0 0.0
    %5003 = vmatpush1.msra.mxu0 0.0
    %5004 = vmatprep.subr.mxu0 0.0
    %5005 = vmatpush1.msra.mxu0 0.0
    %5006 = vmatprep.subr.mxu0 0.0
    %5007 = vmatpush1.msra.mxu0 0.0
    %5008 = vmatprep.subr.mxu0 0.0
    %5009 = vmatpush1.msra.mxu0 0.0
    %5010 = vmatprep.subr.mxu0 0.0
    %5011 = vmatpush1.msra.mxu0 0.0
    %5012 = vmatprep.subr.mxu0 0.0
    %5013 = vmatpush1.msra.mxu0 %v4975
    %5014 = vmatprep.subr.mxu0 0.0
    %5015 = vmatpush1.msra.mxu0 %v4973
    %5016 = vmatprep.subr.mxu0 0.0
    %5017 = vmatpush2.msra.mxu0 0.0
    %5018 = vmatprep.subr.mxu0 0.0
    %5019 = vmatpush2.msra.mxu0 0.0
    %5020 = vmatprep.subr.mxu0 0.0
    %5021 = vmatpush2.msra.mxu0 0.0
    %5022 = vmatprep.subr.mxu0 0.0
    %5023 = vmatpush2.msra.mxu0 0.0
    %5024 = vmatprep.subr.mxu0 0.0
    %5025 = vmatpush2.msra.mxu0 0.0
    %5026 = vmatprep.subr.mxu0 0.0
    %5027 = vmatpush2.msra.mxu0 0.0
    %5028 = vmatprep.subr.mxu0 0.0
    %5029 = vmatpush2.msra.mxu0 0.0
    %5030 = vmatprep.subr.mxu0 0.0
    %5031 = vmatpush2.msra.mxu0 0.0
    %5032 = vmatprep.subr.mxu0 0.0
    %5033 = vmatpush2.msra.mxu0 0.0
    %5034 = vmatprep.subr.mxu0 0.0
    %5035 = vmatpush2.msra.mxu0 0.0
    %5036 = vmatprep.subr.mxu0 0.0
    %5037 = vmatpush2.msra.mxu0 0.0
    %5038 = vmatprep.subr.mxu0 0.0
    %5039 = vmatpush2.msra.mxu0 0.0
    %5040 = vmatprep.subr.mxu0 0.0
    %5041 = vmatpush2.msra.mxu0 0.0
    %5042 = vmatprep.subr.mxu0 0.0
    %5043 = vmatpush2.msra.mxu0 0.0
    %5044 = vmatprep.subr.mxu0 0.0
    %5045 = vmatpush2.msra.mxu0 0.0
    %5046 = vmatprep.subr.mxu0 0.0
    %5047 = vmatpush2.msra.mxu0 0.0
    %5048 = vmatprep.mubr.f32.mxu0 0.0
    %5049 = vmatmul.mubr.f32.gmra.mxu0 %v4979
    %v5050 = vpop.f32.mrf.mxu0
    %v5051 = vadd.f32 0.0, %v5050
    %v5052 = vpop.f32.mrf.mxu0
    %5053 = vmatprep.mubr.f32.mxu0 0.0
    %5054 = vmatmul.mubr.f32.gmra.mxu0 %v4982
    %v5055 = vpop.f32.mrf.mxu0
    %v5056 = vadd.f32 0.0, %v5055
    %v5057 = vpop.f32.mrf.mxu0
    %5058 = vdwg.mxu0
    %5059 = vrot.lane.b32.xlu0 %v282, 48
    %v5060 = vpop.permute.xlu0 %5059
    %5061 = vrot.lane.b32.xlu0 %v287, 48
    %v5062 = vpop.permute.xlu0 %5061
    %v5066 = vsel %vm1029, %v4530, 0
    %v5069 = vsel %vm1029, %v4532, 0
    %5071 = vmatprep.subr.mxu0 0.0
    %5072 = vmatpush1.msra.mxu0 0.0
    %5073 = vmatprep.subr.mxu0 0.0
    %5074 = vmatpush1.msra.mxu0 0.0
    %5075 = vmatprep.subr.mxu0 0.0
    %5076 = vmatpush1.msra.mxu0 0.0
    %5077 = vmatprep.subr.mxu0 0.0
    %5078 = vmatpush1.msra.mxu0 0.0
    %5079 = vmatprep.subr.mxu0 0.0
    %5080 = vmatpush1.msra.mxu0 0.0
    %5081 = vmatprep.subr.mxu0 0.0
    %5082 = vmatpush1.msra.mxu0 0.0
    %5083 = vmatprep.subr.mxu0 0.0
    %5084 = vmatpush1.msra.mxu0 0.0
    %5085 = vmatprep.subr.mxu0 0.0
    %5086 = vmatpush1.msra.mxu0 0.0
    %5087 = vmatprep.subr.mxu0 0.0
    %5088 = vmatpush1.msra.mxu0 0.0
    %5089 = vmatprep.subr.mxu0 0.0
    %5090 = vmatpush1.msra.mxu0 0.0
    %5091 = vmatprep.subr.mxu0 0.0
    %5092 = vmatpush1.msra.mxu0 0.0
    %5093 = vmatprep.subr.mxu0 0.0
    %5094 = vmatpush1.msra.mxu0 0.0
    %5095 = vmatprep.subr.mxu0 0.0
    %5096 = vmatpush1.msra.mxu0 0.0
    %5097 = vmatprep.subr.mxu0 0.0
    %5098 = vmatpush1.msra.mxu0 0.0
    %5099 = vmatprep.subr.mxu0 0.0
    %5100 = vmatpush1.msra.mxu0 %v5062
    %5101 = vmatprep.subr.mxu0 0.0
    %5102 = vmatpush1.msra.mxu0 %v5060
    %5103 = vmatprep.subr.mxu0 0.0
    %5104 = vmatpush2.msra.mxu0 0.0
    %5105 = vmatprep.subr.mxu0 0.0
    %5106 = vmatpush2.msra.mxu0 0.0
    %5107 = vmatprep.subr.mxu0 0.0
    %5108 = vmatpush2.msra.mxu0 0.0
    %5109 = vmatprep.subr.mxu0 0.0
    %5110 = vmatpush2.msra.mxu0 0.0
    %5111 = vmatprep.subr.mxu0 0.0
    %5112 = vmatpush2.msra.mxu0 0.0
    %5113 = vmatprep.subr.mxu0 0.0
    %5114 = vmatpush2.msra.mxu0 0.0
    %5115 = vmatprep.subr.mxu0 0.0
    %5116 = vmatpush2.msra.mxu0 0.0
    %5117 = vmatprep.subr.mxu0 0.0
    %5118 = vmatpush2.msra.mxu0 0.0
    %5119 = vmatprep.subr.mxu0 0.0
    %5120 = vmatpush2.msra.mxu0 0.0
    %5121 = vmatprep.subr.mxu0 0.0
    %5122 = vmatpush2.msra.mxu0 0.0
    %5123 = vmatprep.subr.mxu0 0.0
    %5124 = vmatpush2.msra.mxu0 0.0
    %5125 = vmatprep.subr.mxu0 0.0
    %5126 = vmatpush2.msra.mxu0 0.0
    %5127 = vmatprep.subr.mxu0 0.0
    %5128 = vmatpush2.msra.mxu0 0.0
    %5129 = vmatprep.subr.mxu0 0.0
    %5130 = vmatpush2.msra.mxu0 0.0
    %5131 = vmatprep.subr.mxu0 0.0
    %5132 = vmatpush2.msra.mxu0 0.0
    %5133 = vmatprep.subr.mxu0 0.0
    %5134 = vmatpush2.msra.mxu0 0.0
    %5135 = vmatprep.mubr.f32.mxu0 0.0
    %5136 = vmatmul.mubr.f32.gmra.mxu0 %v5066
    %v5137 = vpop.f32.mrf.mxu0
    %v5138 = vadd.f32 0.0, %v5137
    %v5139 = vpop.f32.mrf.mxu0
    %5140 = vmatprep.mubr.f32.mxu0 0.0
    %5141 = vmatmul.mubr.f32.gmra.mxu0 %v5069
    %v5142 = vpop.f32.mrf.mxu0
    %v5143 = vadd.f32 0.0, %v5142
    %v5144 = vpop.f32.mrf.mxu0
    %5145 = vdwg.mxu0
    %5146 = vrot.lane.b32.xlu0 %v292, 48
    %v5147 = vpop.permute.xlu0 %5146
    %5148 = vrot.lane.b32.xlu0 %v297, 48
    %v5149 = vpop.permute.xlu0 %5148
    %v5153 = vsel %vm1029, %v4534, 0
    %v5156 = vsel %vm1029, %v4536, 0
    %5158 = vmatprep.subr.mxu0 0.0
    %5159 = vmatpush1.msra.mxu0 0.0
    %5160 = vmatprep.subr.mxu0 0.0
    %5161 = vmatpush1.msra.mxu0 0.0
    %5162 = vmatprep.subr.mxu0 0.0
    %5163 = vmatpush1.msra.mxu0 0.0
    %5164 = vmatprep.subr.mxu0 0.0
    %5165 = vmatpush1.msra.mxu0 0.0
    %5166 = vmatprep.subr.mxu0 0.0
    %5167 = vmatpush1.msra.mxu0 0.0
    %5168 = vmatprep.subr.mxu0 0.0
    %5169 = vmatpush1.msra.mxu0 0.0
    %5170 = vmatprep.subr.mxu0 0.0
    %5171 = vmatpush1.msra.mxu0 0.0
    %5172 = vmatprep.subr.mxu0 0.0
    %5173 = vmatpush1.msra.mxu0 0.0
    %5174 = vmatprep.subr.mxu0 0.0
    %5175 = vmatpush1.msra.mxu0 0.0
    %5176 = vmatprep.subr.mxu0 0.0
    %5177 = vmatpush1.msra.mxu0 0.0
    %5178 = vmatprep.subr.mxu0 0.0
    %5179 = vmatpush1.msra.mxu0 0.0
    %5180 = vmatprep.subr.mxu0 0.0
    %5181 = vmatpush1.msra.mxu0 0.0
    %5182 = vmatprep.subr.mxu0 0.0
    %5183 = vmatpush1.msra.mxu0 0.0
    %5184 = vmatprep.subr.mxu0 0.0
    %5185 = vmatpush1.msra.mxu0 0.0
    %5186 = vmatprep.subr.mxu0 0.0
    %5187 = vmatpush1.msra.mxu0 %v5149
    %5188 = vmatprep.subr.mxu0 0.0
    %5189 = vmatpush1.msra.mxu0 %v5147
    %5190 = vmatprep.subr.mxu0 0.0
    %5191 = vmatpush2.msra.mxu0 0.0
    %5192 = vmatprep.subr.mxu0 0.0
    %5193 = vmatpush2.msra.mxu0 0.0
    %5194 = vmatprep.subr.mxu0 0.0
    %5195 = vmatpush2.msra.mxu0 0.0
    %5196 = vmatprep.subr.mxu0 0.0
    %5197 = vmatpush2.msra.mxu0 0.0
    %5198 = vmatprep.subr.mxu0 0.0
    %5199 = vmatpush2.msra.mxu0 0.0
    %5200 = vmatprep.subr.mxu0 0.0
    %5201 = vmatpush2.msra.mxu0 0.0
    %5202 = vmatprep.subr.mxu0 0.0
    %5203 = vmatpush2.msra.mxu0 0.0
    %5204 = vmatprep.subr.mxu0 0.0
    %5205 = vmatpush2.msra.mxu0 0.0
    %5206 = vmatprep.subr.mxu0 0.0
    %5207 = vmatpush2.msra.mxu0 0.0
    %5208 = vmatprep.subr.mxu0 0.0
    %5209 = vmatpush2.msra.mxu0 0.0
    %5210 = vmatprep.subr.mxu0 0.0
    %5211 = vmatpush2.msra.mxu0 0.0
    %5212 = vmatprep.subr.mxu0 0.0
    %5213 = vmatpush2.msra.mxu0 0.0
    %5214 = vmatprep.subr.mxu0 0.0
    %5215 = vmatpush2.msra.mxu0 0.0
    %5216 = vmatprep.subr.mxu0 0.0
    %5217 = vmatpush2.msra.mxu0 0.0
    %5218 = vmatprep.subr.mxu0 0.0
    %5219 = vmatpush2.msra.mxu0 0.0
    %5220 = vmatprep.subr.mxu0 0.0
    %5221 = vmatpush2.msra.mxu0 0.0
    %5222 = vmatprep.mubr.f32.mxu0 0.0
    %5223 = vmatmul.mubr.f32.gmra.mxu0 %v5153
    %v5224 = vpop.f32.mrf.mxu0
    %v5225 = vadd.f32 0.0, %v5224
    %v5226 = vpop.f32.mrf.mxu0
    %5227 = vmatprep.mubr.f32.mxu0 0.0
    %5228 = vmatmul.mubr.f32.gmra.mxu0 %v5156
    %v5229 = vpop.f32.mrf.mxu0
    %v5230 = vadd.f32 0.0, %v5229
    %v5231 = vpop.f32.mrf.mxu0
    %5232 = vdwg.mxu0
    %5249 = vrot.lane.b32.xlu0 %v4616, 16
    %v5250 = vpop.permute.xlu0 %5249
    %5251 = vrot.lane.b32.xlu0 %v4621, 16
    %v5252 = vpop.permute.xlu0 %5251
    %5253 = vrot.lane.b32.xlu0 %v4703, 16
    %v5254 = vpop.permute.xlu0 %5253
    %5255 = vrot.lane.b32.xlu0 %v4708, 16
    %v5256 = vpop.permute.xlu0 %5255
    %5257 = vrot.lane.b32.xlu0 %v4790, 16
    %v5258 = vpop.permute.xlu0 %5257
    %5259 = vrot.lane.b32.xlu0 %v4795, 16
    %v5260 = vpop.permute.xlu0 %5259
    %5261 = vrot.lane.b32.xlu0 %v4877, 16
    %v5262 = vpop.permute.xlu0 %5261
    %5263 = vrot.lane.b32.xlu0 %v4882, 16
    %v5264 = vpop.permute.xlu0 %5263
    %5265 = vrot.lane.b32.xlu0 %v4964, 16
    %v5266 = vpop.permute.xlu0 %5265
    %5267 = vrot.lane.b32.xlu0 %v4969, 16
    %v5268 = vpop.permute.xlu0 %5267
    %5269 = vrot.lane.b32.xlu0 %v5051, 16
    %v5270 = vpop.permute.xlu0 %5269
    %5271 = vrot.lane.b32.xlu0 %v5056, 16
    %v5272 = vpop.permute.xlu0 %5271
    %5273 = vrot.lane.b32.xlu0 %v5138, 16
    %v5274 = vpop.permute.xlu0 %5273
    %5275 = vrot.lane.b32.xlu0 %v5143, 16
    %v5276 = vpop.permute.xlu0 %5275
    %5277 = vrot.lane.b32.xlu0 %v5225, 16
    %v5278 = vpop.permute.xlu0 %5277
    %5279 = vrot.lane.b32.xlu0 %v5230, 16
    %v5280 = vpop.permute.xlu0 %5279
    %vm5297 = vcmask 195712
    %5298 = vst.msk [vmem:[#allocation2] sm:$0xff] %vm5297, %v5250
    %5299 = vst.msk [vmem:[#allocation2 + $0x8] sm:$0xff] %vm5297, %v5252
    %5300 = vst.msk [vmem:[#allocation2 + $0x10] sm:$0xff] %vm5297, %v5254
    %5301 = vst.msk [vmem:[#allocation2 + $0x18] sm:$0xff] %vm5297, %v5256
    %5302 = vst.msk [vmem:[#allocation2 + $0x20] sm:$0xff] %vm5297, %v5258
    %5303 = vst.msk [vmem:[#allocation2 + $0x28] sm:$0xff] %vm5297, %v5260
    %5304 = vst.msk [vmem:[#allocation2 + $0x30] sm:$0xff] %vm5297, %v5262
    %5305 = vst.msk [vmem:[#allocation2 + $0x38] sm:$0xff] %vm5297, %v5264
    %5306 = vst.msk [vmem:[#allocation2 + $0x40] sm:$0xff] %vm5297, %v5266
    %5307 = vst.msk [vmem:[#allocation2 + $0x48] sm:$0xff] %vm5297, %v5268
    %5308 = vst.msk [vmem:[#allocation2 + $0x50] sm:$0xff] %vm5297, %v5270
    %5309 = vst.msk [vmem:[#allocation2 + $0x58] sm:$0xff] %vm5297, %v5272
    %5310 = vst.msk [vmem:[#allocation2 + $0x60] sm:$0xff] %vm5297, %v5274
    %5311 = vst.msk [vmem:[#allocation2 + $0x68] sm:$0xff] %vm5297, %v5276
    %5312 = vst.msk [vmem:[#allocation2 + $0x70] sm:$0xff] %vm5297, %v5278
    %5313 = vst.msk [vmem:[#allocation2 + $0x78] sm:$0xff] %vm5297, %v5280
    %s5314 = scalar_lea.vmem [#allocation9], 48
    %v5315 = vld [vmem:[%s5314] sm:$0xff]
    %v5316 = vld [vmem:[%s5314 + $0x8] sm:$0xff]
    %v5317 = vld [vmem:[%s5314 + $0x40] sm:$0xff]
    %v5318 = vld [vmem:[%s5314 + $0x48] sm:$0xff]
    %v5319 = vld [vmem:[%s5314 + $0x80] sm:$0xff]
    %v5320 = vld [vmem:[%s5314 + $0x88] sm:$0xff]
    %v5321 = vld [vmem:[%s5314 + $0xc0] sm:$0xff]
    %v5322 = vld [vmem:[%s5314 + $0xc8] sm:$0xff]
    %v5323 = vld [vmem:[%s5314 + $0x100] sm:$0xff]
    %v5324 = vld [vmem:[%s5314 + $0x108] sm:$0xff]
    %v5325 = vld [vmem:[%s5314 + $0x140] sm:$0xff]
    %v5326 = vld [vmem:[%s5314 + $0x148] sm:$0xff]
    %v5327 = vld [vmem:[%s5314 + $0x180] sm:$0xff]
    %v5328 = vld [vmem:[%s5314 + $0x188] sm:$0xff]
    %v5329 = vld [vmem:[%s5314 + $0x1c0] sm:$0xff]
    %v5330 = vld [vmem:[%s5314 + $0x1c8] sm:$0xff]
    %5331 = vrot.lane.b32.xlu0 %v222, 104
    %v5332 = vpop.permute.xlu0 %5331
    %5333 = vrot.lane.b32.xlu0 %v227, 104
    %v5334 = vpop.permute.xlu0 %5333
    %5335 = vrot.lane.b32.xlu0 %v222, 72
    %v5336 = vpop.permute.xlu0 %5335
    %5337 = vrot.lane.b32.xlu0 %v227, 72
    %v5338 = vpop.permute.xlu0 %5337
    %v5339 = vsel %vm322, %v5332, 0
    %v5341 = vsel %vm322, %v5334, 0
    %v5343 = vsel %vm322, %v5336, 0
    %v5345 = vsel %vm322, %v5338, 0
    %5347 = vmatprep.subr.mxu0 0.0
    %5348 = vmatpush1.xpose.msra.mxu0 0.0
    %5349 = vmatprep.subr.mxu0 0.0
    %5350 = vmatpush1.xpose.msra.mxu0 0.0
    %5351 = vmatprep.subr.mxu0 0.0
    %5352 = vmatpush1.xpose.msra.mxu0 0.0
    %5353 = vmatprep.subr.mxu0 0.0
    %5354 = vmatpush1.xpose.msra.mxu0 0.0
    %5355 = vmatprep.subr.mxu0 0.0
    %5356 = vmatpush1.xpose.msra.mxu0 0.0
    %5357 = vmatprep.subr.mxu0 0.0
    %5358 = vmatpush1.xpose.msra.mxu0 0.0
    %5359 = vmatprep.subr.mxu0 0.0
    %5360 = vmatpush1.xpose.msra.mxu0 0.0
    %5361 = vmatprep.subr.mxu0 0.0
    %5362 = vmatpush1.xpose.msra.mxu0 0.0
    %5363 = vmatprep.subr.mxu0 0.0
    %5364 = vmatpush1.xpose.msra.mxu0 0.0
    %5365 = vmatprep.subr.mxu0 0.0
    %5366 = vmatpush1.xpose.msra.mxu0 0.0
    %5367 = vmatprep.subr.mxu0 0.0
    %5368 = vmatpush1.xpose.msra.mxu0 0.0
    %5369 = vmatprep.subr.mxu0 0.0
    %5370 = vmatpush1.xpose.msra.mxu0 0.0
    %5371 = vmatprep.subr.mxu0 0.0
    %5372 = vmatpush1.xpose.msra.mxu0 0.0
    %5373 = vmatprep.subr.mxu0 0.0
    %5374 = vmatpush1.xpose.msra.mxu0 0.0
    %5375 = vmatprep.subr.mxu0 0.0
    %5376 = vmatpush1.xpose.msra.mxu0 %v5345
    %5377 = vmatprep.subr.mxu0 0.0
    %5378 = vmatpush1.xpose.msra.mxu0 %v5343
    %5379 = vmatprep.subr.mxu0 0.0
    %5380 = vmatpush2.xpose.msra.mxu0 0.0
    %5381 = vmatprep.subr.mxu0 0.0
    %5382 = vmatpush2.xpose.msra.mxu0 0.0
    %5383 = vmatprep.subr.mxu0 0.0
    %5384 = vmatpush2.xpose.msra.mxu0 0.0
    %5385 = vmatprep.subr.mxu0 0.0
    %5386 = vmatpush2.xpose.msra.mxu0 0.0
    %5387 = vmatprep.subr.mxu0 0.0
    %5388 = vmatpush2.xpose.msra.mxu0 0.0
    %5389 = vmatprep.subr.mxu0 0.0
    %5390 = vmatpush2.xpose.msra.mxu0 0.0
    %5391 = vmatprep.subr.mxu0 0.0
    %5392 = vmatpush2.xpose.msra.mxu0 0.0
    %5393 = vmatprep.subr.mxu0 0.0
    %5394 = vmatpush2.xpose.msra.mxu0 0.0
    %5395 = vmatprep.subr.mxu0 0.0
    %5396 = vmatpush2.xpose.msra.mxu0 0.0
    %5397 = vmatprep.subr.mxu0 0.0
    %5398 = vmatpush2.xpose.msra.mxu0 0.0
    %5399 = vmatprep.subr.mxu0 0.0
    %5400 = vmatpush2.xpose.msra.mxu0 0.0
    %5401 = vmatprep.subr.mxu0 0.0
    %5402 = vmatpush2.xpose.msra.mxu0 0.0
    %5403 = vmatprep.subr.mxu0 0.0
    %5404 = vmatpush2.xpose.msra.mxu0 0.0
    %5405 = vmatprep.subr.mxu0 0.0
    %5406 = vmatpush2.xpose.msra.mxu0 0.0
    %5407 = vmatprep.subr.mxu0 0.0
    %5408 = vmatpush2.xpose.msra.mxu0 0.0
    %5409 = vmatprep.subr.mxu0 0.0
    %5410 = vmatpush2.xpose.msra.mxu0 0.0
    %5411 = vmatprep.mubr.f32.mxu0 0.0
    %5412 = vmatmul.mubr.f32.gmra.mxu0 %v5339
    %v5413 = vpop.f32.mrf.mxu0
    %v5414 = vadd.f32 %v5315, %v5413
    %v5415 = vpop.f32.mrf.mxu0
    %5416 = vmatprep.mubr.f32.mxu0 0.0
    %5417 = vmatmul.mubr.f32.gmra.mxu0 %v5341
    %v5418 = vpop.f32.mrf.mxu0
    %v5419 = vadd.f32 %v5316, %v5418
    %v5420 = vpop.f32.mrf.mxu0
    %5421 = vdwg.mxu0
    %5422 = vrot.lane.b32.xlu0 %v232, 104
    %v5423 = vpop.permute.xlu0 %5422
    %5424 = vrot.lane.b32.xlu0 %v237, 104
    %v5425 = vpop.permute.xlu0 %5424
    %5426 = vrot.lane.b32.xlu0 %v232, 72
    %v5427 = vpop.permute.xlu0 %5426
    %5428 = vrot.lane.b32.xlu0 %v237, 72
    %v5429 = vpop.permute.xlu0 %5428
    %v5430 = vsel %vm322, %v5423, 0
    %v5432 = vsel %vm322, %v5425, 0
    %v5434 = vsel %vm322, %v5427, 0
    %v5436 = vsel %vm322, %v5429, 0
    %5438 = vmatprep.subr.mxu0 0.0
    %5439 = vmatpush1.xpose.msra.mxu0 0.0
    %5440 = vmatprep.subr.mxu0 0.0
    %5441 = vmatpush1.xpose.msra.mxu0 0.0
    %5442 = vmatprep.subr.mxu0 0.0
    %5443 = vmatpush1.xpose.msra.mxu0 0.0
    %5444 = vmatprep.subr.mxu0 0.0
    %5445 = vmatpush1.xpose.msra.mxu0 0.0
    %5446 = vmatprep.subr.mxu0 0.0
    %5447 = vmatpush1.xpose.msra.mxu0 0.0
    %5448 = vmatprep.subr.mxu0 0.0
    %5449 = vmatpush1.xpose.msra.mxu0 0.0
    %5450 = vmatprep.subr.mxu0 0.0
    %5451 = vmatpush1.xpose.msra.mxu0 0.0
    %5452 = vmatprep.subr.mxu0 0.0
    %5453 = vmatpush1.xpose.msra.mxu0 0.0
    %5454 = vmatprep.subr.mxu0 0.0
    %5455 = vmatpush1.xpose.msra.mxu0 0.0
    %5456 = vmatprep.subr.mxu0 0.0
    %5457 = vmatpush1.xpose.msra.mxu0 0.0
    %5458 = vmatprep.subr.mxu0 0.0
    %5459 = vmatpush1.xpose.msra.mxu0 0.0
    %5460 = vmatprep.subr.mxu0 0.0
    %5461 = vmatpush1.xpose.msra.mxu0 0.0
    %5462 = vmatprep.subr.mxu0 0.0
    %5463 = vmatpush1.xpose.msra.mxu0 0.0
    %5464 = vmatprep.subr.mxu0 0.0
    %5465 = vmatpush1.xpose.msra.mxu0 0.0
    %5466 = vmatprep.subr.mxu0 0.0
    %5467 = vmatpush1.xpose.msra.mxu0 %v5436
    %5468 = vmatprep.subr.mxu0 0.0
    %5469 = vmatpush1.xpose.msra.mxu0 %v5434
    %5470 = vmatprep.subr.mxu0 0.0
    %5471 = vmatpush2.xpose.msra.mxu0 0.0
    %5472 = vmatprep.subr.mxu0 0.0
    %5473 = vmatpush2.xpose.msra.mxu0 0.0
    %5474 = vmatprep.subr.mxu0 0.0
    %5475 = vmatpush2.xpose.msra.mxu0 0.0
    %5476 = vmatprep.subr.mxu0 0.0
    %5477 = vmatpush2.xpose.msra.mxu0 0.0
    %5478 = vmatprep.subr.mxu0 0.0
    %5479 = vmatpush2.xpose.msra.mxu0 0.0
    %5480 = vmatprep.subr.mxu0 0.0
    %5481 = vmatpush2.xpose.msra.mxu0 0.0
    %5482 = vmatprep.subr.mxu0 0.0
    %5483 = vmatpush2.xpose.msra.mxu0 0.0
    %5484 = vmatprep.subr.mxu0 0.0
    %5485 = vmatpush2.xpose.msra.mxu0 0.0
    %5486 = vmatprep.subr.mxu0 0.0
    %5487 = vmatpush2.xpose.msra.mxu0 0.0
    %5488 = vmatprep.subr.mxu0 0.0
    %5489 = vmatpush2.xpose.msra.mxu0 0.0
    %5490 = vmatprep.subr.mxu0 0.0
    %5491 = vmatpush2.xpose.msra.mxu0 0.0
    %5492 = vmatprep.subr.mxu0 0.0
    %5493 = vmatpush2.xpose.msra.mxu0 0.0
    %5494 = vmatprep.subr.mxu0 0.0
    %5495 = vmatpush2.xpose.msra.mxu0 0.0
    %5496 = vmatprep.subr.mxu0 0.0
    %5497 = vmatpush2.xpose.msra.mxu0 0.0
    %5498 = vmatprep.subr.mxu0 0.0
    %5499 = vmatpush2.xpose.msra.mxu0 0.0
    %5500 = vmatprep.subr.mxu0 0.0
    %5501 = vmatpush2.xpose.msra.mxu0 0.0
    %5502 = vmatprep.mubr.f32.mxu0 0.0
    %5503 = vmatmul.mubr.f32.gmra.mxu0 %v5430
    %v5504 = vpop.f32.mrf.mxu0
    %v5505 = vadd.f32 %v5317, %v5504
    %v5506 = vpop.f32.mrf.mxu0
    %5507 = vmatprep.mubr.f32.mxu0 0.0
    %5508 = vmatmul.mubr.f32.gmra.mxu0 %v5432
    %v5509 = vpop.f32.mrf.mxu0
    %v5510 = vadd.f32 %v5318, %v5509
    %v5511 = vpop.f32.mrf.mxu0
    %5512 = vdwg.mxu0
    %5513 = vrot.lane.b32.xlu0 %v242, 104
    %v5514 = vpop.permute.xlu0 %5513
    %5515 = vrot.lane.b32.xlu0 %v247, 104
    %v5516 = vpop.permute.xlu0 %5515
    %5517 = vrot.lane.b32.xlu0 %v242, 72
    %v5518 = vpop.permute.xlu0 %5517
    %5519 = vrot.lane.b32.xlu0 %v247, 72
    %v5520 = vpop.permute.xlu0 %5519
    %v5521 = vsel %vm322, %v5514, 0
    %v5523 = vsel %vm322, %v5516, 0
    %v5525 = vsel %vm322, %v5518, 0
    %v5527 = vsel %vm322, %v5520, 0
    %5529 = vmatprep.subr.mxu0 0.0
    %5530 = vmatpush1.xpose.msra.mxu0 0.0
    %5531 = vmatprep.subr.mxu0 0.0
    %5532 = vmatpush1.xpose.msra.mxu0 0.0
    %5533 = vmatprep.subr.mxu0 0.0
    %5534 = vmatpush1.xpose.msra.mxu0 0.0
    %5535 = vmatprep.subr.mxu0 0.0
    %5536 = vmatpush1.xpose.msra.mxu0 0.0
    %5537 = vmatprep.subr.mxu0 0.0
    %5538 = vmatpush1.xpose.msra.mxu0 0.0
    %5539 = vmatprep.subr.mxu0 0.0
    %5540 = vmatpush1.xpose.msra.mxu0 0.0
    %5541 = vmatprep.subr.mxu0 0.0
    %5542 = vmatpush1.xpose.msra.mxu0 0.0
    %5543 = vmatprep.subr.mxu0 0.0
    %5544 = vmatpush1.xpose.msra.mxu0 0.0
    %5545 = vmatprep.subr.mxu0 0.0
    %5546 = vmatpush1.xpose.msra.mxu0 0.0
    %5547 = vmatprep.subr.mxu0 0.0
    %5548 = vmatpush1.xpose.msra.mxu0 0.0
    %5549 = vmatprep.subr.mxu0 0.0
    %5550 = vmatpush1.xpose.msra.mxu0 0.0
    %5551 = vmatprep.subr.mxu0 0.0
    %5552 = vmatpush1.xpose.msra.mxu0 0.0
    %5553 = vmatprep.subr.mxu0 0.0
    %5554 = vmatpush1.xpose.msra.mxu0 0.0
    %5555 = vmatprep.subr.mxu0 0.0
    %5556 = vmatpush1.xpose.msra.mxu0 0.0
    %5557 = vmatprep.subr.mxu0 0.0
    %5558 = vmatpush1.xpose.msra.mxu0 %v5527
    %5559 = vmatprep.subr.mxu0 0.0
    %5560 = vmatpush1.xpose.msra.mxu0 %v5525
    %5561 = vmatprep.subr.mxu0 0.0
    %5562 = vmatpush2.xpose.msra.mxu0 0.0
    %5563 = vmatprep.subr.mxu0 0.0
    %5564 = vmatpush2.xpose.msra.mxu0 0.0
    %5565 = vmatprep.subr.mxu0 0.0
    %5566 = vmatpush2.xpose.msra.mxu0 0.0
    %5567 = vmatprep.subr.mxu0 0.0
    %5568 = vmatpush2.xpose.msra.mxu0 0.0
    %5569 = vmatprep.subr.mxu0 0.0
    %5570 = vmatpush2.xpose.msra.mxu0 0.0
    %5571 = vmatprep.subr.mxu0 0.0
    %5572 = vmatpush2.xpose.msra.mxu0 0.0
    %5573 = vmatprep.subr.mxu0 0.0
    %5574 = vmatpush2.xpose.msra.mxu0 0.0
    %5575 = vmatprep.subr.mxu0 0.0
    %5576 = vmatpush2.xpose.msra.mxu0 0.0
    %5577 = vmatprep.subr.mxu0 0.0
    %5578 = vmatpush2.xpose.msra.mxu0 0.0
    %5579 = vmatprep.subr.mxu0 0.0
    %5580 = vmatpush2.xpose.msra.mxu0 0.0
    %5581 = vmatprep.subr.mxu0 0.0
    %5582 = vmatpush2.xpose.msra.mxu0 0.0
    %5583 = vmatprep.subr.mxu0 0.0
    %5584 = vmatpush2.xpose.msra.mxu0 0.0
    %5585 = vmatprep.subr.mxu0 0.0
    %5586 = vmatpush2.xpose.msra.mxu0 0.0
    %5587 = vmatprep.subr.mxu0 0.0
    %5588 = vmatpush2.xpose.msra.mxu0 0.0
    %5589 = vmatprep.subr.mxu0 0.0
    %5590 = vmatpush2.xpose.msra.mxu0 0.0
    %5591 = vmatprep.subr.mxu0 0.0
    %5592 = vmatpush2.xpose.msra.mxu0 0.0
    %5593 = vmatprep.mubr.f32.mxu0 0.0
    %5594 = vmatmul.mubr.f32.gmra.mxu0 %v5521
    %v5595 = vpop.f32.mrf.mxu0
    %v5596 = vadd.f32 %v5319, %v5595
    %v5597 = vpop.f32.mrf.mxu0
    %5598 = vmatprep.mubr.f32.mxu0 0.0
    %5599 = vmatmul.mubr.f32.gmra.mxu0 %v5523
    %v5600 = vpop.f32.mrf.mxu0
    %v5601 = vadd.f32 %v5320, %v5600
    %v5602 = vpop.f32.mrf.mxu0
    %5603 = vdwg.mxu0
    %5604 = vrot.lane.b32.xlu0 %v252, 104
    %v5605 = vpop.permute.xlu0 %5604
    %5606 = vrot.lane.b32.xlu0 %v257, 104
    %v5607 = vpop.permute.xlu0 %5606
    %5608 = vrot.lane.b32.xlu0 %v252, 72
    %v5609 = vpop.permute.xlu0 %5608
    %5610 = vrot.lane.b32.xlu0 %v257, 72
    %v5611 = vpop.permute.xlu0 %5610
    %v5612 = vsel %vm322, %v5605, 0
    %v5614 = vsel %vm322, %v5607, 0
    %v5616 = vsel %vm322, %v5609, 0
    %v5618 = vsel %vm322, %v5611, 0
    %5620 = vmatprep.subr.mxu0 0.0
    %5621 = vmatpush1.xpose.msra.mxu0 0.0
    %5622 = vmatprep.subr.mxu0 0.0
    %5623 = vmatpush1.xpose.msra.mxu0 0.0
    %5624 = vmatprep.subr.mxu0 0.0
    %5625 = vmatpush1.xpose.msra.mxu0 0.0
    %5626 = vmatprep.subr.mxu0 0.0
    %5627 = vmatpush1.xpose.msra.mxu0 0.0
    %5628 = vmatprep.subr.mxu0 0.0
    %5629 = vmatpush1.xpose.msra.mxu0 0.0
    %5630 = vmatprep.subr.mxu0 0.0
    %5631 = vmatpush1.xpose.msra.mxu0 0.0
    %5632 = vmatprep.subr.mxu0 0.0
    %5633 = vmatpush1.xpose.msra.mxu0 0.0
    %5634 = vmatprep.subr.mxu0 0.0
    %5635 = vmatpush1.xpose.msra.mxu0 0.0
    %5636 = vmatprep.subr.mxu0 0.0
    %5637 = vmatpush1.xpose.msra.mxu0 0.0
    %5638 = vmatprep.subr.mxu0 0.0
    %5639 = vmatpush1.xpose.msra.mxu0 0.0
    %5640 = vmatprep.subr.mxu0 0.0
    %5641 = vmatpush1.xpose.msra.mxu0 0.0
    %5642 = vmatprep.subr.mxu0 0.0
    %5643 = vmatpush1.xpose.msra.mxu0 0.0
    %5644 = vmatprep.subr.mxu0 0.0
    %5645 = vmatpush1.xpose.msra.mxu0 0.0
    %5646 = vmatprep.subr.mxu0 0.0
    %5647 = vmatpush1.xpose.msra.mxu0 0.0
    %5648 = vmatprep.subr.mxu0 0.0
    %5649 = vmatpush1.xpose.msra.mxu0 %v5618
    %5650 = vmatprep.subr.mxu0 0.0
    %5651 = vmatpush1.xpose.msra.mxu0 %v5616
    %5652 = vmatprep.subr.mxu0 0.0
    %5653 = vmatpush2.xpose.msra.mxu0 0.0
    %5654 = vmatprep.subr.mxu0 0.0
    %5655 = vmatpush2.xpose.msra.mxu0 0.0
    %5656 = vmatprep.subr.mxu0 0.0
    %5657 = vmatpush2.xpose.msra.mxu0 0.0
    %5658 = vmatprep.subr.mxu0 0.0
    %5659 = vmatpush2.xpose.msra.mxu0 0.0
    %5660 = vmatprep.subr.mxu0 0.0
    %5661 = vmatpush2.xpose.msra.mxu0 0.0
    %5662 = vmatprep.subr.mxu0 0.0
    %5663 = vmatpush2.xpose.msra.mxu0 0.0
    %5664 = vmatprep.subr.mxu0 0.0
    %5665 = vmatpush2.xpose.msra.mxu0 0.0
    %5666 = vmatprep.subr.mxu0 0.0
    %5667 = vmatpush2.xpose.msra.mxu0 0.0
    %5668 = vmatprep.subr.mxu0 0.0
    %5669 = vmatpush2.xpose.msra.mxu0 0.0
    %5670 = vmatprep.subr.mxu0 0.0
    %5671 = vmatpush2.xpose.msra.mxu0 0.0
    %5672 = vmatprep.subr.mxu0 0.0
    %5673 = vmatpush2.xpose.msra.mxu0 0.0
    %5674 = vmatprep.subr.mxu0 0.0
    %5675 = vmatpush2.xpose.msra.mxu0 0.0
    %5676 = vmatprep.subr.mxu0 0.0
    %5677 = vmatpush2.xpose.msra.mxu0 0.0
    %5678 = vmatprep.subr.mxu0 0.0
    %5679 = vmatpush2.xpose.msra.mxu0 0.0
    %5680 = vmatprep.subr.mxu0 0.0
    %5681 = vmatpush2.xpose.msra.mxu0 0.0
    %5682 = vmatprep.subr.mxu0 0.0
    %5683 = vmatpush2.xpose.msra.mxu0 0.0
    %5684 = vmatprep.mubr.f32.mxu0 0.0
    %5685 = vmatmul.mubr.f32.gmra.mxu0 %v5612
    %v5686 = vpop.f32.mrf.mxu0
    %v5687 = vadd.f32 %v5321, %v5686
    %v5688 = vpop.f32.mrf.mxu0
    %5689 = vmatprep.mubr.f32.mxu0 0.0
    %5690 = vmatmul.mubr.f32.gmra.mxu0 %v5614
    %v5691 = vpop.f32.mrf.mxu0
    %v5692 = vadd.f32 %v5322, %v5691
    %v5693 = vpop.f32.mrf.mxu0
    %5694 = vdwg.mxu0
    %5695 = vrot.lane.b32.xlu0 %v262, 104
    %v5696 = vpop.permute.xlu0 %5695
    %5697 = vrot.lane.b32.xlu0 %v267, 104
    %v5698 = vpop.permute.xlu0 %5697
    %5699 = vrot.lane.b32.xlu0 %v262, 72
    %v5700 = vpop.permute.xlu0 %5699
    %5701 = vrot.lane.b32.xlu0 %v267, 72
    %v5702 = vpop.permute.xlu0 %5701
    %v5703 = vsel %vm322, %v5696, 0
    %v5705 = vsel %vm322, %v5698, 0
    %v5707 = vsel %vm322, %v5700, 0
    %v5709 = vsel %vm322, %v5702, 0
    %5711 = vmatprep.subr.mxu0 0.0
    %5712 = vmatpush1.xpose.msra.mxu0 0.0
    %5713 = vmatprep.subr.mxu0 0.0
    %5714 = vmatpush1.xpose.msra.mxu0 0.0
    %5715 = vmatprep.subr.mxu0 0.0
    %5716 = vmatpush1.xpose.msra.mxu0 0.0
    %5717 = vmatprep.subr.mxu0 0.0
    %5718 = vmatpush1.xpose.msra.mxu0 0.0
    %5719 = vmatprep.subr.mxu0 0.0
    %5720 = vmatpush1.xpose.msra.mxu0 0.0
    %5721 = vmatprep.subr.mxu0 0.0
    %5722 = vmatpush1.xpose.msra.mxu0 0.0
    %5723 = vmatprep.subr.mxu0 0.0
    %5724 = vmatpush1.xpose.msra.mxu0 0.0
    %5725 = vmatprep.subr.mxu0 0.0
    %5726 = vmatpush1.xpose.msra.mxu0 0.0
    %5727 = vmatprep.subr.mxu0 0.0
    %5728 = vmatpush1.xpose.msra.mxu0 0.0
    %5729 = vmatprep.subr.mxu0 0.0
    %5730 = vmatpush1.xpose.msra.mxu0 0.0
    %5731 = vmatprep.subr.mxu0 0.0
    %5732 = vmatpush1.xpose.msra.mxu0 0.0
    %5733 = vmatprep.subr.mxu0 0.0
    %5734 = vmatpush1.xpose.msra.mxu0 0.0
    %5735 = vmatprep.subr.mxu0 0.0
    %5736 = vmatpush1.xpose.msra.mxu0 0.0
    %5737 = vmatprep.subr.mxu0 0.0
    %5738 = vmatpush1.xpose.msra.mxu0 0.0
    %5739 = vmatprep.subr.mxu0 0.0
    %5740 = vmatpush1.xpose.msra.mxu0 %v5709
    %5741 = vmatprep.subr.mxu0 0.0
    %5742 = vmatpush1.xpose.msra.mxu0 %v5707
    %5743 = vmatprep.subr.mxu0 0.0
    %5744 = vmatpush2.xpose.msra.mxu0 0.0
    %5745 = vmatprep.subr.mxu0 0.0
    %5746 = vmatpush2.xpose.msra.mxu0 0.0
    %5747 = vmatprep.subr.mxu0 0.0
    %5748 = vmatpush2.xpose.msra.mxu0 0.0
    %5749 = vmatprep.subr.mxu0 0.0
    %5750 = vmatpush2.xpose.msra.mxu0 0.0
    %5751 = vmatprep.subr.mxu0 0.0
    %5752 = vmatpush2.xpose.msra.mxu0 0.0
    %5753 = vmatprep.subr.mxu0 0.0
    %5754 = vmatpush2.xpose.msra.mxu0 0.0
    %5755 = vmatprep.subr.mxu0 0.0
    %5756 = vmatpush2.xpose.msra.mxu0 0.0
    %5757 = vmatprep.subr.mxu0 0.0
    %5758 = vmatpush2.xpose.msra.mxu0 0.0
    %5759 = vmatprep.subr.mxu0 0.0
    %5760 = vmatpush2.xpose.msra.mxu0 0.0
    %5761 = vmatprep.subr.mxu0 0.0
    %5762 = vmatpush2.xpose.msra.mxu0 0.0
    %5763 = vmatprep.subr.mxu0 0.0
    %5764 = vmatpush2.xpose.msra.mxu0 0.0
    %5765 = vmatprep.subr.mxu0 0.0
    %5766 = vmatpush2.xpose.msra.mxu0 0.0
    %5767 = vmatprep.subr.mxu0 0.0
    %5768 = vmatpush2.xpose.msra.mxu0 0.0
    %5769 = vmatprep.subr.mxu0 0.0
    %5770 = vmatpush2.xpose.msra.mxu0 0.0
    %5771 = vmatprep.subr.mxu0 0.0
    %5772 = vmatpush2.xpose.msra.mxu0 0.0
    %5773 = vmatprep.subr.mxu0 0.0
    %5774 = vmatpush2.xpose.msra.mxu0 0.0
    %5775 = vmatprep.mubr.f32.mxu0 0.0
    %5776 = vmatmul.mubr.f32.gmra.mxu0 %v5703
    %v5777 = vpop.f32.mrf.mxu0
    %v5778 = vadd.f32 %v5323, %v5777
    %v5779 = vpop.f32.mrf.mxu0
    %5780 = vmatprep.mubr.f32.mxu0 0.0
    %5781 = vmatmul.mubr.f32.gmra.mxu0 %v5705
    %v5782 = vpop.f32.mrf.mxu0
    %v5783 = vadd.f32 %v5324, %v5782
    %v5784 = vpop.f32.mrf.mxu0
    %5785 = vdwg.mxu0
    %5786 = vrot.lane.b32.xlu0 %v272, 104
    %v5787 = vpop.permute.xlu0 %5786
    %5788 = vrot.lane.b32.xlu0 %v277, 104
    %v5789 = vpop.permute.xlu0 %5788
    %5790 = vrot.lane.b32.xlu0 %v272, 72
    %v5791 = vpop.permute.xlu0 %5790
    %5792 = vrot.lane.b32.xlu0 %v277, 72
    %v5793 = vpop.permute.xlu0 %5792
    %v5794 = vsel %vm322, %v5787, 0
    %v5796 = vsel %vm322, %v5789, 0
    %v5798 = vsel %vm322, %v5791, 0
    %v5800 = vsel %vm322, %v5793, 0
    %5802 = vmatprep.subr.mxu0 0.0
    %5803 = vmatpush1.xpose.msra.mxu0 0.0
    %5804 = vmatprep.subr.mxu0 0.0
    %5805 = vmatpush1.xpose.msra.mxu0 0.0
    %5806 = vmatprep.subr.mxu0 0.0
    %5807 = vmatpush1.xpose.msra.mxu0 0.0
    %5808 = vmatprep.subr.mxu0 0.0
    %5809 = vmatpush1.xpose.msra.mxu0 0.0
    %5810 = vmatprep.subr.mxu0 0.0
    %5811 = vmatpush1.xpose.msra.mxu0 0.0
    %5812 = vmatprep.subr.mxu0 0.0
    %5813 = vmatpush1.xpose.msra.mxu0 0.0
    %5814 = vmatprep.subr.mxu0 0.0
    %5815 = vmatpush1.xpose.msra.mxu0 0.0
    %5816 = vmatprep.subr.mxu0 0.0
    %5817 = vmatpush1.xpose.msra.mxu0 0.0
    %5818 = vmatprep.subr.mxu0 0.0
    %5819 = vmatpush1.xpose.msra.mxu0 0.0
    %5820 = vmatprep.subr.mxu0 0.0
    %5821 = vmatpush1.xpose.msra.mxu0 0.0
    %5822 = vmatprep.subr.mxu0 0.0
    %5823 = vmatpush1.xpose.msra.mxu0 0.0
    %5824 = vmatprep.subr.mxu0 0.0
    %5825 = vmatpush1.xpose.msra.mxu0 0.0
    %5826 = vmatprep.subr.mxu0 0.0
    %5827 = vmatpush1.xpose.msra.mxu0 0.0
    %5828 = vmatprep.subr.mxu0 0.0
    %5829 = vmatpush1.xpose.msra.mxu0 0.0
    %5830 = vmatprep.subr.mxu0 0.0
    %5831 = vmatpush1.xpose.msra.mxu0 %v5800
    %5832 = vmatprep.subr.mxu0 0.0
    %5833 = vmatpush1.xpose.msra.mxu0 %v5798
    %5834 = vmatprep.subr.mxu0 0.0
    %5835 = vmatpush2.xpose.msra.mxu0 0.0
    %5836 = vmatprep.subr.mxu0 0.0
    %5837 = vmatpush2.xpose.msra.mxu0 0.0
    %5838 = vmatprep.subr.mxu0 0.0
    %5839 = vmatpush2.xpose.msra.mxu0 0.0
    %5840 = vmatprep.subr.mxu0 0.0
    %5841 = vmatpush2.xpose.msra.mxu0 0.0
    %5842 = vmatprep.subr.mxu0 0.0
    %5843 = vmatpush2.xpose.msra.mxu0 0.0
    %5844 = vmatprep.subr.mxu0 0.0
    %5845 = vmatpush2.xpose.msra.mxu0 0.0
    %5846 = vmatprep.subr.mxu0 0.0
    %5847 = vmatpush2.xpose.msra.mxu0 0.0
    %5848 = vmatprep.subr.mxu0 0.0
    %5849 = vmatpush2.xpose.msra.mxu0 0.0
    %5850 = vmatprep.subr.mxu0 0.0
    %5851 = vmatpush2.xpose.msra.mxu0 0.0
    %5852 = vmatprep.subr.mxu0 0.0
    %5853 = vmatpush2.xpose.msra.mxu0 0.0
    %5854 = vmatprep.subr.mxu0 0.0
    %5855 = vmatpush2.xpose.msra.mxu0 0.0
    %5856 = vmatprep.subr.mxu0 0.0
    %5857 = vmatpush2.xpose.msra.mxu0 0.0
    %5858 = vmatprep.subr.mxu0 0.0
    %5859 = vmatpush2.xpose.msra.mxu0 0.0
    %5860 = vmatprep.subr.mxu0 0.0
    %5861 = vmatpush2.xpose.msra.mxu0 0.0
    %5862 = vmatprep.subr.mxu0 0.0
    %5863 = vmatpush2.xpose.msra.mxu0 0.0
    %5864 = vmatprep.subr.mxu0 0.0
    %5865 = vmatpush2.xpose.msra.mxu0 0.0
    %5866 = vmatprep.mubr.f32.mxu0 0.0
    %5867 = vmatmul.mubr.f32.gmra.mxu0 %v5794
    %v5868 = vpop.f32.mrf.mxu0
    %v5869 = vadd.f32 %v5325, %v5868
    %v5870 = vpop.f32.mrf.mxu0
    %5871 = vmatprep.mubr.f32.mxu0 0.0
    %5872 = vmatmul.mubr.f32.gmra.mxu0 %v5796
    %v5873 = vpop.f32.mrf.mxu0
    %v5874 = vadd.f32 %v5326, %v5873
    %v5875 = vpop.f32.mrf.mxu0
    %5876 = vdwg.mxu0
    %5877 = vrot.lane.b32.xlu0 %v282, 104
    %v5878 = vpop.permute.xlu0 %5877
    %5879 = vrot.lane.b32.xlu0 %v287, 104
    %v5880 = vpop.permute.xlu0 %5879
    %5881 = vrot.lane.b32.xlu0 %v282, 72
    %v5882 = vpop.permute.xlu0 %5881
    %5883 = vrot.lane.b32.xlu0 %v287, 72
    %v5884 = vpop.permute.xlu0 %5883
    %v5885 = vsel %vm322, %v5878, 0
    %v5887 = vsel %vm322, %v5880, 0
    %v5889 = vsel %vm322, %v5882, 0
    %v5891 = vsel %vm322, %v5884, 0
    %5893 = vmatprep.subr.mxu0 0.0
    %5894 = vmatpush1.xpose.msra.mxu0 0.0
    %5895 = vmatprep.subr.mxu0 0.0
    %5896 = vmatpush1.xpose.msra.mxu0 0.0
    %5897 = vmatprep.subr.mxu0 0.0
    %5898 = vmatpush1.xpose.msra.mxu0 0.0
    %5899 = vmatprep.subr.mxu0 0.0
    %5900 = vmatpush1.xpose.msra.mxu0 0.0
    %5901 = vmatprep.subr.mxu0 0.0
    %5902 = vmatpush1.xpose.msra.mxu0 0.0
    %5903 = vmatprep.subr.mxu0 0.0
    %5904 = vmatpush1.xpose.msra.mxu0 0.0
    %5905 = vmatprep.subr.mxu0 0.0
    %5906 = vmatpush1.xpose.msra.mxu0 0.0
    %5907 = vmatprep.subr.mxu0 0.0
    %5908 = vmatpush1.xpose.msra.mxu0 0.0
    %5909 = vmatprep.subr.mxu0 0.0
    %5910 = vmatpush1.xpose.msra.mxu0 0.0
    %5911 = vmatprep.subr.mxu0 0.0
    %5912 = vmatpush1.xpose.msra.mxu0 0.0
    %5913 = vmatprep.subr.mxu0 0.0
    %5914 = vmatpush1.xpose.msra.mxu0 0.0
    %5915 = vmatprep.subr.mxu0 0.0
    %5916 = vmatpush1.xpose.msra.mxu0 0.0
    %5917 = vmatprep.subr.mxu0 0.0
    %5918 = vmatpush1.xpose.msra.mxu0 0.0
    %5919 = vmatprep.subr.mxu0 0.0
    %5920 = vmatpush1.xpose.msra.mxu0 0.0
    %5921 = vmatprep.subr.mxu0 0.0
    %5922 = vmatpush1.xpose.msra.mxu0 %v5891
    %5923 = vmatprep.subr.mxu0 0.0
    %5924 = vmatpush1.xpose.msra.mxu0 %v5889
    %5925 = vmatprep.subr.mxu0 0.0
    %5926 = vmatpush2.xpose.msra.mxu0 0.0
    %5927 = vmatprep.subr.mxu0 0.0
    %5928 = vmatpush2.xpose.msra.mxu0 0.0
    %5929 = vmatprep.subr.mxu0 0.0
    %5930 = vmatpush2.xpose.msra.mxu0 0.0
    %5931 = vmatprep.subr.mxu0 0.0
    %5932 = vmatpush2.xpose.msra.mxu0 0.0
    %5933 = vmatprep.subr.mxu0 0.0
    %5934 = vmatpush2.xpose.msra.mxu0 0.0
    %5935 = vmatprep.subr.mxu0 0.0
    %5936 = vmatpush2.xpose.msra.mxu0 0.0
    %5937 = vmatprep.subr.mxu0 0.0
    %5938 = vmatpush2.xpose.msra.mxu0 0.0
    %5939 = vmatprep.subr.mxu0 0.0
    %5940 = vmatpush2.xpose.msra.mxu0 0.0
    %5941 = vmatprep.subr.mxu0 0.0
    %5942 = vmatpush2.xpose.msra.mxu0 0.0
    %5943 = vmatprep.subr.mxu0 0.0
    %5944 = vmatpush2.xpose.msra.mxu0 0.0
    %5945 = vmatprep.subr.mxu0 0.0
    %5946 = vmatpush2.xpose.msra.mxu0 0.0
    %5947 = vmatprep.subr.mxu0 0.0
    %5948 = vmatpush2.xpose.msra.mxu0 0.0
    %5949 = vmatprep.subr.mxu0 0.0
    %5950 = vmatpush2.xpose.msra.mxu0 0.0
    %5951 = vmatprep.subr.mxu0 0.0
    %5952 = vmatpush2.xpose.msra.mxu0 0.0
    %5953 = vmatprep.subr.mxu0 0.0
    %5954 = vmatpush2.xpose.msra.mxu0 0.0
    %5955 = vmatprep.subr.mxu0 0.0
    %5956 = vmatpush2.xpose.msra.mxu0 0.0
    %5957 = vmatprep.mubr.f32.mxu0 0.0
    %5958 = vmatmul.mubr.f32.gmra.mxu0 %v5885
    %v5959 = vpop.f32.mrf.mxu0
    %v5960 = vadd.f32 %v5327, %v5959
    %v5961 = vpop.f32.mrf.mxu0
    %5962 = vmatprep.mubr.f32.mxu0 0.0
    %5963 = vmatmul.mubr.f32.gmra.mxu0 %v5887
    %v5964 = vpop.f32.mrf.mxu0
    %v5965 = vadd.f32 %v5328, %v5964
    %v5966 = vpop.f32.mrf.mxu0
    %5967 = vdwg.mxu0
    %5968 = vrot.lane.b32.xlu0 %v292, 104
    %v5969 = vpop.permute.xlu0 %5968
    %5970 = vrot.lane.b32.xlu0 %v297, 104
    %v5971 = vpop.permute.xlu0 %5970
    %5972 = vrot.lane.b32.xlu0 %v292, 72
    %v5973 = vpop.permute.xlu0 %5972
    %5974 = vrot.lane.b32.xlu0 %v297, 72
    %v5975 = vpop.permute.xlu0 %5974
    %v5976 = vsel %vm322, %v5969, 0
    %v5978 = vsel %vm322, %v5971, 0
    %v5980 = vsel %vm322, %v5973, 0
    %v5982 = vsel %vm322, %v5975, 0
    %5984 = vmatprep.subr.mxu0 0.0
    %5985 = vmatpush1.xpose.msra.mxu0 0.0
    %5986 = vmatprep.subr.mxu0 0.0
    %5987 = vmatpush1.xpose.msra.mxu0 0.0
    %5988 = vmatprep.subr.mxu0 0.0
    %5989 = vmatpush1.xpose.msra.mxu0 0.0
    %5990 = vmatprep.subr.mxu0 0.0
    %5991 = vmatpush1.xpose.msra.mxu0 0.0
    %5992 = vmatprep.subr.mxu0 0.0
    %5993 = vmatpush1.xpose.msra.mxu0 0.0
    %5994 = vmatprep.subr.mxu0 0.0
    %5995 = vmatpush1.xpose.msra.mxu0 0.0
    %5996 = vmatprep.subr.mxu0 0.0
    %5997 = vmatpush1.xpose.msra.mxu0 0.0
    %5998 = vmatprep.subr.mxu0 0.0
    %5999 = vmatpush1.xpose.msra.mxu0 0.0
    %6000 = vmatprep.subr.mxu0 0.0
    %6001 = vmatpush1.xpose.msra.mxu0 0.0
    %6002 = vmatprep.subr.mxu0 0.0
    %6003 = vmatpush1.xpose.msra.mxu0 0.0
    %6004 = vmatprep.subr.mxu0 0.0
    %6005 = vmatpush1.xpose.msra.mxu0 0.0
    %6006 = vmatprep.subr.mxu0 0.0
    %6007 = vmatpush1.xpose.msra.mxu0 0.0
    %6008 = vmatprep.subr.mxu0 0.0
    %6009 = vmatpush1.xpose.msra.mxu0 0.0
    %6010 = vmatprep.subr.mxu0 0.0
    %6011 = vmatpush1.xpose.msra.mxu0 0.0
    %6012 = vmatprep.subr.mxu0 0.0
    %6013 = vmatpush1.xpose.msra.mxu0 %v5982
    %6014 = vmatprep.subr.mxu0 0.0
    %6015 = vmatpush1.xpose.msra.mxu0 %v5980
    %6016 = vmatprep.subr.mxu0 0.0
    %6017 = vmatpush2.xpose.msra.mxu0 0.0
    %6018 = vmatprep.subr.mxu0 0.0
    %6019 = vmatpush2.xpose.msra.mxu0 0.0
    %6020 = vmatprep.subr.mxu0 0.0
    %6021 = vmatpush2.xpose.msra.mxu0 0.0
    %6022 = vmatprep.subr.mxu0 0.0
    %6023 = vmatpush2.xpose.msra.mxu0 0.0
    %6024 = vmatprep.subr.mxu0 0.0
    %6025 = vmatpush2.xpose.msra.mxu0 0.0
    %6026 = vmatprep.subr.mxu0 0.0
    %6027 = vmatpush2.xpose.msra.mxu0 0.0
    %6028 = vmatprep.subr.mxu0 0.0
    %6029 = vmatpush2.xpose.msra.mxu0 0.0
    %6030 = vmatprep.subr.mxu0 0.0
    %6031 = vmatpush2.xpose.msra.mxu0 0.0
    %6032 = vmatprep.subr.mxu0 0.0
    %6033 = vmatpush2.xpose.msra.mxu0 0.0
    %6034 = vmatprep.subr.mxu0 0.0
    %6035 = vmatpush2.xpose.msra.mxu0 0.0
    %6036 = vmatprep.subr.mxu0 0.0
    %6037 = vmatpush2.xpose.msra.mxu0 0.0
    %6038 = vmatprep.subr.mxu0 0.0
    %6039 = vmatpush2.xpose.msra.mxu0 0.0
    %6040 = vmatprep.subr.mxu0 0.0
    %6041 = vmatpush2.xpose.msra.mxu0 0.0
    %6042 = vmatprep.subr.mxu0 0.0
    %6043 = vmatpush2.xpose.msra.mxu0 0.0
    %6044 = vmatprep.subr.mxu0 0.0
    %6045 = vmatpush2.xpose.msra.mxu0 0.0
    %6046 = vmatprep.subr.mxu0 0.0
    %6047 = vmatpush2.xpose.msra.mxu0 0.0
    %6048 = vmatprep.mubr.f32.mxu0 0.0
    %6049 = vmatmul.mubr.f32.gmra.mxu0 %v5976
    %v6050 = vpop.f32.mrf.mxu0
    %v6051 = vadd.f32 %v5329, %v6050
    %v6052 = vpop.f32.mrf.mxu0
    %6053 = vmatprep.mubr.f32.mxu0 0.0
    %6054 = vmatmul.mubr.f32.gmra.mxu0 %v5978
    %v6055 = vpop.f32.mrf.mxu0
    %v6056 = vadd.f32 %v5330, %v6055
    %v6057 = vpop.f32.mrf.mxu0
    %6058 = vdwg.mxu0
    %v6059 = vsel %vm1029, %v5414, -inf
    %6060 = vmax.xlane.f32.xlu0 %v6059
    %v6061 = vpop.xlane.xlu0 %6060
    %v6062 = vsel %vm1029, %v5419, -inf
    %6063 = vmax.xlane.f32.xlu0 %v6062
    %v6064 = vpop.xlane.xlu0 %6063
    %v6065 = vsel %vm1029, %v5505, -inf
    %6066 = vmax.xlane.f32.xlu0 %v6065
    %v6067 = vpop.xlane.xlu0 %6066
    %v6068 = vsel %vm1029, %v5510, -inf
    %6069 = vmax.xlane.f32.xlu0 %v6068
    %v6070 = vpop.xlane.xlu0 %6069
    %v6071 = vsel %vm1029, %v5596, -inf
    %6072 = vmax.xlane.f32.xlu0 %v6071
    %v6073 = vpop.xlane.xlu0 %6072
    %v6074 = vsel %vm1029, %v5601, -inf
    %6075 = vmax.xlane.f32.xlu0 %v6074
    %v6076 = vpop.xlane.xlu0 %6075
    %v6077 = vsel %vm1029, %v5687, -inf
    %6078 = vmax.xlane.f32.xlu0 %v6077
    %v6079 = vpop.xlane.xlu0 %6078
    %v6080 = vsel %vm1029, %v5692, -inf
    %6081 = vmax.xlane.f32.xlu0 %v6080
    %v6082 = vpop.xlane.xlu0 %6081
    %v6083 = vsel %vm1029, %v5778, -inf
    %6084 = vmax.xlane.f32.xlu0 %v6083
    %v6085 = vpop.xlane.xlu0 %6084
    %v6086 = vsel %vm1029, %v5783, -inf
    %6087 = vmax.xlane.f32.xlu0 %v6086
    %v6088 = vpop.xlane.xlu0 %6087
    %v6089 = vsel %vm1029, %v5869, -inf
    %6090 = vmax.xlane.f32.xlu0 %v6089
    %v6091 = vpop.xlane.xlu0 %6090
    %v6092 = vsel %vm1029, %v5874, -inf
    %6093 = vmax.xlane.f32.xlu0 %v6092
    %v6094 = vpop.xlane.xlu0 %6093
    %v6095 = vsel %vm1029, %v5960, -inf
    %6096 = vmax.xlane.f32.xlu0 %v6095
    %v6097 = vpop.xlane.xlu0 %6096
    %v6098 = vsel %vm1029, %v5965, -inf
    %6099 = vmax.xlane.f32.xlu0 %v6098
    %v6100 = vpop.xlane.xlu0 %6099
    %v6101 = vsel %vm1029, %v6051, -inf
    %6102 = vmax.xlane.f32.xlu0 %v6101
    %v6103 = vpop.xlane.xlu0 %6102
    %v6104 = vsel %vm1029, %v6056, -inf
    %6105 = vmax.xlane.f32.xlu0 %v6104
    %v6106 = vpop.xlane.xlu0 %6105
    %v6107 = vsub.f32 %v5414, %v6061
    %v6108 = vsub.f32 %v5419, %v6064
    %v6109 = vsub.f32 %v5505, %v6067
    %v6110 = vsub.f32 %v5510, %v6070
    %v6111 = vsub.f32 %v5596, %v6073
    %v6112 = vsub.f32 %v5601, %v6076
    %v6113 = vsub.f32 %v5687, %v6079
    %v6114 = vsub.f32 %v5692, %v6082
    %v6115 = vsub.f32 %v5778, %v6085
    %v6116 = vsub.f32 %v5783, %v6088
    %v6117 = vsub.f32 %v5869, %v6091
    %v6118 = vsub.f32 %v5874, %v6094
    %v6119 = vsub.f32 %v5960, %v6097
    %v6120 = vsub.f32 %v5965, %v6100
    %v6121 = vsub.f32 %v6051, %v6103
    %v6122 = vsub.f32 %v6056, %v6106
    %v6123 = vmul.f32 %v6107, 1.442695
    %v6124 = vpow.pop %v6123
    %v6125 = vmul.f32 %v6108, 1.442695
    %v6126 = vpow.pop %v6125
    %v6127 = vmul.f32 %v6109, 1.442695
    %v6128 = vpow.pop %v6127
    %v6129 = vmul.f32 %v6110, 1.442695
    %v6130 = vpow.pop %v6129
    %v6131 = vmul.f32 %v6111, 1.442695
    %v6132 = vpow.pop %v6131
    %v6133 = vmul.f32 %v6112, 1.442695
    %v6134 = vpow.pop %v6133
    %v6135 = vmul.f32 %v6113, 1.442695
    %v6136 = vpow.pop %v6135
    %v6137 = vmul.f32 %v6114, 1.442695
    %v6138 = vpow.pop %v6137
    %v6139 = vmul.f32 %v6115, 1.442695
    %v6140 = vpow.pop %v6139
    %v6141 = vmul.f32 %v6116, 1.442695
    %v6142 = vpow.pop %v6141
    %v6143 = vmul.f32 %v6117, 1.442695
    %v6144 = vpow.pop %v6143
    %v6145 = vmul.f32 %v6118, 1.442695
    %v6146 = vpow.pop %v6145
    %v6147 = vmul.f32 %v6119, 1.442695
    %v6148 = vpow.pop %v6147
    %v6149 = vmul.f32 %v6120, 1.442695
    %v6150 = vpow.pop %v6149
    %v6151 = vmul.f32 %v6121, 1.442695
    %v6152 = vpow.pop %v6151
    %v6153 = vmul.f32 %v6122, 1.442695
    %v6154 = vpow.pop %v6153
    %v6155 = vsel %vm1029, %v6124, 0.0
    %6156 = vadd.xlane.f32.xlu0 %v6155
    %v6157 = vpop.xlane.xlu0 %6156
    %v6158 = vsel %vm1029, %v6126, 0.0
    %6159 = vadd.xlane.f32.xlu0 %v6158
    %v6160 = vpop.xlane.xlu0 %6159
    %v6161 = vsel %vm1029, %v6128, 0.0
    %6162 = vadd.xlane.f32.xlu0 %v6161
    %v6163 = vpop.xlane.xlu0 %6162
    %v6164 = vsel %vm1029, %v6130, 0.0
    %6165 = vadd.xlane.f32.xlu0 %v6164
    %v6166 = vpop.xlane.xlu0 %6165
    %v6167 = vsel %vm1029, %v6132, 0.0
    %6168 = vadd.xlane.f32.xlu0 %v6167
    %v6169 = vpop.xlane.xlu0 %6168
    %v6170 = vsel %vm1029, %v6134, 0.0
    %6171 = vadd.xlane.f32.xlu0 %v6170
    %v6172 = vpop.xlane.xlu0 %6171
    %v6173 = vsel %vm1029, %v6136, 0.0
    %6174 = vadd.xlane.f32.xlu0 %v6173
    %v6175 = vpop.xlane.xlu0 %6174
    %v6176 = vsel %vm1029, %v6138, 0.0
    %6177 = vadd.xlane.f32.xlu0 %v6176
    %v6178 = vpop.xlane.xlu0 %6177
    %v6179 = vsel %vm1029, %v6140, 0.0
    %6180 = vadd.xlane.f32.xlu0 %v6179
    %v6181 = vpop.xlane.xlu0 %6180
    %v6182 = vsel %vm1029, %v6142, 0.0
    %6183 = vadd.xlane.f32.xlu0 %v6182
    %v6184 = vpop.xlane.xlu0 %6183
    %v6185 = vsel %vm1029, %v6144, 0.0
    %6186 = vadd.xlane.f32.xlu0 %v6185
    %v6187 = vpop.xlane.xlu0 %6186
    %v6188 = vsel %vm1029, %v6146, 0.0
    %6189 = vadd.xlane.f32.xlu0 %v6188
    %v6190 = vpop.xlane.xlu0 %6189
    %v6191 = vsel %vm1029, %v6148, 0.0
    %6192 = vadd.xlane.f32.xlu0 %v6191
    %v6193 = vpop.xlane.xlu0 %6192
    %v6194 = vsel %vm1029, %v6150, 0.0
    %6195 = vadd.xlane.f32.xlu0 %v6194
    %v6196 = vpop.xlane.xlu0 %6195
    %v6197 = vsel %vm1029, %v6152, 0.0
    %6198 = vadd.xlane.f32.xlu0 %v6197
    %v6199 = vpop.xlane.xlu0 %6198
    %v6200 = vsel %vm1029, %v6154, 0.0
    %6201 = vadd.xlane.f32.xlu0 %v6200
    %v6202 = vpop.xlane.xlu0 %6201
    %v6203 = vrcp.pop %v6157
    %v6204 = vmul.f32 %v6124, %v6203
    %v6205 = vrcp.pop %v6160
    %v6206 = vmul.f32 %v6126, %v6205
    %v6207 = vrcp.pop %v6163
    %v6208 = vmul.f32 %v6128, %v6207
    %v6209 = vrcp.pop %v6166
    %v6210 = vmul.f32 %v6130, %v6209
    %v6211 = vrcp.pop %v6169
    %v6212 = vmul.f32 %v6132, %v6211
    %v6213 = vrcp.pop %v6172
    %v6214 = vmul.f32 %v6134, %v6213
    %v6215 = vrcp.pop %v6175
    %v6216 = vmul.f32 %v6136, %v6215
    %v6217 = vrcp.pop %v6178
    %v6218 = vmul.f32 %v6138, %v6217
    %v6219 = vrcp.pop %v6181
    %v6220 = vmul.f32 %v6140, %v6219
    %v6221 = vrcp.pop %v6184
    %v6222 = vmul.f32 %v6142, %v6221
    %v6223 = vrcp.pop %v6187
    %v6224 = vmul.f32 %v6144, %v6223
    %v6225 = vrcp.pop %v6190
    %v6226 = vmul.f32 %v6146, %v6225
    %v6227 = vrcp.pop %v6193
    %v6228 = vmul.f32 %v6148, %v6227
    %v6229 = vrcp.pop %v6196
    %v6230 = vmul.f32 %v6150, %v6229
    %v6231 = vrcp.pop %v6199
    %v6232 = vmul.f32 %v6152, %v6231
    %v6233 = vrcp.pop %v6202
    %v6234 = vmul.f32 %v6154, %v6233
    %6235 = vrot.lane.b32.xlu0 %v222, 40
    %v6236 = vpop.permute.xlu0 %6235
    %6237 = vrot.lane.b32.xlu0 %v227, 40
    %v6238 = vpop.permute.xlu0 %6237
    %v6242 = vsel %vm1029, %v6204, 0
    %v6245 = vsel %vm1029, %v6206, 0
    %6247 = vmatprep.subr.mxu0 0.0
    %6248 = vmatpush1.msra.mxu0 0.0
    %6249 = vmatprep.subr.mxu0 0.0
    %6250 = vmatpush1.msra.mxu0 0.0
    %6251 = vmatprep.subr.mxu0 0.0
    %6252 = vmatpush1.msra.mxu0 0.0
    %6253 = vmatprep.subr.mxu0 0.0
    %6254 = vmatpush1.msra.mxu0 0.0
    %6255 = vmatprep.subr.mxu0 0.0
    %6256 = vmatpush1.msra.mxu0 0.0
    %6257 = vmatprep.subr.mxu0 0.0
    %6258 = vmatpush1.msra.mxu0 0.0
    %6259 = vmatprep.subr.mxu0 0.0
    %6260 = vmatpush1.msra.mxu0 0.0
    %6261 = vmatprep.subr.mxu0 0.0
    %6262 = vmatpush1.msra.mxu0 0.0
    %6263 = vmatprep.subr.mxu0 0.0
    %6264 = vmatpush1.msra.mxu0 0.0
    %6265 = vmatprep.subr.mxu0 0.0
    %6266 = vmatpush1.msra.mxu0 0.0
    %6267 = vmatprep.subr.mxu0 0.0
    %6268 = vmatpush1.msra.mxu0 0.0
    %6269 = vmatprep.subr.mxu0 0.0
    %6270 = vmatpush1.msra.mxu0 0.0
    %6271 = vmatprep.subr.mxu0 0.0
    %6272 = vmatpush1.msra.mxu0 0.0
    %6273 = vmatprep.subr.mxu0 0.0
    %6274 = vmatpush1.msra.mxu0 0.0
    %6275 = vmatprep.subr.mxu0 0.0
    %6276 = vmatpush1.msra.mxu0 %v6238
    %6277 = vmatprep.subr.mxu0 0.0
    %6278 = vmatpush1.msra.mxu0 %v6236
    %6279 = vmatprep.subr.mxu0 0.0
    %6280 = vmatpush2.msra.mxu0 0.0
    %6281 = vmatprep.subr.mxu0 0.0
    %6282 = vmatpush2.msra.mxu0 0.0
    %6283 = vmatprep.subr.mxu0 0.0
    %6284 = vmatpush2.msra.mxu0 0.0
    %6285 = vmatprep.subr.mxu0 0.0
    %6286 = vmatpush2.msra.mxu0 0.0
    %6287 = vmatprep.subr.mxu0 0.0
    %6288 = vmatpush2.msra.mxu0 0.0
    %6289 = vmatprep.subr.mxu0 0.0
    %6290 = vmatpush2.msra.mxu0 0.0
    %6291 = vmatprep.subr.mxu0 0.0
    %6292 = vmatpush2.msra.mxu0 0.0
    %6293 = vmatprep.subr.mxu0 0.0
    %6294 = vmatpush2.msra.mxu0 0.0
    %6295 = vmatprep.subr.mxu0 0.0
    %6296 = vmatpush2.msra.mxu0 0.0
    %6297 = vmatprep.subr.mxu0 0.0
    %6298 = vmatpush2.msra.mxu0 0.0
    %6299 = vmatprep.subr.mxu0 0.0
    %6300 = vmatpush2.msra.mxu0 0.0
    %6301 = vmatprep.subr.mxu0 0.0
    %6302 = vmatpush2.msra.mxu0 0.0
    %6303 = vmatprep.subr.mxu0 0.0
    %6304 = vmatpush2.msra.mxu0 0.0
    %6305 = vmatprep.subr.mxu0 0.0
    %6306 = vmatpush2.msra.mxu0 0.0
    %6307 = vmatprep.subr.mxu0 0.0
    %6308 = vmatpush2.msra.mxu0 0.0
    %6309 = vmatprep.subr.mxu0 0.0
    %6310 = vmatpush2.msra.mxu0 0.0
    %6311 = vmatprep.mubr.f32.mxu0 0.0
    %6312 = vmatmul.mubr.f32.gmra.mxu0 %v6242
    %v6313 = vpop.f32.mrf.mxu0
    %v6314 = vadd.f32 0.0, %v6313
    %v6315 = vpop.f32.mrf.mxu0
    %6316 = vmatprep.mubr.f32.mxu0 0.0
    %6317 = vmatmul.mubr.f32.gmra.mxu0 %v6245
    %v6318 = vpop.f32.mrf.mxu0
    %v6319 = vadd.f32 0.0, %v6318
    %v6320 = vpop.f32.mrf.mxu0
    %6321 = vdwg.mxu0
    %6322 = vrot.lane.b32.xlu0 %v232, 40
    %v6323 = vpop.permute.xlu0 %6322
    %6324 = vrot.lane.b32.xlu0 %v237, 40
    %v6325 = vpop.permute.xlu0 %6324
    %v6329 = vsel %vm1029, %v6208, 0
    %v6332 = vsel %vm1029, %v6210, 0
    %6334 = vmatprep.subr.mxu0 0.0
    %6335 = vmatpush1.msra.mxu0 0.0
    %6336 = vmatprep.subr.mxu0 0.0
    %6337 = vmatpush1.msra.mxu0 0.0
    %6338 = vmatprep.subr.mxu0 0.0
    %6339 = vmatpush1.msra.mxu0 0.0
    %6340 = vmatprep.subr.mxu0 0.0
    %6341 = vmatpush1.msra.mxu0 0.0
    %6342 = vmatprep.subr.mxu0 0.0
    %6343 = vmatpush1.msra.mxu0 0.0
    %6344 = vmatprep.subr.mxu0 0.0
    %6345 = vmatpush1.msra.mxu0 0.0
    %6346 = vmatprep.subr.mxu0 0.0
    %6347 = vmatpush1.msra.mxu0 0.0
    %6348 = vmatprep.subr.mxu0 0.0
    %6349 = vmatpush1.msra.mxu0 0.0
    %6350 = vmatprep.subr.mxu0 0.0
    %6351 = vmatpush1.msra.mxu0 0.0
    %6352 = vmatprep.subr.mxu0 0.0
    %6353 = vmatpush1.msra.mxu0 0.0
    %6354 = vmatprep.subr.mxu0 0.0
    %6355 = vmatpush1.msra.mxu0 0.0
    %6356 = vmatprep.subr.mxu0 0.0
    %6357 = vmatpush1.msra.mxu0 0.0
    %6358 = vmatprep.subr.mxu0 0.0
    %6359 = vmatpush1.msra.mxu0 0.0
    %6360 = vmatprep.subr.mxu0 0.0
    %6361 = vmatpush1.msra.mxu0 0.0
    %6362 = vmatprep.subr.mxu0 0.0
    %6363 = vmatpush1.msra.mxu0 %v6325
    %6364 = vmatprep.subr.mxu0 0.0
    %6365 = vmatpush1.msra.mxu0 %v6323
    %6366 = vmatprep.subr.mxu0 0.0
    %6367 = vmatpush2.msra.mxu0 0.0
    %6368 = vmatprep.subr.mxu0 0.0
    %6369 = vmatpush2.msra.mxu0 0.0
    %6370 = vmatprep.subr.mxu0 0.0
    %6371 = vmatpush2.msra.mxu0 0.0
    %6372 = vmatprep.subr.mxu0 0.0
    %6373 = vmatpush2.msra.mxu0 0.0
    %6374 = vmatprep.subr.mxu0 0.0
    %6375 = vmatpush2.msra.mxu0 0.0
    %6376 = vmatprep.subr.mxu0 0.0
    %6377 = vmatpush2.msra.mxu0 0.0
    %6378 = vmatprep.subr.mxu0 0.0
    %6379 = vmatpush2.msra.mxu0 0.0
    %6380 = vmatprep.subr.mxu0 0.0
    %6381 = vmatpush2.msra.mxu0 0.0
    %6382 = vmatprep.subr.mxu0 0.0
    %6383 = vmatpush2.msra.mxu0 0.0
    %6384 = vmatprep.subr.mxu0 0.0
    %6385 = vmatpush2.msra.mxu0 0.0
    %6386 = vmatprep.subr.mxu0 0.0
    %6387 = vmatpush2.msra.mxu0 0.0
    %6388 = vmatprep.subr.mxu0 0.0
    %6389 = vmatpush2.msra.mxu0 0.0
    %6390 = vmatprep.subr.mxu0 0.0
    %6391 = vmatpush2.msra.mxu0 0.0
    %6392 = vmatprep.subr.mxu0 0.0
    %6393 = vmatpush2.msra.mxu0 0.0
    %6394 = vmatprep.subr.mxu0 0.0
    %6395 = vmatpush2.msra.mxu0 0.0
    %6396 = vmatprep.subr.mxu0 0.0
    %6397 = vmatpush2.msra.mxu0 0.0
    %6398 = vmatprep.mubr.f32.mxu0 0.0
    %6399 = vmatmul.mubr.f32.gmra.mxu0 %v6329
    %v6400 = vpop.f32.mrf.mxu0
    %v6401 = vadd.f32 0.0, %v6400
    %v6402 = vpop.f32.mrf.mxu0
    %6403 = vmatprep.mubr.f32.mxu0 0.0
    %6404 = vmatmul.mubr.f32.gmra.mxu0 %v6332
    %v6405 = vpop.f32.mrf.mxu0
    %v6406 = vadd.f32 0.0, %v6405
    %v6407 = vpop.f32.mrf.mxu0
    %6408 = vdwg.mxu0
    %6409 = vrot.lane.b32.xlu0 %v242, 40
    %v6410 = vpop.permute.xlu0 %6409
    %6411 = vrot.lane.b32.xlu0 %v247, 40
    %v6412 = vpop.permute.xlu0 %6411
    %v6416 = vsel %vm1029, %v6212, 0
    %v6419 = vsel %vm1029, %v6214, 0
    %6421 = vmatprep.subr.mxu0 0.0
    %6422 = vmatpush1.msra.mxu0 0.0
    %6423 = vmatprep.subr.mxu0 0.0
    %6424 = vmatpush1.msra.mxu0 0.0
    %6425 = vmatprep.subr.mxu0 0.0
    %6426 = vmatpush1.msra.mxu0 0.0
    %6427 = vmatprep.subr.mxu0 0.0
    %6428 = vmatpush1.msra.mxu0 0.0
    %6429 = vmatprep.subr.mxu0 0.0
    %6430 = vmatpush1.msra.mxu0 0.0
    %6431 = vmatprep.subr.mxu0 0.0
    %6432 = vmatpush1.msra.mxu0 0.0
    %6433 = vmatprep.subr.mxu0 0.0
    %6434 = vmatpush1.msra.mxu0 0.0
    %6435 = vmatprep.subr.mxu0 0.0
    %6436 = vmatpush1.msra.mxu0 0.0
    %6437 = vmatprep.subr.mxu0 0.0
    %6438 = vmatpush1.msra.mxu0 0.0
    %6439 = vmatprep.subr.mxu0 0.0
    %6440 = vmatpush1.msra.mxu0 0.0
    %6441 = vmatprep.subr.mxu0 0.0
    %6442 = vmatpush1.msra.mxu0 0.0
    %6443 = vmatprep.subr.mxu0 0.0
    %6444 = vmatpush1.msra.mxu0 0.0
    %6445 = vmatprep.subr.mxu0 0.0
    %6446 = vmatpush1.msra.mxu0 0.0
    %6447 = vmatprep.subr.mxu0 0.0
    %6448 = vmatpush1.msra.mxu0 0.0
    %6449 = vmatprep.subr.mxu0 0.0
    %6450 = vmatpush1.msra.mxu0 %v6412
    %6451 = vmatprep.subr.mxu0 0.0
    %6452 = vmatpush1.msra.mxu0 %v6410
    %6453 = vmatprep.subr.mxu0 0.0
    %6454 = vmatpush2.msra.mxu0 0.0
    %6455 = vmatprep.subr.mxu0 0.0
    %6456 = vmatpush2.msra.mxu0 0.0
    %6457 = vmatprep.subr.mxu0 0.0
    %6458 = vmatpush2.msra.mxu0 0.0
    %6459 = vmatprep.subr.mxu0 0.0
    %6460 = vmatpush2.msra.mxu0 0.0
    %6461 = vmatprep.subr.mxu0 0.0
    %6462 = vmatpush2.msra.mxu0 0.0
    %6463 = vmatprep.subr.mxu0 0.0
    %6464 = vmatpush2.msra.mxu0 0.0
    %6465 = vmatprep.subr.mxu0 0.0
    %6466 = vmatpush2.msra.mxu0 0.0
    %6467 = vmatprep.subr.mxu0 0.0
    %6468 = vmatpush2.msra.mxu0 0.0
    %6469 = vmatprep.subr.mxu0 0.0
    %6470 = vmatpush2.msra.mxu0 0.0
    %6471 = vmatprep.subr.mxu0 0.0
    %6472 = vmatpush2.msra.mxu0 0.0
    %6473 = vmatprep.subr.mxu0 0.0
    %6474 = vmatpush2.msra.mxu0 0.0
    %6475 = vmatprep.subr.mxu0 0.0
    %6476 = vmatpush2.msra.mxu0 0.0
    %6477 = vmatprep.subr.mxu0 0.0
    %6478 = vmatpush2.msra.mxu0 0.0
    %6479 = vmatprep.subr.mxu0 0.0
    %6480 = vmatpush2.msra.mxu0 0.0
    %6481 = vmatprep.subr.mxu0 0.0
    %6482 = vmatpush2.msra.mxu0 0.0
    %6483 = vmatprep.subr.mxu0 0.0
    %6484 = vmatpush2.msra.mxu0 0.0
    %6485 = vmatprep.mubr.f32.mxu0 0.0
    %6486 = vmatmul.mubr.f32.gmra.mxu0 %v6416
    %v6487 = vpop.f32.mrf.mxu0
    %v6488 = vadd.f32 0.0, %v6487
    %v6489 = vpop.f32.mrf.mxu0
    %6490 = vmatprep.mubr.f32.mxu0 0.0
    %6491 = vmatmul.mubr.f32.gmra.mxu0 %v6419
    %v6492 = vpop.f32.mrf.mxu0
    %v6493 = vadd.f32 0.0, %v6492
    %v6494 = vpop.f32.mrf.mxu0
    %6495 = vdwg.mxu0
    %6496 = vrot.lane.b32.xlu0 %v252, 40
    %v6497 = vpop.permute.xlu0 %6496
    %6498 = vrot.lane.b32.xlu0 %v257, 40
    %v6499 = vpop.permute.xlu0 %6498
    %v6503 = vsel %vm1029, %v6216, 0
    %v6506 = vsel %vm1029, %v6218, 0
    %6508 = vmatprep.subr.mxu0 0.0
    %6509 = vmatpush1.msra.mxu0 0.0
    %6510 = vmatprep.subr.mxu0 0.0
    %6511 = vmatpush1.msra.mxu0 0.0
    %6512 = vmatprep.subr.mxu0 0.0
    %6513 = vmatpush1.msra.mxu0 0.0
    %6514 = vmatprep.subr.mxu0 0.0
    %6515 = vmatpush1.msra.mxu0 0.0
    %6516 = vmatprep.subr.mxu0 0.0
    %6517 = vmatpush1.msra.mxu0 0.0
    %6518 = vmatprep.subr.mxu0 0.0
    %6519 = vmatpush1.msra.mxu0 0.0
    %6520 = vmatprep.subr.mxu0 0.0
    %6521 = vmatpush1.msra.mxu0 0.0
    %6522 = vmatprep.subr.mxu0 0.0
    %6523 = vmatpush1.msra.mxu0 0.0
    %6524 = vmatprep.subr.mxu0 0.0
    %6525 = vmatpush1.msra.mxu0 0.0
    %6526 = vmatprep.subr.mxu0 0.0
    %6527 = vmatpush1.msra.mxu0 0.0
    %6528 = vmatprep.subr.mxu0 0.0
    %6529 = vmatpush1.msra.mxu0 0.0
    %6530 = vmatprep.subr.mxu0 0.0
    %6531 = vmatpush1.msra.mxu0 0.0
    %6532 = vmatprep.subr.mxu0 0.0
    %6533 = vmatpush1.msra.mxu0 0.0
    %6534 = vmatprep.subr.mxu0 0.0
    %6535 = vmatpush1.msra.mxu0 0.0
    %6536 = vmatprep.subr.mxu0 0.0
    %6537 = vmatpush1.msra.mxu0 %v6499
    %6538 = vmatprep.subr.mxu0 0.0
    %6539 = vmatpush1.msra.mxu0 %v6497
    %6540 = vmatprep.subr.mxu0 0.0
    %6541 = vmatpush2.msra.mxu0 0.0
    %6542 = vmatprep.subr.mxu0 0.0
    %6543 = vmatpush2.msra.mxu0 0.0
    %6544 = vmatprep.subr.mxu0 0.0
    %6545 = vmatpush2.msra.mxu0 0.0
    %6546 = vmatprep.subr.mxu0 0.0
    %6547 = vmatpush2.msra.mxu0 0.0
    %6548 = vmatprep.subr.mxu0 0.0
    %6549 = vmatpush2.msra.mxu0 0.0
    %6550 = vmatprep.subr.mxu0 0.0
    %6551 = vmatpush2.msra.mxu0 0.0
    %6552 = vmatprep.subr.mxu0 0.0
    %6553 = vmatpush2.msra.mxu0 0.0
    %6554 = vmatprep.subr.mxu0 0.0
    %6555 = vmatpush2.msra.mxu0 0.0
    %6556 = vmatprep.subr.mxu0 0.0
    %6557 = vmatpush2.msra.mxu0 0.0
    %6558 = vmatprep.subr.mxu0 0.0
    %6559 = vmatpush2.msra.mxu0 0.0
    %6560 = vmatprep.subr.mxu0 0.0
    %6561 = vmatpush2.msra.mxu0 0.0
    %6562 = vmatprep.subr.mxu0 0.0
    %6563 = vmatpush2.msra.mxu0 0.0
    %6564 = vmatprep.subr.mxu0 0.0
    %6565 = vmatpush2.msra.mxu0 0.0
    %6566 = vmatprep.subr.mxu0 0.0
    %6567 = vmatpush2.msra.mxu0 0.0
    %6568 = vmatprep.subr.mxu0 0.0
    %6569 = vmatpush2.msra.mxu0 0.0
    %6570 = vmatprep.subr.mxu0 0.0
    %6571 = vmatpush2.msra.mxu0 0.0
    %6572 = vmatprep.mubr.f32.mxu0 0.0
    %6573 = vmatmul.mubr.f32.gmra.mxu0 %v6503
    %v6574 = vpop.f32.mrf.mxu0
    %v6575 = vadd.f32 0.0, %v6574
    %v6576 = vpop.f32.mrf.mxu0
    %6577 = vmatprep.mubr.f32.mxu0 0.0
    %6578 = vmatmul.mubr.f32.gmra.mxu0 %v6506
    %v6579 = vpop.f32.mrf.mxu0
    %v6580 = vadd.f32 0.0, %v6579
    %v6581 = vpop.f32.mrf.mxu0
    %6582 = vdwg.mxu0
    %6583 = vrot.lane.b32.xlu0 %v262, 40
    %v6584 = vpop.permute.xlu0 %6583
    %6585 = vrot.lane.b32.xlu0 %v267, 40
    %v6586 = vpop.permute.xlu0 %6585
    %v6590 = vsel %vm1029, %v6220, 0
    %v6593 = vsel %vm1029, %v6222, 0
    %6595 = vmatprep.subr.mxu0 0.0
    %6596 = vmatpush1.msra.mxu0 0.0
    %6597 = vmatprep.subr.mxu0 0.0
    %6598 = vmatpush1.msra.mxu0 0.0
    %6599 = vmatprep.subr.mxu0 0.0
    %6600 = vmatpush1.msra.mxu0 0.0
    %6601 = vmatprep.subr.mxu0 0.0
    %6602 = vmatpush1.msra.mxu0 0.0
    %6603 = vmatprep.subr.mxu0 0.0
    %6604 = vmatpush1.msra.mxu0 0.0
    %6605 = vmatprep.subr.mxu0 0.0
    %6606 = vmatpush1.msra.mxu0 0.0
    %6607 = vmatprep.subr.mxu0 0.0
    %6608 = vmatpush1.msra.mxu0 0.0
    %6609 = vmatprep.subr.mxu0 0.0
    %6610 = vmatpush1.msra.mxu0 0.0
    %6611 = vmatprep.subr.mxu0 0.0
    %6612 = vmatpush1.msra.mxu0 0.0
    %6613 = vmatprep.subr.mxu0 0.0
    %6614 = vmatpush1.msra.mxu0 0.0
    %6615 = vmatprep.subr.mxu0 0.0
    %6616 = vmatpush1.msra.mxu0 0.0
    %6617 = vmatprep.subr.mxu0 0.0
    %6618 = vmatpush1.msra.mxu0 0.0
    %6619 = vmatprep.subr.mxu0 0.0
    %6620 = vmatpush1.msra.mxu0 0.0
    %6621 = vmatprep.subr.mxu0 0.0
    %6622 = vmatpush1.msra.mxu0 0.0
    %6623 = vmatprep.subr.mxu0 0.0
    %6624 = vmatpush1.msra.mxu0 %v6586
    %6625 = vmatprep.subr.mxu0 0.0
    %6626 = vmatpush1.msra.mxu0 %v6584
    %6627 = vmatprep.subr.mxu0 0.0
    %6628 = vmatpush2.msra.mxu0 0.0
    %6629 = vmatprep.subr.mxu0 0.0
    %6630 = vmatpush2.msra.mxu0 0.0
    %6631 = vmatprep.subr.mxu0 0.0
    %6632 = vmatpush2.msra.mxu0 0.0
    %6633 = vmatprep.subr.mxu0 0.0
    %6634 = vmatpush2.msra.mxu0 0.0
    %6635 = vmatprep.subr.mxu0 0.0
    %6636 = vmatpush2.msra.mxu0 0.0
    %6637 = vmatprep.subr.mxu0 0.0
    %6638 = vmatpush2.msra.mxu0 0.0
    %6639 = vmatprep.subr.mxu0 0.0
    %6640 = vmatpush2.msra.mxu0 0.0
    %6641 = vmatprep.subr.mxu0 0.0
    %6642 = vmatpush2.msra.mxu0 0.0
    %6643 = vmatprep.subr.mxu0 0.0
    %6644 = vmatpush2.msra.mxu0 0.0
    %6645 = vmatprep.subr.mxu0 0.0
    %6646 = vmatpush2.msra.mxu0 0.0
    %6647 = vmatprep.subr.mxu0 0.0
    %6648 = vmatpush2.msra.mxu0 0.0
    %6649 = vmatprep.subr.mxu0 0.0
    %6650 = vmatpush2.msra.mxu0 0.0
    %6651 = vmatprep.subr.mxu0 0.0
    %6652 = vmatpush2.msra.mxu0 0.0
    %6653 = vmatprep.subr.mxu0 0.0
    %6654 = vmatpush2.msra.mxu0 0.0
    %6655 = vmatprep.subr.mxu0 0.0
    %6656 = vmatpush2.msra.mxu0 0.0
    %6657 = vmatprep.subr.mxu0 0.0
    %6658 = vmatpush2.msra.mxu0 0.0
    %6659 = vmatprep.mubr.f32.mxu0 0.0
    %6660 = vmatmul.mubr.f32.gmra.mxu0 %v6590
    %v6661 = vpop.f32.mrf.mxu0
    %v6662 = vadd.f32 0.0, %v6661
    %v6663 = vpop.f32.mrf.mxu0
    %6664 = vmatprep.mubr.f32.mxu0 0.0
    %6665 = vmatmul.mubr.f32.gmra.mxu0 %v6593
    %v6666 = vpop.f32.mrf.mxu0
    %v6667 = vadd.f32 0.0, %v6666
    %v6668 = vpop.f32.mrf.mxu0
    %6669 = vdwg.mxu0
    %6670 = vrot.lane.b32.xlu0 %v272, 40
    %v6671 = vpop.permute.xlu0 %6670
    %6672 = vrot.lane.b32.xlu0 %v277, 40
    %v6673 = vpop.permute.xlu0 %6672
    %v6677 = vsel %vm1029, %v6224, 0
    %v6680 = vsel %vm1029, %v6226, 0
    %6682 = vmatprep.subr.mxu0 0.0
    %6683 = vmatpush1.msra.mxu0 0.0
    %6684 = vmatprep.subr.mxu0 0.0
    %6685 = vmatpush1.msra.mxu0 0.0
    %6686 = vmatprep.subr.mxu0 0.0
    %6687 = vmatpush1.msra.mxu0 0.0
    %6688 = vmatprep.subr.mxu0 0.0
    %6689 = vmatpush1.msra.mxu0 0.0
    %6690 = vmatprep.subr.mxu0 0.0
    %6691 = vmatpush1.msra.mxu0 0.0
    %6692 = vmatprep.subr.mxu0 0.0
    %6693 = vmatpush1.msra.mxu0 0.0
    %6694 = vmatprep.subr.mxu0 0.0
    %6695 = vmatpush1.msra.mxu0 0.0
    %6696 = vmatprep.subr.mxu0 0.0
    %6697 = vmatpush1.msra.mxu0 0.0
    %6698 = vmatprep.subr.mxu0 0.0
    %6699 = vmatpush1.msra.mxu0 0.0
    %6700 = vmatprep.subr.mxu0 0.0
    %6701 = vmatpush1.msra.mxu0 0.0
    %6702 = vmatprep.subr.mxu0 0.0
    %6703 = vmatpush1.msra.mxu0 0.0
    %6704 = vmatprep.subr.mxu0 0.0
    %6705 = vmatpush1.msra.mxu0 0.0
    %6706 = vmatprep.subr.mxu0 0.0
    %6707 = vmatpush1.msra.mxu0 0.0
    %6708 = vmatprep.subr.mxu0 0.0
    %6709 = vmatpush1.msra.mxu0 0.0
    %6710 = vmatprep.subr.mxu0 0.0
    %6711 = vmatpush1.msra.mxu0 %v6673
    %6712 = vmatprep.subr.mxu0 0.0
    %6713 = vmatpush1.msra.mxu0 %v6671
    %6714 = vmatprep.subr.mxu0 0.0
    %6715 = vmatpush2.msra.mxu0 0.0
    %6716 = vmatprep.subr.mxu0 0.0
    %6717 = vmatpush2.msra.mxu0 0.0
    %6718 = vmatprep.subr.mxu0 0.0
    %6719 = vmatpush2.msra.mxu0 0.0
    %6720 = vmatprep.subr.mxu0 0.0
    %6721 = vmatpush2.msra.mxu0 0.0
    %6722 = vmatprep.subr.mxu0 0.0
    %6723 = vmatpush2.msra.mxu0 0.0
    %6724 = vmatprep.subr.mxu0 0.0
    %6725 = vmatpush2.msra.mxu0 0.0
    %6726 = vmatprep.subr.mxu0 0.0
    %6727 = vmatpush2.msra.mxu0 0.0
    %6728 = vmatprep.subr.mxu0 0.0
    %6729 = vmatpush2.msra.mxu0 0.0
    %6730 = vmatprep.subr.mxu0 0.0
    %6731 = vmatpush2.msra.mxu0 0.0
    %6732 = vmatprep.subr.mxu0 0.0
    %6733 = vmatpush2.msra.mxu0 0.0
    %6734 = vmatprep.subr.mxu0 0.0
    %6735 = vmatpush2.msra.mxu0 0.0
    %6736 = vmatprep.subr.mxu0 0.0
    %6737 = vmatpush2.msra.mxu0 0.0
    %6738 = vmatprep.subr.mxu0 0.0
    %6739 = vmatpush2.msra.mxu0 0.0
    %6740 = vmatprep.subr.mxu0 0.0
    %6741 = vmatpush2.msra.mxu0 0.0
    %6742 = vmatprep.subr.mxu0 0.0
    %6743 = vmatpush2.msra.mxu0 0.0
    %6744 = vmatprep.subr.mxu0 0.0
    %6745 = vmatpush2.msra.mxu0 0.0
    %6746 = vmatprep.mubr.f32.mxu0 0.0
    %6747 = vmatmul.mubr.f32.gmra.mxu0 %v6677
    %v6748 = vpop.f32.mrf.mxu0
    %v6749 = vadd.f32 0.0, %v6748
    %v6750 = vpop.f32.mrf.mxu0
    %6751 = vmatprep.mubr.f32.mxu0 0.0
    %6752 = vmatmul.mubr.f32.gmra.mxu0 %v6680
    %v6753 = vpop.f32.mrf.mxu0
    %v6754 = vadd.f32 0.0, %v6753
    %v6755 = vpop.f32.mrf.mxu0
    %6756 = vdwg.mxu0
    %6757 = vrot.lane.b32.xlu0 %v282, 40
    %v6758 = vpop.permute.xlu0 %6757
    %6759 = vrot.lane.b32.xlu0 %v287, 40
    %v6760 = vpop.permute.xlu0 %6759
    %v6764 = vsel %vm1029, %v6228, 0
    %v6767 = vsel %vm1029, %v6230, 0
    %6769 = vmatprep.subr.mxu0 0.0
    %6770 = vmatpush1.msra.mxu0 0.0
    %6771 = vmatprep.subr.mxu0 0.0
    %6772 = vmatpush1.msra.mxu0 0.0
    %6773 = vmatprep.subr.mxu0 0.0
    %6774 = vmatpush1.msra.mxu0 0.0
    %6775 = vmatprep.subr.mxu0 0.0
    %6776 = vmatpush1.msra.mxu0 0.0
    %6777 = vmatprep.subr.mxu0 0.0
    %6778 = vmatpush1.msra.mxu0 0.0
    %6779 = vmatprep.subr.mxu0 0.0
    %6780 = vmatpush1.msra.mxu0 0.0
    %6781 = vmatprep.subr.mxu0 0.0
    %6782 = vmatpush1.msra.mxu0 0.0
    %6783 = vmatprep.subr.mxu0 0.0
    %6784 = vmatpush1.msra.mxu0 0.0
    %6785 = vmatprep.subr.mxu0 0.0
    %6786 = vmatpush1.msra.mxu0 0.0
    %6787 = vmatprep.subr.mxu0 0.0
    %6788 = vmatpush1.msra.mxu0 0.0
    %6789 = vmatprep.subr.mxu0 0.0
    %6790 = vmatpush1.msra.mxu0 0.0
    %6791 = vmatprep.subr.mxu0 0.0
    %6792 = vmatpush1.msra.mxu0 0.0
    %6793 = vmatprep.subr.mxu0 0.0
    %6794 = vmatpush1.msra.mxu0 0.0
    %6795 = vmatprep.subr.mxu0 0.0
    %6796 = vmatpush1.msra.mxu0 0.0
    %6797 = vmatprep.subr.mxu0 0.0
    %6798 = vmatpush1.msra.mxu0 %v6760
    %6799 = vmatprep.subr.mxu0 0.0
    %6800 = vmatpush1.msra.mxu0 %v6758
    %6801 = vmatprep.subr.mxu0 0.0
    %6802 = vmatpush2.msra.mxu0 0.0
    %6803 = vmatprep.subr.mxu0 0.0
    %6804 = vmatpush2.msra.mxu0 0.0
    %6805 = vmatprep.subr.mxu0 0.0
    %6806 = vmatpush2.msra.mxu0 0.0
    %6807 = vmatprep.subr.mxu0 0.0
    %6808 = vmatpush2.msra.mxu0 0.0
    %6809 = vmatprep.subr.mxu0 0.0
    %6810 = vmatpush2.msra.mxu0 0.0
    %6811 = vmatprep.subr.mxu0 0.0
    %6812 = vmatpush2.msra.mxu0 0.0
    %6813 = vmatprep.subr.mxu0 0.0
    %6814 = vmatpush2.msra.mxu0 0.0
    %6815 = vmatprep.subr.mxu0 0.0
    %6816 = vmatpush2.msra.mxu0 0.0
    %6817 = vmatprep.subr.mxu0 0.0
    %6818 = vmatpush2.msra.mxu0 0.0
    %6819 = vmatprep.subr.mxu0 0.0
    %6820 = vmatpush2.msra.mxu0 0.0
    %6821 = vmatprep.subr.mxu0 0.0
    %6822 = vmatpush2.msra.mxu0 0.0
    %6823 = vmatprep.subr.mxu0 0.0
    %6824 = vmatpush2.msra.mxu0 0.0
    %6825 = vmatprep.subr.mxu0 0.0
    %6826 = vmatpush2.msra.mxu0 0.0
    %6827 = vmatprep.subr.mxu0 0.0
    %6828 = vmatpush2.msra.mxu0 0.0
    %6829 = vmatprep.subr.mxu0 0.0
    %6830 = vmatpush2.msra.mxu0 0.0
    %6831 = vmatprep.subr.mxu0 0.0
    %6832 = vmatpush2.msra.mxu0 0.0
    %6833 = vmatprep.mubr.f32.mxu0 0.0
    %6834 = vmatmul.mubr.f32.gmra.mxu0 %v6764
    %v6835 = vpop.f32.mrf.mxu0
    %v6836 = vadd.f32 0.0, %v6835
    %v6837 = vpop.f32.mrf.mxu0
    %6838 = vmatprep.mubr.f32.mxu0 0.0
    %6839 = vmatmul.mubr.f32.gmra.mxu0 %v6767
    %v6840 = vpop.f32.mrf.mxu0
    %v6841 = vadd.f32 0.0, %v6840
    %v6842 = vpop.f32.mrf.mxu0
    %6843 = vdwg.mxu0
    %6844 = vrot.lane.b32.xlu0 %v292, 40
    %v6845 = vpop.permute.xlu0 %6844
    %6846 = vrot.lane.b32.xlu0 %v297, 40
    %v6847 = vpop.permute.xlu0 %6846
    %v6851 = vsel %vm1029, %v6232, 0
    %v6854 = vsel %vm1029, %v6234, 0
    %6856 = vmatprep.subr.mxu0 0.0
    %6857 = vmatpush1.msra.mxu0 0.0
    %6858 = vmatprep.subr.mxu0 0.0
    %6859 = vmatpush1.msra.mxu0 0.0
    %6860 = vmatprep.subr.mxu0 0.0
    %6861 = vmatpush1.msra.mxu0 0.0
    %6862 = vmatprep.subr.mxu0 0.0
    %6863 = vmatpush1.msra.mxu0 0.0
    %6864 = vmatprep.subr.mxu0 0.0
    %6865 = vmatpush1.msra.mxu0 0.0
    %6866 = vmatprep.subr.mxu0 0.0
    %6867 = vmatpush1.msra.mxu0 0.0
    %6868 = vmatprep.subr.mxu0 0.0
    %6869 = vmatpush1.msra.mxu0 0.0
    %6870 = vmatprep.subr.mxu0 0.0
    %6871 = vmatpush1.msra.mxu0 0.0
    %6872 = vmatprep.subr.mxu0 0.0
    %6873 = vmatpush1.msra.mxu0 0.0
    %6874 = vmatprep.subr.mxu0 0.0
    %6875 = vmatpush1.msra.mxu0 0.0
    %6876 = vmatprep.subr.mxu0 0.0
    %6877 = vmatpush1.msra.mxu0 0.0
    %6878 = vmatprep.subr.mxu0 0.0
    %6879 = vmatpush1.msra.mxu0 0.0
    %6880 = vmatprep.subr.mxu0 0.0
    %6881 = vmatpush1.msra.mxu0 0.0
    %6882 = vmatprep.subr.mxu0 0.0
    %6883 = vmatpush1.msra.mxu0 0.0
    %6884 = vmatprep.subr.mxu0 0.0
    %6885 = vmatpush1.msra.mxu0 %v6847
    %6886 = vmatprep.subr.mxu0 0.0
    %6887 = vmatpush1.msra.mxu0 %v6845
    %6888 = vmatprep.subr.mxu0 0.0
    %6889 = vmatpush2.msra.mxu0 0.0
    %6890 = vmatprep.subr.mxu0 0.0
    %6891 = vmatpush2.msra.mxu0 0.0
    %6892 = vmatprep.subr.mxu0 0.0
    %6893 = vmatpush2.msra.mxu0 0.0
    %6894 = vmatprep.subr.mxu0 0.0
    %6895 = vmatpush2.msra.mxu0 0.0
    %6896 = vmatprep.subr.mxu0 0.0
    %6897 = vmatpush2.msra.mxu0 0.0
    %6898 = vmatprep.subr.mxu0 0.0
    %6899 = vmatpush2.msra.mxu0 0.0
    %6900 = vmatprep.subr.mxu0 0.0
    %6901 = vmatpush2.msra.mxu0 0.0
    %6902 = vmatprep.subr.mxu0 0.0
    %6903 = vmatpush2.msra.mxu0 0.0
    %6904 = vmatprep.subr.mxu0 0.0
    %6905 = vmatpush2.msra.mxu0 0.0
    %6906 = vmatprep.subr.mxu0 0.0
    %6907 = vmatpush2.msra.mxu0 0.0
    %6908 = vmatprep.subr.mxu0 0.0
    %6909 = vmatpush2.msra.mxu0 0.0
    %6910 = vmatprep.subr.mxu0 0.0
    %6911 = vmatpush2.msra.mxu0 0.0
    %6912 = vmatprep.subr.mxu0 0.0
    %6913 = vmatpush2.msra.mxu0 0.0
    %6914 = vmatprep.subr.mxu0 0.0
    %6915 = vmatpush2.msra.mxu0 0.0
    %6916 = vmatprep.subr.mxu0 0.0
    %6917 = vmatpush2.msra.mxu0 0.0
    %6918 = vmatprep.subr.mxu0 0.0
    %6919 = vmatpush2.msra.mxu0 0.0
    %6920 = vmatprep.mubr.f32.mxu0 0.0
    %6921 = vmatmul.mubr.f32.gmra.mxu0 %v6851
    %v6922 = vpop.f32.mrf.mxu0
    %v6923 = vadd.f32 0.0, %v6922
    %v6924 = vpop.f32.mrf.mxu0
    %6925 = vmatprep.mubr.f32.mxu0 0.0
    %6926 = vmatmul.mubr.f32.gmra.mxu0 %v6854
    %v6927 = vpop.f32.mrf.mxu0
    %v6928 = vadd.f32 0.0, %v6927
    %v6929 = vpop.f32.mrf.mxu0
    %6930 = vdwg.mxu0
    %6947 = vrot.lane.b32.xlu0 %v6314, 24
    %v6948 = vpop.permute.xlu0 %6947
    %6949 = vrot.lane.b32.xlu0 %v6319, 24
    %v6950 = vpop.permute.xlu0 %6949
    %6951 = vrot.lane.b32.xlu0 %v6401, 24
    %v6952 = vpop.permute.xlu0 %6951
    %6953 = vrot.lane.b32.xlu0 %v6406, 24
    %v6954 = vpop.permute.xlu0 %6953
    %6955 = vrot.lane.b32.xlu0 %v6488, 24
    %v6956 = vpop.permute.xlu0 %6955
    %6957 = vrot.lane.b32.xlu0 %v6493, 24
    %v6958 = vpop.permute.xlu0 %6957
    %6959 = vrot.lane.b32.xlu0 %v6575, 24
    %v6960 = vpop.permute.xlu0 %6959
    %6961 = vrot.lane.b32.xlu0 %v6580, 24
    %v6962 = vpop.permute.xlu0 %6961
    %6963 = vrot.lane.b32.xlu0 %v6662, 24
    %v6964 = vpop.permute.xlu0 %6963
    %6965 = vrot.lane.b32.xlu0 %v6667, 24
    %v6966 = vpop.permute.xlu0 %6965
    %6967 = vrot.lane.b32.xlu0 %v6749, 24
    %v6968 = vpop.permute.xlu0 %6967
    %6969 = vrot.lane.b32.xlu0 %v6754, 24
    %v6970 = vpop.permute.xlu0 %6969
    %6971 = vrot.lane.b32.xlu0 %v6836, 24
    %v6972 = vpop.permute.xlu0 %6971
    %6973 = vrot.lane.b32.xlu0 %v6841, 24
    %v6974 = vpop.permute.xlu0 %6973
    %6975 = vrot.lane.b32.xlu0 %v6923, 24
    %v6976 = vpop.permute.xlu0 %6975
    %6977 = vrot.lane.b32.xlu0 %v6928, 24
    %v6978 = vpop.permute.xlu0 %6977
    %vm6995 = vcmask 261312
    %6996 = vst.msk [vmem:[#allocation2] sm:$0xff] %vm6995, %v6948
    %6997 = vst.msk [vmem:[#allocation2 + $0x8] sm:$0xff] %vm6995, %v6950
    %6998 = vst.msk [vmem:[#allocation2 + $0x10] sm:$0xff] %vm6995, %v6952
    %6999 = vst.msk [vmem:[#allocation2 + $0x18] sm:$0xff] %vm6995, %v6954
    %7000 = vst.msk [vmem:[#allocation2 + $0x20] sm:$0xff] %vm6995, %v6956
    %7001 = vst.msk [vmem:[#allocation2 + $0x28] sm:$0xff] %vm6995, %v6958
    %7002 = vst.msk [vmem:[#allocation2 + $0x30] sm:$0xff] %vm6995, %v6960
    %7003 = vst.msk [vmem:[#allocation2 + $0x38] sm:$0xff] %vm6995, %v6962
    %7004 = vst.msk [vmem:[#allocation2 + $0x40] sm:$0xff] %vm6995, %v6964
    %7005 = vst.msk [vmem:[#allocation2 + $0x48] sm:$0xff] %vm6995, %v6966
    %7006 = vst.msk [vmem:[#allocation2 + $0x50] sm:$0xff] %vm6995, %v6968
    %7007 = vst.msk [vmem:[#allocation2 + $0x58] sm:$0xff] %vm6995, %v6970
    %7008 = vst.msk [vmem:[#allocation2 + $0x60] sm:$0xff] %vm6995, %v6972
    %7009 = vst.msk [vmem:[#allocation2 + $0x68] sm:$0xff] %vm6995, %v6974
    %7010 = vst.msk [vmem:[#allocation2 + $0x70] sm:$0xff] %vm6995, %v6976
    %7011 = vst.msk [vmem:[#allocation2 + $0x78] sm:$0xff] %vm6995, %v6978
    %v7012 = vld [vmem:[#allocation2] sm:$0xff]
    %v7013 = vld [vmem:[#allocation2 + $0x8] sm:$0xff]
    %v7014 = vld [vmem:[#allocation2 + $0x10] sm:$0xff]
    %v7015 = vld [vmem:[#allocation2 + $0x18] sm:$0xff]
    %v7016 = vld [vmem:[#allocation2 + $0x20] sm:$0xff]
    %v7017 = vld [vmem:[#allocation2 + $0x28] sm:$0xff]
    %v7018 = vld [vmem:[#allocation2 + $0x30] sm:$0xff]
    %v7019 = vld [vmem:[#allocation2 + $0x38] sm:$0xff]
    %v7020 = vld [vmem:[#allocation2 + $0x40] sm:$0xff]
    %v7021 = vld [vmem:[#allocation2 + $0x48] sm:$0xff]
    %v7022 = vld [vmem:[#allocation2 + $0x50] sm:$0xff]
    %v7023 = vld [vmem:[#allocation2 + $0x58] sm:$0xff]
    %v7024 = vld [vmem:[#allocation2 + $0x60] sm:$0xff]
    %v7025 = vld [vmem:[#allocation2 + $0x68] sm:$0xff]
    %v7026 = vld [vmem:[#allocation2 + $0x70] sm:$0xff]
    %v7027 = vld [vmem:[#allocation2 + $0x78] sm:$0xff]
    %v7028 = vld [vmem:[#allocation8] sm:$0xff]
    %v7029 = vld [vmem:[#allocation8 + $0x8] sm:$0xff]
    %v7030 = vld [vmem:[#allocation8 + $0x10] sm:$0xff]
    %v7031 = vld [vmem:[#allocation8 + $0x18] sm:$0xff]
    %v7032 = vld [vmem:[%s4] sm:$0x1]
    %v7034 = vlaneseq
    %v7035 = vshrl.u32 %v7034, 7
    %v7036 = vsub.s32 0, %v7035
    %v7037 = vrot.slane %v7032, %v7036
    %v7040 = vsel %vm106, %v7012, 0
    %v7043 = vsel %vm106, %v7013, 0
    %v7046 = vsel %vm106, %v7014, 0
    %v7049 = vsel %vm106, %v7015, 0
    %v7052 = vsel %vm106, %v7016, 0
    %v7055 = vsel %vm106, %v7017, 0
    %v7058 = vsel %vm106, %v7018, 0
    %v7061 = vsel %vm106, %v7019, 0
    %v7064 = vsel %vm106, %v7020, 0
    %v7067 = vsel %vm106, %v7021, 0
    %v7070 = vsel %vm106, %v7022, 0
    %v7073 = vsel %vm106, %v7023, 0
    %v7076 = vsel %vm106, %v7024, 0
    %v7079 = vsel %vm106, %v7025, 0
    %v7082 = vsel %vm106, %v7026, 0
    %v7085 = vsel %vm106, %v7027, 0
    %7087 = vmatprep.subr.mxu0 0.0
    %7088 = vmatpush1.msra.mxu0 0.0
    %7089 = vmatprep.subr.mxu0 0.0
    %7090 = vmatpush1.msra.mxu0 0.0
    %7091 = vmatprep.subr.mxu0 0.0
    %7092 = vmatpush1.msra.mxu0 0.0
    %7093 = vmatprep.subr.mxu0 0.0
    %7094 = vmatpush1.msra.mxu0 0.0
    %7095 = vmatprep.subr.mxu0 0.0
    %7096 = vmatpush1.msra.mxu0 0.0
    %7097 = vmatprep.subr.mxu0 0.0
    %7098 = vmatpush1.msra.mxu0 0.0
    %7099 = vmatprep.subr.mxu0 0.0
    %7100 = vmatpush1.msra.mxu0 0.0
    %7101 = vmatprep.subr.mxu0 0.0
    %7102 = vmatpush1.msra.mxu0 0.0
    %7103 = vmatprep.subr.mxu0 0.0
    %7104 = vmatpush1.msra.mxu0 0.0
    %7105 = vmatprep.subr.mxu0 0.0
    %7106 = vmatpush1.msra.mxu0 0.0
    %7107 = vmatprep.subr.mxu0 0.0
    %7108 = vmatpush1.msra.mxu0 0.0
    %7109 = vmatprep.subr.mxu0 0.0
    %7110 = vmatpush1.msra.mxu0 0.0
    %7111 = vmatprep.subr.mxu0 0.0
    %7112 = vmatpush1.msra.mxu0 %v7031
    %7113 = vmatprep.subr.mxu0 0.0
    %7114 = vmatpush1.msra.mxu0 %v7030
    %7115 = vmatprep.subr.mxu0 0.0
    %7116 = vmatpush1.msra.mxu0 %v7029
    %7117 = vmatprep.subr.mxu0 0.0
    %7118 = vmatpush1.msra.mxu0 %v7028
    %7119 = vmatprep.subr.mxu0 0.0
    %7120 = vmatpush2.msra.mxu0 0.0
    %7121 = vmatprep.subr.mxu0 0.0
    %7122 = vmatpush2.msra.mxu0 0.0
    %7123 = vmatprep.subr.mxu0 0.0
    %7124 = vmatpush2.msra.mxu0 0.0
    %7125 = vmatprep.subr.mxu0 0.0
    %7126 = vmatpush2.msra.mxu0 0.0
    %7127 = vmatprep.subr.mxu0 0.0
    %7128 = vmatpush2.msra.mxu0 0.0
    %7129 = vmatprep.subr.mxu0 0.0
    %7130 = vmatpush2.msra.mxu0 0.0
    %7131 = vmatprep.subr.mxu0 0.0
    %7132 = vmatpush2.msra.mxu0 0.0
    %7133 = vmatprep.subr.mxu0 0.0
    %7134 = vmatpush2.msra.mxu0 0.0
    %7135 = vmatprep.subr.mxu0 0.0
    %7136 = vmatpush2.msra.mxu0 0.0
    %7137 = vmatprep.subr.mxu0 0.0
    %7138 = vmatpush2.msra.mxu0 0.0
    %7139 = vmatprep.subr.mxu0 0.0
    %7140 = vmatpush2.msra.mxu0 0.0
    %7141 = vmatprep.subr.mxu0 0.0
    %7142 = vmatpush2.msra.mxu0 0.0
    %7143 = vmatprep.subr.mxu0 0.0
    %7144 = vmatpush2.msra.mxu0 0.0
    %7145 = vmatprep.subr.mxu0 0.0
    %7146 = vmatpush2.msra.mxu0 0.0
    %7147 = vmatprep.subr.mxu0 0.0
    %7148 = vmatpush2.msra.mxu0 0.0
    %7149 = vmatprep.subr.mxu0 0.0
    %7150 = vmatpush2.msra.mxu0 0.0
    %7151 = vmatprep.mubr.f32.mxu0 0.0
    %7152 = vmatmul.mubr.f32.gmra.mxu0 %v7040
    %v7153 = vpop.f32.mrf.mxu0
    %v7154 = vadd.f32 %v7037, %v7153
    %v7155 = vpop.f32.mrf.mxu0
    %7156 = vmatprep.mubr.f32.mxu0 0.0
    %7157 = vmatmul.mubr.f32.gmra.mxu0 %v7043
    %v7158 = vpop.f32.mrf.mxu0
    %v7159 = vadd.f32 %v7037, %v7158
    %v7160 = vpop.f32.mrf.mxu0
    %7161 = vmatprep.mubr.f32.mxu0 0.0
    %7162 = vmatmul.mubr.f32.gmra.mxu0 %v7046
    %v7163 = vpop.f32.mrf.mxu0
    %v7164 = vadd.f32 %v7037, %v7163
    %v7165 = vpop.f32.mrf.mxu0
    %7166 = vmatprep.mubr.f32.mxu0 0.0
    %7167 = vmatmul.mubr.f32.gmra.mxu0 %v7049
    %v7168 = vpop.f32.mrf.mxu0
    %v7169 = vadd.f32 %v7037, %v7168
    %v7170 = vpop.f32.mrf.mxu0
    %7171 = vmatprep.mubr.f32.mxu0 0.0
    %7172 = vmatmul.mubr.f32.gmra.mxu0 %v7052
    %v7173 = vpop.f32.mrf.mxu0
    %v7174 = vadd.f32 %v7037, %v7173
    %v7175 = vpop.f32.mrf.mxu0
    %7176 = vmatprep.mubr.f32.mxu0 0.0
    %7177 = vmatmul.mubr.f32.gmra.mxu0 %v7055
    %v7178 = vpop.f32.mrf.mxu0
    %v7179 = vadd.f32 %v7037, %v7178
    %v7180 = vpop.f32.mrf.mxu0
    %7181 = vmatprep.mubr.f32.mxu0 0.0
    %7182 = vmatmul.mubr.f32.gmra.mxu0 %v7058
    %v7183 = vpop.f32.mrf.mxu0
    %v7184 = vadd.f32 %v7037, %v7183
    %v7185 = vpop.f32.mrf.mxu0
    %7186 = vmatprep.mubr.f32.mxu0 0.0
    %7187 = vmatmul.mubr.f32.gmra.mxu0 %v7061
    %v7188 = vpop.f32.mrf.mxu0
    %v7189 = vadd.f32 %v7037, %v7188
    %v7190 = vpop.f32.mrf.mxu0
    %7191 = vmatprep.mubr.f32.mxu0 0.0
    %7192 = vmatmul.mubr.f32.gmra.mxu0 %v7064
    %v7193 = vpop.f32.mrf.mxu0
    %v7194 = vadd.f32 %v7037, %v7193
    %v7195 = vpop.f32.mrf.mxu0
    %7196 = vmatprep.mubr.f32.mxu0 0.0
    %7197 = vmatmul.mubr.f32.gmra.mxu0 %v7067
    %v7198 = vpop.f32.mrf.mxu0
    %v7199 = vadd.f32 %v7037, %v7198
    %v7200 = vpop.f32.mrf.mxu0
    %7201 = vmatprep.mubr.f32.mxu0 0.0
    %7202 = vmatmul.mubr.f32.gmra.mxu0 %v7070
    %v7203 = vpop.f32.mrf.mxu0
    %v7204 = vadd.f32 %v7037, %v7203
    %v7205 = vpop.f32.mrf.mxu0
    %7206 = vmatprep.mubr.f32.mxu0 0.0
    %7207 = vmatmul.mubr.f32.gmra.mxu0 %v7073
    %v7208 = vpop.f32.mrf.mxu0
    %v7209 = vadd.f32 %v7037, %v7208
    %v7210 = vpop.f32.mrf.mxu0
    %7211 = vmatprep.mubr.f32.mxu0 0.0
    %7212 = vmatmul.mubr.f32.gmra.mxu0 %v7076
    %v7213 = vpop.f32.mrf.mxu0
    %v7214 = vadd.f32 %v7037, %v7213
    %v7215 = vpop.f32.mrf.mxu0
    %7216 = vmatprep.mubr.f32.mxu0 0.0
    %7217 = vmatmul.mubr.f32.gmra.mxu0 %v7079
    %v7218 = vpop.f32.mrf.mxu0
    %v7219 = vadd.f32 %v7037, %v7218
    %v7220 = vpop.f32.mrf.mxu0
    %7221 = vmatprep.mubr.f32.mxu0 0.0
    %7222 = vmatmul.mubr.f32.gmra.mxu0 %v7082
    %v7223 = vpop.f32.mrf.mxu0
    %v7224 = vadd.f32 %v7037, %v7223
    %v7225 = vpop.f32.mrf.mxu0
    %7226 = vmatprep.mubr.f32.mxu0 0.0
    %7227 = vmatmul.mubr.f32.gmra.mxu0 %v7085
    %v7228 = vpop.f32.mrf.mxu0
    %v7229 = vadd.f32 %v7037, %v7228
    %v7230 = vpop.f32.mrf.mxu0
    %7231 = vdwg.mxu0
    %7232 = vst.msk [vmem:[#allocation11] sm:$0xff] %vm106, %v7154
    %7233 = vst.msk [vmem:[#allocation11 + $0x8] sm:$0xff] %vm106, %v7159
    %7234 = vst.msk [vmem:[#allocation11 + $0x10] sm:$0xff] %vm106, %v7164
    %7235 = vst.msk [vmem:[#allocation11 + $0x18] sm:$0xff] %vm106, %v7169
    %7236 = vst.msk [vmem:[#allocation11 + $0x20] sm:$0xff] %vm106, %v7174
    %7237 = vst.msk [vmem:[#allocation11 + $0x28] sm:$0xff] %vm106, %v7179
    %7238 = vst.msk [vmem:[#allocation11 + $0x30] sm:$0xff] %vm106, %v7184
    %7239 = vst.msk [vmem:[#allocation11 + $0x38] sm:$0xff] %vm106, %v7189
    %7240 = vst.msk [vmem:[#allocation11 + $0x40] sm:$0xff] %vm106, %v7194
    %7241 = vst.msk [vmem:[#allocation11 + $0x48] sm:$0xff] %vm106, %v7199
    %7242 = vst.msk [vmem:[#allocation11 + $0x50] sm:$0xff] %vm106, %v7204
    %7243 = vst.msk [vmem:[#allocation11 + $0x58] sm:$0xff] %vm106, %v7209
    %7244 = vst.msk [vmem:[#allocation11 + $0x60] sm:$0xff] %vm106, %v7214
    %7245 = vst.msk [vmem:[#allocation11 + $0x68] sm:$0xff] %vm106, %v7219
    %7246 = vst.msk [vmem:[#allocation11 + $0x70] sm:$0xff] %vm106, %v7224
    %7247 = vst.msk [vmem:[#allocation11 + $0x78] sm:$0xff] %vm106, %v7229
    // Predicated region
    $region42: #{tpu_custom_call.1} parent=1 // pred_check
      _
    $region43: #{tpu_custom_call.1} parent=1 // pred_check_branch
      %7249 = sbr.rel (0) target = $region45
    $region44: #{tpu_custom_call.1} parent=1 // pred_region
      %s7251 = ssub.s32 2048, 2048
      %7252 = vsyncadd [#allocation5], %s7251
      %s7253 = sshll.u32 [#allocation11], 4
      %s7254 = int_to_ptr.vmem [resolvable:$true] %s7253
      %7259 = dma.vmem_to_hbm [thread:$0]  %s7254, 2048, %s6, [#allocation5], 128, 128, 8
    $region45: #{tpu_custom_call.1} parent=1 // pred_fallthru
      _
    // Predicated region
    $region46: #{tpu_custom_call.1} parent=1 // pred_check
      _
    $region47: #{tpu_custom_call.1} parent=1 // pred_check_branch
      %7261 = sbr.rel (0) target = $region49
    $region48: #{tpu_custom_call.1} parent=1 // pred_region
      %7262 = dma.done [#allocation5], 2048
    $region49: #{tpu_custom_call.1} parent=1 // pred_fallthru
      _
    %7263 = vsyncpa [#allocation4], 1
    %7264 = vsyncpa [#allocation7], 1
    %7265 = vsyncpa [#allocation10], 1
    %7266 = vsyncpa [#allocation5], 1

</llo_original>
